<compile_context>
chip_gen: v6e
topology: v6e:2x2x1
jax: 0.10.0
libtpu: 0.0.40
codegen_flags: <defaults>
</compile_context>

<pallas_src>
import functools

import numpy as np
import jax
import jax.numpy as jnp
from jax.experimental import pallas as pl
from jax.experimental.pallas import tpu as pltpu

EPS = 1e-5
VMEM_LIMIT = 32 * 1024 * 1024   # fits v7x's 64 MiB/TC budget with headroom


# --------------------------------------------------------------------------- #
# Kernel A: fused conv1 + BN + ReLU + pool + conv2 + BN + ReLU + pool
# --------------------------------------------------------------------------- #
def _features_kernel(x_ref, m1_ref, sh1_ref, m2_ref, sh2_ref, o_ref, x2_ref):
    # x_ref : (1, 2, 15, 30) bf16  -- padded 30x30 image, rows split by parity
    # m1_ref: (2, 3, 30, 448) bf16 -- conv1 band weights [col_parity, di, wp, w2*32+c]
    # m2_ref: (2, 3, 512, 448) bf16-- conv2 band weights [col_parity, di, wp*32+ci, w2*64+c]
    # o_ref : (1, 7, 512) f32      -- pooled conv2 features (h2, w2*64+c), cols 448:512 = 0
    # x2_ref: (16, 512) f32 scratch-- zero-padded conv2 input (hp, wp*32+ci)
    xe = x_ref[0, 0]          # rows 0,2,...,28 of the padded image   (15, 30)
    xo = x_ref[0, 1]          # rows 1,3,...,29                        (15, 30)

    # ---- conv1 (+BN scale folded) with 2x2 pooling via parity decomposition ----
    def conv1_combo(rh, rw):
        acc = None
        for di in range(3):
            q = rh + di                       # padded-row offset 2*h2 + q
            src = xe if q % 2 == 0 else xo
            a = q // 2
            lhs = src[a:a + 14, :]            # (14, 30) bf16
            t = jnp.dot(lhs, m1_ref[rw, di],
                        preferred_element_type=jnp.float32)   # (14, 448) f32
            acc = t if acc is None else acc + t
        return acc

    p1 = jnp.maximum(jnp.maximum(conv1_combo(0, 0), conv1_combo(0, 1)),
                     jnp.maximum(conv1_combo(1, 0), conv1_combo(1, 1)))
    p1 = jnp.maximum(p1 + sh1_ref[...], 0.0)          # (14, 448): pooled conv1, (h2, w2*32+c)

    # ---- build zero-padded conv2 input in VMEM scratch (no HBM round trip) ----
    x2_ref[...] = jnp.zeros((16, 512), jnp.float32)
    x2_ref[1:15, 32:480] = p1

    x2 = x2_ref[...].astype(jnp.bfloat16)             # (16, 512)

    # ---- conv2 (+BN scale folded), horizontal pooling folded into the weights ----
    def conv2_half(rw):
        acc = None
        for di in range(3):
            lhs = x2[di:di + 14, :]                   # (14, 512)
            t = jnp.dot(lhs, m2_ref[rw, di],
                        preferred_element_type=jnp.float32)   # (14, 448)
            acc = t if acc is None else acc + t
        return acc

    h2 = jnp.maximum(jnp.maximum(conv2_half(0), conv2_half(1)) + sh2_ref[...], 0.0)

    # ---- vertical 2x2 pooling + lane-dense store ----
    o_ref[...] = jnp.zeros((1, 7, 512), jnp.float32)
    for a in range(7):
        row = jnp.maximum(h2[2 * a:2 * a + 1, :], h2[2 * a + 1:2 * a + 2, :])   # (1, 448)
        o_ref[0:1, a:a + 1, 0:448] = row.reshape(1, 1, 448)


def _conv_features(xsplit, p):
    n = xsplit.shape[0]
    return pl.pallas_call(
        _features_kernel,
        out_shape=jax.ShapeDtypeStruct((n, 7, 512), jnp.float32),
        grid=(n,),
        in_specs=[
            pl.BlockSpec((1, 2, 15, 30), lambda i: (i, 0, 0, 0)),
            pl.BlockSpec((2, 3, 30, 448), lambda i: (0, 0, 0, 0)),
            pl.BlockSpec((1, 448), lambda i: (0, 0)),
            pl.BlockSpec((2, 3, 512, 448), lambda i: (0, 0, 0, 0)),
            pl.BlockSpec((1, 448), lambda i: (0, 0)),
        ],
        out_specs=pl.BlockSpec((1, 7, 512), lambda i: (i, 0, 0)),
        scratch_shapes=[pltpu.VMEM((16, 512), jnp.float32)],
        compiler_params=pltpu.CompilerParams(
            dimension_semantics=("parallel",),
            vmem_limit_bytes=VMEM_LIMIT),
    )(xsplit, p["m1"], p["sh1"], p["m2"], p["sh2"])


# --------------------------------------------------------------------------- #
# Kernel B: fused fc1 + BN1d + ReLU (+Dropout eval=identity) + fc2
# --------------------------------------------------------------------------- #
def _classifier_kernel(x_ref, w1_ref, s3_ref, w2_ref, b2_ref, o_ref, acc_ref):
    k = pl.program_id(1)

    @pl.when(k == 0)
    def _init():
        acc_ref[...] = jnp.zeros_like(acc_ref)

    x = x_ref[...].astype(jnp.bfloat16)                     # (bm, 512)
    acc_ref[...] += jnp.dot(x, w1_ref[...],
                            preferred_element_type=jnp.float32)

    @pl.when(k == pl.num_programs(1) - 1)
    def _finalize():
        h = jnp.maximum(acc_ref[...] + s3_ref[...], 0.0)
        # TODO(synk): Dropout(0.5) and train-mode BatchNorm (batch stats) are not
        # modeled; eval-mode semantics are used.
        o_ref[...] = jnp.dot(h.astype(jnp.bfloat16), w2_ref[...],
                             preferred_element_type=jnp.float32) + b2_ref[...]


def _batch_tile(n):
    if n % 8 != 0:
        return n                       # block == full batch dim (allowed)
    for cand in (128, 64, 32, 16, 8):
        if n % cand == 0:
            return cand
    return 8


def _classifier(feats2, p):
    n = feats2.shape[0]
    bm = _batch_tile(n)
    return pl.pallas_call(
        _classifier_kernel,
        out_shape=jax.ShapeDtypeStruct((n, 128), jnp.float32),
        grid=(n // bm, 7),
        in_specs=[
            pl.BlockSpec((bm, 512), lambda m, k: (m, k)),
            pl.BlockSpec((512, 512), lambda m, k: (k, 0)),
            pl.BlockSpec((1, 512), lambda m, k: (0, 0)),
            pl.BlockSpec((512, 128), lambda m, k: (0, 0)),
            pl.BlockSpec((1, 128), lambda m, k: (0, 0)),
        ],
        out_specs=pl.BlockSpec((bm, 128), lambda m, k: (m, 0)),
        scratch_shapes=[pltpu.VMEM((bm, 512), jnp.float32)],
        compiler_params=pltpu.CompilerParams(
            dimension_semantics=("parallel", "arbitrary"),
            vmem_limit_bytes=VMEM_LIMIT),
    )(feats2, p["w1p"], p["sh3"], p["w2p"], p["b2p"])


# --------------------------------------------------------------------------- #
# Parameter construction (BN folding, band matrices, flatten permutation)
# --------------------------------------------------------------------------- #
def _np_bf16(w):
    return np.asarray(w.astype(jnp.bfloat16).astype(jnp.float32))


def _pooled_band_matrices(w_hwio, wp_len, wo):
    """Build the (2, 3, wp_len*cin, wo*cout) band matrices that turn a 3x3 SAME conv
    (with horizontal 2x2 pooling handled by the column-parity split) into matmuls."""
    kh, kw, cin, cout = w_hwio.shape
    bands = np.zeros((2, kh, wp_len * cin, wo * cout), np.float32)
    for rw in range(2):
        for di in range(kh):
            for w2 in range(wo):
                for dj in range(kw):
                    wp = 2 * w2 + rw + dj
                    bands[rw, di, wp * cin:(wp + 1) * cin,
                          w2 * cout:(w2 + 1) * cout] = w_hwio[di, dj]
    return bands


def init_params(key):
    ks = jax.random.split(key, 14)

    def nrm(k, shape, s=0.05):
        return s * jax.random.normal(k, shape, dtype=jnp.float32)

    # raw "torch-like" parameters
    w1 = nrm(ks[0], (3, 3, 1, 32));      b1 = nrm(ks[1], (32,))
    g1 = 1.0 + nrm(ks[2], (32,));        be1 = nrm(ks[3], (32,))
    w2 = nrm(ks[4], (3, 3, 32, 64));     b2 = nrm(ks[5], (64,))
    g2 = 1.0 + nrm(ks[6], (64,));        be2 = nrm(ks[7], (64,))
    fw1 = nrm(ks[8], (3136, 512), 0.02); fb1 = nrm(ks[9], (512,))
    g3 = 1.0 + nrm(ks[10], (512,));      be3 = nrm(ks[11], (512,))
    fw2 = nrm(ks[12], (512, 10), 0.02);  fb2 = nrm(ks[13], (10,))

    # eval-mode BN folding (running_mean=0, running_var=1), scale folded into weights
    s1 = g1 / jnp.sqrt(1.0 + EPS); sh1 = be1 + s1 * b1
    s2 = g2 / jnp.sqrt(1.0 + EPS); sh2 = be2 + s2 * b2
    s3 = g3 / jnp.sqrt(1.0 + EPS); sh3 = be3 + s3 * fb1
    w1s = w1 * s1
    w2s = w2 * s2
    fw1s = fw1 * s3[None, :]

    # ---- kernel-layout parameters ----
    m1 = jnp.asarray(_pooled_band_matrices(_np_bf16(w1s), 30, 14)).astype(jnp.bfloat16)
    m2 = jnp.asarray(_pooled_band_matrices(_np_bf16(w2s), 16, 7)).astype(jnp.bfloat16)
    sh1_row = jnp.tile(sh1, 14).reshape(1, 448)
    sh2_row = jnp.tile(sh2, 7).reshape(1, 448)

    # fc1: permute rows from torch NCHW flatten (c*49+h*7+w) to the kernel's
    # NHWC-flat emission order (h*512 + w*64 + c), zero-padding each 448 block to 512.
    wt = fw1s.reshape(64, 7, 7, 512)
    wt = jnp.transpose(wt, (1, 2, 0, 3)).reshape(7, 448, 512)
    wt = jnp.pad(wt, ((0, 0), (0, 64), (0, 0))).reshape(3584, 512)
    w1p = wt.astype(jnp.bfloat16)

    # fc2: pad outputs to 128 lanes (zero columns) for lane-dense stores
    w2p = jnp.pad(fw2, ((0, 0), (0, 118))).astype(jnp.bfloat16)
    b2p = jnp.pad(fb2, (0, 118)).reshape(1, 128)

    kparams = dict(m1=m1, sh1=sh1_row, m2=m2, sh2=sh2_row,
                   w1p=w1p, sh3=sh3.reshape(1, 512), w2p=w2p, b2p=b2p)
    rparams = dict(w1=w1s, sh1=sh1, w2=w2s, sh2=sh2,
                   fw1=fw1s, sh3=sh3, fw2=fw2, fb2=fb2)
    return kparams, rparams


# --------------------------------------------------------------------------- #
# Forward passes
# --------------------------------------------------------------------------- #
def forward(params, x_nchw):
    n = x_nchw.shape[0]
    x = x_nchw.reshape(n, 28, 28)                                   # Cin == 1
    xp = jnp.pad(x, ((0, 0), (1, 1), (1, 1)))                       # (N, 30, 30)
    xsplit = jnp.stack([xp[:, 0::2, :], xp[:, 1::2, :]],
                       axis=1).astype(jnp.bfloat16)                 # (N, 2, 15, 30)
    feats = _conv_features(xsplit, params)                          # (N, 7, 512)
    logits = _classifier(feats.reshape(n, 7 * 512), params)         # (N, 128)
    return logits[:, :10]


def reference_forward(rp, x_nchw):
    """Pure-JAX reference with identical folding / bf16 casting points."""
    n = x_nchw.shape[0]

    def conv(x, w):
        return jax.lax.conv_general_dilated(
            x.astype(jnp.bfloat16), w.astype(jnp.bfloat16),
            window_strides=(1, 1), padding="SAME",
            dimension_numbers=("NHWC", "HWIO", "NHWC"),
            preferred_element_type=jnp.float32)

    def pool(y):
        nb, h, w, c = y.shape
        return jnp.max(y.reshape(nb, h // 2, 2, w // 2, 2, c), axis=(2, 4))

    x = jnp.transpose(x_nchw, (0, 2, 3, 1))
    y = jnp.maximum(conv(x, rp["w1"]) + rp["sh1"], 0.0)
    y = pool(y).astype(jnp.bfloat16)                                # (N,14,14,32)
    y = jnp.maximum(conv(y, rp["w2"]) + rp["sh2"], 0.0)
    y = pool(y).astype(jnp.bfloat16)                                # (N,7,7,64)
    flat = jnp.transpose(y, (0, 3, 1, 2)).reshape(n, -1)            # torch NCHW flatten
    h = jnp.dot(flat.astype(jnp.bfloat16), rp["fw1"].astype(jnp.bfloat16),
                preferred_element_type=jnp.float32) + rp["sh3"]
    h = jnp.maximum(h, 0.0).astype(jnp.bfloat16)
    return jnp.dot(h, rp["fw2"].astype(jnp.bfloat16),
                   preferred_element_type=jnp.float32) + rp["fb2"]


if __name__ == "__main__":
    key = jax.random.PRNGKey(0)
    kx, kp = jax.random.split(key)
    x = jax.random.normal(kx, (2, 1, 28, 28), dtype=jnp.float32)    # NCHW like PyTorch
    kparams, rparams = init_params(kp)

    out = jax.block_until_ready(jax.jit(forward)(kparams, x))
    assert out.shape == (2, 10) and out.dtype == jnp.float32
    assert bool(jnp.all(jnp.isfinite(out)))

    ref = jax.block_until_ready(jax.jit(reference_forward)(rparams, x))
    assert jnp.allclose(out, ref, atol=1e-2, rtol=1e-2), (out, ref)

    print("KERNEL_OK")
</pallas_src>

<mosaic_0001>
module attributes {stable_mosaic.version = 11 : i64} {
  func.func @_features_kernel(%arg0: i32, %arg1: memref<1x2x15x30xbf16, #tpu.memory_space<vmem>>, %arg2: memref<2x3x30x448xbf16, #tpu.memory_space<vmem>>, %arg3: memref<1x448xf32, #tpu.memory_space<vmem>>, %arg4: memref<2x3x512x448xbf16, #tpu.memory_space<vmem>>, %arg5: memref<1x448xf32, #tpu.memory_space<vmem>>, %arg6: memref<1x7x512xf32, #tpu.memory_space<vmem>>, %arg7: memref<16x512xf32, #tpu.memory_space<vmem>>) attributes {dimension_semantics = [#tpu.dimension_semantics<parallel>], iteration_bounds = array<i64: 2>, scalar_prefetch = 0 : i64, scratch_operands = 1 : i64, tpu.core_type = #tpu.core_type<tc>, window_params = [{transform_indices = @transform_0, window_bounds = array<i64: 1, 2, 15, 30>}, {pipeline_mode = #tpu.pipeline_mode<synchronous>, transform_indices = @transform_1, window_bounds = array<i64: 2, 3, 30, 448>}, {pipeline_mode = #tpu.pipeline_mode<synchronous>, transform_indices = @transform_2, window_bounds = array<i64: 1, 448>}, {pipeline_mode = #tpu.pipeline_mode<synchronous>, transform_indices = @transform_3, window_bounds = array<i64: 2, 3, 512, 448>}, {pipeline_mode = #tpu.pipeline_mode<synchronous>, transform_indices = @transform_4, window_bounds = array<i64: 1, 448>}, {transform_indices = @transform_5, window_bounds = array<i64: 1, 7, 512>}]} {
    %c0 = arith.constant 0 : index
    %c0_0 = arith.constant 0 : index
    %c0_1 = arith.constant 0 : index
    %c0_2 = arith.constant 0 : index
    %0 = vector.load %arg1[%c0, %c0_0, %c0_1, %c0_2] : memref<1x2x15x30xbf16, #tpu.memory_space<vmem>>, vector<1x1x15x30xbf16>
    %1 = vector.shape_cast %0 : vector<1x1x15x30xbf16> to vector<15x30xbf16>
    %c0_3 = arith.constant 0 : index
    %c1 = arith.constant 1 : index
    %c0_4 = arith.constant 0 : index
    %c0_5 = arith.constant 0 : index
    %2 = vector.load %arg1[%c0_3, %c1, %c0_4, %c0_5] : memref<1x2x15x30xbf16, #tpu.memory_space<vmem>>, vector<1x1x15x30xbf16>
    %3 = vector.shape_cast %2 : vector<1x1x15x30xbf16> to vector<15x30xbf16>
    %4 = vector.extract_strided_slice %1 {offsets = [0, 0], sizes = [14, 30], strides = [1, 1]} : vector<15x30xbf16> to vector<14x30xbf16>
    %c0_6 = arith.constant 0 : index
    %c0_7 = arith.constant 0 : index
    %c0_8 = arith.constant 0 : index
    %c0_9 = arith.constant 0 : index
    %5 = vector.load %arg2[%c0_6, %c0_7, %c0_8, %c0_9] : memref<2x3x30x448xbf16, #tpu.memory_space<vmem>>, vector<1x1x30x448xbf16>
    %6 = vector.shape_cast %5 : vector<1x1x30x448xbf16> to vector<30x448xbf16>
    %cst = arith.constant dense<0.000000e+00> : vector<14x448xf32>
    %7 = tpu.matmul %4, %6, %cst {dimension_numbers = #tpu.dot_dimension_numbers<[1], [0], [0], [1], [0, 0, 1, 1], [], []>} : vector<14x30xbf16>, vector<30x448xbf16>, vector<14x448xf32> -> vector<14x448xf32>
    %8 = vector.extract_strided_slice %3 {offsets = [0, 0], sizes = [14, 30], strides = [1, 1]} : vector<15x30xbf16> to vector<14x30xbf16>
    %c0_10 = arith.constant 0 : index
    %c1_11 = arith.constant 1 : index
    %c0_12 = arith.constant 0 : index
    %c0_13 = arith.constant 0 : index
    %9 = vector.load %arg2[%c0_10, %c1_11, %c0_12, %c0_13] : memref<2x3x30x448xbf16, #tpu.memory_space<vmem>>, vector<1x1x30x448xbf16>
    %10 = vector.shape_cast %9 : vector<1x1x30x448xbf16> to vector<30x448xbf16>
    %cst_14 = arith.constant dense<0.000000e+00> : vector<14x448xf32>
    %11 = tpu.matmul %8, %10, %cst_14 {dimension_numbers = #tpu.dot_dimension_numbers<[1], [0], [0], [1], [0, 0, 1, 1], [], []>} : vector<14x30xbf16>, vector<30x448xbf16>, vector<14x448xf32> -> vector<14x448xf32>
    %12 = arith.addf %7, %11 : vector<14x448xf32>
    %13 = vector.extract_strided_slice %1 {offsets = [1, 0], sizes = [14, 30], strides = [1, 1]} : vector<15x30xbf16> to vector<14x30xbf16>
    %c0_15 = arith.constant 0 : index
    %c2 = arith.constant 2 : index
    %c0_16 = arith.constant 0 : index
    %c0_17 = arith.constant 0 : index
    %14 = vector.load %arg2[%c0_15, %c2, %c0_16, %c0_17] : memref<2x3x30x448xbf16, #tpu.memory_space<vmem>>, vector<1x1x30x448xbf16>
    %15 = vector.shape_cast %14 : vector<1x1x30x448xbf16> to vector<30x448xbf16>
    %cst_18 = arith.constant dense<0.000000e+00> : vector<14x448xf32>
    %16 = tpu.matmul %13, %15, %cst_18 {dimension_numbers = #tpu.dot_dimension_numbers<[1], [0], [0], [1], [0, 0, 1, 1], [], []>} : vector<14x30xbf16>, vector<30x448xbf16>, vector<14x448xf32> -> vector<14x448xf32>
    %17 = arith.addf %12, %16 : vector<14x448xf32>
    %18 = vector.extract_strided_slice %1 {offsets = [0, 0], sizes = [14, 30], strides = [1, 1]} : vector<15x30xbf16> to vector<14x30xbf16>
    %c1_19 = arith.constant 1 : index
    %c0_20 = arith.constant 0 : index
    %c0_21 = arith.constant 0 : index
    %c0_22 = arith.constant 0 : index
    %19 = vector.load %arg2[%c1_19, %c0_20, %c0_21, %c0_22] : memref<2x3x30x448xbf16, #tpu.memory_space<vmem>>, vector<1x1x30x448xbf16>
    %20 = vector.shape_cast %19 : vector<1x1x30x448xbf16> to vector<30x448xbf16>
    %cst_23 = arith.constant dense<0.000000e+00> : vector<14x448xf32>
    %21 = tpu.matmul %18, %20, %cst_23 {dimension_numbers = #tpu.dot_dimension_numbers<[1], [0], [0], [1], [0, 0, 1, 1], [], []>} : vector<14x30xbf16>, vector<30x448xbf16>, vector<14x448xf32> -> vector<14x448xf32>
    %22 = vector.extract_strided_slice %3 {offsets = [0, 0], sizes = [14, 30], strides = [1, 1]} : vector<15x30xbf16> to vector<14x30xbf16>
    %c1_24 = arith.constant 1 : index
    %c1_25 = arith.constant 1 : index
    %c0_26 = arith.constant 0 : index
    %c0_27 = arith.constant 0 : index
    %23 = vector.load %arg2[%c1_24, %c1_25, %c0_26, %c0_27] : memref<2x3x30x448xbf16, #tpu.memory_space<vmem>>, vector<1x1x30x448xbf16>
    %24 = vector.shape_cast %23 : vector<1x1x30x448xbf16> to vector<30x448xbf16>
    %cst_28 = arith.constant dense<0.000000e+00> : vector<14x448xf32>
    %25 = tpu.matmul %22, %24, %cst_28 {dimension_numbers = #tpu.dot_dimension_numbers<[1], [0], [0], [1], [0, 0, 1, 1], [], []>} : vector<14x30xbf16>, vector<30x448xbf16>, vector<14x448xf32> -> vector<14x448xf32>
    %26 = arith.addf %21, %25 : vector<14x448xf32>
    %27 = vector.extract_strided_slice %1 {offsets = [1, 0], sizes = [14, 30], strides = [1, 1]} : vector<15x30xbf16> to vector<14x30xbf16>
    %c1_29 = arith.constant 1 : index
    %c2_30 = arith.constant 2 : index
    %c0_31 = arith.constant 0 : index
    %c0_32 = arith.constant 0 : index
    %28 = vector.load %arg2[%c1_29, %c2_30, %c0_31, %c0_32] : memref<2x3x30x448xbf16, #tpu.memory_space<vmem>>, vector<1x1x30x448xbf16>
    %29 = vector.shape_cast %28 : vector<1x1x30x448xbf16> to vector<30x448xbf16>
    %cst_33 = arith.constant dense<0.000000e+00> : vector<14x448xf32>
    %30 = tpu.matmul %27, %29, %cst_33 {dimension_numbers = #tpu.dot_dimension_numbers<[1], [0], [0], [1], [0, 0, 1, 1], [], []>} : vector<14x30xbf16>, vector<30x448xbf16>, vector<14x448xf32> -> vector<14x448xf32>
    %31 = arith.addf %26, %30 : vector<14x448xf32>
    %32 = arith.maximumf %17, %31 : vector<14x448xf32>
    %33 = vector.extract_strided_slice %3 {offsets = [0, 0], sizes = [14, 30], strides = [1, 1]} : vector<15x30xbf16> to vector<14x30xbf16>
    %c0_34 = arith.constant 0 : index
    %c0_35 = arith.constant 0 : index
    %c0_36 = arith.constant 0 : index
    %c0_37 = arith.constant 0 : index
    %34 = vector.load %arg2[%c0_34, %c0_35, %c0_36, %c0_37] : memref<2x3x30x448xbf16, #tpu.memory_space<vmem>>, vector<1x1x30x448xbf16>
    %35 = vector.shape_cast %34 : vector<1x1x30x448xbf16> to vector<30x448xbf16>
    %cst_38 = arith.constant dense<0.000000e+00> : vector<14x448xf32>
    %36 = tpu.matmul %33, %35, %cst_38 {dimension_numbers = #tpu.dot_dimension_numbers<[1], [0], [0], [1], [0, 0, 1, 1], [], []>} : vector<14x30xbf16>, vector<30x448xbf16>, vector<14x448xf32> -> vector<14x448xf32>
    %37 = vector.extract_strided_slice %1 {offsets = [1, 0], sizes = [14, 30], strides = [1, 1]} : vector<15x30xbf16> to vector<14x30xbf16>
    %c0_39 = arith.constant 0 : index
    %c1_40 = arith.constant 1 : index
    %c0_41 = arith.constant 0 : index
    %c0_42 = arith.constant 0 : index
    %38 = vector.load %arg2[%c0_39, %c1_40, %c0_41, %c0_42] : memref<2x3x30x448xbf16, #tpu.memory_space<vmem>>, vector<1x1x30x448xbf16>
    %39 = vector.shape_cast %38 : vector<1x1x30x448xbf16> to vector<30x448xbf16>
    %cst_43 = arith.constant dense<0.000000e+00> : vector<14x448xf32>
    %40 = tpu.matmul %37, %39, %cst_43 {dimension_numbers = #tpu.dot_dimension_numbers<[1], [0], [0], [1], [0, 0, 1, 1], [], []>} : vector<14x30xbf16>, vector<30x448xbf16>, vector<14x448xf32> -> vector<14x448xf32>
    %41 = arith.addf %36, %40 : vector<14x448xf32>
    %42 = vector.extract_strided_slice %3 {offsets = [1, 0], sizes = [14, 30], strides = [1, 1]} : vector<15x30xbf16> to vector<14x30xbf16>
    %c0_44 = arith.constant 0 : index
    %c2_45 = arith.constant 2 : index
    %c0_46 = arith.constant 0 : index
    %c0_47 = arith.constant 0 : index
    %43 = vector.load %arg2[%c0_44, %c2_45, %c0_46, %c0_47] : memref<2x3x30x448xbf16, #tpu.memory_space<vmem>>, vector<1x1x30x448xbf16>
    %44 = vector.shape_cast %43 : vector<1x1x30x448xbf16> to vector<30x448xbf16>
    %cst_48 = arith.constant dense<0.000000e+00> : vector<14x448xf32>
    %45 = tpu.matmul %42, %44, %cst_48 {dimension_numbers = #tpu.dot_dimension_numbers<[1], [0], [0], [1], [0, 0, 1, 1], [], []>} : vector<14x30xbf16>, vector<30x448xbf16>, vector<14x448xf32> -> vector<14x448xf32>
    %46 = arith.addf %41, %45 : vector<14x448xf32>
    %47 = vector.extract_strided_slice %3 {offsets = [0, 0], sizes = [14, 30], strides = [1, 1]} : vector<15x30xbf16> to vector<14x30xbf16>
    %c1_49 = arith.constant 1 : index
    %c0_50 = arith.constant 0 : index
    %c0_51 = arith.constant 0 : index
    %c0_52 = arith.constant 0 : index
    %48 = vector.load %arg2[%c1_49, %c0_50, %c0_51, %c0_52] : memref<2x3x30x448xbf16, #tpu.memory_space<vmem>>, vector<1x1x30x448xbf16>
    %49 = vector.shape_cast %48 : vector<1x1x30x448xbf16> to vector<30x448xbf16>
    %cst_53 = arith.constant dense<0.000000e+00> : vector<14x448xf32>
    %50 = tpu.matmul %47, %49, %cst_53 {dimension_numbers = #tpu.dot_dimension_numbers<[1], [0], [0], [1], [0, 0, 1, 1], [], []>} : vector<14x30xbf16>, vector<30x448xbf16>, vector<14x448xf32> -> vector<14x448xf32>
    %51 = vector.extract_strided_slice %1 {offsets = [1, 0], sizes = [14, 30], strides = [1, 1]} : vector<15x30xbf16> to vector<14x30xbf16>
    %c1_54 = arith.constant 1 : index
    %c1_55 = arith.constant 1 : index
    %c0_56 = arith.constant 0 : index
    %c0_57 = arith.constant 0 : index
    %52 = vector.load %arg2[%c1_54, %c1_55, %c0_56, %c0_57] : memref<2x3x30x448xbf16, #tpu.memory_space<vmem>>, vector<1x1x30x448xbf16>
    %53 = vector.shape_cast %52 : vector<1x1x30x448xbf16> to vector<30x448xbf16>
    %cst_58 = arith.constant dense<0.000000e+00> : vector<14x448xf32>
    %54 = tpu.matmul %51, %53, %cst_58 {dimension_numbers = #tpu.dot_dimension_numbers<[1], [0], [0], [1], [0, 0, 1, 1], [], []>} : vector<14x30xbf16>, vector<30x448xbf16>, vector<14x448xf32> -> vector<14x448xf32>
    %55 = arith.addf %50, %54 : vector<14x448xf32>
    %56 = vector.extract_strided_slice %3 {offsets = [1, 0], sizes = [14, 30], strides = [1, 1]} : vector<15x30xbf16> to vector<14x30xbf16>
    %c1_59 = arith.constant 1 : index
    %c2_60 = arith.constant 2 : index
    %c0_61 = arith.constant 0 : index
    %c0_62 = arith.constant 0 : index
    %57 = vector.load %arg2[%c1_59, %c2_60, %c0_61, %c0_62] : memref<2x3x30x448xbf16, #tpu.memory_space<vmem>>, vector<1x1x30x448xbf16>
    %58 = vector.shape_cast %57 : vector<1x1x30x448xbf16> to vector<30x448xbf16>
    %cst_63 = arith.constant dense<0.000000e+00> : vector<14x448xf32>
    %59 = tpu.matmul %56, %58, %cst_63 {dimension_numbers = #tpu.dot_dimension_numbers<[1], [0], [0], [1], [0, 0, 1, 1], [], []>} : vector<14x30xbf16>, vector<30x448xbf16>, vector<14x448xf32> -> vector<14x448xf32>
    %60 = arith.addf %55, %59 : vector<14x448xf32>
    %61 = arith.maximumf %46, %60 : vector<14x448xf32>
    %62 = arith.maximumf %32, %61 : vector<14x448xf32>
    %c0_64 = arith.constant 0 : index
    %c0_65 = arith.constant 0 : index
    %63 = vector.load %arg3[%c0_64, %c0_65] : memref<1x448xf32, #tpu.memory_space<vmem>>, vector<1x448xf32>
    %64 = vector.broadcast %63 : vector<1x448xf32> to vector<14x448xf32>
    %65 = arith.addf %62, %64 : vector<14x448xf32>
    %cst_66 = arith.constant 0.000000e+00 : f32
    %66 = vector.broadcast %cst_66 : f32 to vector<14x448xf32>
    %67 = arith.maximumf %65, %66 : vector<14x448xf32>
    %cst_67 = arith.constant 0.000000e+00 : f32
    %68 = vector.broadcast %cst_67 : f32 to vector<16x512xf32>
    %c0_68 = arith.constant 0 : index
    %c0_69 = arith.constant 0 : index
    %69 = vector.load %arg7[%c0_68, %c0_69] : memref<16x512xf32, #tpu.memory_space<vmem>>, vector<16x512xf32>
    tpu.vector_store %arg7[%c0_68, %c0_69], %68 {strides = array<i32>} : memref<16x512xf32, #tpu.memory_space<vmem>>, vector<16x512xf32>,
    %c1_70 = arith.constant 1 : index
    %c32 = arith.constant 32 : index
    %70 = vector.load %arg7[%c1_70, %c32] : memref<16x512xf32, #tpu.memory_space<vmem>>, vector<14x448xf32>
    tpu.vector_store %arg7[%c1_70, %c32], %67 {strides = array<i32>} : memref<16x512xf32, #tpu.memory_space<vmem>>, vector<14x448xf32>,
    %c0_71 = arith.constant 0 : index
    %c0_72 = arith.constant 0 : index
    %71 = vector.load %arg7[%c0_71, %c0_72] : memref<16x512xf32, #tpu.memory_space<vmem>>, vector<16x512xf32>
    %72 = arith.truncf %71 : vector<16x512xf32> to vector<16x512xbf16>
    %73 = vector.extract_strided_slice %72 {offsets = [0, 0], sizes = [14, 512], strides = [1, 1]} : vector<16x512xbf16> to vector<14x512xbf16>
    %c0_73 = arith.constant 0 : index
    %c0_74 = arith.constant 0 : index
    %c0_75 = arith.constant 0 : index
    %c0_76 = arith.constant 0 : index
    %74 = vector.load %arg4[%c0_73, %c0_74, %c0_75, %c0_76] : memref<2x3x512x448xbf16, #tpu.memory_space<vmem>>, vector<1x1x512x448xbf16>
    %75 = vector.shape_cast %74 : vector<1x1x512x448xbf16> to vector<512x448xbf16>
    %cst_77 = arith.constant dense<0.000000e+00> : vector<14x448xf32>
    %76 = tpu.matmul %73, %75, %cst_77 {dimension_numbers = #tpu.dot_dimension_numbers<[1], [0], [0], [1], [0, 0, 1, 1], [], []>} : vector<14x512xbf16>, vector<512x448xbf16>, vector<14x448xf32> -> vector<14x448xf32>
    %77 = vector.extract_strided_slice %72 {offsets = [1, 0], sizes = [14, 512], strides = [1, 1]} : vector<16x512xbf16> to vector<14x512xbf16>
    %c0_78 = arith.constant 0 : index
    %c1_79 = arith.constant 1 : index
    %c0_80 = arith.constant 0 : index
    %c0_81 = arith.constant 0 : index
    %78 = vector.load %arg4[%c0_78, %c1_79, %c0_80, %c0_81] : memref<2x3x512x448xbf16, #tpu.memory_space<vmem>>, vector<1x1x512x448xbf16>
    %79 = vector.shape_cast %78 : vector<1x1x512x448xbf16> to vector<512x448xbf16>
    %cst_82 = arith.constant dense<0.000000e+00> : vector<14x448xf32>
    %80 = tpu.matmul %77, %79, %cst_82 {dimension_numbers = #tpu.dot_dimension_numbers<[1], [0], [0], [1], [0, 0, 1, 1], [], []>} : vector<14x512xbf16>, vector<512x448xbf16>, vector<14x448xf32> -> vector<14x448xf32>
    %81 = arith.addf %76, %80 : vector<14x448xf32>
    %82 = vector.extract_strided_slice %72 {offsets = [2, 0], sizes = [14, 512], strides = [1, 1]} : vector<16x512xbf16> to vector<14x512xbf16>
    %c0_83 = arith.constant 0 : index
    %c2_84 = arith.constant 2 : index
    %c0_85 = arith.constant 0 : index
    %c0_86 = arith.constant 0 : index
    %83 = vector.load %arg4[%c0_83, %c2_84, %c0_85, %c0_86] : memref<2x3x512x448xbf16, #tpu.memory_space<vmem>>, vector<1x1x512x448xbf16>
    %84 = vector.shape_cast %83 : vector<1x1x512x448xbf16> to vector<512x448xbf16>
    %cst_87 = arith.constant dense<0.000000e+00> : vector<14x448xf32>
    %85 = tpu.matmul %82, %84, %cst_87 {dimension_numbers = #tpu.dot_dimension_numbers<[1], [0], [0], [1], [0, 0, 1, 1], [], []>} : vector<14x512xbf16>, vector<512x448xbf16>, vector<14x448xf32> -> vector<14x448xf32>
    %86 = arith.addf %81, %85 : vector<14x448xf32>
    %87 = vector.extract_strided_slice %72 {offsets = [0, 0], sizes = [14, 512], strides = [1, 1]} : vector<16x512xbf16> to vector<14x512xbf16>
    %c1_88 = arith.constant 1 : index
    %c0_89 = arith.constant 0 : index
    %c0_90 = arith.constant 0 : index
    %c0_91 = arith.constant 0 : index
    %88 = vector.load %arg4[%c1_88, %c0_89, %c0_90, %c0_91] : memref<2x3x512x448xbf16, #tpu.memory_space<vmem>>, vector<1x1x512x448xbf16>
    %89 = vector.shape_cast %88 : vector<1x1x512x448xbf16> to vector<512x448xbf16>
    %cst_92 = arith.constant dense<0.000000e+00> : vector<14x448xf32>
    %90 = tpu.matmul %87, %89, %cst_92 {dimension_numbers = #tpu.dot_dimension_numbers<[1], [0], [0], [1], [0, 0, 1, 1], [], []>} : vector<14x512xbf16>, vector<512x448xbf16>, vector<14x448xf32> -> vector<14x448xf32>
    %91 = vector.extract_strided_slice %72 {offsets = [1, 0], sizes = [14, 512], strides = [1, 1]} : vector<16x512xbf16> to vector<14x512xbf16>
    %c1_93 = arith.constant 1 : index
    %c1_94 = arith.constant 1 : index
    %c0_95 = arith.constant 0 : index
    %c0_96 = arith.constant 0 : index
    %92 = vector.load %arg4[%c1_93, %c1_94, %c0_95, %c0_96] : memref<2x3x512x448xbf16, #tpu.memory_space<vmem>>, vector<1x1x512x448xbf16>
    %93 = vector.shape_cast %92 : vector<1x1x512x448xbf16> to vector<512x448xbf16>
    %cst_97 = arith.constant dense<0.000000e+00> : vector<14x448xf32>
    %94 = tpu.matmul %91, %93, %cst_97 {dimension_numbers = #tpu.dot_dimension_numbers<[1], [0], [0], [1], [0, 0, 1, 1], [], []>} : vector<14x512xbf16>, vector<512x448xbf16>, vector<14x448xf32> -> vector<14x448xf32>
    %95 = arith.addf %90, %94 : vector<14x448xf32>
    %96 = vector.extract_strided_slice %72 {offsets = [2, 0], sizes = [14, 512], strides = [1, 1]} : vector<16x512xbf16> to vector<14x512xbf16>
    %c1_98 = arith.constant 1 : index
    %c2_99 = arith.constant 2 : index
    %c0_100 = arith.constant 0 : index
    %c0_101 = arith.constant 0 : index
    %97 = vector.load %arg4[%c1_98, %c2_99, %c0_100, %c0_101] : memref<2x3x512x448xbf16, #tpu.memory_space<vmem>>, vector<1x1x512x448xbf16>
    %98 = vector.shape_cast %97 : vector<1x1x512x448xbf16> to vector<512x448xbf16>
    %cst_102 = arith.constant dense<0.000000e+00> : vector<14x448xf32>
    %99 = tpu.matmul %96, %98, %cst_102 {dimension_numbers = #tpu.dot_dimension_numbers<[1], [0], [0], [1], [0, 0, 1, 1], [], []>} : vector<14x512xbf16>, vector<512x448xbf16>, vector<14x448xf32> -> vector<14x448xf32>
    %100 = arith.addf %95, %99 : vector<14x448xf32>
    %101 = arith.maximumf %86, %100 : vector<14x448xf32>
    %c0_103 = arith.constant 0 : index
    %c0_104 = arith.constant 0 : index
    %102 = vector.load %arg5[%c0_103, %c0_104] : memref<1x448xf32, #tpu.memory_space<vmem>>, vector<1x448xf32>
    %103 = vector.broadcast %102 : vector<1x448xf32> to vector<14x448xf32>
    %104 = arith.addf %101, %103 : vector<14x448xf32>
    %cst_105 = arith.constant 0.000000e+00 : f32
    %105 = vector.broadcast %cst_105 : f32 to vector<14x448xf32>
    %106 = arith.maximumf %104, %105 : vector<14x448xf32>
    %cst_106 = arith.constant 0.000000e+00 : f32
    %107 = vector.broadcast %cst_106 : f32 to vector<1x7x512xf32>
    %c0_107 = arith.constant 0 : index
    %c0_108 = arith.constant 0 : index
    %c0_109 = arith.constant 0 : index
    %108 = vector.load %arg6[%c0_107, %c0_108, %c0_109] : memref<1x7x512xf32, #tpu.memory_space<vmem>>, vector<1x7x512xf32>
    tpu.vector_store %arg6[%c0_107, %c0_108, %c0_109], %107 {strides = array<i32>} : memref<1x7x512xf32, #tpu.memory_space<vmem>>, vector<1x7x512xf32>,
    %109 = vector.extract_strided_slice %106 {offsets = [0, 0], sizes = [1, 448], strides = [1, 1]} : vector<14x448xf32> to vector<1x448xf32>
    %110 = vector.extract_strided_slice %106 {offsets = [1, 0], sizes = [1, 448], strides = [1, 1]} : vector<14x448xf32> to vector<1x448xf32>
    %111 = arith.maximumf %109, %110 : vector<1x448xf32>
    %112 = vector.shape_cast %111 : vector<1x448xf32> to vector<1x1x448xf32>
    %c0_110 = arith.constant 0 : index
    %c0_111 = arith.constant 0 : index
    %c0_112 = arith.constant 0 : index
    %113 = vector.load %arg6[%c0_110, %c0_111, %c0_112] : memref<1x7x512xf32, #tpu.memory_space<vmem>>, vector<1x1x448xf32>
    tpu.vector_store %arg6[%c0_110, %c0_111, %c0_112], %112 {strides = array<i32>} : memref<1x7x512xf32, #tpu.memory_space<vmem>>, vector<1x1x448xf32>,
    %114 = vector.extract_strided_slice %106 {offsets = [2, 0], sizes = [1, 448], strides = [1, 1]} : vector<14x448xf32> to vector<1x448xf32>
    %115 = vector.extract_strided_slice %106 {offsets = [3, 0], sizes = [1, 448], strides = [1, 1]} : vector<14x448xf32> to vector<1x448xf32>
    %116 = arith.maximumf %114, %115 : vector<1x448xf32>
    %117 = vector.shape_cast %116 : vector<1x448xf32> to vector<1x1x448xf32>
    %c0_113 = arith.constant 0 : index
    %c1_114 = arith.constant 1 : index
    %c0_115 = arith.constant 0 : index
    %118 = vector.load %arg6[%c0_113, %c1_114, %c0_115] : memref<1x7x512xf32, #tpu.memory_space<vmem>>, vector<1x1x448xf32>
    tpu.vector_store %arg6[%c0_113, %c1_114, %c0_115], %117 {strides = array<i32>} : memref<1x7x512xf32, #tpu.memory_space<vmem>>, vector<1x1x448xf32>,
    %119 = vector.extract_strided_slice %106 {offsets = [4, 0], sizes = [1, 448], strides = [1, 1]} : vector<14x448xf32> to vector<1x448xf32>
    %120 = vector.extract_strided_slice %106 {offsets = [5, 0], sizes = [1, 448], strides = [1, 1]} : vector<14x448xf32> to vector<1x448xf32>
    %121 = arith.maximumf %119, %120 : vector<1x448xf32>
    %122 = vector.shape_cast %121 : vector<1x448xf32> to vector<1x1x448xf32>
    %c0_116 = arith.constant 0 : index
    %c2_117 = arith.constant 2 : index
    %c0_118 = arith.constant 0 : index
    %123 = vector.load %arg6[%c0_116, %c2_117, %c0_118] : memref<1x7x512xf32, #tpu.memory_space<vmem>>, vector<1x1x448xf32>
    tpu.vector_store %arg6[%c0_116, %c2_117, %c0_118], %122 {strides = array<i32>} : memref<1x7x512xf32, #tpu.memory_space<vmem>>, vector<1x1x448xf32>,
    %124 = vector.extract_strided_slice %106 {offsets = [6, 0], sizes = [1, 448], strides = [1, 1]} : vector<14x448xf32> to vector<1x448xf32>
    %125 = vector.extract_strided_slice %106 {offsets = [7, 0], sizes = [1, 448], strides = [1, 1]} : vector<14x448xf32> to vector<1x448xf32>
    %126 = arith.maximumf %124, %125 : vector<1x448xf32>
    %127 = vector.shape_cast %126 : vector<1x448xf32> to vector<1x1x448xf32>
    %c0_119 = arith.constant 0 : index
    %c3 = arith.constant 3 : index
    %c0_120 = arith.constant 0 : index
    %128 = vector.load %arg6[%c0_119, %c3, %c0_120] : memref<1x7x512xf32, #tpu.memory_space<vmem>>, vector<1x1x448xf32>
    tpu.vector_store %arg6[%c0_119, %c3, %c0_120], %127 {strides = array<i32>} : memref<1x7x512xf32, #tpu.memory_space<vmem>>, vector<1x1x448xf32>,
    %129 = vector.extract_strided_slice %106 {offsets = [8, 0], sizes = [1, 448], strides = [1, 1]} : vector<14x448xf32> to vector<1x448xf32>
    %130 = vector.extract_strided_slice %106 {offsets = [9, 0], sizes = [1, 448], strides = [1, 1]} : vector<14x448xf32> to vector<1x448xf32>
    %131 = arith.maximumf %129, %130 : vector<1x448xf32>
    %132 = vector.shape_cast %131 : vector<1x448xf32> to vector<1x1x448xf32>
    %c0_121 = arith.constant 0 : index
    %c4 = arith.constant 4 : index
    %c0_122 = arith.constant 0 : index
    %133 = vector.load %arg6[%c0_121, %c4, %c0_122] : memref<1x7x512xf32, #tpu.memory_space<vmem>>, vector<1x1x448xf32>
    tpu.vector_store %arg6[%c0_121, %c4, %c0_122], %132 {strides = array<i32>} : memref<1x7x512xf32, #tpu.memory_space<vmem>>, vector<1x1x448xf32>,
    %134 = vector.extract_strided_slice %106 {offsets = [10, 0], sizes = [1, 448], strides = [1, 1]} : vector<14x448xf32> to vector<1x448xf32>
    %135 = vector.extract_strided_slice %106 {offsets = [11, 0], sizes = [1, 448], strides = [1, 1]} : vector<14x448xf32> to vector<1x448xf32>
    %136 = arith.maximumf %134, %135 : vector<1x448xf32>
    %137 = vector.shape_cast %136 : vector<1x448xf32> to vector<1x1x448xf32>
    %c0_123 = arith.constant 0 : index
    %c5 = arith.constant 5 : index
    %c0_124 = arith.constant 0 : index
    %138 = vector.load %arg6[%c0_123, %c5, %c0_124] : memref<1x7x512xf32, #tpu.memory_space<vmem>>, vector<1x1x448xf32>
    tpu.vector_store %arg6[%c0_123, %c5, %c0_124], %137 {strides = array<i32>} : memref<1x7x512xf32, #tpu.memory_space<vmem>>, vector<1x1x448xf32>,
    %139 = vector.extract_strided_slice %106 {offsets = [12, 0], sizes = [1, 448], strides = [1, 1]} : vector<14x448xf32> to vector<1x448xf32>
    %140 = vector.extract_strided_slice %106 {offsets = [13, 0], sizes = [1, 448], strides = [1, 1]} : vector<14x448xf32> to vector<1x448xf32>
    %141 = arith.maximumf %139, %140 : vector<1x448xf32>
    %142 = vector.shape_cast %141 : vector<1x448xf32> to vector<1x1x448xf32>
    %c0_125 = arith.constant 0 : index
    %c6 = arith.constant 6 : index
    %c0_126 = arith.constant 0 : index
    %143 = vector.load %arg6[%c0_125, %c6, %c0_126] : memref<1x7x512xf32, #tpu.memory_space<vmem>>, vector<1x1x448xf32>
    tpu.vector_store %arg6[%c0_125, %c6, %c0_126], %142 {strides = array<i32>} : memref<1x7x512xf32, #tpu.memory_space<vmem>>, vector<1x1x448xf32>,
    return
  }
  func.func @transform_0(%arg0: i32) -> (i32, i32, i32, i32) {
    %c0_i32 = arith.constant 0 : i32
    %c0_i32_0 = arith.constant 0 : i32
    %c0_i32_1 = arith.constant 0 : i32
    %c0_i32_2 = arith.constant 0 : i32
    return %arg0, %c0_i32, %c0_i32_0, %c0_i32_1 : i32, i32, i32, i32
  }
  func.func @transform_1(%arg0: i32) -> (i32, i32, i32, i32) {
    %c0_i32 = arith.constant 0 : i32
    %c0_i32_0 = arith.constant 0 : i32
    %c0_i32_1 = arith.constant 0 : i32
    %c0_i32_2 = arith.constant 0 : i32
    %c0_i32_3 = arith.constant 0 : i32
    return %c0_i32, %c0_i32_0, %c0_i32_1, %c0_i32_2 : i32, i32, i32, i32
  }
  func.func @transform_2(%arg0: i32) -> (i32, i32) {
    %c0_i32 = arith.constant 0 : i32
    %c0_i32_0 = arith.constant 0 : i32
    %c0_i32_1 = arith.constant 0 : i32
    return %c0_i32, %c0_i32_0 : i32, i32
  }
  func.func @transform_3(%arg0: i32) -> (i32, i32, i32, i32) {
    %c0_i32 = arith.constant 0 : i32
    %c0_i32_0 = arith.constant 0 : i32
    %c0_i32_1 = arith.constant 0 : i32
    %c0_i32_2 = arith.constant 0 : i32
    %c0_i32_3 = arith.constant 0 : i32
    return %c0_i32, %c0_i32_0, %c0_i32_1, %c0_i32_2 : i32, i32, i32, i32
  }
  func.func @transform_4(%arg0: i32) -> (i32, i32) {
    %c0_i32 = arith.constant 0 : i32
    %c0_i32_0 = arith.constant 0 : i32
    %c0_i32_1 = arith.constant 0 : i32
    return %c0_i32, %c0_i32_0 : i32, i32
  }
  func.func @transform_5(%arg0: i32) -> (i32, i32, i32) {
    %c0_i32 = arith.constant 0 : i32
    %c0_i32_0 = arith.constant 0 : i32
    %c0_i32_1 = arith.constant 0 : i32
    return %arg0, %c0_i32, %c0_i32_0 : i32, i32, i32
  }
}

module attributes {stable_mosaic.version = 11 : i64} {
  func.func @_classifier_kernel(%arg0: i32, %arg1: i32, %arg2: memref<2x512xf32, #tpu.memory_space<vmem>>, %arg3: memref<512x512xbf16, #tpu.memory_space<vmem>>, %arg4: memref<1x512xf32, #tpu.memory_space<vmem>>, %arg5: memref<512x128xbf16, #tpu.memory_space<vmem>>, %arg6: memref<1x128xf32, #tpu.memory_space<vmem>>, %arg7: memref<2x128xf32, #tpu.memory_space<vmem>>, %arg8: memref<2x512xf32, #tpu.memory_space<vmem>>) attributes {dimension_semantics = [#tpu.dimension_semantics<parallel>, #tpu.dimension_semantics<arbitrary>], iteration_bounds = array<i64: 1, 7>, scalar_prefetch = 0 : i64, scratch_operands = 1 : i64, tpu.core_type = #tpu.core_type<tc>, window_params = [{transform_indices = @transform_0, window_bounds = array<i64: 2, 512>}, {transform_indices = @transform_1, window_bounds = array<i64: 512, 512>}, {pipeline_mode = #tpu.pipeline_mode<synchronous>, transform_indices = @transform_2, window_bounds = array<i64: 1, 512>}, {pipeline_mode = #tpu.pipeline_mode<synchronous>, transform_indices = @transform_3, window_bounds = array<i64: 512, 128>}, {pipeline_mode = #tpu.pipeline_mode<synchronous>, transform_indices = @transform_4, window_bounds = array<i64: 1, 128>}, {transform_indices = @transform_5, window_bounds = array<i64: 2, 128>}]} {
    %c0_i32 = arith.constant 0 : i32
    %0 = arith.cmpi eq, %arg1, %c0_i32 : i32
    %1 = arith.extui %0 : i1 to i32
    %c0_i32_0 = arith.constant 0 : i32
    %2 = arith.cmpi ne, %1, %c0_i32_0 : i32
    scf.if %2 {
      %cst_9 = arith.constant 0.000000e+00 : f32
      %13 = vector.broadcast %cst_9 : f32 to vector<2x512xf32>
      %c0_10 = arith.constant 0 : index
      %c0_11 = arith.constant 0 : index
      %14 = vector.load %arg8[%c0_10, %c0_11] : memref<2x512xf32, #tpu.memory_space<vmem>>, vector<2x512xf32>
      tpu.vector_store %arg8[%c0_10, %c0_11], %13 {strides = array<i32>} : memref<2x512xf32, #tpu.memory_space<vmem>>, vector<2x512xf32>,
    } else {
    }
    %c0 = arith.constant 0 : index
    %c0_1 = arith.constant 0 : index
    %3 = vector.load %arg2[%c0, %c0_1] : memref<2x512xf32, #tpu.memory_space<vmem>>, vector<2x512xf32>
    %4 = arith.truncf %3 : vector<2x512xf32> to vector<2x512xbf16>
    %c0_2 = arith.constant 0 : index
    %c0_3 = arith.constant 0 : index
    %5 = vector.load %arg8[%c0_2, %c0_3] : memref<2x512xf32, #tpu.memory_space<vmem>>, vector<2x512xf32>
    %c0_4 = arith.constant 0 : index
    %c0_5 = arith.constant 0 : index
    %6 = vector.load %arg3[%c0_4, %c0_5] : memref<512x512xbf16, #tpu.memory_space<vmem>>, vector<512x512xbf16>
    %cst = arith.constant dense<0.000000e+00> : vector<2x512xf32>
    %7 = tpu.matmul %4, %6, %cst {dimension_numbers = #tpu.dot_dimension_numbers<[1], [0], [0], [1], [0, 0, 1, 1], [], []>} : vector<2x512xbf16>, vector<512x512xbf16>, vector<2x512xf32> -> vector<2x512xf32>
    %8 = arith.addf %5, %7 : vector<2x512xf32>
    %c0_6 = arith.constant 0 : index
    %c0_7 = arith.constant 0 : index
    %9 = vector.load %arg8[%c0_6, %c0_7] : memref<2x512xf32, #tpu.memory_space<vmem>>, vector<2x512xf32>
    tpu.vector_store %arg8[%c0_6, %c0_7], %8 {strides = array<i32>} : memref<2x512xf32, #tpu.memory_space<vmem>>, vector<2x512xf32>,
    %c6_i32 = arith.constant 6 : i32
    %10 = arith.cmpi eq, %arg1, %c6_i32 : i32
    %11 = arith.extui %10 : i1 to i32
    %c0_i32_8 = arith.constant 0 : i32
    %12 = arith.cmpi ne, %11, %c0_i32_8 : i32
    scf.if %12 {
      %c0_9 = arith.constant 0 : index
      %c0_10 = arith.constant 0 : index
      %13 = vector.load %arg8[%c0_9, %c0_10] : memref<2x512xf32, #tpu.memory_space<vmem>>, vector<2x512xf32>
      %c0_11 = arith.constant 0 : index
      %c0_12 = arith.constant 0 : index
      %14 = vector.load %arg4[%c0_11, %c0_12] : memref<1x512xf32, #tpu.memory_space<vmem>>, vector<1x512xf32>
      %15 = vector.broadcast %14 : vector<1x512xf32> to vector<2x512xf32>
      %16 = arith.addf %13, %15 : vector<2x512xf32>
      %cst_13 = arith.constant 0.000000e+00 : f32
      %17 = vector.broadcast %cst_13 : f32 to vector<2x512xf32>
      %18 = arith.maximumf %16, %17 : vector<2x512xf32>
      %19 = arith.truncf %18 : vector<2x512xf32> to vector<2x512xbf16>
      %c0_14 = arith.constant 0 : index
      %c0_15 = arith.constant 0 : index
      %20 = vector.load %arg5[%c0_14, %c0_15] : memref<512x128xbf16, #tpu.memory_space<vmem>>, vector<512x128xbf16>
      %cst_16 = arith.constant dense<0.000000e+00> : vector<2x128xf32>
      %21 = tpu.matmul %19, %20, %cst_16 {dimension_numbers = #tpu.dot_dimension_numbers<[1], [0], [0], [1], [0, 0, 1, 1], [], []>} : vector<2x512xbf16>, vector<512x128xbf16>, vector<2x128xf32> -> vector<2x128xf32>
      %c0_17 = arith.constant 0 : index
      %c0_18 = arith.constant 0 : index
      %22 = vector.load %arg6[%c0_17, %c0_18] : memref<1x128xf32, #tpu.memory_space<vmem>>, vector<1x128xf32>
      %23 = vector.broadcast %22 : vector<1x128xf32> to vector<2x128xf32>
      %24 = arith.addf %21, %23 : vector<2x128xf32>
      %c0_19 = arith.constant 0 : index
      %c0_20 = arith.constant 0 : index
      %25 = vector.load %arg7[%c0_19, %c0_20] : memref<2x128xf32, #tpu.memory_space<vmem>>, vector<2x128xf32>
      tpu.vector_store %arg7[%c0_19, %c0_20], %24 {strides = array<i32>} : memref<2x128xf32, #tpu.memory_space<vmem>>, vector<2x128xf32>,
    } else {
    }
    return
  }
  func.func @transform_0(%arg0: i32, %arg1: i32) -> (i32, i32) {
    %c0_i32 = arith.constant 0 : i32
    return %arg0, %arg1 : i32, i32
  }
  func.func @transform_1(%arg0: i32, %arg1: i32) -> (i32, i32) {
    %c0_i32 = arith.constant 0 : i32
    %c0_i32_0 = arith.constant 0 : i32
    return %arg1, %c0_i32 : i32, i32
  }
  func.func @transform_2(%arg0: i32, %arg1: i32) -> (i32, i32) {
    %c0_i32 = arith.constant 0 : i32
    %c0_i32_0 = arith.constant 0 : i32
    %c0_i32_1 = arith.constant 0 : i32
    return %c0_i32, %c0_i32_0 : i32, i32
  }
  func.func @transform_3(%arg0: i32, %arg1: i32) -> (i32, i32) {
    %c0_i32 = arith.constant 0 : i32
    %c0_i32_0 = arith.constant 0 : i32
    %c0_i32_1 = arith.constant 0 : i32
    return %c0_i32, %c0_i32_0 : i32, i32
  }
  func.func @transform_4(%arg0: i32, %arg1: i32) -> (i32, i32) {
    %c0_i32 = arith.constant 0 : i32
    %c0_i32_0 = arith.constant 0 : i32
    %c0_i32_1 = arith.constant 0 : i32
    return %c0_i32, %c0_i32_0 : i32, i32
  }
  func.func @transform_5(%arg0: i32, %arg1: i32) -> (i32, i32) {
    %c0_i32 = arith.constant 0 : i32
    %c0_i32_0 = arith.constant 0 : i32
    return %arg0, %c0_i32 : i32, i32
  }
}

</mosaic_0001>

<llo_original>
// kernel: forward.3
$region0: #{forward.3}
  #allocation0 [shape = 'u32[]', space=smem, size = 0x4, offset = 0x4, fixed_abs, tag = 'smem constant byte address 0x4 - core index']
  #allocation1 [shape = 'u32[144,128]{1,0:T(1,128)}', space=vmem, size = 0x12000, scoped, tag = 'internal scratch']
  #allocation2 [shape = 'f32[2,512]{1,0:T(2,128)}', space=vmem, size = 0x1000, scoped, tag = 'scratch operand']
  %s0 = inlined_call_operand.vmem [shape: f32[2,3584], index: 0, kind: input, shape index: {}]
  %s1 = inlined_call_operand.vmem [shape: bf16[3584,512], index: 1, kind: input, shape index: {}]
  %s2 = inlined_call_operand.vmem [shape: f32[1,512], index: 2, kind: input, shape index: {}]
  %s3 = inlined_call_operand.vmem [shape: bf16[512,128], index: 3, kind: input, shape index: {}]
  %s4 = inlined_call_operand.vmem [shape: f32[1,128], index: 4, kind: input, shape index: {}]
  %s5 = inlined_call_operand.hbm [shape: f32[2,128], index: 5, kind: output, shape index: {}]
  %s6 = sld [smem:[#allocation0]]
  $region61: #{forward.3} parent=0
    _
  %s8 = ssub.s32 1, %s6
  %s9 = scalar_select 0, %s8, %s6
  $region1: #{forward.3} parent=0
    #allocation3 [shape = 'u8[1024]{0}', space=vmem, size = 0x400, scoped, tag = 'output window, operand 0, single buffered']
    #allocation4 [shape = 's32[2]{0}', space=sflag, size = 0x8, scoped, tag = 'scoped memory for forward.3']
    %10 = vsyncpa [#allocation4], 0
    loop: start=0, step=1, limit=9
    $region2: #{forward.3} parent=1 // loop_pre_header
      _
    $region3: #{forward.3} parent=1 // loop_header
      %s12 = sphi 0, %s16
      %p13 = scmp.ge.s32.totalorder %s12, 9
      %s19 = sphi 0, %s31
      %s20 = sphi 0, %s27
      %s21 = sphi 0, %s19
      %s22 = sphi 0, %s20
      %s23 = sphi 0, %s21
      %s24 = sphi 0, %s22
      %s36 = sphi 0, %s38
      %s39 = sphi 0, %s36
      %s40 = sphi 0, %s39
      %s56 = sphi 0, %s40
      %s62 = sphi 0, %s64
      %s65 = sphi 0, %s62
      %s66 = sphi 0, %s65
      %s82 = sphi 0, %s66
      %s86 = sphi 0, %s86
      %s88 = sphi 0, %s86
      %s89 = sphi 0, %s88
      %s103 = sphi 0, %s89
      %s107 = sphi 0, %s107
      %s109 = sphi 0, %s107
      %s110 = sphi 0, %s109
      %s124 = sphi 0, %s110
      %s128 = sphi 0, %s128
      %s130 = sphi 0, %s128
      %s131 = sphi 0, %s130
      %s145 = sphi 0, %s131
      %s151 = sphi 0, %s153
      %s154 = sphi 0, %s151
      %s155 = sphi 0, %s154
      %s171 = sphi 0, %s155
    $region4: #{forward.3} parent=1 // loop_header_branch
      %15 = sbr.rel (%p13) target = $region8
    $region5: #{forward.3} parent=1 // loop_body
      %s17 = ssub.s32 %s12, 1
      %s18 = ssub.s32 %s12, 2
      %s25 = sadd.s32 1, %s20
      %p26 = scmp.ge.s32.totalorder %s25, 7
      %s27 = scalar_select %p26, 0, %s25
      %s28 = sadd.s32 1, %s19
      %s29 = scalar_select %p26, %s28, %s19
      %p30 = scmp.ge.s32.totalorder %s29, 1
      %s31 = scalar_select %p30, 0, %s29
      %s32 = ssub.s32 %s19, %s31
      %s33 = ssub.s32 %s20, %s27
      %s34 = sor.u32 %s32, %s33
      %p35 = scmp.eq.s32.totalorder %s34, 0
      %s37 = sadd.s32 %s36, 1
      %s38 = scalar_select %p35, %s36, %s37
      %p41 = pneg %p35
      %p42 = scmp.eq.s32.totalorder %s12, 6
      %p43 = por %p41, %p42
      %p44 = scmp.ne.s32.totalorder %s36, %s39
      %p45 = scmp.eq.s32.totalorder %s12, 0
      %p46 = por %p44, %p45
      %p47 = scmp.ne.s32.totalorder %s36, %s39
      %p48 = scmp.eq.s32.totalorder %s17, 6
      %p49 = por %p47, %p48
      %p50 = scmp.ne.s32.totalorder %s39, %s40
      %p51 = scmp.eq.s32.totalorder %s17, 0
      %p52 = por %p50, %p51
      %p53 = scmp.ne.s32.totalorder %s39, %s40
      %p54 = scmp.eq.s32.totalorder %s18, 6
      %p55 = por %p53, %p54
      %p57 = scmp.ne.s32.totalorder %s40, %s56
      %p58 = scmp.eq.s32.totalorder %s18, 0
      %p59 = por %p57, %p58
      %s60 = ssub.s32 %s20, %s27
      %p61 = scmp.eq.s32.totalorder %s60, 0
      %s63 = sadd.s32 %s62, 1
      %s64 = scalar_select %p61, %s62, %s63
      %p67 = pneg %p61
      %p68 = scmp.eq.s32.totalorder %s12, 6
      %p69 = por %p67, %p68
      %p70 = scmp.ne.s32.totalorder %s62, %s65
      %p71 = scmp.eq.s32.totalorder %s12, 0
      %p72 = por %p70, %p71
      %p73 = scmp.ne.s32.totalorder %s62, %s65
      %p74 = scmp.eq.s32.totalorder %s17, 6
      %p75 = por %p73, %p74
      %p76 = scmp.ne.s32.totalorder %s65, %s66
      %p77 = scmp.eq.s32.totalorder %s17, 0
      %p78 = por %p76, %p77
      %p79 = scmp.ne.s32.totalorder %s65, %s66
      %p80 = scmp.eq.s32.totalorder %s18, 6
      %p81 = por %p79, %p80
      %p83 = scmp.ne.s32.totalorder %s66, %s82
      %p84 = scmp.eq.s32.totalorder %s18, 0
      %p85 = por %p83, %p84
      %s87 = sadd.s32 %s86, 1
      %p90 = scmp.eq.s32.totalorder %s12, 6
      %p91 = scmp.ne.s32.totalorder %s86, %s88
      %p92 = scmp.eq.s32.totalorder %s12, 0
      %p93 = por %p91, %p92
      %p94 = scmp.ne.s32.totalorder %s86, %s88
      %p95 = scmp.eq.s32.totalorder %s17, 6
      %p96 = por %p94, %p95
      %p97 = scmp.ne.s32.totalorder %s88, %s89
      %p98 = scmp.eq.s32.totalorder %s17, 0
      %p99 = por %p97, %p98
      %p100 = scmp.ne.s32.totalorder %s88, %s89
      %p101 = scmp.eq.s32.totalorder %s18, 6
      %p102 = por %p100, %p101
      %p104 = scmp.ne.s32.totalorder %s89, %s103
      %p105 = scmp.eq.s32.totalorder %s18, 0
      %p106 = por %p104, %p105
      %s108 = sadd.s32 %s107, 1
      %p111 = scmp.eq.s32.totalorder %s12, 6
      %p112 = scmp.ne.s32.totalorder %s107, %s109
      %p113 = scmp.eq.s32.totalorder %s12, 0
      %p114 = por %p112, %p113
      %p115 = scmp.ne.s32.totalorder %s107, %s109
      %p116 = scmp.eq.s32.totalorder %s17, 6
      %p117 = por %p115, %p116
      %p118 = scmp.ne.s32.totalorder %s109, %s110
      %p119 = scmp.eq.s32.totalorder %s17, 0
      %p120 = por %p118, %p119
      %p121 = scmp.ne.s32.totalorder %s109, %s110
      %p122 = scmp.eq.s32.totalorder %s18, 6
      %p123 = por %p121, %p122
      %p125 = scmp.ne.s32.totalorder %s110, %s124
      %p126 = scmp.eq.s32.totalorder %s18, 0
      %p127 = por %p125, %p126
      %s129 = sadd.s32 %s128, 1
      %p132 = scmp.eq.s32.totalorder %s12, 6
      %p133 = scmp.ne.s32.totalorder %s128, %s130
      %p134 = scmp.eq.s32.totalorder %s12, 0
      %p135 = por %p133, %p134
      %p136 = scmp.ne.s32.totalorder %s128, %s130
      %p137 = scmp.eq.s32.totalorder %s17, 6
      %p138 = por %p136, %p137
      %p139 = scmp.ne.s32.totalorder %s130, %s131
      %p140 = scmp.eq.s32.totalorder %s17, 0
      %p141 = por %p139, %p140
      %p142 = scmp.ne.s32.totalorder %s130, %s131
      %p143 = scmp.eq.s32.totalorder %s18, 6
      %p144 = por %p142, %p143
      %p146 = scmp.ne.s32.totalorder %s131, %s145
      %p147 = scmp.eq.s32.totalorder %s18, 0
      %p148 = por %p146, %p147
      %s149 = ssub.s32 %s19, %s31
      %p150 = scmp.eq.s32.totalorder %s149, 0
      %s152 = sadd.s32 %s151, 1
      %s153 = scalar_select %p150, %s151, %s152
      %p156 = pneg %p150
      %p157 = scmp.eq.s32.totalorder %s12, 6
      %p158 = por %p156, %p157
      %p159 = scmp.ne.s32.totalorder %s151, %s154
      %p160 = scmp.eq.s32.totalorder %s12, 0
      %p161 = por %p159, %p160
      %p162 = scmp.ne.s32.totalorder %s151, %s154
      %p163 = scmp.eq.s32.totalorder %s17, 6
      %p164 = por %p162, %p163
      %p165 = scmp.ne.s32.totalorder %s154, %s155
      %p166 = scmp.eq.s32.totalorder %s17, 0
      %p167 = por %p165, %p166
      %p168 = scmp.ne.s32.totalorder %s154, %s155
      %p169 = scmp.eq.s32.totalorder %s18, 6
      %p170 = por %p168, %p169
      %p172 = scmp.ne.s32.totalorder %s155, %s171
      %p173 = scmp.eq.s32.totalorder %s18, 0
      %p174 = por %p172, %p173
      %p175 = scmp.le.s32.totalorder 1, %s12
      %p176 = scmp.lt.s32.totalorder %s12, 8
      %p177 = pnand %p175, %p176
      %p178 = pneg %p177
      // Predicated region
      $region9: #{forward.3} parent=5 // pred_check
        _
      $region10: #{forward.3} parent=5 // pred_check_branch
        %180 = sbr.rel (%p177) target = $region12
      $region11: #{forward.3} parent=5 // pred_region
        %s181 = ssub.s32 %s12, 1
        // Predicated region
        $region13: #{forward.3} parent=11 // pred_check
          %p182 = pneg %p99
        $region14: #{forward.3} parent=11 // pred_check_branch
          %184 = sbr.rel (%p182) target = $region16
        $region15: #{forward.3} parent=11 // pred_region
          _
        $region16: #{forward.3} parent=11 // pred_fallthru
          _
        // Predicated region
        $region17: #{forward.3} parent=11 // pred_check
          %p185 = pneg %p120
        $region18: #{forward.3} parent=11 // pred_check_branch
          %187 = sbr.rel (%p185) target = $region20
        $region19: #{forward.3} parent=11 // pred_region
          _
        $region20: #{forward.3} parent=11 // pred_fallthru
          _
        // Predicated region
        $region21: #{forward.3} parent=11 // pred_check
          %p188 = pneg %p141
        $region22: #{forward.3} parent=11 // pred_check_branch
          %190 = sbr.rel (%p188) target = $region24
        $region23: #{forward.3} parent=11 // pred_region
          _
        $region24: #{forward.3} parent=11 // pred_fallthru
          _
      $region12: #{forward.3} parent=5 // pred_fallthru
        _
      %p191 = scmp.lt.s32.totalorder %s12, 7
      // Predicated region
      $region25: #{forward.3} parent=5 // pred_check
        %p192 = pneg %p191
      $region26: #{forward.3} parent=5 // pred_check_branch
        %194 = sbr.rel (%p192) target = $region28
      $region27: #{forward.3} parent=5 // pred_region
        // Predicated region
        $region29: #{forward.3} parent=27 // pred_check
          %p195 = pneg %p46
        $region30: #{forward.3} parent=27 // pred_check_branch
          %197 = sbr.rel (%p195) target = $region32
        $region31: #{forward.3} parent=27 // pred_region
          %s198 = smul.u32 4, %s20
          %p199 = scmp.lt.s32.totalorder %s19, 0
          %s200 = scalar_select %p199, %s19, 0
          %p201 = scmp.lt.s32.totalorder %s198, 27
          %s202 = scalar_select %p201, %s198, 27
          %s203 = smul.addr %s200, 28
          %s204 = sadd.s32 %s202, %s203
          %s205 = smul.addr %s204, 2
          %s206 = scalar_lea.vmem %s0, %s205
          %s207 = smul.u32 4, %s20
        $region32: #{forward.3} parent=27 // pred_fallthru
          _
        // Predicated region
        $region33: #{forward.3} parent=27 // pred_check
          %p208 = pneg %p72
        $region34: #{forward.3} parent=27 // pred_check_branch
          %210 = sbr.rel (%p208) target = $region36
        $region35: #{forward.3} parent=27 // pred_region
          %s211 = smul.u32 64, %s20
          %p212 = scmp.lt.s32.totalorder %s211, 447
          %s213 = scalar_select %p212, %s211, 447
          %s214 = smul.addr %s213, 4
          %s215 = smul.addr %s214, 4
          %s216 = scalar_lea.vmem %s1, %s215
          %s217 = smul.u32 64, %s20
        $region36: #{forward.3} parent=27 // pred_fallthru
          _
      $region28: #{forward.3} parent=5 // pred_fallthru
        _
      %p218 = scmp.le.s32.totalorder 1, %s12
      %p219 = scmp.lt.s32.totalorder %s12, 8
      %p220 = pnand %p218, %p219
      %p221 = pneg %p220
      // Predicated region
      $region37: #{forward.3} parent=5 // pred_check
        _
      $region38: #{forward.3} parent=5 // pred_check_branch
        %223 = sbr.rel (%p220) target = $region40
      $region39: #{forward.3} parent=5 // pred_region
        %s224 = ssub.s32 %s12, 1
        %s225 = smul.u32 4, %s22
        %p226 = scmp.lt.s32.totalorder %s21, 0
        %s227 = scalar_select %p226, %s21, 0
        %p228 = scmp.lt.s32.totalorder %s225, 27
        %s229 = scalar_select %p228, %s225, 27
        %s230 = smul.addr %s227, 28
        %s231 = sadd.s32 %s229, %s230
        %s232 = smul.addr %s231, 2
        %s233 = scalar_lea.vmem %s0, %s232
        %p234 = pneg %p52
        %p235 = pneg %p49
        %s236 = smul.u32 64, %s22
        %p237 = scmp.lt.s32.totalorder %s236, 447
        %s238 = scalar_select %p237, %s236, 447
        %s239 = smul.addr %s238, 4
        %s240 = smul.addr %s239, 4
        %s241 = scalar_lea.vmem %s1, %s240
        %p242 = pneg %p78
        %p243 = pneg %p75
        %p244 = pneg %p99
        %p245 = pneg %p96
        %p246 = pneg %p120
        %p247 = pneg %p117
        %p248 = pneg %p141
        %p249 = pneg %p138
        %p250 = pneg %p167
        %p251 = pneg %p164
        %s252 = smul.u32 4, %s22
        %p253 = scmp.lt.s32.totalorder %s21, 0
        %s254 = scalar_select %p253, %s21, 0
        %p255 = scmp.lt.s32.totalorder %s252, 27
        %s256 = scalar_select %p255, %s252, 27
        %s257 = smul.addr %s254, 28
        %s258 = sadd.s32 %s256, %s257
        %s259 = smul.addr %s258, 2
        %s260 = scalar_lea.vmem %s0, %s259
        %s261 = smul.u32 4, %s22
        %s262 = smul.u32 64, %s22
        %p263 = scmp.lt.s32.totalorder %s262, 447
        %s264 = scalar_select %p263, %s262, 447
        %s265 = smul.addr %s264, 4
        %s266 = smul.addr %s265, 4
        %s267 = scalar_lea.vmem %s1, %s266
        %s268 = smul.u32 64, %s22
        %p270 = scmp.eq.s32.totalorder %s22, 0
        // Predicated region
        $region41: #{forward.3} parent=39 // pred_check
          %p271 = pneg %p270
        $region42: #{forward.3} parent=39 // pred_check_branch
          %273 = sbr.rel (%p271) target = $region44
        $region43: #{forward.3} parent=39 // pred_region
          %274 = vst [vmem:[#allocation2] sm:$0xff] 0.0
        $region44: #{forward.3} parent=39 // pred_fallthru
          _
        %v275 = vld [vmem:[%s260] sm:$0xff]
        %v277 = vcombine.high %v275, %v275
        %v279 = vunpack.c.l.s4 1983009808
        %v280 = vunpack.c.0.s8 %v279
        %v281 = vlaneseq
        %v282 = vshrl.u32 %v281, 7
        %v283 = vsub.s32 %v280, %v282
        %v284 = vrot.slane %v275, %v283
        %v286 = vunpack.c.l.s4 1983009808
        %v287 = vunpack.c.0.s8 %v286
        %v288 = vlaneseq
        %v289 = vshrl.u32 %v288, 7
        %v290 = vsub.s32 %v287, %v289
        %v291 = vrot.slane %v277, %v290
        %v292 = vcombine.high %v284, %v284
        %v293 = vcombine.high %v291, %v291
        %v298 = vpack.c.bf16 %v284, %v284
        %v299 = vpack.c.bf16 %v292, %v292
        %v300 = vpack.c.bf16 %v291, %v291
        %v301 = vpack.c.bf16 %v293, %v293
        %v302 = vld [vmem:[#allocation2] sm:$0xff]
        %v303 = vld [vmem:[%s267] sm:$0xff]
        %v304 = vld [vmem:[%s267 + $0x8] sm:$0xff]
        %v305 = vld [vmem:[%s267 + $0x10] sm:$0xff]
        %v306 = vld [vmem:[%s267 + $0x18] sm:$0xff]
        %v307 = vld [vmem:[%s267 + $0x20] sm:$0xff]
        %v308 = vld [vmem:[%s267 + $0x28] sm:$0xff]
        %v309 = vld [vmem:[%s267 + $0x30] sm:$0xff]
        %v310 = vld [vmem:[%s267 + $0x38] sm:$0xff]
        %v311 = vld [vmem:[%s267 + $0x40] sm:$0xff]
        %v312 = vld [vmem:[%s267 + $0x48] sm:$0xff]
        %v313 = vld [vmem:[%s267 + $0x50] sm:$0xff]
        %v314 = vld [vmem:[%s267 + $0x58] sm:$0xff]
        %v315 = vld [vmem:[%s267 + $0x60] sm:$0xff]
        %v316 = vld [vmem:[%s267 + $0x68] sm:$0xff]
        %v317 = vld [vmem:[%s267 + $0x70] sm:$0xff]
        %v318 = vld [vmem:[%s267 + $0x78] sm:$0xff]
        %v319 = vld [vmem:[%s267 + $0x80] sm:$0xff]
        %v320 = vld [vmem:[%s267 + $0x88] sm:$0xff]
        %v321 = vld [vmem:[%s267 + $0x90] sm:$0xff]
        %v322 = vld [vmem:[%s267 + $0x98] sm:$0xff]
        %v323 = vld [vmem:[%s267 + $0xa0] sm:$0xff]
        %v324 = vld [vmem:[%s267 + $0xa8] sm:$0xff]
        %v325 = vld [vmem:[%s267 + $0xb0] sm:$0xff]
        %v326 = vld [vmem:[%s267 + $0xb8] sm:$0xff]
        %v327 = vld [vmem:[%s267 + $0xc0] sm:$0xff]
        %v328 = vld [vmem:[%s267 + $0xc8] sm:$0xff]
        %v329 = vld [vmem:[%s267 + $0xd0] sm:$0xff]
        %v330 = vld [vmem:[%s267 + $0xd8] sm:$0xff]
        %v331 = vld [vmem:[%s267 + $0xe0] sm:$0xff]
        %v332 = vld [vmem:[%s267 + $0xe8] sm:$0xff]
        %v333 = vld [vmem:[%s267 + $0xf0] sm:$0xff]
        %v334 = vld [vmem:[%s267 + $0xf8] sm:$0xff]
        %v335 = vld [vmem:[%s267 + $0x100] sm:$0xff]
        %v336 = vld [vmem:[%s267 + $0x108] sm:$0xff]
        %v337 = vld [vmem:[%s267 + $0x110] sm:$0xff]
        %v338 = vld [vmem:[%s267 + $0x118] sm:$0xff]
        %v339 = vld [vmem:[%s267 + $0x120] sm:$0xff]
        %v340 = vld [vmem:[%s267 + $0x128] sm:$0xff]
        %v341 = vld [vmem:[%s267 + $0x130] sm:$0xff]
        %v342 = vld [vmem:[%s267 + $0x138] sm:$0xff]
        %v343 = vld [vmem:[%s267 + $0x140] sm:$0xff]
        %v344 = vld [vmem:[%s267 + $0x148] sm:$0xff]
        %v345 = vld [vmem:[%s267 + $0x150] sm:$0xff]
        %v346 = vld [vmem:[%s267 + $0x158] sm:$0xff]
        %v347 = vld [vmem:[%s267 + $0x160] sm:$0xff]
        %v348 = vld [vmem:[%s267 + $0x168] sm:$0xff]
        %v349 = vld [vmem:[%s267 + $0x170] sm:$0xff]
        %v350 = vld [vmem:[%s267 + $0x178] sm:$0xff]
        %v351 = vld [vmem:[%s267 + $0x180] sm:$0xff]
        %v352 = vld [vmem:[%s267 + $0x188] sm:$0xff]
        %v353 = vld [vmem:[%s267 + $0x190] sm:$0xff]
        %v354 = vld [vmem:[%s267 + $0x198] sm:$0xff]
        %v355 = vld [vmem:[%s267 + $0x1a0] sm:$0xff]
        %v356 = vld [vmem:[%s267 + $0x1a8] sm:$0xff]
        %v357 = vld [vmem:[%s267 + $0x1b0] sm:$0xff]
        %v358 = vld [vmem:[%s267 + $0x1b8] sm:$0xff]
        %v359 = vld [vmem:[%s267 + $0x1c0] sm:$0xff]
        %v360 = vld [vmem:[%s267 + $0x1c8] sm:$0xff]
        %v361 = vld [vmem:[%s267 + $0x1d0] sm:$0xff]
        %v362 = vld [vmem:[%s267 + $0x1d8] sm:$0xff]
        %v363 = vld [vmem:[%s267 + $0x1e0] sm:$0xff]
        %v364 = vld [vmem:[%s267 + $0x1e8] sm:$0xff]
        %v365 = vld [vmem:[%s267 + $0x1f0] sm:$0xff]
        %v366 = vld [vmem:[%s267 + $0x1f8] sm:$0xff]
        %v367 = vld [vmem:[%s267 + $0x200] sm:$0xff]
        %v368 = vld [vmem:[%s267 + $0x208] sm:$0xff]
        %v369 = vld [vmem:[%s267 + $0x210] sm:$0xff]
        %v370 = vld [vmem:[%s267 + $0x218] sm:$0xff]
        %v371 = vld [vmem:[%s267 + $0x220] sm:$0xff]
        %v372 = vld [vmem:[%s267 + $0x228] sm:$0xff]
        %v373 = vld [vmem:[%s267 + $0x230] sm:$0xff]
        %v374 = vld [vmem:[%s267 + $0x238] sm:$0xff]
        %v375 = vld [vmem:[%s267 + $0x240] sm:$0xff]
        %v376 = vld [vmem:[%s267 + $0x248] sm:$0xff]
        %v377 = vld [vmem:[%s267 + $0x250] sm:$0xff]
        %v378 = vld [vmem:[%s267 + $0x258] sm:$0xff]
        %v379 = vld [vmem:[%s267 + $0x260] sm:$0xff]
        %v380 = vld [vmem:[%s267 + $0x268] sm:$0xff]
        %v381 = vld [vmem:[%s267 + $0x270] sm:$0xff]
        %v382 = vld [vmem:[%s267 + $0x278] sm:$0xff]
        %v383 = vld [vmem:[%s267 + $0x280] sm:$0xff]
        %v384 = vld [vmem:[%s267 + $0x288] sm:$0xff]
        %v385 = vld [vmem:[%s267 + $0x290] sm:$0xff]
        %v386 = vld [vmem:[%s267 + $0x298] sm:$0xff]
        %v387 = vld [vmem:[%s267 + $0x2a0] sm:$0xff]
        %v388 = vld [vmem:[%s267 + $0x2a8] sm:$0xff]
        %v389 = vld [vmem:[%s267 + $0x2b0] sm:$0xff]
        %v390 = vld [vmem:[%s267 + $0x2b8] sm:$0xff]
        %v391 = vld [vmem:[%s267 + $0x2c0] sm:$0xff]
        %v392 = vld [vmem:[%s267 + $0x2c8] sm:$0xff]
        %v393 = vld [vmem:[%s267 + $0x2d0] sm:$0xff]
        %v394 = vld [vmem:[%s267 + $0x2d8] sm:$0xff]
        %v395 = vld [vmem:[%s267 + $0x2e0] sm:$0xff]
        %v396 = vld [vmem:[%s267 + $0x2e8] sm:$0xff]
        %v397 = vld [vmem:[%s267 + $0x2f0] sm:$0xff]
        %v398 = vld [vmem:[%s267 + $0x2f8] sm:$0xff]
        %v399 = vld [vmem:[%s267 + $0x300] sm:$0xff]
        %v400 = vld [vmem:[%s267 + $0x308] sm:$0xff]
        %v401 = vld [vmem:[%s267 + $0x310] sm:$0xff]
        %v402 = vld [vmem:[%s267 + $0x318] sm:$0xff]
        %v403 = vld [vmem:[%s267 + $0x320] sm:$0xff]
        %v404 = vld [vmem:[%s267 + $0x328] sm:$0xff]
        %v405 = vld [vmem:[%s267 + $0x330] sm:$0xff]
        %v406 = vld [vmem:[%s267 + $0x338] sm:$0xff]
        %v407 = vld [vmem:[%s267 + $0x340] sm:$0xff]
        %v408 = vld [vmem:[%s267 + $0x348] sm:$0xff]
        %v409 = vld [vmem:[%s267 + $0x350] sm:$0xff]
        %v410 = vld [vmem:[%s267 + $0x358] sm:$0xff]
        %v411 = vld [vmem:[%s267 + $0x360] sm:$0xff]
        %v412 = vld [vmem:[%s267 + $0x368] sm:$0xff]
        %v413 = vld [vmem:[%s267 + $0x370] sm:$0xff]
        %v414 = vld [vmem:[%s267 + $0x378] sm:$0xff]
        %v415 = vld [vmem:[%s267 + $0x380] sm:$0xff]
        %v416 = vld [vmem:[%s267 + $0x388] sm:$0xff]
        %v417 = vld [vmem:[%s267 + $0x390] sm:$0xff]
        %v418 = vld [vmem:[%s267 + $0x398] sm:$0xff]
        %v419 = vld [vmem:[%s267 + $0x3a0] sm:$0xff]
        %v420 = vld [vmem:[%s267 + $0x3a8] sm:$0xff]
        %v421 = vld [vmem:[%s267 + $0x3b0] sm:$0xff]
        %v422 = vld [vmem:[%s267 + $0x3b8] sm:$0xff]
        %v423 = vld [vmem:[%s267 + $0x3c0] sm:$0xff]
        %v424 = vld [vmem:[%s267 + $0x3c8] sm:$0xff]
        %v425 = vld [vmem:[%s267 + $0x3d0] sm:$0xff]
        %v426 = vld [vmem:[%s267 + $0x3d8] sm:$0xff]
        %v427 = vld [vmem:[%s267 + $0x3e0] sm:$0xff]
        %v428 = vld [vmem:[%s267 + $0x3e8] sm:$0xff]
        %v429 = vld [vmem:[%s267 + $0x3f0] sm:$0xff]
        %v430 = vld [vmem:[%s267 + $0x3f8] sm:$0xff]
        %v559 = vunpack.c.l.b16 %v303
        %v560 = vunpack.c.h.b16 %v303
        %v561 = vunpack.c.l.b16 %v304
        %v562 = vunpack.c.h.b16 %v304
        %v563 = vunpack.c.l.b16 %v305
        %v564 = vunpack.c.h.b16 %v305
        %v565 = vunpack.c.l.b16 %v306
        %v566 = vunpack.c.h.b16 %v306
        %v567 = vunpack.c.l.b16 %v307
        %v568 = vunpack.c.h.b16 %v307
        %v569 = vunpack.c.l.b16 %v308
        %v570 = vunpack.c.h.b16 %v308
        %v571 = vunpack.c.l.b16 %v309
        %v572 = vunpack.c.h.b16 %v309
        %v573 = vunpack.c.l.b16 %v310
        %v574 = vunpack.c.h.b16 %v310
        %v575 = vunpack.c.l.b16 %v311
        %v576 = vunpack.c.h.b16 %v311
        %v577 = vunpack.c.l.b16 %v312
        %v578 = vunpack.c.h.b16 %v312
        %v579 = vunpack.c.l.b16 %v313
        %v580 = vunpack.c.h.b16 %v313
        %v581 = vunpack.c.l.b16 %v314
        %v582 = vunpack.c.h.b16 %v314
        %v583 = vunpack.c.l.b16 %v315
        %v584 = vunpack.c.h.b16 %v315
        %v585 = vunpack.c.l.b16 %v316
        %v586 = vunpack.c.h.b16 %v316
        %v587 = vunpack.c.l.b16 %v317
        %v588 = vunpack.c.h.b16 %v317
        %v589 = vunpack.c.l.b16 %v318
        %v590 = vunpack.c.h.b16 %v318
        %v591 = vunpack.c.l.b16 %v319
        %v592 = vunpack.c.h.b16 %v319
        %v593 = vunpack.c.l.b16 %v320
        %v594 = vunpack.c.h.b16 %v320
        %v595 = vunpack.c.l.b16 %v321
        %v596 = vunpack.c.h.b16 %v321
        %v597 = vunpack.c.l.b16 %v322
        %v598 = vunpack.c.h.b16 %v322
        %v599 = vunpack.c.l.b16 %v323
        %v600 = vunpack.c.h.b16 %v323
        %v601 = vunpack.c.l.b16 %v324
        %v602 = vunpack.c.h.b16 %v324
        %v603 = vunpack.c.l.b16 %v325
        %v604 = vunpack.c.h.b16 %v325
        %v605 = vunpack.c.l.b16 %v326
        %v606 = vunpack.c.h.b16 %v326
        %v607 = vunpack.c.l.b16 %v327
        %v608 = vunpack.c.h.b16 %v327
        %v609 = vunpack.c.l.b16 %v328
        %v610 = vunpack.c.h.b16 %v328
        %v611 = vunpack.c.l.b16 %v329
        %v612 = vunpack.c.h.b16 %v329
        %v613 = vunpack.c.l.b16 %v330
        %v614 = vunpack.c.h.b16 %v330
        %v615 = vunpack.c.l.b16 %v331
        %v616 = vunpack.c.h.b16 %v331
        %v617 = vunpack.c.l.b16 %v332
        %v618 = vunpack.c.h.b16 %v332
        %v619 = vunpack.c.l.b16 %v333
        %v620 = vunpack.c.h.b16 %v333
        %v621 = vunpack.c.l.b16 %v334
        %v622 = vunpack.c.h.b16 %v334
        %v623 = vunpack.c.l.b16 %v335
        %v624 = vunpack.c.h.b16 %v335
        %v625 = vunpack.c.l.b16 %v336
        %v626 = vunpack.c.h.b16 %v336
        %v627 = vunpack.c.l.b16 %v337
        %v628 = vunpack.c.h.b16 %v337
        %v629 = vunpack.c.l.b16 %v338
        %v630 = vunpack.c.h.b16 %v338
        %v631 = vunpack.c.l.b16 %v339
        %v632 = vunpack.c.h.b16 %v339
        %v633 = vunpack.c.l.b16 %v340
        %v634 = vunpack.c.h.b16 %v340
        %v635 = vunpack.c.l.b16 %v341
        %v636 = vunpack.c.h.b16 %v341
        %v637 = vunpack.c.l.b16 %v342
        %v638 = vunpack.c.h.b16 %v342
        %v639 = vunpack.c.l.b16 %v343
        %v640 = vunpack.c.h.b16 %v343
        %v641 = vunpack.c.l.b16 %v344
        %v642 = vunpack.c.h.b16 %v344
        %v643 = vunpack.c.l.b16 %v345
        %v644 = vunpack.c.h.b16 %v345
        %v645 = vunpack.c.l.b16 %v346
        %v646 = vunpack.c.h.b16 %v346
        %v647 = vunpack.c.l.b16 %v347
        %v648 = vunpack.c.h.b16 %v347
        %v649 = vunpack.c.l.b16 %v348
        %v650 = vunpack.c.h.b16 %v348
        %v651 = vunpack.c.l.b16 %v349
        %v652 = vunpack.c.h.b16 %v349
        %v653 = vunpack.c.l.b16 %v350
        %v654 = vunpack.c.h.b16 %v350
        %v655 = vunpack.c.l.b16 %v351
        %v656 = vunpack.c.h.b16 %v351
        %v657 = vunpack.c.l.b16 %v352
        %v658 = vunpack.c.h.b16 %v352
        %v659 = vunpack.c.l.b16 %v353
        %v660 = vunpack.c.h.b16 %v353
        %v661 = vunpack.c.l.b16 %v354
        %v662 = vunpack.c.h.b16 %v354
        %v663 = vunpack.c.l.b16 %v355
        %v664 = vunpack.c.h.b16 %v355
        %v665 = vunpack.c.l.b16 %v356
        %v666 = vunpack.c.h.b16 %v356
        %v667 = vunpack.c.l.b16 %v357
        %v668 = vunpack.c.h.b16 %v357
        %v669 = vunpack.c.l.b16 %v358
        %v670 = vunpack.c.h.b16 %v358
        %v671 = vunpack.c.l.b16 %v359
        %v672 = vunpack.c.h.b16 %v359
        %v673 = vunpack.c.l.b16 %v360
        %v674 = vunpack.c.h.b16 %v360
        %v675 = vunpack.c.l.b16 %v361
        %v676 = vunpack.c.h.b16 %v361
        %v677 = vunpack.c.l.b16 %v362
        %v678 = vunpack.c.h.b16 %v362
        %v679 = vunpack.c.l.b16 %v363
        %v680 = vunpack.c.h.b16 %v363
        %v681 = vunpack.c.l.b16 %v364
        %v682 = vunpack.c.h.b16 %v364
        %v683 = vunpack.c.l.b16 %v365
        %v684 = vunpack.c.h.b16 %v365
        %v685 = vunpack.c.l.b16 %v366
        %v686 = vunpack.c.h.b16 %v366
        %v687 = vunpack.c.l.b16 %v367
        %v688 = vunpack.c.h.b16 %v367
        %v689 = vunpack.c.l.b16 %v368
        %v690 = vunpack.c.h.b16 %v368
        %v691 = vunpack.c.l.b16 %v369
        %v692 = vunpack.c.h.b16 %v369
        %v693 = vunpack.c.l.b16 %v370
        %v694 = vunpack.c.h.b16 %v370
        %v695 = vunpack.c.l.b16 %v371
        %v696 = vunpack.c.h.b16 %v371
        %v697 = vunpack.c.l.b16 %v372
        %v698 = vunpack.c.h.b16 %v372
        %v699 = vunpack.c.l.b16 %v373
        %v700 = vunpack.c.h.b16 %v373
        %v701 = vunpack.c.l.b16 %v374
        %v702 = vunpack.c.h.b16 %v374
        %v703 = vunpack.c.l.b16 %v375
        %v704 = vunpack.c.h.b16 %v375
        %v705 = vunpack.c.l.b16 %v376
        %v706 = vunpack.c.h.b16 %v376
        %v707 = vunpack.c.l.b16 %v377
        %v708 = vunpack.c.h.b16 %v377
        %v709 = vunpack.c.l.b16 %v378
        %v710 = vunpack.c.h.b16 %v378
        %v711 = vunpack.c.l.b16 %v379
        %v712 = vunpack.c.h.b16 %v379
        %v713 = vunpack.c.l.b16 %v380
        %v714 = vunpack.c.h.b16 %v380
        %v715 = vunpack.c.l.b16 %v381
        %v716 = vunpack.c.h.b16 %v381
        %v717 = vunpack.c.l.b16 %v382
        %v718 = vunpack.c.h.b16 %v382
        %v719 = vunpack.c.l.b16 %v383
        %v720 = vunpack.c.h.b16 %v383
        %v721 = vunpack.c.l.b16 %v384
        %v722 = vunpack.c.h.b16 %v384
        %v723 = vunpack.c.l.b16 %v385
        %v724 = vunpack.c.h.b16 %v385
        %v725 = vunpack.c.l.b16 %v386
        %v726 = vunpack.c.h.b16 %v386
        %v727 = vunpack.c.l.b16 %v387
        %v728 = vunpack.c.h.b16 %v387
        %v729 = vunpack.c.l.b16 %v388
        %v730 = vunpack.c.h.b16 %v388
        %v731 = vunpack.c.l.b16 %v389
        %v732 = vunpack.c.h.b16 %v389
        %v733 = vunpack.c.l.b16 %v390
        %v734 = vunpack.c.h.b16 %v390
        %v735 = vunpack.c.l.b16 %v391
        %v736 = vunpack.c.h.b16 %v391
        %v737 = vunpack.c.l.b16 %v392
        %v738 = vunpack.c.h.b16 %v392
        %v739 = vunpack.c.l.b16 %v393
        %v740 = vunpack.c.h.b16 %v393
        %v741 = vunpack.c.l.b16 %v394
        %v742 = vunpack.c.h.b16 %v394
        %v743 = vunpack.c.l.b16 %v395
        %v744 = vunpack.c.h.b16 %v395
        %v745 = vunpack.c.l.b16 %v396
        %v746 = vunpack.c.h.b16 %v396
        %v747 = vunpack.c.l.b16 %v397
        %v748 = vunpack.c.h.b16 %v397
        %v749 = vunpack.c.l.b16 %v398
        %v750 = vunpack.c.h.b16 %v398
        %v751 = vunpack.c.l.b16 %v399
        %v752 = vunpack.c.h.b16 %v399
        %v753 = vunpack.c.l.b16 %v400
        %v754 = vunpack.c.h.b16 %v400
        %v755 = vunpack.c.l.b16 %v401
        %v756 = vunpack.c.h.b16 %v401
        %v757 = vunpack.c.l.b16 %v402
        %v758 = vunpack.c.h.b16 %v402
        %v759 = vunpack.c.l.b16 %v403
        %v760 = vunpack.c.h.b16 %v403
        %v761 = vunpack.c.l.b16 %v404
        %v762 = vunpack.c.h.b16 %v404
        %v763 = vunpack.c.l.b16 %v405
        %v764 = vunpack.c.h.b16 %v405
        %v765 = vunpack.c.l.b16 %v406
        %v766 = vunpack.c.h.b16 %v406
        %v767 = vunpack.c.l.b16 %v407
        %v768 = vunpack.c.h.b16 %v407
        %v769 = vunpack.c.l.b16 %v408
        %v770 = vunpack.c.h.b16 %v408
        %v771 = vunpack.c.l.b16 %v409
        %v772 = vunpack.c.h.b16 %v409
        %v773 = vunpack.c.l.b16 %v410
        %v774 = vunpack.c.h.b16 %v410
        %v775 = vunpack.c.l.b16 %v411
        %v776 = vunpack.c.h.b16 %v411
        %v777 = vunpack.c.l.b16 %v412
        %v778 = vunpack.c.h.b16 %v412
        %v779 = vunpack.c.l.b16 %v413
        %v780 = vunpack.c.h.b16 %v413
        %v781 = vunpack.c.l.b16 %v414
        %v782 = vunpack.c.h.b16 %v414
        %v783 = vunpack.c.l.b16 %v415
        %v784 = vunpack.c.h.b16 %v415
        %v785 = vunpack.c.l.b16 %v416
        %v786 = vunpack.c.h.b16 %v416
        %v787 = vunpack.c.l.b16 %v417
        %v788 = vunpack.c.h.b16 %v417
        %v789 = vunpack.c.l.b16 %v418
        %v790 = vunpack.c.h.b16 %v418
        %v791 = vunpack.c.l.b16 %v419
        %v792 = vunpack.c.h.b16 %v419
        %v793 = vunpack.c.l.b16 %v420
        %v794 = vunpack.c.h.b16 %v420
        %v795 = vunpack.c.l.b16 %v421
        %v796 = vunpack.c.h.b16 %v421
        %v797 = vunpack.c.l.b16 %v422
        %v798 = vunpack.c.h.b16 %v422
        %v799 = vunpack.c.l.b16 %v423
        %v800 = vunpack.c.h.b16 %v423
        %v801 = vunpack.c.l.b16 %v424
        %v802 = vunpack.c.h.b16 %v424
        %v803 = vunpack.c.l.b16 %v425
        %v804 = vunpack.c.h.b16 %v425
        %v805 = vunpack.c.l.b16 %v426
        %v806 = vunpack.c.h.b16 %v426
        %v807 = vunpack.c.l.b16 %v427
        %v808 = vunpack.c.h.b16 %v427
        %v809 = vunpack.c.l.b16 %v428
        %v810 = vunpack.c.h.b16 %v428
        %v811 = vunpack.c.l.b16 %v429
        %v812 = vunpack.c.h.b16 %v429
        %v813 = vunpack.c.l.b16 %v430
        %v814 = vunpack.c.h.b16 %v430
        %v815 = vpack.c.b16 %v563, %v559
        %v816 = vpack.c.b16 %v564, %v560
        %v817 = vpack.c.b16 %v565, %v561
        %v818 = vpack.c.b16 %v566, %v562
        %v819 = vpack.c.b16 %v571, %v567
        %v820 = vpack.c.b16 %v572, %v568
        %v821 = vpack.c.b16 %v573, %v569
        %v822 = vpack.c.b16 %v574, %v570
        %v823 = vpack.c.b16 %v579, %v575
        %v824 = vpack.c.b16 %v580, %v576
        %v825 = vpack.c.b16 %v581, %v577
        %v826 = vpack.c.b16 %v582, %v578
        %v827 = vpack.c.b16 %v587, %v583
        %v828 = vpack.c.b16 %v588, %v584
        %v829 = vpack.c.b16 %v589, %v585
        %v830 = vpack.c.b16 %v590, %v586
        %v831 = vpack.c.b16 %v595, %v591
        %v832 = vpack.c.b16 %v596, %v592
        %v833 = vpack.c.b16 %v597, %v593
        %v834 = vpack.c.b16 %v598, %v594
        %v835 = vpack.c.b16 %v603, %v599
        %v836 = vpack.c.b16 %v604, %v600
        %v837 = vpack.c.b16 %v605, %v601
        %v838 = vpack.c.b16 %v606, %v602
        %v839 = vpack.c.b16 %v611, %v607
        %v840 = vpack.c.b16 %v612, %v608
        %v841 = vpack.c.b16 %v613, %v609
        %v842 = vpack.c.b16 %v614, %v610
        %v843 = vpack.c.b16 %v619, %v615
        %v844 = vpack.c.b16 %v620, %v616
        %v845 = vpack.c.b16 %v621, %v617
        %v846 = vpack.c.b16 %v622, %v618
        %v847 = vpack.c.b16 %v627, %v623
        %v848 = vpack.c.b16 %v628, %v624
        %v849 = vpack.c.b16 %v629, %v625
        %v850 = vpack.c.b16 %v630, %v626
        %v851 = vpack.c.b16 %v635, %v631
        %v852 = vpack.c.b16 %v636, %v632
        %v853 = vpack.c.b16 %v637, %v633
        %v854 = vpack.c.b16 %v638, %v634
        %v855 = vpack.c.b16 %v643, %v639
        %v856 = vpack.c.b16 %v644, %v640
        %v857 = vpack.c.b16 %v645, %v641
        %v858 = vpack.c.b16 %v646, %v642
        %v859 = vpack.c.b16 %v651, %v647
        %v860 = vpack.c.b16 %v652, %v648
        %v861 = vpack.c.b16 %v653, %v649
        %v862 = vpack.c.b16 %v654, %v650
        %v863 = vpack.c.b16 %v659, %v655
        %v864 = vpack.c.b16 %v660, %v656
        %v865 = vpack.c.b16 %v661, %v657
        %v866 = vpack.c.b16 %v662, %v658
        %v867 = vpack.c.b16 %v667, %v663
        %v868 = vpack.c.b16 %v668, %v664
        %v869 = vpack.c.b16 %v669, %v665
        %v870 = vpack.c.b16 %v670, %v666
        %v871 = vpack.c.b16 %v675, %v671
        %v872 = vpack.c.b16 %v676, %v672
        %v873 = vpack.c.b16 %v677, %v673
        %v874 = vpack.c.b16 %v678, %v674
        %v875 = vpack.c.b16 %v683, %v679
        %v876 = vpack.c.b16 %v684, %v680
        %v877 = vpack.c.b16 %v685, %v681
        %v878 = vpack.c.b16 %v686, %v682
        %v879 = vpack.c.b16 %v691, %v687
        %v880 = vpack.c.b16 %v692, %v688
        %v881 = vpack.c.b16 %v693, %v689
        %v882 = vpack.c.b16 %v694, %v690
        %v883 = vpack.c.b16 %v699, %v695
        %v884 = vpack.c.b16 %v700, %v696
        %v885 = vpack.c.b16 %v701, %v697
        %v886 = vpack.c.b16 %v702, %v698
        %v887 = vpack.c.b16 %v707, %v703
        %v888 = vpack.c.b16 %v708, %v704
        %v889 = vpack.c.b16 %v709, %v705
        %v890 = vpack.c.b16 %v710, %v706
        %v891 = vpack.c.b16 %v715, %v711
        %v892 = vpack.c.b16 %v716, %v712
        %v893 = vpack.c.b16 %v717, %v713
        %v894 = vpack.c.b16 %v718, %v714
        %v895 = vpack.c.b16 %v723, %v719
        %v896 = vpack.c.b16 %v724, %v720
        %v897 = vpack.c.b16 %v725, %v721
        %v898 = vpack.c.b16 %v726, %v722
        %v899 = vpack.c.b16 %v731, %v727
        %v900 = vpack.c.b16 %v732, %v728
        %v901 = vpack.c.b16 %v733, %v729
        %v902 = vpack.c.b16 %v734, %v730
        %v903 = vpack.c.b16 %v739, %v735
        %v904 = vpack.c.b16 %v740, %v736
        %v905 = vpack.c.b16 %v741, %v737
        %v906 = vpack.c.b16 %v742, %v738
        %v907 = vpack.c.b16 %v747, %v743
        %v908 = vpack.c.b16 %v748, %v744
        %v909 = vpack.c.b16 %v749, %v745
        %v910 = vpack.c.b16 %v750, %v746
        %v911 = vpack.c.b16 %v755, %v751
        %v912 = vpack.c.b16 %v756, %v752
        %v913 = vpack.c.b16 %v757, %v753
        %v914 = vpack.c.b16 %v758, %v754
        %v915 = vpack.c.b16 %v763, %v759
        %v916 = vpack.c.b16 %v764, %v760
        %v917 = vpack.c.b16 %v765, %v761
        %v918 = vpack.c.b16 %v766, %v762
        %v919 = vpack.c.b16 %v771, %v767
        %v920 = vpack.c.b16 %v772, %v768
        %v921 = vpack.c.b16 %v773, %v769
        %v922 = vpack.c.b16 %v774, %v770
        %v923 = vpack.c.b16 %v779, %v775
        %v924 = vpack.c.b16 %v780, %v776
        %v925 = vpack.c.b16 %v781, %v777
        %v926 = vpack.c.b16 %v782, %v778
        %v927 = vpack.c.b16 %v787, %v783
        %v928 = vpack.c.b16 %v788, %v784
        %v929 = vpack.c.b16 %v789, %v785
        %v930 = vpack.c.b16 %v790, %v786
        %v931 = vpack.c.b16 %v795, %v791
        %v932 = vpack.c.b16 %v796, %v792
        %v933 = vpack.c.b16 %v797, %v793
        %v934 = vpack.c.b16 %v798, %v794
        %v935 = vpack.c.b16 %v803, %v799
        %v936 = vpack.c.b16 %v804, %v800
        %v937 = vpack.c.b16 %v805, %v801
        %v938 = vpack.c.b16 %v806, %v802
        %v939 = vpack.c.b16 %v811, %v807
        %v940 = vpack.c.b16 %v812, %v808
        %v941 = vpack.c.b16 %v813, %v809
        %v942 = vpack.c.b16 %v814, %v810
        %1071 = vmatprep.subr.bf16.mxu0 %v844
        %1072 = vmatpush1.bf16.msra.mxu0 %v843
        %1073 = vmatprep.subr.bf16.mxu0 %v840
        %1074 = vmatpush1.bf16.msra.mxu0 %v839
        %1075 = vmatprep.subr.bf16.mxu0 %v836
        %1076 = vmatpush1.bf16.msra.mxu0 %v835
        %1077 = vmatprep.subr.bf16.mxu0 %v832
        %1078 = vmatpush1.bf16.msra.mxu0 %v831
        %1079 = vmatprep.subr.bf16.mxu0 %v828
        %1080 = vmatpush1.bf16.msra.mxu0 %v827
        %1081 = vmatprep.subr.bf16.mxu0 %v824
        %1082 = vmatpush1.bf16.msra.mxu0 %v823
        %1083 = vmatprep.subr.bf16.mxu0 %v820
        %1084 = vmatpush1.bf16.msra.mxu0 %v819
        %1085 = vmatprep.subr.bf16.mxu0 %v816
        %1086 = vmatpush1.bf16.msra.mxu0 %v815
        %1087 = vmatprep.subr.bf16.mxu0 %v876
        %1088 = vmatpush2.bf16.msra.mxu0 %v875
        %1089 = vmatprep.subr.bf16.mxu0 %v872
        %1090 = vmatpush2.bf16.msra.mxu0 %v871
        %1091 = vmatprep.subr.bf16.mxu0 %v868
        %1092 = vmatpush2.bf16.msra.mxu0 %v867
        %1093 = vmatprep.subr.bf16.mxu0 %v864
        %1094 = vmatpush2.bf16.msra.mxu0 %v863
        %1095 = vmatprep.subr.bf16.mxu0 %v860
        %1096 = vmatpush2.bf16.msra.mxu0 %v859
        %1097 = vmatprep.subr.bf16.mxu0 %v856
        %1098 = vmatpush2.bf16.msra.mxu0 %v855
        %1099 = vmatprep.subr.bf16.mxu0 %v852
        %1100 = vmatpush2.bf16.msra.mxu0 %v851
        %1101 = vmatprep.subr.bf16.mxu0 %v848
        %1102 = vmatpush2.bf16.msra.mxu0 %v847
        %1103 = vmatprep.mubr.bf16.mxu0 %v299
        %1104 = vmatmul.mubr.bf16.gmra.mxu0 %v298
        %v1105 = vpop.f32.mrf.mxu0
        %v1106 = vadd.f32 0.0, %v1105
        %v1107 = vpop.f32.mrf.mxu0
        %v1108 = vadd.f32 0.0, %v1107
        %v1109 = vpop.f32.mrf.mxu0
        %v1110 = vpop.f32.mrf.mxu0
        %1111 = vdwg.mxu0
        %1112 = vmatprep.subr.bf16.mxu0 %v908
        %1113 = vmatpush1.bf16.msra.mxu0 %v907
        %1114 = vmatprep.subr.bf16.mxu0 %v904
        %1115 = vmatpush1.bf16.msra.mxu0 %v903
        %1116 = vmatprep.subr.bf16.mxu0 %v900
        %1117 = vmatpush1.bf16.msra.mxu0 %v899
        %1118 = vmatprep.subr.bf16.mxu0 %v896
        %1119 = vmatpush1.bf16.msra.mxu0 %v895
        %1120 = vmatprep.subr.bf16.mxu0 %v892
        %1121 = vmatpush1.bf16.msra.mxu0 %v891
        %1122 = vmatprep.subr.bf16.mxu0 %v888
        %1123 = vmatpush1.bf16.msra.mxu0 %v887
        %1124 = vmatprep.subr.bf16.mxu0 %v884
        %1125 = vmatpush1.bf16.msra.mxu0 %v883
        %1126 = vmatprep.subr.bf16.mxu0 %v880
        %1127 = vmatpush1.bf16.msra.mxu0 %v879
        %1128 = vmatprep.subr.bf16.mxu0 %v940
        %1129 = vmatpush2.bf16.msra.mxu0 %v939
        %1130 = vmatprep.subr.bf16.mxu0 %v936
        %1131 = vmatpush2.bf16.msra.mxu0 %v935
        %1132 = vmatprep.subr.bf16.mxu0 %v932
        %1133 = vmatpush2.bf16.msra.mxu0 %v931
        %1134 = vmatprep.subr.bf16.mxu0 %v928
        %1135 = vmatpush2.bf16.msra.mxu0 %v927
        %1136 = vmatprep.subr.bf16.mxu0 %v924
        %1137 = vmatpush2.bf16.msra.mxu0 %v923
        %1138 = vmatprep.subr.bf16.mxu0 %v920
        %1139 = vmatpush2.bf16.msra.mxu0 %v919
        %1140 = vmatprep.subr.bf16.mxu0 %v916
        %1141 = vmatpush2.bf16.msra.mxu0 %v915
        %1142 = vmatprep.subr.bf16.mxu0 %v912
        %1143 = vmatpush2.bf16.msra.mxu0 %v911
        %1144 = vmatprep.mubr.bf16.mxu0 %v301
        %1145 = vmatmul.mubr.bf16.gmra.mxu0 %v300
        %v1146 = vpop.f32.mrf.mxu0
        %v1147 = vadd.f32 %v1106, %v1146
        %v1148 = vpop.f32.mrf.mxu0
        %v1149 = vadd.f32 %v1108, %v1148
        %v1150 = vpop.f32.mrf.mxu0
        %v1151 = vpop.f32.mrf.mxu0
        %1152 = vdwg.mxu0
        %1153 = vmatprep.subr.bf16.mxu0 %v846
        %1154 = vmatpush1.bf16.msra.mxu0 %v845
        %1155 = vmatprep.subr.bf16.mxu0 %v842
        %1156 = vmatpush1.bf16.msra.mxu0 %v841
        %1157 = vmatprep.subr.bf16.mxu0 %v838
        %1158 = vmatpush1.bf16.msra.mxu0 %v837
        %1159 = vmatprep.subr.bf16.mxu0 %v834
        %1160 = vmatpush1.bf16.msra.mxu0 %v833
        %1161 = vmatprep.subr.bf16.mxu0 %v830
        %1162 = vmatpush1.bf16.msra.mxu0 %v829
        %1163 = vmatprep.subr.bf16.mxu0 %v826
        %1164 = vmatpush1.bf16.msra.mxu0 %v825
        %1165 = vmatprep.subr.bf16.mxu0 %v822
        %1166 = vmatpush1.bf16.msra.mxu0 %v821
        %1167 = vmatprep.subr.bf16.mxu0 %v818
        %1168 = vmatpush1.bf16.msra.mxu0 %v817
        %1169 = vmatprep.subr.bf16.mxu0 %v878
        %1170 = vmatpush2.bf16.msra.mxu0 %v877
        %1171 = vmatprep.subr.bf16.mxu0 %v874
        %1172 = vmatpush2.bf16.msra.mxu0 %v873
        %1173 = vmatprep.subr.bf16.mxu0 %v870
        %1174 = vmatpush2.bf16.msra.mxu0 %v869
        %1175 = vmatprep.subr.bf16.mxu0 %v866
        %1176 = vmatpush2.bf16.msra.mxu0 %v865
        %1177 = vmatprep.subr.bf16.mxu0 %v862
        %1178 = vmatpush2.bf16.msra.mxu0 %v861
        %1179 = vmatprep.subr.bf16.mxu0 %v858
        %1180 = vmatpush2.bf16.msra.mxu0 %v857
        %1181 = vmatprep.subr.bf16.mxu0 %v854
        %1182 = vmatpush2.bf16.msra.mxu0 %v853
        %1183 = vmatprep.subr.bf16.mxu0 %v850
        %1184 = vmatpush2.bf16.msra.mxu0 %v849
        %1185 = vmatprep.mubr.bf16.mxu0 %v299
        %1186 = vmatmul.mubr.bf16.gmra.mxu0 %v298
        %v1187 = vpop.f32.mrf.mxu0
        %v1188 = vadd.f32 0.0, %v1187
        %v1189 = vpop.f32.mrf.mxu0
        %v1190 = vadd.f32 0.0, %v1189
        %v1191 = vpop.f32.mrf.mxu0
        %v1192 = vpop.f32.mrf.mxu0
        %1193 = vdwg.mxu0
        %1194 = vmatprep.subr.bf16.mxu0 %v910
        %1195 = vmatpush1.bf16.msra.mxu0 %v909
        %1196 = vmatprep.subr.bf16.mxu0 %v906
        %1197 = vmatpush1.bf16.msra.mxu0 %v905
        %1198 = vmatprep.subr.bf16.mxu0 %v902
        %1199 = vmatpush1.bf16.msra.mxu0 %v901
        %1200 = vmatprep.subr.bf16.mxu0 %v898
        %1201 = vmatpush1.bf16.msra.mxu0 %v897
        %1202 = vmatprep.subr.bf16.mxu0 %v894
        %1203 = vmatpush1.bf16.msra.mxu0 %v893
        %1204 = vmatprep.subr.bf16.mxu0 %v890
        %1205 = vmatpush1.bf16.msra.mxu0 %v889
        %1206 = vmatprep.subr.bf16.mxu0 %v886
        %1207 = vmatpush1.bf16.msra.mxu0 %v885
        %1208 = vmatprep.subr.bf16.mxu0 %v882
        %1209 = vmatpush1.bf16.msra.mxu0 %v881
        %1210 = vmatprep.subr.bf16.mxu0 %v942
        %1211 = vmatpush2.bf16.msra.mxu0 %v941
        %1212 = vmatprep.subr.bf16.mxu0 %v938
        %1213 = vmatpush2.bf16.msra.mxu0 %v937
        %1214 = vmatprep.subr.bf16.mxu0 %v934
        %1215 = vmatpush2.bf16.msra.mxu0 %v933
        %1216 = vmatprep.subr.bf16.mxu0 %v930
        %1217 = vmatpush2.bf16.msra.mxu0 %v929
        %1218 = vmatprep.subr.bf16.mxu0 %v926
        %1219 = vmatpush2.bf16.msra.mxu0 %v925
        %1220 = vmatprep.subr.bf16.mxu0 %v922
        %1221 = vmatpush2.bf16.msra.mxu0 %v921
        %1222 = vmatprep.subr.bf16.mxu0 %v918
        %1223 = vmatpush2.bf16.msra.mxu0 %v917
        %1224 = vmatprep.subr.bf16.mxu0 %v914
        %1225 = vmatpush2.bf16.msra.mxu0 %v913
        %1226 = vmatprep.mubr.bf16.mxu0 %v301
        %1227 = vmatmul.mubr.bf16.gmra.mxu0 %v300
        %v1228 = vpop.f32.mrf.mxu0
        %v1229 = vadd.f32 %v1188, %v1228
        %v1230 = vpop.f32.mrf.mxu0
        %v1231 = vadd.f32 %v1190, %v1230
        %v1232 = vpop.f32.mrf.mxu0
        %v1233 = vpop.f32.mrf.mxu0
        %1234 = vdwg.mxu0
        %v1239 = vcombine.low %v1147, %v1149
        %v1240 = vcombine.low %v1229, %v1231
        %v1242 = vunpack.c.l.s4 1983009808
        %v1243 = vunpack.c.0.s8 %v1242
        %v1244 = vlaneseq
        %v1245 = vshrl.u32 %v1244, 7
        %v1246 = vsub.s32 %v1243, %v1245
        %v1247 = vrot.slane %v1239, %v1246
        %v1249 = vunpack.c.l.s4 1983009808
        %v1250 = vunpack.c.0.s8 %v1249
        %v1251 = vlaneseq
        %v1252 = vshrl.u32 %v1251, 7
        %v1253 = vsub.s32 %v1250, %v1252
        %v1254 = vrot.slane %v1240, %v1253
        %v1255 = vcombine.low %v1247, %v1254
        %v1257 = vadd.f32 %v302, %v1255
        %1258 = vst [vmem:[#allocation2] sm:$0xff] %v1257
        %p1259 = scmp.eq.s32.totalorder %s22, 6
        // Predicated region
        $region45: #{forward.3} parent=39 // pred_check
          %p1260 = pneg %p1259
        $region46: #{forward.3} parent=39 // pred_check_branch
          %1262 = sbr.rel (%p1260) target = $region48
        $region47: #{forward.3} parent=39 // pred_region
          %v1263 = vld [vmem:[#allocation2] sm:$0xff]
          %v1264 = vld [vmem:[%s2] sm:$0xf]
          %v1266 = vlaneseq
          %v1267 = vshrl.u32 %v1266, 7
          %v1268 = vsub.s32 0, %v1267
          %v1269 = vrot.slane %v1264, %v1268
          %v1270 = vlaneseq
          %v1271 = vshrl.u32 %v1270, 7
          %v1272 = vsub.s32 1, %v1271
          %v1273 = vrot.slane %v1264, %v1272
          %v1274 = vlaneseq
          %v1275 = vshrl.u32 %v1274, 7
          %v1276 = vsub.s32 2, %v1275
          %v1277 = vrot.slane %v1264, %v1276
          %v1278 = vlaneseq
          %v1279 = vshrl.u32 %v1278, 7
          %v1280 = vsub.s32 3, %v1279
          %v1281 = vrot.slane %v1264, %v1280
          %v1282 = vcombine.low %v1269, %v1273
          %v1283 = vcombine.low %v1277, %v1281
          %v1285 = vunpack.c.l.s4 1983009808
          %v1286 = vunpack.c.0.s8 %v1285
          %v1287 = vlaneseq
          %v1288 = vshrl.u32 %v1287, 7
          %v1289 = vsub.s32 %v1286, %v1288
          %v1290 = vrot.slane %v1282, %v1289
          %v1292 = vunpack.c.l.s4 1983009808
          %v1293 = vunpack.c.0.s8 %v1292
          %v1294 = vlaneseq
          %v1295 = vshrl.u32 %v1294, 7
          %v1296 = vsub.s32 %v1293, %v1295
          %v1297 = vrot.slane %v1283, %v1296
          %v1298 = vcombine.low %v1290, %v1297
          %v1300 = vadd.f32 %v1263, %v1298
          %v1301 = vmax.f32 %v1300, 0.0
          %v1303 = vcombine.high %v1301, %v1301
          %v1305 = vunpack.c.l.s4 1983009808
          %v1306 = vunpack.c.0.s8 %v1305
          %v1307 = vlaneseq
          %v1308 = vshrl.u32 %v1307, 7
          %v1309 = vsub.s32 %v1306, %v1308
          %v1310 = vrot.slane %v1301, %v1309
          %v1312 = vunpack.c.l.s4 1983009808
          %v1313 = vunpack.c.0.s8 %v1312
          %v1314 = vlaneseq
          %v1315 = vshrl.u32 %v1314, 7
          %v1316 = vsub.s32 %v1313, %v1315
          %v1317 = vrot.slane %v1303, %v1316
          %v1318 = vcombine.high %v1310, %v1310
          %v1319 = vcombine.high %v1317, %v1317
          %v1324 = vpack.c.bf16 %v1310, %v1310
          %v1325 = vpack.c.bf16 %v1318, %v1318
          %v1326 = vpack.c.bf16 %v1317, %v1317
          %v1327 = vpack.c.bf16 %v1319, %v1319
          %v1328 = vld [vmem:[%s3] sm:$0xf]
          %v1329 = vld [vmem:[%s3 + $0x4] sm:$0xf]
          %v1330 = vld [vmem:[%s3 + $0x8] sm:$0xf]
          %v1331 = vld [vmem:[%s3 + $0xc] sm:$0xf]
          %v1332 = vld [vmem:[%s3 + $0x10] sm:$0xf]
          %v1333 = vld [vmem:[%s3 + $0x14] sm:$0xf]
          %v1334 = vld [vmem:[%s3 + $0x18] sm:$0xf]
          %v1335 = vld [vmem:[%s3 + $0x1c] sm:$0xf]
          %v1336 = vld [vmem:[%s3 + $0x20] sm:$0xf]
          %v1337 = vld [vmem:[%s3 + $0x24] sm:$0xf]
          %v1338 = vld [vmem:[%s3 + $0x28] sm:$0xf]
          %v1339 = vld [vmem:[%s3 + $0x2c] sm:$0xf]
          %v1340 = vld [vmem:[%s3 + $0x30] sm:$0xf]
          %v1341 = vld [vmem:[%s3 + $0x34] sm:$0xf]
          %v1342 = vld [vmem:[%s3 + $0x38] sm:$0xf]
          %v1343 = vld [vmem:[%s3 + $0x3c] sm:$0xf]
          %v1344 = vld [vmem:[%s3 + $0x40] sm:$0xf]
          %v1345 = vld [vmem:[%s3 + $0x44] sm:$0xf]
          %v1346 = vld [vmem:[%s3 + $0x48] sm:$0xf]
          %v1347 = vld [vmem:[%s3 + $0x4c] sm:$0xf]
          %v1348 = vld [vmem:[%s3 + $0x50] sm:$0xf]
          %v1349 = vld [vmem:[%s3 + $0x54] sm:$0xf]
          %v1350 = vld [vmem:[%s3 + $0x58] sm:$0xf]
          %v1351 = vld [vmem:[%s3 + $0x5c] sm:$0xf]
          %v1352 = vld [vmem:[%s3 + $0x60] sm:$0xf]
          %v1353 = vld [vmem:[%s3 + $0x64] sm:$0xf]
          %v1354 = vld [vmem:[%s3 + $0x68] sm:$0xf]
          %v1355 = vld [vmem:[%s3 + $0x6c] sm:$0xf]
          %v1356 = vld [vmem:[%s3 + $0x70] sm:$0xf]
          %v1357 = vld [vmem:[%s3 + $0x74] sm:$0xf]
          %v1358 = vld [vmem:[%s3 + $0x78] sm:$0xf]
          %v1359 = vld [vmem:[%s3 + $0x7c] sm:$0xf]
          %v1360 = vld [vmem:[%s3 + $0x80] sm:$0xf]
          %v1361 = vld [vmem:[%s3 + $0x84] sm:$0xf]
          %v1362 = vld [vmem:[%s3 + $0x88] sm:$0xf]
          %v1363 = vld [vmem:[%s3 + $0x8c] sm:$0xf]
          %v1364 = vld [vmem:[%s3 + $0x90] sm:$0xf]
          %v1365 = vld [vmem:[%s3 + $0x94] sm:$0xf]
          %v1366 = vld [vmem:[%s3 + $0x98] sm:$0xf]
          %v1367 = vld [vmem:[%s3 + $0x9c] sm:$0xf]
          %v1368 = vld [vmem:[%s3 + $0xa0] sm:$0xf]
          %v1369 = vld [vmem:[%s3 + $0xa4] sm:$0xf]
          %v1370 = vld [vmem:[%s3 + $0xa8] sm:$0xf]
          %v1371 = vld [vmem:[%s3 + $0xac] sm:$0xf]
          %v1372 = vld [vmem:[%s3 + $0xb0] sm:$0xf]
          %v1373 = vld [vmem:[%s3 + $0xb4] sm:$0xf]
          %v1374 = vld [vmem:[%s3 + $0xb8] sm:$0xf]
          %v1375 = vld [vmem:[%s3 + $0xbc] sm:$0xf]
          %v1376 = vld [vmem:[%s3 + $0xc0] sm:$0xf]
          %v1377 = vld [vmem:[%s3 + $0xc4] sm:$0xf]
          %v1378 = vld [vmem:[%s3 + $0xc8] sm:$0xf]
          %v1379 = vld [vmem:[%s3 + $0xcc] sm:$0xf]
          %v1380 = vld [vmem:[%s3 + $0xd0] sm:$0xf]
          %v1381 = vld [vmem:[%s3 + $0xd4] sm:$0xf]
          %v1382 = vld [vmem:[%s3 + $0xd8] sm:$0xf]
          %v1383 = vld [vmem:[%s3 + $0xdc] sm:$0xf]
          %v1384 = vld [vmem:[%s3 + $0xe0] sm:$0xf]
          %v1385 = vld [vmem:[%s3 + $0xe4] sm:$0xf]
          %v1386 = vld [vmem:[%s3 + $0xe8] sm:$0xf]
          %v1387 = vld [vmem:[%s3 + $0xec] sm:$0xf]
          %v1388 = vld [vmem:[%s3 + $0xf0] sm:$0xf]
          %v1389 = vld [vmem:[%s3 + $0xf4] sm:$0xf]
          %v1390 = vld [vmem:[%s3 + $0xf8] sm:$0xf]
          %v1391 = vld [vmem:[%s3 + $0xfc] sm:$0xf]
          %v1392 = vld [vmem:[%s4] sm:$0x1]
          %v1394 = vlaneseq
          %v1395 = vshrl.u32 %v1394, 7
          %v1396 = vsub.s32 0, %v1395
          %v1397 = vrot.slane %v1392, %v1396
          %v1463 = vunpack.c.l.b16 %v1328
          %v1464 = vunpack.c.l.b16 %v1329
          %v1465 = vunpack.c.l.b16 %v1330
          %v1466 = vunpack.c.l.b16 %v1331
          %v1467 = vunpack.c.l.b16 %v1332
          %v1468 = vunpack.c.l.b16 %v1333
          %v1469 = vunpack.c.l.b16 %v1334
          %v1470 = vunpack.c.l.b16 %v1335
          %v1471 = vunpack.c.l.b16 %v1336
          %v1472 = vunpack.c.l.b16 %v1337
          %v1473 = vunpack.c.l.b16 %v1338
          %v1474 = vunpack.c.l.b16 %v1339
          %v1475 = vunpack.c.l.b16 %v1340
          %v1476 = vunpack.c.l.b16 %v1341
          %v1477 = vunpack.c.l.b16 %v1342
          %v1478 = vunpack.c.l.b16 %v1343
          %v1479 = vunpack.c.l.b16 %v1344
          %v1480 = vunpack.c.l.b16 %v1345
          %v1481 = vunpack.c.l.b16 %v1346
          %v1482 = vunpack.c.l.b16 %v1347
          %v1483 = vunpack.c.l.b16 %v1348
          %v1484 = vunpack.c.l.b16 %v1349
          %v1485 = vunpack.c.l.b16 %v1350
          %v1486 = vunpack.c.l.b16 %v1351
          %v1487 = vunpack.c.l.b16 %v1352
          %v1488 = vunpack.c.l.b16 %v1353
          %v1489 = vunpack.c.l.b16 %v1354
          %v1490 = vunpack.c.l.b16 %v1355
          %v1491 = vunpack.c.l.b16 %v1356
          %v1492 = vunpack.c.l.b16 %v1357
          %v1493 = vunpack.c.l.b16 %v1358
          %v1494 = vunpack.c.l.b16 %v1359
          %v1495 = vunpack.c.l.b16 %v1360
          %v1496 = vunpack.c.l.b16 %v1361
          %v1497 = vunpack.c.l.b16 %v1362
          %v1498 = vunpack.c.l.b16 %v1363
          %v1499 = vunpack.c.l.b16 %v1364
          %v1500 = vunpack.c.l.b16 %v1365
          %v1501 = vunpack.c.l.b16 %v1366
          %v1502 = vunpack.c.l.b16 %v1367
          %v1503 = vunpack.c.l.b16 %v1368
          %v1504 = vunpack.c.l.b16 %v1369
          %v1505 = vunpack.c.l.b16 %v1370
          %v1506 = vunpack.c.l.b16 %v1371
          %v1507 = vunpack.c.l.b16 %v1372
          %v1508 = vunpack.c.l.b16 %v1373
          %v1509 = vunpack.c.l.b16 %v1374
          %v1510 = vunpack.c.l.b16 %v1375
          %v1511 = vunpack.c.l.b16 %v1376
          %v1512 = vunpack.c.l.b16 %v1377
          %v1513 = vunpack.c.l.b16 %v1378
          %v1514 = vunpack.c.l.b16 %v1379
          %v1515 = vunpack.c.l.b16 %v1380
          %v1516 = vunpack.c.l.b16 %v1381
          %v1517 = vunpack.c.l.b16 %v1382
          %v1518 = vunpack.c.l.b16 %v1383
          %v1519 = vunpack.c.l.b16 %v1384
          %v1520 = vunpack.c.l.b16 %v1385
          %v1521 = vunpack.c.l.b16 %v1386
          %v1522 = vunpack.c.l.b16 %v1387
          %v1523 = vunpack.c.l.b16 %v1388
          %v1524 = vunpack.c.l.b16 %v1389
          %v1525 = vunpack.c.l.b16 %v1390
          %v1526 = vunpack.c.l.b16 %v1391
          %v1527 = vpack.c.b16 %v1464, %v1463
          %v1528 = vpack.c.b16 %v1466, %v1465
          %v1529 = vpack.c.b16 %v1468, %v1467
          %v1530 = vpack.c.b16 %v1470, %v1469
          %v1531 = vpack.c.b16 %v1472, %v1471
          %v1532 = vpack.c.b16 %v1474, %v1473
          %v1533 = vpack.c.b16 %v1476, %v1475
          %v1534 = vpack.c.b16 %v1478, %v1477
          %v1535 = vpack.c.b16 %v1480, %v1479
          %v1536 = vpack.c.b16 %v1482, %v1481
          %v1537 = vpack.c.b16 %v1484, %v1483
          %v1538 = vpack.c.b16 %v1486, %v1485
          %v1539 = vpack.c.b16 %v1488, %v1487
          %v1540 = vpack.c.b16 %v1490, %v1489
          %v1541 = vpack.c.b16 %v1492, %v1491
          %v1542 = vpack.c.b16 %v1494, %v1493
          %v1543 = vpack.c.b16 %v1496, %v1495
          %v1544 = vpack.c.b16 %v1498, %v1497
          %v1545 = vpack.c.b16 %v1500, %v1499
          %v1546 = vpack.c.b16 %v1502, %v1501
          %v1547 = vpack.c.b16 %v1504, %v1503
          %v1548 = vpack.c.b16 %v1506, %v1505
          %v1549 = vpack.c.b16 %v1508, %v1507
          %v1550 = vpack.c.b16 %v1510, %v1509
          %v1551 = vpack.c.b16 %v1512, %v1511
          %v1552 = vpack.c.b16 %v1514, %v1513
          %v1553 = vpack.c.b16 %v1516, %v1515
          %v1554 = vpack.c.b16 %v1518, %v1517
          %v1555 = vpack.c.b16 %v1520, %v1519
          %v1556 = vpack.c.b16 %v1522, %v1521
          %v1557 = vpack.c.b16 %v1524, %v1523
          %v1558 = vpack.c.b16 %v1526, %v1525
          %1591 = vmatprep.subr.bf16.mxu0 0
          %1592 = vmatpush1.bf16.msra.mxu0 %v1534
          %1593 = vmatprep.subr.bf16.mxu0 0
          %1594 = vmatpush1.bf16.msra.mxu0 %v1533
          %1595 = vmatprep.subr.bf16.mxu0 0
          %1596 = vmatpush1.bf16.msra.mxu0 %v1532
          %1597 = vmatprep.subr.bf16.mxu0 0
          %1598 = vmatpush1.bf16.msra.mxu0 %v1531
          %1599 = vmatprep.subr.bf16.mxu0 0
          %1600 = vmatpush1.bf16.msra.mxu0 %v1530
          %1601 = vmatprep.subr.bf16.mxu0 0
          %1602 = vmatpush1.bf16.msra.mxu0 %v1529
          %1603 = vmatprep.subr.bf16.mxu0 0
          %1604 = vmatpush1.bf16.msra.mxu0 %v1528
          %1605 = vmatprep.subr.bf16.mxu0 0
          %1606 = vmatpush1.bf16.msra.mxu0 %v1527
          %1607 = vmatprep.subr.bf16.mxu0 0
          %1608 = vmatpush2.bf16.msra.mxu0 %v1542
          %1609 = vmatprep.subr.bf16.mxu0 0
          %1610 = vmatpush2.bf16.msra.mxu0 %v1541
          %1611 = vmatprep.subr.bf16.mxu0 0
          %1612 = vmatpush2.bf16.msra.mxu0 %v1540
          %1613 = vmatprep.subr.bf16.mxu0 0
          %1614 = vmatpush2.bf16.msra.mxu0 %v1539
          %1615 = vmatprep.subr.bf16.mxu0 0
          %1616 = vmatpush2.bf16.msra.mxu0 %v1538
          %1617 = vmatprep.subr.bf16.mxu0 0
          %1618 = vmatpush2.bf16.msra.mxu0 %v1537
          %1619 = vmatprep.subr.bf16.mxu0 0
          %1620 = vmatpush2.bf16.msra.mxu0 %v1536
          %1621 = vmatprep.subr.bf16.mxu0 0
          %1622 = vmatpush2.bf16.msra.mxu0 %v1535
          %1623 = vmatprep.mubr.bf16.mxu0 %v1325
          %1624 = vmatmul.mubr.bf16.gmra.mxu0 %v1324
          %v1625 = vpop.f32.mrf.mxu0
          %v1626 = vadd.f32 %v1397, %v1625
          %v1627 = vpop.f32.mrf.mxu0
          %v1628 = vpop.f32.mrf.mxu0
          %v1629 = vpop.f32.mrf.mxu0
          %1630 = vdwg.mxu0
          %1631 = vmatprep.subr.bf16.mxu0 0
          %1632 = vmatpush1.bf16.msra.mxu0 %v1550
          %1633 = vmatprep.subr.bf16.mxu0 0
          %1634 = vmatpush1.bf16.msra.mxu0 %v1549
          %1635 = vmatprep.subr.bf16.mxu0 0
          %1636 = vmatpush1.bf16.msra.mxu0 %v1548
          %1637 = vmatprep.subr.bf16.mxu0 0
          %1638 = vmatpush1.bf16.msra.mxu0 %v1547
          %1639 = vmatprep.subr.bf16.mxu0 0
          %1640 = vmatpush1.bf16.msra.mxu0 %v1546
          %1641 = vmatprep.subr.bf16.mxu0 0
          %1642 = vmatpush1.bf16.msra.mxu0 %v1545
          %1643 = vmatprep.subr.bf16.mxu0 0
          %1644 = vmatpush1.bf16.msra.mxu0 %v1544
          %1645 = vmatprep.subr.bf16.mxu0 0
          %1646 = vmatpush1.bf16.msra.mxu0 %v1543
          %1647 = vmatprep.subr.bf16.mxu0 0
          %1648 = vmatpush2.bf16.msra.mxu0 %v1558
          %1649 = vmatprep.subr.bf16.mxu0 0
          %1650 = vmatpush2.bf16.msra.mxu0 %v1557
          %1651 = vmatprep.subr.bf16.mxu0 0
          %1652 = vmatpush2.bf16.msra.mxu0 %v1556
          %1653 = vmatprep.subr.bf16.mxu0 0
          %1654 = vmatpush2.bf16.msra.mxu0 %v1555
          %1655 = vmatprep.subr.bf16.mxu0 0
          %1656 = vmatpush2.bf16.msra.mxu0 %v1554
          %1657 = vmatprep.subr.bf16.mxu0 0
          %1658 = vmatpush2.bf16.msra.mxu0 %v1553
          %1659 = vmatprep.subr.bf16.mxu0 0
          %1660 = vmatpush2.bf16.msra.mxu0 %v1552
          %1661 = vmatprep.subr.bf16.mxu0 0
          %1662 = vmatpush2.bf16.msra.mxu0 %v1551
          %1663 = vmatprep.mubr.bf16.mxu0 %v1327
          %1664 = vmatmul.mubr.bf16.gmra.mxu0 %v1326
          %v1665 = vpop.f32.mrf.mxu0
          %v1666 = vadd.f32 %v1626, %v1665
          %v1667 = vpop.f32.mrf.mxu0
          %v1668 = vpop.f32.mrf.mxu0
          %v1669 = vpop.f32.mrf.mxu0
          %1670 = vdwg.mxu0
          %1671 = vst [vmem:[#allocation3] sm:$0x3] %v1666
        $region48: #{forward.3} parent=39 // pred_fallthru
          _
        // Predicated region
        $region49: #{forward.3} parent=39 // pred_check
          %p1672 = pneg %p164
        $region50: #{forward.3} parent=39 // pred_check_branch
          %1674 = sbr.rel (%p1672) target = $region52
        $region51: #{forward.3} parent=39 // pred_region
          %s1676 = ssub.s32 32, 32
          %1677 = vsyncadd [#allocation4], %s1676
          %s1678 = smul.addr %s21, 32
          %s1679 = scalar_lea.hbm %s5, %s1678
          %s1681 = sshll.u32 [#allocation3], 4
          %s1682 = int_to_ptr.vmem [resolvable:$true] %s1681
          %1684 = dma.vmem_to_hbm [thread:$0]  %s1682, 32, %s1679, [#allocation4]
        $region52: #{forward.3} parent=39 // pred_fallthru
          _
        // Predicated region
        $region53: #{forward.3} parent=39 // pred_check
          %p1685 = pneg %p164
        $region54: #{forward.3} parent=39 // pred_check_branch
          %1687 = sbr.rel (%p1685) target = $region56
        $region55: #{forward.3} parent=39 // pred_region
          %1688 = dma.done [#allocation4], 32
        $region56: #{forward.3} parent=39 // pred_fallthru
          _
      $region40: #{forward.3} parent=5 // pred_fallthru
        _
      %p1689 = scmp.le.s32.totalorder 2, %s12
      // Predicated region
      $region57: #{forward.3} parent=5 // pred_check
        %p1690 = pneg %p1689
      $region58: #{forward.3} parent=5 // pred_check_branch
        %1692 = sbr.rel (%p1690) target = $region60
      $region59: #{forward.3} parent=5 // pred_region
        %s1693 = ssub.s32 %s12, 2
      $region60: #{forward.3} parent=5 // pred_fallthru
        _
    $region6: #{forward.3} parent=1 // loop_footer
      %s16 = sadd.s32 1, %s12
    $region7: #{forward.3} parent=1 // loop_footer_branch
      %11 = sbr.rel target = $region3
    $region8: #{forward.3} parent=1 // loop_exit
      _
    %1694 = vsyncpa [#allocation4], 1
    %s1695 = scalar_lea.sflag [#allocation4], 1
    %1696 = vsyncpa %s1695, 1

// kernel: forward.2
$region0: #{forward.2}
  #allocation0 [shape = 'u32[]', space=smem, size = 0x4, offset = 0x4, fixed_abs, tag = 'smem constant byte address 0x4 - core index']
  #allocation1 [shape = 'u32[144,128]{1,0:T(1,128)}', space=vmem, size = 0x12000, scoped, tag = 'internal scratch']
  #allocation2 [shape = 'f32[16,512]{1,0:T(8,128)}', space=vmem, size = 0x8000, scoped, tag = 'scratch operand']
  %s0 = inlined_call_operand.vmem [shape: bf16[2,2,15,30], index: 0, kind: input, shape index: {}]
  %s1 = inlined_call_operand.vmem [shape: bf16[2,3,30,448], index: 1, kind: input, shape index: {}]
  %s2 = inlined_call_operand.vmem [shape: f32[1,448], index: 2, kind: input, shape index: {}]
  %s3 = inlined_call_operand.vmem [shape: bf16[2,3,512,448], index: 3, kind: input, shape index: {}]
  %s4 = inlined_call_operand.vmem [shape: f32[1,448], index: 4, kind: input, shape index: {}]
  %s5 = inlined_call_operand.vmem [shape: f32[2,7,512], index: 5, kind: output, shape index: {}]
  %s6 = sld [smem:[#allocation0]]
  $region53: #{forward.2} parent=0
    _
  %s8 = ssub.s32 1, %s6
  %s9 = scalar_select 0, %s8, %s6
  loop: start=0, step=1, limit=4
  $region2: #{forward.2} parent=0 // loop_pre_header
    _
  $region3: #{forward.2} parent=0 // loop_header
    %s11 = sphi 0, %s15
    %p12 = scmp.ge.s32.totalorder %s11, 4
    %s21 = sphi 0, %s23
    %s24 = sphi 0, %s21
    %s25 = sphi 0, %s24
    %s41 = sphi 0, %s25
    %s45 = sphi 0, %s45
    %s47 = sphi 0, %s45
    %s48 = sphi 0, %s47
    %s62 = sphi 0, %s48
    %s66 = sphi 0, %s66
    %s68 = sphi 0, %s66
    %s69 = sphi 0, %s68
    %s83 = sphi 0, %s69
    %s87 = sphi 0, %s87
    %s89 = sphi 0, %s87
    %s90 = sphi 0, %s89
    %s104 = sphi 0, %s90
    %s108 = sphi 0, %s108
    %s110 = sphi 0, %s108
    %s111 = sphi 0, %s110
    %s125 = sphi 0, %s111
    %s131 = sphi 0, %s133
    %s134 = sphi 0, %s131
    %s135 = sphi 0, %s134
    %s151 = sphi 0, %s135
  $region4: #{forward.2} parent=0 // loop_header_branch
    %14 = sbr.rel (%p12) target = $region8
  $region5: #{forward.2} parent=0 // loop_body
    %s16 = ssub.s32 %s11, 1
    %s17 = ssub.s32 %s11, 2
    %s18 = sadd.s32 %s11, 1
    %s19 = ssub.s32 %s11, %s18
    %p20 = scmp.eq.s32.totalorder %s19, 0
    %s22 = sadd.s32 %s21, 1
    %s23 = scalar_select %p20, %s21, %s22
    %p26 = pneg %p20
    %p27 = scmp.eq.s32.totalorder %s11, 1
    %p28 = por %p26, %p27
    %p29 = scmp.ne.s32.totalorder %s21, %s24
    %p30 = scmp.eq.s32.totalorder %s11, 0
    %p31 = por %p29, %p30
    %p32 = scmp.ne.s32.totalorder %s21, %s24
    %p33 = scmp.eq.s32.totalorder %s16, 1
    %p34 = por %p32, %p33
    %p35 = scmp.ne.s32.totalorder %s24, %s25
    %p36 = scmp.eq.s32.totalorder %s16, 0
    %p37 = por %p35, %p36
    %p38 = scmp.ne.s32.totalorder %s24, %s25
    %p39 = scmp.eq.s32.totalorder %s17, 1
    %p40 = por %p38, %p39
    %p42 = scmp.ne.s32.totalorder %s25, %s41
    %p43 = scmp.eq.s32.totalorder %s17, 0
    %p44 = por %p42, %p43
    %s46 = sadd.s32 %s45, 1
    %p49 = scmp.eq.s32.totalorder %s11, 1
    %p50 = scmp.ne.s32.totalorder %s45, %s47
    %p51 = scmp.eq.s32.totalorder %s11, 0
    %p52 = por %p50, %p51
    %p53 = scmp.ne.s32.totalorder %s45, %s47
    %p54 = scmp.eq.s32.totalorder %s16, 1
    %p55 = por %p53, %p54
    %p56 = scmp.ne.s32.totalorder %s47, %s48
    %p57 = scmp.eq.s32.totalorder %s16, 0
    %p58 = por %p56, %p57
    %p59 = scmp.ne.s32.totalorder %s47, %s48
    %p60 = scmp.eq.s32.totalorder %s17, 1
    %p61 = por %p59, %p60
    %p63 = scmp.ne.s32.totalorder %s48, %s62
    %p64 = scmp.eq.s32.totalorder %s17, 0
    %p65 = por %p63, %p64
    %s67 = sadd.s32 %s66, 1
    %p70 = scmp.eq.s32.totalorder %s11, 1
    %p71 = scmp.ne.s32.totalorder %s66, %s68
    %p72 = scmp.eq.s32.totalorder %s11, 0
    %p73 = por %p71, %p72
    %p74 = scmp.ne.s32.totalorder %s66, %s68
    %p75 = scmp.eq.s32.totalorder %s16, 1
    %p76 = por %p74, %p75
    %p77 = scmp.ne.s32.totalorder %s68, %s69
    %p78 = scmp.eq.s32.totalorder %s16, 0
    %p79 = por %p77, %p78
    %p80 = scmp.ne.s32.totalorder %s68, %s69
    %p81 = scmp.eq.s32.totalorder %s17, 1
    %p82 = por %p80, %p81
    %p84 = scmp.ne.s32.totalorder %s69, %s83
    %p85 = scmp.eq.s32.totalorder %s17, 0
    %p86 = por %p84, %p85
    %s88 = sadd.s32 %s87, 1
    %p91 = scmp.eq.s32.totalorder %s11, 1
    %p92 = scmp.ne.s32.totalorder %s87, %s89
    %p93 = scmp.eq.s32.totalorder %s11, 0
    %p94 = por %p92, %p93
    %p95 = scmp.ne.s32.totalorder %s87, %s89
    %p96 = scmp.eq.s32.totalorder %s16, 1
    %p97 = por %p95, %p96
    %p98 = scmp.ne.s32.totalorder %s89, %s90
    %p99 = scmp.eq.s32.totalorder %s16, 0
    %p100 = por %p98, %p99
    %p101 = scmp.ne.s32.totalorder %s89, %s90
    %p102 = scmp.eq.s32.totalorder %s17, 1
    %p103 = por %p101, %p102
    %p105 = scmp.ne.s32.totalorder %s90, %s104
    %p106 = scmp.eq.s32.totalorder %s17, 0
    %p107 = por %p105, %p106
    %s109 = sadd.s32 %s108, 1
    %p112 = scmp.eq.s32.totalorder %s11, 1
    %p113 = scmp.ne.s32.totalorder %s108, %s110
    %p114 = scmp.eq.s32.totalorder %s11, 0
    %p115 = por %p113, %p114
    %p116 = scmp.ne.s32.totalorder %s108, %s110
    %p117 = scmp.eq.s32.totalorder %s16, 1
    %p118 = por %p116, %p117
    %p119 = scmp.ne.s32.totalorder %s110, %s111
    %p120 = scmp.eq.s32.totalorder %s16, 0
    %p121 = por %p119, %p120
    %p122 = scmp.ne.s32.totalorder %s110, %s111
    %p123 = scmp.eq.s32.totalorder %s17, 1
    %p124 = por %p122, %p123
    %p126 = scmp.ne.s32.totalorder %s111, %s125
    %p127 = scmp.eq.s32.totalorder %s17, 0
    %p128 = por %p126, %p127
    %s129 = ssub.s32 %s11, %s18
    %p130 = scmp.eq.s32.totalorder %s129, 0
    %s132 = sadd.s32 %s131, 1
    %s133 = scalar_select %p130, %s131, %s132
    %p136 = pneg %p130
    %p137 = scmp.eq.s32.totalorder %s11, 1
    %p138 = por %p136, %p137
    %p139 = scmp.ne.s32.totalorder %s131, %s134
    %p140 = scmp.eq.s32.totalorder %s11, 0
    %p141 = por %p139, %p140
    %p142 = scmp.ne.s32.totalorder %s131, %s134
    %p143 = scmp.eq.s32.totalorder %s16, 1
    %p144 = por %p142, %p143
    %p145 = scmp.ne.s32.totalorder %s134, %s135
    %p146 = scmp.eq.s32.totalorder %s16, 0
    %p147 = por %p145, %p146
    %p148 = scmp.ne.s32.totalorder %s134, %s135
    %p149 = scmp.eq.s32.totalorder %s17, 1
    %p150 = por %p148, %p149
    %p152 = scmp.ne.s32.totalorder %s135, %s151
    %p153 = scmp.eq.s32.totalorder %s17, 0
    %p154 = por %p152, %p153
    %p155 = scmp.le.s32.totalorder 1, %s11
    %p156 = scmp.lt.s32.totalorder %s11, 3
    %p157 = pnand %p155, %p156
    %p158 = pneg %p157
    // Predicated region
    $region9: #{forward.2} parent=5 // pred_check
      _
    $region10: #{forward.2} parent=5 // pred_check_branch
      %160 = sbr.rel (%p157) target = $region12
    $region11: #{forward.2} parent=5 // pred_region
      %s161 = ssub.s32 %s11, 1
      // Predicated region
      $region13: #{forward.2} parent=11 // pred_check
        %p162 = pneg %p58
      $region14: #{forward.2} parent=11 // pred_check_branch
        %164 = sbr.rel (%p162) target = $region16
      $region15: #{forward.2} parent=11 // pred_region
        _
      $region16: #{forward.2} parent=11 // pred_fallthru
        _
      // Predicated region
      $region17: #{forward.2} parent=11 // pred_check
        %p165 = pneg %p79
      $region18: #{forward.2} parent=11 // pred_check_branch
        %167 = sbr.rel (%p165) target = $region20
      $region19: #{forward.2} parent=11 // pred_region
        _
      $region20: #{forward.2} parent=11 // pred_fallthru
        _
      // Predicated region
      $region21: #{forward.2} parent=11 // pred_check
        %p168 = pneg %p100
      $region22: #{forward.2} parent=11 // pred_check_branch
        %170 = sbr.rel (%p168) target = $region24
      $region23: #{forward.2} parent=11 // pred_region
        _
      $region24: #{forward.2} parent=11 // pred_fallthru
        _
      // Predicated region
      $region25: #{forward.2} parent=11 // pred_check
        %p171 = pneg %p121
      $region26: #{forward.2} parent=11 // pred_check_branch
        %173 = sbr.rel (%p171) target = $region28
      $region27: #{forward.2} parent=11 // pred_region
        _
      $region28: #{forward.2} parent=11 // pred_fallthru
        _
    $region12: #{forward.2} parent=5 // pred_fallthru
      _
    %p174 = scmp.lt.s32.totalorder %s11, 2
    // Predicated region
    $region29: #{forward.2} parent=5 // pred_check
      %p175 = pneg %p174
    $region30: #{forward.2} parent=5 // pred_check_branch
      %177 = sbr.rel (%p175) target = $region32
    $region31: #{forward.2} parent=5 // pred_region
      // Predicated region
      $region33: #{forward.2} parent=31 // pred_check
        %p178 = pneg %p31
      $region34: #{forward.2} parent=31 // pred_check_branch
        %180 = sbr.rel (%p178) target = $region36
      $region35: #{forward.2} parent=31 // pred_region
        %p181 = scmp.lt.s32.totalorder %s11, 1
        %s182 = scalar_select %p181, %s11, 1
        %s183 = smul.addr %s182, 4
        %s184 = smul.addr %s183, 4
        %s185 = scalar_lea.vmem %s0, %s184
      $region36: #{forward.2} parent=31 // pred_fallthru
        _
    $region32: #{forward.2} parent=5 // pred_fallthru
      _
    %p186 = scmp.le.s32.totalorder 1, %s11
    %p187 = scmp.lt.s32.totalorder %s11, 3
    %p188 = pnand %p186, %p187
    %p189 = pneg %p188
    // Predicated region
    $region37: #{forward.2} parent=5 // pred_check
      _
    $region38: #{forward.2} parent=5 // pred_check_branch
      %191 = sbr.rel (%p188) target = $region40
    $region39: #{forward.2} parent=5 // pred_region
      %s192 = ssub.s32 %s11, 1
      %p193 = scmp.lt.s32.totalorder %s16, 1
      %s194 = scalar_select %p193, %s16, 1
      %s195 = smul.addr %s194, 4
      %s196 = smul.addr %s195, 4
      %s197 = scalar_lea.vmem %s0, %s196
      %p198 = pneg %p37
      %p199 = pneg %p34
      %p200 = pneg %p58
      %p201 = pneg %p55
      %p202 = pneg %p79
      %p203 = pneg %p76
      %p204 = pneg %p100
      %p205 = pneg %p97
      %p206 = pneg %p121
      %p207 = pneg %p118
      %p208 = pneg %p147
      %p209 = pneg %p144
      %p210 = scmp.lt.s32.totalorder %s16, 1
      %s211 = scalar_select %p210, %s16, 1
      %s212 = smul.addr %s211, 4
      %s213 = smul.addr %s212, 8
      %s214 = scalar_lea.vmem %s5, %s213
      %p215 = scmp.lt.s32.totalorder %s16, 1
      %s216 = scalar_select %p215, %s16, 1
      %s217 = smul.addr %s216, 4
      %s218 = smul.addr %s217, 4
      %s219 = scalar_lea.vmem %s0, %s218
      %p220 = scmp.lt.s32.totalorder %s16, 1
      %s221 = scalar_select %p220, %s16, 1
      %s222 = smul.addr %s221, 4
      %s223 = smul.addr %s222, 8
      %s224 = scalar_lea.vmem %s5, %s223
      %v226 = vld [vmem:[%s219] sm:$0xf]
      %v227 = vld [vmem:[%s219 + $0x4] sm:$0xf]
      %s228 = scalar_lea.vmem %s219, 8
      %v229 = vld [vmem:[%s228] sm:$0xf]
      %v230 = vld [vmem:[%s228 + $0x4] sm:$0xf]
      %v231 = vld [vmem:[%s1] sm:$0xff]
      %v232 = vld [vmem:[%s1 + $0x8] sm:$0xff]
      %v233 = vld [vmem:[%s1 + $0x10] sm:$0xff]
      %v234 = vld [vmem:[%s1 + $0x18] sm:$0xff]
      %v235 = vld [vmem:[%s1 + $0x20] sm:$0xff]
      %v236 = vld [vmem:[%s1 + $0x28] sm:$0xff]
      %v237 = vld [vmem:[%s1 + $0x30] sm:$0x77]
      %v238 = vld [vmem:[%s1 + $0x38] sm:$0x77]
      %s239 = scalar_lea.vmem %s1, 64
      %v240 = vld [vmem:[%s239] sm:$0xff]
      %v241 = vld [vmem:[%s239 + $0x8] sm:$0xff]
      %v242 = vld [vmem:[%s239 + $0x10] sm:$0xff]
      %v243 = vld [vmem:[%s239 + $0x18] sm:$0xff]
      %v244 = vld [vmem:[%s239 + $0x20] sm:$0xff]
      %v245 = vld [vmem:[%s239 + $0x28] sm:$0xff]
      %v246 = vld [vmem:[%s239 + $0x30] sm:$0x77]
      %v247 = vld [vmem:[%s239 + $0x38] sm:$0x77]
      %v250 = vunpack.c.l.b16 %v229
      %v251 = vunpack.c.l.b16 %v230
      %v252 = vpack.c.b16 %v251, %v250
      %v261 = vunpack.c.l.b16 %v240
      %v262 = vunpack.c.h.b16 %v240
      %v263 = vunpack.c.l.b16 %v241
      %v264 = vunpack.c.h.b16 %v241
      %v265 = vunpack.c.l.b16 %v242
      %v266 = vunpack.c.h.b16 %v242
      %v267 = vunpack.c.l.b16 %v243
      %v268 = vunpack.c.h.b16 %v243
      %v269 = vunpack.c.l.b16 %v244
      %v270 = vunpack.c.h.b16 %v244
      %v271 = vunpack.c.l.b16 %v245
      %v272 = vunpack.c.h.b16 %v245
      %v273 = vunpack.c.l.b16 %v246
      %v274 = vunpack.c.h.b16 %v246
      %v275 = vunpack.c.l.b16 %v247
      %v276 = vunpack.c.h.b16 %v247
      %v277 = vpack.c.b16 %v265, %v261
      %v278 = vpack.c.b16 %v266, %v262
      %v279 = vpack.c.b16 %v267, %v263
      %v280 = vpack.c.b16 %v268, %v264
      %v281 = vpack.c.b16 %v273, %v269
      %v282 = vpack.c.b16 %v274, %v270
      %v283 = vpack.c.b16 %v275, %v271
      %v284 = vpack.c.b16 %v276, %v272
      %vm289 = vcmask 244736
      %v291 = vsel %vm289, %v252, 0
      %vm293 = vcmask 1046528
      %v295 = vsel %vm293, %v281, 0
      %v298 = vsel %vm293, %v282, 0
      %v301 = vsel %vm293, %v283, 0
      %v304 = vsel %vm293, %v284, 0
      %306 = vmatprep.subr.bf16.mxu0 0
      %307 = vmatpush1.bf16.msra.mxu0 0
      %308 = vmatprep.subr.bf16.mxu0 0
      %309 = vmatpush1.bf16.msra.mxu0 0
      %310 = vmatprep.subr.bf16.mxu0 0
      %311 = vmatpush1.bf16.msra.mxu0 0
      %312 = vmatprep.subr.bf16.mxu0 0
      %313 = vmatpush1.bf16.msra.mxu0 0
      %314 = vmatprep.subr.bf16.mxu0 0
      %315 = vmatpush1.bf16.msra.mxu0 0
      %316 = vmatprep.subr.bf16.mxu0 0
      %317 = vmatpush1.bf16.msra.mxu0 0
      %318 = vmatprep.subr.bf16.mxu0 %v298
      %319 = vmatpush1.bf16.msra.mxu0 %v295
      %320 = vmatprep.subr.bf16.mxu0 %v278
      %321 = vmatpush1.bf16.msra.mxu0 %v277
      %322 = vmatprep.subr.bf16.mxu0 0
      %323 = vmatpush2.bf16.msra.mxu0 0
      %324 = vmatprep.subr.bf16.mxu0 0
      %325 = vmatpush2.bf16.msra.mxu0 0
      %326 = vmatprep.subr.bf16.mxu0 0
      %327 = vmatpush2.bf16.msra.mxu0 0
      %328 = vmatprep.subr.bf16.mxu0 0
      %329 = vmatpush2.bf16.msra.mxu0 0
      %330 = vmatprep.subr.bf16.mxu0 0
      %331 = vmatpush2.bf16.msra.mxu0 0
      %332 = vmatprep.subr.bf16.mxu0 0
      %333 = vmatpush2.bf16.msra.mxu0 0
      %334 = vmatprep.subr.bf16.mxu0 0
      %335 = vmatpush2.bf16.msra.mxu0 0
      %336 = vmatprep.subr.bf16.mxu0 0
      %337 = vmatpush2.bf16.msra.mxu0 0
      %338 = vmatprep.mubr.bf16.mxu0 0
      %339 = vmatmul.mubr.bf16.gmra.mxu0 %v291
      %v340 = vpop.f32.mrf.mxu0
      %v341 = vadd.f32 0.0, %v340
      %v342 = vpop.f32.mrf.mxu0
      %v343 = vadd.f32 0.0, %v342
      %v344 = vpop.f32.mrf.mxu0
      %v345 = vadd.f32 0.0, %v344
      %v346 = vpop.f32.mrf.mxu0
      %v347 = vadd.f32 0.0, %v346
      %348 = vdwg.mxu0
      %349 = vmatprep.subr.bf16.mxu0 0
      %350 = vmatpush1.bf16.msra.mxu0 0
      %351 = vmatprep.subr.bf16.mxu0 0
      %352 = vmatpush1.bf16.msra.mxu0 0
      %353 = vmatprep.subr.bf16.mxu0 0
      %354 = vmatpush1.bf16.msra.mxu0 0
      %355 = vmatprep.subr.bf16.mxu0 0
      %356 = vmatpush1.bf16.msra.mxu0 0
      %357 = vmatprep.subr.bf16.mxu0 0
      %358 = vmatpush1.bf16.msra.mxu0 0
      %359 = vmatprep.subr.bf16.mxu0 0
      %360 = vmatpush1.bf16.msra.mxu0 0
      %361 = vmatprep.subr.bf16.mxu0 %v304
      %362 = vmatpush1.bf16.msra.mxu0 %v301
      %363 = vmatprep.subr.bf16.mxu0 %v280
      %364 = vmatpush1.bf16.msra.mxu0 %v279
      %365 = vmatprep.subr.bf16.mxu0 0
      %366 = vmatpush2.bf16.msra.mxu0 0
      %367 = vmatprep.subr.bf16.mxu0 0
      %368 = vmatpush2.bf16.msra.mxu0 0
      %369 = vmatprep.subr.bf16.mxu0 0
      %370 = vmatpush2.bf16.msra.mxu0 0
      %371 = vmatprep.subr.bf16.mxu0 0
      %372 = vmatpush2.bf16.msra.mxu0 0
      %373 = vmatprep.subr.bf16.mxu0 0
      %374 = vmatpush2.bf16.msra.mxu0 0
      %375 = vmatprep.subr.bf16.mxu0 0
      %376 = vmatpush2.bf16.msra.mxu0 0
      %377 = vmatprep.subr.bf16.mxu0 0
      %378 = vmatpush2.bf16.msra.mxu0 0
      %379 = vmatprep.subr.bf16.mxu0 0
      %380 = vmatpush2.bf16.msra.mxu0 0
      %381 = vmatprep.mubr.bf16.mxu0 0
      %382 = vmatmul.mubr.bf16.gmra.mxu0 %v291
      %v383 = vpop.f32.mrf.mxu0
      %v384 = vadd.f32 0.0, %v383
      %v385 = vpop.f32.mrf.mxu0
      %v386 = vadd.f32 0.0, %v385
      %v387 = vpop.f32.mrf.mxu0
      %v388 = vadd.f32 0.0, %v387
      %v389 = vpop.f32.mrf.mxu0
      %v390 = vadd.f32 0.0, %v389
      %391 = vdwg.mxu0
      %v394 = vunpack.c.l.b16 %v226
      %v395 = vunpack.c.l.b16 %v227
      %v396 = vpack.c.b16 %v395, %v394
      %v405 = vunpack.c.l.b16 %v231
      %v406 = vunpack.c.h.b16 %v231
      %v407 = vunpack.c.l.b16 %v232
      %v408 = vunpack.c.h.b16 %v232
      %v409 = vunpack.c.l.b16 %v233
      %v410 = vunpack.c.h.b16 %v233
      %v411 = vunpack.c.l.b16 %v234
      %v412 = vunpack.c.h.b16 %v234
      %v413 = vunpack.c.l.b16 %v235
      %v414 = vunpack.c.h.b16 %v235
      %v415 = vunpack.c.l.b16 %v236
      %v416 = vunpack.c.h.b16 %v236
      %v417 = vunpack.c.l.b16 %v237
      %v418 = vunpack.c.h.b16 %v237
      %v419 = vunpack.c.l.b16 %v238
      %v420 = vunpack.c.h.b16 %v238
      %v421 = vpack.c.b16 %v409, %v405
      %v422 = vpack.c.b16 %v410, %v406
      %v423 = vpack.c.b16 %v411, %v407
      %v424 = vpack.c.b16 %v412, %v408
      %v425 = vpack.c.b16 %v417, %v413
      %v426 = vpack.c.b16 %v418, %v414
      %v427 = vpack.c.b16 %v419, %v415
      %v428 = vpack.c.b16 %v420, %v416
      %v434 = vsel %vm289, %v396, 0
      %v437 = vsel %vm293, %v425, 0
      %v440 = vsel %vm293, %v426, 0
      %v443 = vsel %vm293, %v427, 0
      %v446 = vsel %vm293, %v428, 0
      %448 = vmatprep.subr.bf16.mxu0 0
      %449 = vmatpush1.bf16.msra.mxu0 0
      %450 = vmatprep.subr.bf16.mxu0 0
      %451 = vmatpush1.bf16.msra.mxu0 0
      %452 = vmatprep.subr.bf16.mxu0 0
      %453 = vmatpush1.bf16.msra.mxu0 0
      %454 = vmatprep.subr.bf16.mxu0 0
      %455 = vmatpush1.bf16.msra.mxu0 0
      %456 = vmatprep.subr.bf16.mxu0 0
      %457 = vmatpush1.bf16.msra.mxu0 0
      %458 = vmatprep.subr.bf16.mxu0 0
      %459 = vmatpush1.bf16.msra.mxu0 0
      %460 = vmatprep.subr.bf16.mxu0 %v440
      %461 = vmatpush1.bf16.msra.mxu0 %v437
      %462 = vmatprep.subr.bf16.mxu0 %v422
      %463 = vmatpush1.bf16.msra.mxu0 %v421
      %464 = vmatprep.subr.bf16.mxu0 0
      %465 = vmatpush2.bf16.msra.mxu0 0
      %466 = vmatprep.subr.bf16.mxu0 0
      %467 = vmatpush2.bf16.msra.mxu0 0
      %468 = vmatprep.subr.bf16.mxu0 0
      %469 = vmatpush2.bf16.msra.mxu0 0
      %470 = vmatprep.subr.bf16.mxu0 0
      %471 = vmatpush2.bf16.msra.mxu0 0
      %472 = vmatprep.subr.bf16.mxu0 0
      %473 = vmatpush2.bf16.msra.mxu0 0
      %474 = vmatprep.subr.bf16.mxu0 0
      %475 = vmatpush2.bf16.msra.mxu0 0
      %476 = vmatprep.subr.bf16.mxu0 0
      %477 = vmatpush2.bf16.msra.mxu0 0
      %478 = vmatprep.subr.bf16.mxu0 0
      %479 = vmatpush2.bf16.msra.mxu0 0
      %480 = vmatprep.mubr.bf16.mxu0 0
      %481 = vmatmul.mubr.bf16.gmra.mxu0 %v434
      %v482 = vpop.f32.mrf.mxu0
      %v483 = vadd.f32 %v341, %v482
      %v484 = vpop.f32.mrf.mxu0
      %v485 = vadd.f32 %v343, %v484
      %v486 = vpop.f32.mrf.mxu0
      %v487 = vadd.f32 %v345, %v486
      %v488 = vpop.f32.mrf.mxu0
      %v489 = vadd.f32 %v347, %v488
      %490 = vdwg.mxu0
      %491 = vmatprep.subr.bf16.mxu0 0
      %492 = vmatpush1.bf16.msra.mxu0 0
      %493 = vmatprep.subr.bf16.mxu0 0
      %494 = vmatpush1.bf16.msra.mxu0 0
      %495 = vmatprep.subr.bf16.mxu0 0
      %496 = vmatpush1.bf16.msra.mxu0 0
      %497 = vmatprep.subr.bf16.mxu0 0
      %498 = vmatpush1.bf16.msra.mxu0 0
      %499 = vmatprep.subr.bf16.mxu0 0
      %500 = vmatpush1.bf16.msra.mxu0 0
      %501 = vmatprep.subr.bf16.mxu0 0
      %502 = vmatpush1.bf16.msra.mxu0 0
      %503 = vmatprep.subr.bf16.mxu0 %v446
      %504 = vmatpush1.bf16.msra.mxu0 %v443
      %505 = vmatprep.subr.bf16.mxu0 %v424
      %506 = vmatpush1.bf16.msra.mxu0 %v423
      %507 = vmatprep.subr.bf16.mxu0 0
      %508 = vmatpush2.bf16.msra.mxu0 0
      %509 = vmatprep.subr.bf16.mxu0 0
      %510 = vmatpush2.bf16.msra.mxu0 0
      %511 = vmatprep.subr.bf16.mxu0 0
      %512 = vmatpush2.bf16.msra.mxu0 0
      %513 = vmatprep.subr.bf16.mxu0 0
      %514 = vmatpush2.bf16.msra.mxu0 0
      %515 = vmatprep.subr.bf16.mxu0 0
      %516 = vmatpush2.bf16.msra.mxu0 0
      %517 = vmatprep.subr.bf16.mxu0 0
      %518 = vmatpush2.bf16.msra.mxu0 0
      %519 = vmatprep.subr.bf16.mxu0 0
      %520 = vmatpush2.bf16.msra.mxu0 0
      %521 = vmatprep.subr.bf16.mxu0 0
      %522 = vmatpush2.bf16.msra.mxu0 0
      %523 = vmatprep.mubr.bf16.mxu0 0
      %524 = vmatmul.mubr.bf16.gmra.mxu0 %v434
      %v525 = vpop.f32.mrf.mxu0
      %v526 = vadd.f32 %v384, %v525
      %v527 = vpop.f32.mrf.mxu0
      %v528 = vadd.f32 %v386, %v527
      %v529 = vpop.f32.mrf.mxu0
      %v530 = vadd.f32 %v388, %v529
      %v531 = vpop.f32.mrf.mxu0
      %v532 = vadd.f32 %v390, %v531
      %533 = vdwg.mxu0
      %s534 = scalar_lea.vmem %s1, 128
      %v535 = vld [vmem:[%s534] sm:$0xff]
      %v536 = vld [vmem:[%s534 + $0x8] sm:$0xff]
      %v537 = vld [vmem:[%s534 + $0x10] sm:$0xff]
      %v538 = vld [vmem:[%s534 + $0x18] sm:$0xff]
      %v539 = vld [vmem:[%s534 + $0x20] sm:$0xff]
      %v540 = vld [vmem:[%s534 + $0x28] sm:$0xff]
      %v541 = vld [vmem:[%s534 + $0x30] sm:$0x77]
      %v542 = vld [vmem:[%s534 + $0x38] sm:$0x77]
      %v543 = vshrl.u32 %v396, 16
      %v545 = vshll.u32 %v396, 16
      %v547 = vrot.slane %v545, 1
      %v548 = vor.u32 %v543, %v547
      %v557 = vunpack.c.l.b16 %v535
      %v558 = vunpack.c.h.b16 %v535
      %v559 = vunpack.c.l.b16 %v536
      %v560 = vunpack.c.h.b16 %v536
      %v561 = vunpack.c.l.b16 %v537
      %v562 = vunpack.c.h.b16 %v537
      %v563 = vunpack.c.l.b16 %v538
      %v564 = vunpack.c.h.b16 %v538
      %v565 = vunpack.c.l.b16 %v539
      %v566 = vunpack.c.h.b16 %v539
      %v567 = vunpack.c.l.b16 %v540
      %v568 = vunpack.c.h.b16 %v540
      %v569 = vunpack.c.l.b16 %v541
      %v570 = vunpack.c.h.b16 %v541
      %v571 = vunpack.c.l.b16 %v542
      %v572 = vunpack.c.h.b16 %v542
      %v573 = vpack.c.b16 %v561, %v557
      %v574 = vpack.c.b16 %v562, %v558
      %v575 = vpack.c.b16 %v563, %v559
      %v576 = vpack.c.b16 %v564, %v560
      %v577 = vpack.c.b16 %v569, %v565
      %v578 = vpack.c.b16 %v570, %v566
      %v579 = vpack.c.b16 %v571, %v567
      %v580 = vpack.c.b16 %v572, %v568
      %v586 = vsel %vm289, %v548, 0
      %v589 = vsel %vm293, %v577, 0
      %v592 = vsel %vm293, %v578, 0
      %v595 = vsel %vm293, %v579, 0
      %v598 = vsel %vm293, %v580, 0
      %600 = vmatprep.subr.bf16.mxu0 0
      %601 = vmatpush1.bf16.msra.mxu0 0
      %602 = vmatprep.subr.bf16.mxu0 0
      %603 = vmatpush1.bf16.msra.mxu0 0
      %604 = vmatprep.subr.bf16.mxu0 0
      %605 = vmatpush1.bf16.msra.mxu0 0
      %606 = vmatprep.subr.bf16.mxu0 0
      %607 = vmatpush1.bf16.msra.mxu0 0
      %608 = vmatprep.subr.bf16.mxu0 0
      %609 = vmatpush1.bf16.msra.mxu0 0
      %610 = vmatprep.subr.bf16.mxu0 0
      %611 = vmatpush1.bf16.msra.mxu0 0
      %612 = vmatprep.subr.bf16.mxu0 %v592
      %613 = vmatpush1.bf16.msra.mxu0 %v589
      %614 = vmatprep.subr.bf16.mxu0 %v574
      %615 = vmatpush1.bf16.msra.mxu0 %v573
      %616 = vmatprep.subr.bf16.mxu0 0
      %617 = vmatpush2.bf16.msra.mxu0 0
      %618 = vmatprep.subr.bf16.mxu0 0
      %619 = vmatpush2.bf16.msra.mxu0 0
      %620 = vmatprep.subr.bf16.mxu0 0
      %621 = vmatpush2.bf16.msra.mxu0 0
      %622 = vmatprep.subr.bf16.mxu0 0
      %623 = vmatpush2.bf16.msra.mxu0 0
      %624 = vmatprep.subr.bf16.mxu0 0
      %625 = vmatpush2.bf16.msra.mxu0 0
      %626 = vmatprep.subr.bf16.mxu0 0
      %627 = vmatpush2.bf16.msra.mxu0 0
      %628 = vmatprep.subr.bf16.mxu0 0
      %629 = vmatpush2.bf16.msra.mxu0 0
      %630 = vmatprep.subr.bf16.mxu0 0
      %631 = vmatpush2.bf16.msra.mxu0 0
      %632 = vmatprep.mubr.bf16.mxu0 0
      %633 = vmatmul.mubr.bf16.gmra.mxu0 %v586
      %v634 = vpop.f32.mrf.mxu0
      %v635 = vadd.f32 0.0, %v634
      %v636 = vpop.f32.mrf.mxu0
      %v637 = vadd.f32 0.0, %v636
      %v638 = vpop.f32.mrf.mxu0
      %v639 = vadd.f32 0.0, %v638
      %v640 = vpop.f32.mrf.mxu0
      %v641 = vadd.f32 0.0, %v640
      %642 = vdwg.mxu0
      %643 = vmatprep.subr.bf16.mxu0 0
      %644 = vmatpush1.bf16.msra.mxu0 0
      %645 = vmatprep.subr.bf16.mxu0 0
      %646 = vmatpush1.bf16.msra.mxu0 0
      %647 = vmatprep.subr.bf16.mxu0 0
      %648 = vmatpush1.bf16.msra.mxu0 0
      %649 = vmatprep.subr.bf16.mxu0 0
      %650 = vmatpush1.bf16.msra.mxu0 0
      %651 = vmatprep.subr.bf16.mxu0 0
      %652 = vmatpush1.bf16.msra.mxu0 0
      %653 = vmatprep.subr.bf16.mxu0 0
      %654 = vmatpush1.bf16.msra.mxu0 0
      %655 = vmatprep.subr.bf16.mxu0 %v598
      %656 = vmatpush1.bf16.msra.mxu0 %v595
      %657 = vmatprep.subr.bf16.mxu0 %v576
      %658 = vmatpush1.bf16.msra.mxu0 %v575
      %659 = vmatprep.subr.bf16.mxu0 0
      %660 = vmatpush2.bf16.msra.mxu0 0
      %661 = vmatprep.subr.bf16.mxu0 0
      %662 = vmatpush2.bf16.msra.mxu0 0
      %663 = vmatprep.subr.bf16.mxu0 0
      %664 = vmatpush2.bf16.msra.mxu0 0
      %665 = vmatprep.subr.bf16.mxu0 0
      %666 = vmatpush2.bf16.msra.mxu0 0
      %667 = vmatprep.subr.bf16.mxu0 0
      %668 = vmatpush2.bf16.msra.mxu0 0
      %669 = vmatprep.subr.bf16.mxu0 0
      %670 = vmatpush2.bf16.msra.mxu0 0
      %671 = vmatprep.subr.bf16.mxu0 0
      %672 = vmatpush2.bf16.msra.mxu0 0
      %673 = vmatprep.subr.bf16.mxu0 0
      %674 = vmatpush2.bf16.msra.mxu0 0
      %675 = vmatprep.mubr.bf16.mxu0 0
      %676 = vmatmul.mubr.bf16.gmra.mxu0 %v586
      %v677 = vpop.f32.mrf.mxu0
      %v678 = vadd.f32 0.0, %v677
      %v679 = vpop.f32.mrf.mxu0
      %v680 = vadd.f32 0.0, %v679
      %v681 = vpop.f32.mrf.mxu0
      %v682 = vadd.f32 0.0, %v681
      %v683 = vpop.f32.mrf.mxu0
      %v684 = vadd.f32 0.0, %v683
      %685 = vdwg.mxu0
      %v686 = vadd.f32 %v483, %v635
      %v687 = vadd.f32 %v485, %v637
      %v688 = vadd.f32 %v526, %v678
      %v689 = vadd.f32 %v528, %v680
      %v690 = vadd.f32 %v487, %v639
      %v691 = vadd.f32 %v489, %v641
      %v692 = vadd.f32 %v530, %v682
      %v693 = vadd.f32 %v532, %v684
      %s694 = scalar_lea.vmem %s1, 192
      %v695 = vld [vmem:[%s694] sm:$0xff]
      %v696 = vld [vmem:[%s694 + $0x8] sm:$0xff]
      %v697 = vld [vmem:[%s694 + $0x10] sm:$0xff]
      %v698 = vld [vmem:[%s694 + $0x18] sm:$0xff]
      %v699 = vld [vmem:[%s694 + $0x20] sm:$0xff]
      %v700 = vld [vmem:[%s694 + $0x28] sm:$0xff]
      %v701 = vld [vmem:[%s694 + $0x30] sm:$0x77]
      %v702 = vld [vmem:[%s694 + $0x38] sm:$0x77]
      %s703 = scalar_lea.vmem %s1, 256
      %v704 = vld [vmem:[%s703] sm:$0xff]
      %v705 = vld [vmem:[%s703 + $0x8] sm:$0xff]
      %v706 = vld [vmem:[%s703 + $0x10] sm:$0xff]
      %v707 = vld [vmem:[%s703 + $0x18] sm:$0xff]
      %v708 = vld [vmem:[%s703 + $0x20] sm:$0xff]
      %v709 = vld [vmem:[%s703 + $0x28] sm:$0xff]
      %v710 = vld [vmem:[%s703 + $0x30] sm:$0x77]
      %v711 = vld [vmem:[%s703 + $0x38] sm:$0x77]
      %v720 = vunpack.c.l.b16 %v704
      %v721 = vunpack.c.h.b16 %v704
      %v722 = vunpack.c.l.b16 %v705
      %v723 = vunpack.c.h.b16 %v705
      %v724 = vunpack.c.l.b16 %v706
      %v725 = vunpack.c.h.b16 %v706
      %v726 = vunpack.c.l.b16 %v707
      %v727 = vunpack.c.h.b16 %v707
      %v728 = vunpack.c.l.b16 %v708
      %v729 = vunpack.c.h.b16 %v708
      %v730 = vunpack.c.l.b16 %v709
      %v731 = vunpack.c.h.b16 %v709
      %v732 = vunpack.c.l.b16 %v710
      %v733 = vunpack.c.h.b16 %v710
      %v734 = vunpack.c.l.b16 %v711
      %v735 = vunpack.c.h.b16 %v711
      %v736 = vpack.c.b16 %v724, %v720
      %v737 = vpack.c.b16 %v725, %v721
      %v738 = vpack.c.b16 %v726, %v722
      %v739 = vpack.c.b16 %v727, %v723
      %v740 = vpack.c.b16 %v732, %v728
      %v741 = vpack.c.b16 %v733, %v729
      %v742 = vpack.c.b16 %v734, %v730
      %v743 = vpack.c.b16 %v735, %v731
      %v749 = vsel %vm293, %v740, 0
      %v752 = vsel %vm293, %v741, 0
      %v755 = vsel %vm293, %v742, 0
      %v758 = vsel %vm293, %v743, 0
      %760 = vmatprep.subr.bf16.mxu0 0
      %761 = vmatpush1.bf16.msra.mxu0 0
      %762 = vmatprep.subr.bf16.mxu0 0
      %763 = vmatpush1.bf16.msra.mxu0 0
      %764 = vmatprep.subr.bf16.mxu0 0
      %765 = vmatpush1.bf16.msra.mxu0 0
      %766 = vmatprep.subr.bf16.mxu0 0
      %767 = vmatpush1.bf16.msra.mxu0 0
      %768 = vmatprep.subr.bf16.mxu0 0
      %769 = vmatpush1.bf16.msra.mxu0 0
      %770 = vmatprep.subr.bf16.mxu0 0
      %771 = vmatpush1.bf16.msra.mxu0 0
      %772 = vmatprep.subr.bf16.mxu0 %v752
      %773 = vmatpush1.bf16.msra.mxu0 %v749
      %774 = vmatprep.subr.bf16.mxu0 %v737
      %775 = vmatpush1.bf16.msra.mxu0 %v736
      %776 = vmatprep.subr.bf16.mxu0 0
      %777 = vmatpush2.bf16.msra.mxu0 0
      %778 = vmatprep.subr.bf16.mxu0 0
      %779 = vmatpush2.bf16.msra.mxu0 0
      %780 = vmatprep.subr.bf16.mxu0 0
      %781 = vmatpush2.bf16.msra.mxu0 0
      %782 = vmatprep.subr.bf16.mxu0 0
      %783 = vmatpush2.bf16.msra.mxu0 0
      %784 = vmatprep.subr.bf16.mxu0 0
      %785 = vmatpush2.bf16.msra.mxu0 0
      %786 = vmatprep.subr.bf16.mxu0 0
      %787 = vmatpush2.bf16.msra.mxu0 0
      %788 = vmatprep.subr.bf16.mxu0 0
      %789 = vmatpush2.bf16.msra.mxu0 0
      %790 = vmatprep.subr.bf16.mxu0 0
      %791 = vmatpush2.bf16.msra.mxu0 0
      %792 = vmatprep.mubr.bf16.mxu0 0
      %793 = vmatmul.mubr.bf16.gmra.mxu0 %v291
      %v794 = vpop.f32.mrf.mxu0
      %v795 = vadd.f32 0.0, %v794
      %v796 = vpop.f32.mrf.mxu0
      %v797 = vadd.f32 0.0, %v796
      %v798 = vpop.f32.mrf.mxu0
      %v799 = vadd.f32 0.0, %v798
      %v800 = vpop.f32.mrf.mxu0
      %v801 = vadd.f32 0.0, %v800
      %802 = vdwg.mxu0
      %803 = vmatprep.subr.bf16.mxu0 0
      %804 = vmatpush1.bf16.msra.mxu0 0
      %805 = vmatprep.subr.bf16.mxu0 0
      %806 = vmatpush1.bf16.msra.mxu0 0
      %807 = vmatprep.subr.bf16.mxu0 0
      %808 = vmatpush1.bf16.msra.mxu0 0
      %809 = vmatprep.subr.bf16.mxu0 0
      %810 = vmatpush1.bf16.msra.mxu0 0
      %811 = vmatprep.subr.bf16.mxu0 0
      %812 = vmatpush1.bf16.msra.mxu0 0
      %813 = vmatprep.subr.bf16.mxu0 0
      %814 = vmatpush1.bf16.msra.mxu0 0
      %815 = vmatprep.subr.bf16.mxu0 %v758
      %816 = vmatpush1.bf16.msra.mxu0 %v755
      %817 = vmatprep.subr.bf16.mxu0 %v739
      %818 = vmatpush1.bf16.msra.mxu0 %v738
      %819 = vmatprep.subr.bf16.mxu0 0
      %820 = vmatpush2.bf16.msra.mxu0 0
      %821 = vmatprep.subr.bf16.mxu0 0
      %822 = vmatpush2.bf16.msra.mxu0 0
      %823 = vmatprep.subr.bf16.mxu0 0
      %824 = vmatpush2.bf16.msra.mxu0 0
      %825 = vmatprep.subr.bf16.mxu0 0
      %826 = vmatpush2.bf16.msra.mxu0 0
      %827 = vmatprep.subr.bf16.mxu0 0
      %828 = vmatpush2.bf16.msra.mxu0 0
      %829 = vmatprep.subr.bf16.mxu0 0
      %830 = vmatpush2.bf16.msra.mxu0 0
      %831 = vmatprep.subr.bf16.mxu0 0
      %832 = vmatpush2.bf16.msra.mxu0 0
      %833 = vmatprep.subr.bf16.mxu0 0
      %834 = vmatpush2.bf16.msra.mxu0 0
      %835 = vmatprep.mubr.bf16.mxu0 0
      %836 = vmatmul.mubr.bf16.gmra.mxu0 %v291
      %v837 = vpop.f32.mrf.mxu0
      %v838 = vadd.f32 0.0, %v837
      %v839 = vpop.f32.mrf.mxu0
      %v840 = vadd.f32 0.0, %v839
      %v841 = vpop.f32.mrf.mxu0
      %v842 = vadd.f32 0.0, %v841
      %v843 = vpop.f32.mrf.mxu0
      %v844 = vadd.f32 0.0, %v843
      %845 = vdwg.mxu0
      %v854 = vunpack.c.l.b16 %v695
      %v855 = vunpack.c.h.b16 %v695
      %v856 = vunpack.c.l.b16 %v696
      %v857 = vunpack.c.h.b16 %v696
      %v858 = vunpack.c.l.b16 %v697
      %v859 = vunpack.c.h.b16 %v697
      %v860 = vunpack.c.l.b16 %v698
      %v861 = vunpack.c.h.b16 %v698
      %v862 = vunpack.c.l.b16 %v699
      %v863 = vunpack.c.h.b16 %v699
      %v864 = vunpack.c.l.b16 %v700
      %v865 = vunpack.c.h.b16 %v700
      %v866 = vunpack.c.l.b16 %v701
      %v867 = vunpack.c.h.b16 %v701
      %v868 = vunpack.c.l.b16 %v702
      %v869 = vunpack.c.h.b16 %v702
      %v870 = vpack.c.b16 %v858, %v854
      %v871 = vpack.c.b16 %v859, %v855
      %v872 = vpack.c.b16 %v860, %v856
      %v873 = vpack.c.b16 %v861, %v857
      %v874 = vpack.c.b16 %v866, %v862
      %v875 = vpack.c.b16 %v867, %v863
      %v876 = vpack.c.b16 %v868, %v864
      %v877 = vpack.c.b16 %v869, %v865
      %v883 = vsel %vm293, %v874, 0
      %v886 = vsel %vm293, %v875, 0
      %v889 = vsel %vm293, %v876, 0
      %v892 = vsel %vm293, %v877, 0
      %894 = vmatprep.subr.bf16.mxu0 0
      %895 = vmatpush1.bf16.msra.mxu0 0
      %896 = vmatprep.subr.bf16.mxu0 0
      %897 = vmatpush1.bf16.msra.mxu0 0
      %898 = vmatprep.subr.bf16.mxu0 0
      %899 = vmatpush1.bf16.msra.mxu0 0
      %900 = vmatprep.subr.bf16.mxu0 0
      %901 = vmatpush1.bf16.msra.mxu0 0
      %902 = vmatprep.subr.bf16.mxu0 0
      %903 = vmatpush1.bf16.msra.mxu0 0
      %904 = vmatprep.subr.bf16.mxu0 0
      %905 = vmatpush1.bf16.msra.mxu0 0
      %906 = vmatprep.subr.bf16.mxu0 %v886
      %907 = vmatpush1.bf16.msra.mxu0 %v883
      %908 = vmatprep.subr.bf16.mxu0 %v871
      %909 = vmatpush1.bf16.msra.mxu0 %v870
      %910 = vmatprep.subr.bf16.mxu0 0
      %911 = vmatpush2.bf16.msra.mxu0 0
      %912 = vmatprep.subr.bf16.mxu0 0
      %913 = vmatpush2.bf16.msra.mxu0 0
      %914 = vmatprep.subr.bf16.mxu0 0
      %915 = vmatpush2.bf16.msra.mxu0 0
      %916 = vmatprep.subr.bf16.mxu0 0
      %917 = vmatpush2.bf16.msra.mxu0 0
      %918 = vmatprep.subr.bf16.mxu0 0
      %919 = vmatpush2.bf16.msra.mxu0 0
      %920 = vmatprep.subr.bf16.mxu0 0
      %921 = vmatpush2.bf16.msra.mxu0 0
      %922 = vmatprep.subr.bf16.mxu0 0
      %923 = vmatpush2.bf16.msra.mxu0 0
      %924 = vmatprep.subr.bf16.mxu0 0
      %925 = vmatpush2.bf16.msra.mxu0 0
      %926 = vmatprep.mubr.bf16.mxu0 0
      %927 = vmatmul.mubr.bf16.gmra.mxu0 %v434
      %v928 = vpop.f32.mrf.mxu0
      %v929 = vadd.f32 %v795, %v928
      %v930 = vpop.f32.mrf.mxu0
      %v931 = vadd.f32 %v797, %v930
      %v932 = vpop.f32.mrf.mxu0
      %v933 = vadd.f32 %v799, %v932
      %v934 = vpop.f32.mrf.mxu0
      %v935 = vadd.f32 %v801, %v934
      %936 = vdwg.mxu0
      %937 = vmatprep.subr.bf16.mxu0 0
      %938 = vmatpush1.bf16.msra.mxu0 0
      %939 = vmatprep.subr.bf16.mxu0 0
      %940 = vmatpush1.bf16.msra.mxu0 0
      %941 = vmatprep.subr.bf16.mxu0 0
      %942 = vmatpush1.bf16.msra.mxu0 0
      %943 = vmatprep.subr.bf16.mxu0 0
      %944 = vmatpush1.bf16.msra.mxu0 0
      %945 = vmatprep.subr.bf16.mxu0 0
      %946 = vmatpush1.bf16.msra.mxu0 0
      %947 = vmatprep.subr.bf16.mxu0 0
      %948 = vmatpush1.bf16.msra.mxu0 0
      %949 = vmatprep.subr.bf16.mxu0 %v892
      %950 = vmatpush1.bf16.msra.mxu0 %v889
      %951 = vmatprep.subr.bf16.mxu0 %v873
      %952 = vmatpush1.bf16.msra.mxu0 %v872
      %953 = vmatprep.subr.bf16.mxu0 0
      %954 = vmatpush2.bf16.msra.mxu0 0
      %955 = vmatprep.subr.bf16.mxu0 0
      %956 = vmatpush2.bf16.msra.mxu0 0
      %957 = vmatprep.subr.bf16.mxu0 0
      %958 = vmatpush2.bf16.msra.mxu0 0
      %959 = vmatprep.subr.bf16.mxu0 0
      %960 = vmatpush2.bf16.msra.mxu0 0
      %961 = vmatprep.subr.bf16.mxu0 0
      %962 = vmatpush2.bf16.msra.mxu0 0
      %963 = vmatprep.subr.bf16.mxu0 0
      %964 = vmatpush2.bf16.msra.mxu0 0
      %965 = vmatprep.subr.bf16.mxu0 0
      %966 = vmatpush2.bf16.msra.mxu0 0
      %967 = vmatprep.subr.bf16.mxu0 0
      %968 = vmatpush2.bf16.msra.mxu0 0
      %969 = vmatprep.mubr.bf16.mxu0 0
      %970 = vmatmul.mubr.bf16.gmra.mxu0 %v434
      %v971 = vpop.f32.mrf.mxu0
      %v972 = vadd.f32 %v838, %v971
      %v973 = vpop.f32.mrf.mxu0
      %v974 = vadd.f32 %v840, %v973
      %v975 = vpop.f32.mrf.mxu0
      %v976 = vadd.f32 %v842, %v975
      %v977 = vpop.f32.mrf.mxu0
      %v978 = vadd.f32 %v844, %v977
      %979 = vdwg.mxu0
      %s980 = scalar_lea.vmem %s1, 320
      %v981 = vld [vmem:[%s980] sm:$0xff]
      %v982 = vld [vmem:[%s980 + $0x8] sm:$0xff]
      %v983 = vld [vmem:[%s980 + $0x10] sm:$0xff]
      %v984 = vld [vmem:[%s980 + $0x18] sm:$0xff]
      %v985 = vld [vmem:[%s980 + $0x20] sm:$0xff]
      %v986 = vld [vmem:[%s980 + $0x28] sm:$0xff]
      %v987 = vld [vmem:[%s980 + $0x30] sm:$0x77]
      %v988 = vld [vmem:[%s980 + $0x38] sm:$0x77]
      %v997 = vunpack.c.l.b16 %v981
      %v998 = vunpack.c.h.b16 %v981
      %v999 = vunpack.c.l.b16 %v982
      %v1000 = vunpack.c.h.b16 %v982
      %v1001 = vunpack.c.l.b16 %v983
      %v1002 = vunpack.c.h.b16 %v983
      %v1003 = vunpack.c.l.b16 %v984
      %v1004 = vunpack.c.h.b16 %v984
      %v1005 = vunpack.c.l.b16 %v985
      %v1006 = vunpack.c.h.b16 %v985
      %v1007 = vunpack.c.l.b16 %v986
      %v1008 = vunpack.c.h.b16 %v986
      %v1009 = vunpack.c.l.b16 %v987
      %v1010 = vunpack.c.h.b16 %v987
      %v1011 = vunpack.c.l.b16 %v988
      %v1012 = vunpack.c.h.b16 %v988
      %v1013 = vpack.c.b16 %v1001, %v997
      %v1014 = vpack.c.b16 %v1002, %v998
      %v1015 = vpack.c.b16 %v1003, %v999
      %v1016 = vpack.c.b16 %v1004, %v1000
      %v1017 = vpack.c.b16 %v1009, %v1005
      %v1018 = vpack.c.b16 %v1010, %v1006
      %v1019 = vpack.c.b16 %v1011, %v1007
      %v1020 = vpack.c.b16 %v1012, %v1008
      %v1026 = vsel %vm293, %v1017, 0
      %v1029 = vsel %vm293, %v1018, 0
      %v1032 = vsel %vm293, %v1019, 0
      %v1035 = vsel %vm293, %v1020, 0
      %1037 = vmatprep.subr.bf16.mxu0 0
      %1038 = vmatpush1.bf16.msra.mxu0 0
      %1039 = vmatprep.subr.bf16.mxu0 0
      %1040 = vmatpush1.bf16.msra.mxu0 0
      %1041 = vmatprep.subr.bf16.mxu0 0
      %1042 = vmatpush1.bf16.msra.mxu0 0
      %1043 = vmatprep.subr.bf16.mxu0 0
      %1044 = vmatpush1.bf16.msra.mxu0 0
      %1045 = vmatprep.subr.bf16.mxu0 0
      %1046 = vmatpush1.bf16.msra.mxu0 0
      %1047 = vmatprep.subr.bf16.mxu0 0
      %1048 = vmatpush1.bf16.msra.mxu0 0
      %1049 = vmatprep.subr.bf16.mxu0 %v1029
      %1050 = vmatpush1.bf16.msra.mxu0 %v1026
      %1051 = vmatprep.subr.bf16.mxu0 %v1014
      %1052 = vmatpush1.bf16.msra.mxu0 %v1013
      %1053 = vmatprep.subr.bf16.mxu0 0
      %1054 = vmatpush2.bf16.msra.mxu0 0
      %1055 = vmatprep.subr.bf16.mxu0 0
      %1056 = vmatpush2.bf16.msra.mxu0 0
      %1057 = vmatprep.subr.bf16.mxu0 0
      %1058 = vmatpush2.bf16.msra.mxu0 0
      %1059 = vmatprep.subr.bf16.mxu0 0
      %1060 = vmatpush2.bf16.msra.mxu0 0
      %1061 = vmatprep.subr.bf16.mxu0 0
      %1062 = vmatpush2.bf16.msra.mxu0 0
      %1063 = vmatprep.subr.bf16.mxu0 0
      %1064 = vmatpush2.bf16.msra.mxu0 0
      %1065 = vmatprep.subr.bf16.mxu0 0
      %1066 = vmatpush2.bf16.msra.mxu0 0
      %1067 = vmatprep.subr.bf16.mxu0 0
      %1068 = vmatpush2.bf16.msra.mxu0 0
      %1069 = vmatprep.mubr.bf16.mxu0 0
      %1070 = vmatmul.mubr.bf16.gmra.mxu0 %v586
      %v1071 = vpop.f32.mrf.mxu0
      %v1072 = vadd.f32 0.0, %v1071
      %v1073 = vpop.f32.mrf.mxu0
      %v1074 = vadd.f32 0.0, %v1073
      %v1075 = vpop.f32.mrf.mxu0
      %v1076 = vadd.f32 0.0, %v1075
      %v1077 = vpop.f32.mrf.mxu0
      %v1078 = vadd.f32 0.0, %v1077
      %1079 = vdwg.mxu0
      %1080 = vmatprep.subr.bf16.mxu0 0
      %1081 = vmatpush1.bf16.msra.mxu0 0
      %1082 = vmatprep.subr.bf16.mxu0 0
      %1083 = vmatpush1.bf16.msra.mxu0 0
      %1084 = vmatprep.subr.bf16.mxu0 0
      %1085 = vmatpush1.bf16.msra.mxu0 0
      %1086 = vmatprep.subr.bf16.mxu0 0
      %1087 = vmatpush1.bf16.msra.mxu0 0
      %1088 = vmatprep.subr.bf16.mxu0 0
      %1089 = vmatpush1.bf16.msra.mxu0 0
      %1090 = vmatprep.subr.bf16.mxu0 0
      %1091 = vmatpush1.bf16.msra.mxu0 0
      %1092 = vmatprep.subr.bf16.mxu0 %v1035
      %1093 = vmatpush1.bf16.msra.mxu0 %v1032
      %1094 = vmatprep.subr.bf16.mxu0 %v1016
      %1095 = vmatpush1.bf16.msra.mxu0 %v1015
      %1096 = vmatprep.subr.bf16.mxu0 0
      %1097 = vmatpush2.bf16.msra.mxu0 0
      %1098 = vmatprep.subr.bf16.mxu0 0
      %1099 = vmatpush2.bf16.msra.mxu0 0
      %1100 = vmatprep.subr.bf16.mxu0 0
      %1101 = vmatpush2.bf16.msra.mxu0 0
      %1102 = vmatprep.subr.bf16.mxu0 0
      %1103 = vmatpush2.bf16.msra.mxu0 0
      %1104 = vmatprep.subr.bf16.mxu0 0
      %1105 = vmatpush2.bf16.msra.mxu0 0
      %1106 = vmatprep.subr.bf16.mxu0 0
      %1107 = vmatpush2.bf16.msra.mxu0 0
      %1108 = vmatprep.subr.bf16.mxu0 0
      %1109 = vmatpush2.bf16.msra.mxu0 0
      %1110 = vmatprep.subr.bf16.mxu0 0
      %1111 = vmatpush2.bf16.msra.mxu0 0
      %1112 = vmatprep.mubr.bf16.mxu0 0
      %1113 = vmatmul.mubr.bf16.gmra.mxu0 %v586
      %v1114 = vpop.f32.mrf.mxu0
      %v1115 = vadd.f32 0.0, %v1114
      %v1116 = vpop.f32.mrf.mxu0
      %v1117 = vadd.f32 0.0, %v1116
      %v1118 = vpop.f32.mrf.mxu0
      %v1119 = vadd.f32 0.0, %v1118
      %v1120 = vpop.f32.mrf.mxu0
      %v1121 = vadd.f32 0.0, %v1120
      %1122 = vdwg.mxu0
      %v1123 = vadd.f32 %v929, %v1072
      %v1124 = vadd.f32 %v931, %v1074
      %v1125 = vadd.f32 %v972, %v1115
      %v1126 = vadd.f32 %v974, %v1117
      %v1127 = vadd.f32 %v933, %v1076
      %v1128 = vadd.f32 %v935, %v1078
      %v1129 = vadd.f32 %v976, %v1119
      %v1130 = vadd.f32 %v978, %v1121
      %v1131 = vmax.f32 %v686, %v1123
      %v1132 = vmax.f32 %v687, %v1124
      %v1133 = vmax.f32 %v688, %v1125
      %v1134 = vmax.f32 %v689, %v1126
      %v1135 = vmax.f32 %v690, %v1127
      %v1136 = vmax.f32 %v691, %v1128
      %v1137 = vmax.f32 %v692, %v1129
      %v1138 = vmax.f32 %v693, %v1130
      %1139 = vmatprep.subr.bf16.mxu0 0
      %1140 = vmatpush1.bf16.msra.mxu0 0
      %1141 = vmatprep.subr.bf16.mxu0 0
      %1142 = vmatpush1.bf16.msra.mxu0 0
      %1143 = vmatprep.subr.bf16.mxu0 0
      %1144 = vmatpush1.bf16.msra.mxu0 0
      %1145 = vmatprep.subr.bf16.mxu0 0
      %1146 = vmatpush1.bf16.msra.mxu0 0
      %1147 = vmatprep.subr.bf16.mxu0 0
      %1148 = vmatpush1.bf16.msra.mxu0 0
      %1149 = vmatprep.subr.bf16.mxu0 0
      %1150 = vmatpush1.bf16.msra.mxu0 0
      %1151 = vmatprep.subr.bf16.mxu0 %v298
      %1152 = vmatpush1.bf16.msra.mxu0 %v295
      %1153 = vmatprep.subr.bf16.mxu0 %v278
      %1154 = vmatpush1.bf16.msra.mxu0 %v277
      %1155 = vmatprep.subr.bf16.mxu0 0
      %1156 = vmatpush2.bf16.msra.mxu0 0
      %1157 = vmatprep.subr.bf16.mxu0 0
      %1158 = vmatpush2.bf16.msra.mxu0 0
      %1159 = vmatprep.subr.bf16.mxu0 0
      %1160 = vmatpush2.bf16.msra.mxu0 0
      %1161 = vmatprep.subr.bf16.mxu0 0
      %1162 = vmatpush2.bf16.msra.mxu0 0
      %1163 = vmatprep.subr.bf16.mxu0 0
      %1164 = vmatpush2.bf16.msra.mxu0 0
      %1165 = vmatprep.subr.bf16.mxu0 0
      %1166 = vmatpush2.bf16.msra.mxu0 0
      %1167 = vmatprep.subr.bf16.mxu0 0
      %1168 = vmatpush2.bf16.msra.mxu0 0
      %1169 = vmatprep.subr.bf16.mxu0 0
      %1170 = vmatpush2.bf16.msra.mxu0 0
      %1171 = vmatprep.mubr.bf16.mxu0 0
      %1172 = vmatmul.mubr.bf16.gmra.mxu0 %v586
      %v1173 = vpop.f32.mrf.mxu0
      %v1174 = vadd.f32 0.0, %v1173
      %v1175 = vpop.f32.mrf.mxu0
      %v1176 = vadd.f32 0.0, %v1175
      %v1177 = vpop.f32.mrf.mxu0
      %v1178 = vadd.f32 0.0, %v1177
      %v1179 = vpop.f32.mrf.mxu0
      %v1180 = vadd.f32 0.0, %v1179
      %1181 = vdwg.mxu0
      %1182 = vmatprep.subr.bf16.mxu0 0
      %1183 = vmatpush1.bf16.msra.mxu0 0
      %1184 = vmatprep.subr.bf16.mxu0 0
      %1185 = vmatpush1.bf16.msra.mxu0 0
      %1186 = vmatprep.subr.bf16.mxu0 0
      %1187 = vmatpush1.bf16.msra.mxu0 0
      %1188 = vmatprep.subr.bf16.mxu0 0
      %1189 = vmatpush1.bf16.msra.mxu0 0
      %1190 = vmatprep.subr.bf16.mxu0 0
      %1191 = vmatpush1.bf16.msra.mxu0 0
      %1192 = vmatprep.subr.bf16.mxu0 0
      %1193 = vmatpush1.bf16.msra.mxu0 0
      %1194 = vmatprep.subr.bf16.mxu0 %v304
      %1195 = vmatpush1.bf16.msra.mxu0 %v301
      %1196 = vmatprep.subr.bf16.mxu0 %v280
      %1197 = vmatpush1.bf16.msra.mxu0 %v279
      %1198 = vmatprep.subr.bf16.mxu0 0
      %1199 = vmatpush2.bf16.msra.mxu0 0
      %1200 = vmatprep.subr.bf16.mxu0 0
      %1201 = vmatpush2.bf16.msra.mxu0 0
      %1202 = vmatprep.subr.bf16.mxu0 0
      %1203 = vmatpush2.bf16.msra.mxu0 0
      %1204 = vmatprep.subr.bf16.mxu0 0
      %1205 = vmatpush2.bf16.msra.mxu0 0
      %1206 = vmatprep.subr.bf16.mxu0 0
      %1207 = vmatpush2.bf16.msra.mxu0 0
      %1208 = vmatprep.subr.bf16.mxu0 0
      %1209 = vmatpush2.bf16.msra.mxu0 0
      %1210 = vmatprep.subr.bf16.mxu0 0
      %1211 = vmatpush2.bf16.msra.mxu0 0
      %1212 = vmatprep.subr.bf16.mxu0 0
      %1213 = vmatpush2.bf16.msra.mxu0 0
      %1214 = vmatprep.mubr.bf16.mxu0 0
      %1215 = vmatmul.mubr.bf16.gmra.mxu0 %v586
      %v1216 = vpop.f32.mrf.mxu0
      %v1217 = vadd.f32 0.0, %v1216
      %v1218 = vpop.f32.mrf.mxu0
      %v1219 = vadd.f32 0.0, %v1218
      %v1220 = vpop.f32.mrf.mxu0
      %v1221 = vadd.f32 0.0, %v1220
      %v1222 = vpop.f32.mrf.mxu0
      %v1223 = vadd.f32 0.0, %v1222
      %1224 = vdwg.mxu0
      %1225 = vmatprep.subr.bf16.mxu0 0
      %1226 = vmatpush1.bf16.msra.mxu0 0
      %1227 = vmatprep.subr.bf16.mxu0 0
      %1228 = vmatpush1.bf16.msra.mxu0 0
      %1229 = vmatprep.subr.bf16.mxu0 0
      %1230 = vmatpush1.bf16.msra.mxu0 0
      %1231 = vmatprep.subr.bf16.mxu0 0
      %1232 = vmatpush1.bf16.msra.mxu0 0
      %1233 = vmatprep.subr.bf16.mxu0 0
      %1234 = vmatpush1.bf16.msra.mxu0 0
      %1235 = vmatprep.subr.bf16.mxu0 0
      %1236 = vmatpush1.bf16.msra.mxu0 0
      %1237 = vmatprep.subr.bf16.mxu0 %v440
      %1238 = vmatpush1.bf16.msra.mxu0 %v437
      %1239 = vmatprep.subr.bf16.mxu0 %v422
      %1240 = vmatpush1.bf16.msra.mxu0 %v421
      %1241 = vmatprep.subr.bf16.mxu0 0
      %1242 = vmatpush2.bf16.msra.mxu0 0
      %1243 = vmatprep.subr.bf16.mxu0 0
      %1244 = vmatpush2.bf16.msra.mxu0 0
      %1245 = vmatprep.subr.bf16.mxu0 0
      %1246 = vmatpush2.bf16.msra.mxu0 0
      %1247 = vmatprep.subr.bf16.mxu0 0
      %1248 = vmatpush2.bf16.msra.mxu0 0
      %1249 = vmatprep.subr.bf16.mxu0 0
      %1250 = vmatpush2.bf16.msra.mxu0 0
      %1251 = vmatprep.subr.bf16.mxu0 0
      %1252 = vmatpush2.bf16.msra.mxu0 0
      %1253 = vmatprep.subr.bf16.mxu0 0
      %1254 = vmatpush2.bf16.msra.mxu0 0
      %1255 = vmatprep.subr.bf16.mxu0 0
      %1256 = vmatpush2.bf16.msra.mxu0 0
      %1257 = vmatprep.mubr.bf16.mxu0 0
      %1258 = vmatmul.mubr.bf16.gmra.mxu0 %v291
      %v1259 = vpop.f32.mrf.mxu0
      %v1260 = vadd.f32 %v1174, %v1259
      %v1261 = vpop.f32.mrf.mxu0
      %v1262 = vadd.f32 %v1176, %v1261
      %v1263 = vpop.f32.mrf.mxu0
      %v1264 = vadd.f32 %v1178, %v1263
      %v1265 = vpop.f32.mrf.mxu0
      %v1266 = vadd.f32 %v1180, %v1265
      %1267 = vdwg.mxu0
      %1268 = vmatprep.subr.bf16.mxu0 0
      %1269 = vmatpush1.bf16.msra.mxu0 0
      %1270 = vmatprep.subr.bf16.mxu0 0
      %1271 = vmatpush1.bf16.msra.mxu0 0
      %1272 = vmatprep.subr.bf16.mxu0 0
      %1273 = vmatpush1.bf16.msra.mxu0 0
      %1274 = vmatprep.subr.bf16.mxu0 0
      %1275 = vmatpush1.bf16.msra.mxu0 0
      %1276 = vmatprep.subr.bf16.mxu0 0
      %1277 = vmatpush1.bf16.msra.mxu0 0
      %1278 = vmatprep.subr.bf16.mxu0 0
      %1279 = vmatpush1.bf16.msra.mxu0 0
      %1280 = vmatprep.subr.bf16.mxu0 %v446
      %1281 = vmatpush1.bf16.msra.mxu0 %v443
      %1282 = vmatprep.subr.bf16.mxu0 %v424
      %1283 = vmatpush1.bf16.msra.mxu0 %v423
      %1284 = vmatprep.subr.bf16.mxu0 0
      %1285 = vmatpush2.bf16.msra.mxu0 0
      %1286 = vmatprep.subr.bf16.mxu0 0
      %1287 = vmatpush2.bf16.msra.mxu0 0
      %1288 = vmatprep.subr.bf16.mxu0 0
      %1289 = vmatpush2.bf16.msra.mxu0 0
      %1290 = vmatprep.subr.bf16.mxu0 0
      %1291 = vmatpush2.bf16.msra.mxu0 0
      %1292 = vmatprep.subr.bf16.mxu0 0
      %1293 = vmatpush2.bf16.msra.mxu0 0
      %1294 = vmatprep.subr.bf16.mxu0 0
      %1295 = vmatpush2.bf16.msra.mxu0 0
      %1296 = vmatprep.subr.bf16.mxu0 0
      %1297 = vmatpush2.bf16.msra.mxu0 0
      %1298 = vmatprep.subr.bf16.mxu0 0
      %1299 = vmatpush2.bf16.msra.mxu0 0
      %1300 = vmatprep.mubr.bf16.mxu0 0
      %1301 = vmatmul.mubr.bf16.gmra.mxu0 %v291
      %v1302 = vpop.f32.mrf.mxu0
      %v1303 = vadd.f32 %v1217, %v1302
      %v1304 = vpop.f32.mrf.mxu0
      %v1305 = vadd.f32 %v1219, %v1304
      %v1306 = vpop.f32.mrf.mxu0
      %v1307 = vadd.f32 %v1221, %v1306
      %v1308 = vpop.f32.mrf.mxu0
      %v1309 = vadd.f32 %v1223, %v1308
      %1310 = vdwg.mxu0
      %v1311 = vshrl.u32 %v252, 16
      %v1313 = vshll.u32 %v252, 16
      %v1315 = vrot.slane %v1313, 1
      %v1316 = vor.u32 %v1311, %v1315
      %v1318 = vsel %vm289, %v1316, 0
      %1320 = vmatprep.subr.bf16.mxu0 0
      %1321 = vmatpush1.bf16.msra.mxu0 0
      %1322 = vmatprep.subr.bf16.mxu0 0
      %1323 = vmatpush1.bf16.msra.mxu0 0
      %1324 = vmatprep.subr.bf16.mxu0 0
      %1325 = vmatpush1.bf16.msra.mxu0 0
      %1326 = vmatprep.subr.bf16.mxu0 0
      %1327 = vmatpush1.bf16.msra.mxu0 0
      %1328 = vmatprep.subr.bf16.mxu0 0
      %1329 = vmatpush1.bf16.msra.mxu0 0
      %1330 = vmatprep.subr.bf16.mxu0 0
      %1331 = vmatpush1.bf16.msra.mxu0 0
      %1332 = vmatprep.subr.bf16.mxu0 %v592
      %1333 = vmatpush1.bf16.msra.mxu0 %v589
      %1334 = vmatprep.subr.bf16.mxu0 %v574
      %1335 = vmatpush1.bf16.msra.mxu0 %v573
      %1336 = vmatprep.subr.bf16.mxu0 0
      %1337 = vmatpush2.bf16.msra.mxu0 0
      %1338 = vmatprep.subr.bf16.mxu0 0
      %1339 = vmatpush2.bf16.msra.mxu0 0
      %1340 = vmatprep.subr.bf16.mxu0 0
      %1341 = vmatpush2.bf16.msra.mxu0 0
      %1342 = vmatprep.subr.bf16.mxu0 0
      %1343 = vmatpush2.bf16.msra.mxu0 0
      %1344 = vmatprep.subr.bf16.mxu0 0
      %1345 = vmatpush2.bf16.msra.mxu0 0
      %1346 = vmatprep.subr.bf16.mxu0 0
      %1347 = vmatpush2.bf16.msra.mxu0 0
      %1348 = vmatprep.subr.bf16.mxu0 0
      %1349 = vmatpush2.bf16.msra.mxu0 0
      %1350 = vmatprep.subr.bf16.mxu0 0
      %1351 = vmatpush2.bf16.msra.mxu0 0
      %1352 = vmatprep.mubr.bf16.mxu0 0
      %1353 = vmatmul.mubr.bf16.gmra.mxu0 %v1318
      %v1354 = vpop.f32.mrf.mxu0
      %v1355 = vadd.f32 0.0, %v1354
      %v1356 = vpop.f32.mrf.mxu0
      %v1357 = vadd.f32 0.0, %v1356
      %v1358 = vpop.f32.mrf.mxu0
      %v1359 = vadd.f32 0.0, %v1358
      %v1360 = vpop.f32.mrf.mxu0
      %v1361 = vadd.f32 0.0, %v1360
      %1362 = vdwg.mxu0
      %1363 = vmatprep.subr.bf16.mxu0 0
      %1364 = vmatpush1.bf16.msra.mxu0 0
      %1365 = vmatprep.subr.bf16.mxu0 0
      %1366 = vmatpush1.bf16.msra.mxu0 0
      %1367 = vmatprep.subr.bf16.mxu0 0
      %1368 = vmatpush1.bf16.msra.mxu0 0
      %1369 = vmatprep.subr.bf16.mxu0 0
      %1370 = vmatpush1.bf16.msra.mxu0 0
      %1371 = vmatprep.subr.bf16.mxu0 0
      %1372 = vmatpush1.bf16.msra.mxu0 0
      %1373 = vmatprep.subr.bf16.mxu0 0
      %1374 = vmatpush1.bf16.msra.mxu0 0
      %1375 = vmatprep.subr.bf16.mxu0 %v598
      %1376 = vmatpush1.bf16.msra.mxu0 %v595
      %1377 = vmatprep.subr.bf16.mxu0 %v576
      %1378 = vmatpush1.bf16.msra.mxu0 %v575
      %1379 = vmatprep.subr.bf16.mxu0 0
      %1380 = vmatpush2.bf16.msra.mxu0 0
      %1381 = vmatprep.subr.bf16.mxu0 0
      %1382 = vmatpush2.bf16.msra.mxu0 0
      %1383 = vmatprep.subr.bf16.mxu0 0
      %1384 = vmatpush2.bf16.msra.mxu0 0
      %1385 = vmatprep.subr.bf16.mxu0 0
      %1386 = vmatpush2.bf16.msra.mxu0 0
      %1387 = vmatprep.subr.bf16.mxu0 0
      %1388 = vmatpush2.bf16.msra.mxu0 0
      %1389 = vmatprep.subr.bf16.mxu0 0
      %1390 = vmatpush2.bf16.msra.mxu0 0
      %1391 = vmatprep.subr.bf16.mxu0 0
      %1392 = vmatpush2.bf16.msra.mxu0 0
      %1393 = vmatprep.subr.bf16.mxu0 0
      %1394 = vmatpush2.bf16.msra.mxu0 0
      %1395 = vmatprep.mubr.bf16.mxu0 0
      %1396 = vmatmul.mubr.bf16.gmra.mxu0 %v1318
      %v1397 = vpop.f32.mrf.mxu0
      %v1398 = vadd.f32 0.0, %v1397
      %v1399 = vpop.f32.mrf.mxu0
      %v1400 = vadd.f32 0.0, %v1399
      %v1401 = vpop.f32.mrf.mxu0
      %v1402 = vadd.f32 0.0, %v1401
      %v1403 = vpop.f32.mrf.mxu0
      %v1404 = vadd.f32 0.0, %v1403
      %1405 = vdwg.mxu0
      %v1406 = vadd.f32 %v1260, %v1355
      %v1407 = vadd.f32 %v1262, %v1357
      %v1408 = vadd.f32 %v1303, %v1398
      %v1409 = vadd.f32 %v1305, %v1400
      %v1410 = vadd.f32 %v1264, %v1359
      %v1411 = vadd.f32 %v1266, %v1361
      %v1412 = vadd.f32 %v1307, %v1402
      %v1413 = vadd.f32 %v1309, %v1404
      %1414 = vmatprep.subr.bf16.mxu0 0
      %1415 = vmatpush1.bf16.msra.mxu0 0
      %1416 = vmatprep.subr.bf16.mxu0 0
      %1417 = vmatpush1.bf16.msra.mxu0 0
      %1418 = vmatprep.subr.bf16.mxu0 0
      %1419 = vmatpush1.bf16.msra.mxu0 0
      %1420 = vmatprep.subr.bf16.mxu0 0
      %1421 = vmatpush1.bf16.msra.mxu0 0
      %1422 = vmatprep.subr.bf16.mxu0 0
      %1423 = vmatpush1.bf16.msra.mxu0 0
      %1424 = vmatprep.subr.bf16.mxu0 0
      %1425 = vmatpush1.bf16.msra.mxu0 0
      %1426 = vmatprep.subr.bf16.mxu0 %v752
      %1427 = vmatpush1.bf16.msra.mxu0 %v749
      %1428 = vmatprep.subr.bf16.mxu0 %v737
      %1429 = vmatpush1.bf16.msra.mxu0 %v736
      %1430 = vmatprep.subr.bf16.mxu0 0
      %1431 = vmatpush2.bf16.msra.mxu0 0
      %1432 = vmatprep.subr.bf16.mxu0 0
      %1433 = vmatpush2.bf16.msra.mxu0 0
      %1434 = vmatprep.subr.bf16.mxu0 0
      %1435 = vmatpush2.bf16.msra.mxu0 0
      %1436 = vmatprep.subr.bf16.mxu0 0
      %1437 = vmatpush2.bf16.msra.mxu0 0
      %1438 = vmatprep.subr.bf16.mxu0 0
      %1439 = vmatpush2.bf16.msra.mxu0 0
      %1440 = vmatprep.subr.bf16.mxu0 0
      %1441 = vmatpush2.bf16.msra.mxu0 0
      %1442 = vmatprep.subr.bf16.mxu0 0
      %1443 = vmatpush2.bf16.msra.mxu0 0
      %1444 = vmatprep.subr.bf16.mxu0 0
      %1445 = vmatpush2.bf16.msra.mxu0 0
      %1446 = vmatprep.mubr.bf16.mxu0 0
      %1447 = vmatmul.mubr.bf16.gmra.mxu0 %v586
      %v1448 = vpop.f32.mrf.mxu0
      %v1449 = vadd.f32 0.0, %v1448
      %v1450 = vpop.f32.mrf.mxu0
      %v1451 = vadd.f32 0.0, %v1450
      %v1452 = vpop.f32.mrf.mxu0
      %v1453 = vadd.f32 0.0, %v1452
      %v1454 = vpop.f32.mrf.mxu0
      %v1455 = vadd.f32 0.0, %v1454
      %1456 = vdwg.mxu0
      %1457 = vmatprep.subr.bf16.mxu0 0
      %1458 = vmatpush1.bf16.msra.mxu0 0
      %1459 = vmatprep.subr.bf16.mxu0 0
      %1460 = vmatpush1.bf16.msra.mxu0 0
      %1461 = vmatprep.subr.bf16.mxu0 0
      %1462 = vmatpush1.bf16.msra.mxu0 0
      %1463 = vmatprep.subr.bf16.mxu0 0
      %1464 = vmatpush1.bf16.msra.mxu0 0
      %1465 = vmatprep.subr.bf16.mxu0 0
      %1466 = vmatpush1.bf16.msra.mxu0 0
      %1467 = vmatprep.subr.bf16.mxu0 0
      %1468 = vmatpush1.bf16.msra.mxu0 0
      %1469 = vmatprep.subr.bf16.mxu0 %v758
      %1470 = vmatpush1.bf16.msra.mxu0 %v755
      %1471 = vmatprep.subr.bf16.mxu0 %v739
      %1472 = vmatpush1.bf16.msra.mxu0 %v738
      %1473 = vmatprep.subr.bf16.mxu0 0
      %1474 = vmatpush2.bf16.msra.mxu0 0
      %1475 = vmatprep.subr.bf16.mxu0 0
      %1476 = vmatpush2.bf16.msra.mxu0 0
      %1477 = vmatprep.subr.bf16.mxu0 0
      %1478 = vmatpush2.bf16.msra.mxu0 0
      %1479 = vmatprep.subr.bf16.mxu0 0
      %1480 = vmatpush2.bf16.msra.mxu0 0
      %1481 = vmatprep.subr.bf16.mxu0 0
      %1482 = vmatpush2.bf16.msra.mxu0 0
      %1483 = vmatprep.subr.bf16.mxu0 0
      %1484 = vmatpush2.bf16.msra.mxu0 0
      %1485 = vmatprep.subr.bf16.mxu0 0
      %1486 = vmatpush2.bf16.msra.mxu0 0
      %1487 = vmatprep.subr.bf16.mxu0 0
      %1488 = vmatpush2.bf16.msra.mxu0 0
      %1489 = vmatprep.mubr.bf16.mxu0 0
      %1490 = vmatmul.mubr.bf16.gmra.mxu0 %v586
      %v1491 = vpop.f32.mrf.mxu0
      %v1492 = vadd.f32 0.0, %v1491
      %v1493 = vpop.f32.mrf.mxu0
      %v1494 = vadd.f32 0.0, %v1493
      %v1495 = vpop.f32.mrf.mxu0
      %v1496 = vadd.f32 0.0, %v1495
      %v1497 = vpop.f32.mrf.mxu0
      %v1498 = vadd.f32 0.0, %v1497
      %1499 = vdwg.mxu0
      %1500 = vmatprep.subr.bf16.mxu0 0
      %1501 = vmatpush1.bf16.msra.mxu0 0
      %1502 = vmatprep.subr.bf16.mxu0 0
      %1503 = vmatpush1.bf16.msra.mxu0 0
      %1504 = vmatprep.subr.bf16.mxu0 0
      %1505 = vmatpush1.bf16.msra.mxu0 0
      %1506 = vmatprep.subr.bf16.mxu0 0
      %1507 = vmatpush1.bf16.msra.mxu0 0
      %1508 = vmatprep.subr.bf16.mxu0 0
      %1509 = vmatpush1.bf16.msra.mxu0 0
      %1510 = vmatprep.subr.bf16.mxu0 0
      %1511 = vmatpush1.bf16.msra.mxu0 0
      %1512 = vmatprep.subr.bf16.mxu0 %v886
      %1513 = vmatpush1.bf16.msra.mxu0 %v883
      %1514 = vmatprep.subr.bf16.mxu0 %v871
      %1515 = vmatpush1.bf16.msra.mxu0 %v870
      %1516 = vmatprep.subr.bf16.mxu0 0
      %1517 = vmatpush2.bf16.msra.mxu0 0
      %1518 = vmatprep.subr.bf16.mxu0 0
      %1519 = vmatpush2.bf16.msra.mxu0 0
      %1520 = vmatprep.subr.bf16.mxu0 0
      %1521 = vmatpush2.bf16.msra.mxu0 0
      %1522 = vmatprep.subr.bf16.mxu0 0
      %1523 = vmatpush2.bf16.msra.mxu0 0
      %1524 = vmatprep.subr.bf16.mxu0 0
      %1525 = vmatpush2.bf16.msra.mxu0 0
      %1526 = vmatprep.subr.bf16.mxu0 0
      %1527 = vmatpush2.bf16.msra.mxu0 0
      %1528 = vmatprep.subr.bf16.mxu0 0
      %1529 = vmatpush2.bf16.msra.mxu0 0
      %1530 = vmatprep.subr.bf16.mxu0 0
      %1531 = vmatpush2.bf16.msra.mxu0 0
      %1532 = vmatprep.mubr.bf16.mxu0 0
      %1533 = vmatmul.mubr.bf16.gmra.mxu0 %v291
      %v1534 = vpop.f32.mrf.mxu0
      %v1535 = vadd.f32 %v1449, %v1534
      %v1536 = vpop.f32.mrf.mxu0
      %v1537 = vadd.f32 %v1451, %v1536
      %v1538 = vpop.f32.mrf.mxu0
      %v1539 = vadd.f32 %v1453, %v1538
      %v1540 = vpop.f32.mrf.mxu0
      %v1541 = vadd.f32 %v1455, %v1540
      %1542 = vdwg.mxu0
      %1543 = vmatprep.subr.bf16.mxu0 0
      %1544 = vmatpush1.bf16.msra.mxu0 0
      %1545 = vmatprep.subr.bf16.mxu0 0
      %1546 = vmatpush1.bf16.msra.mxu0 0
      %1547 = vmatprep.subr.bf16.mxu0 0
      %1548 = vmatpush1.bf16.msra.mxu0 0
      %1549 = vmatprep.subr.bf16.mxu0 0
      %1550 = vmatpush1.bf16.msra.mxu0 0
      %1551 = vmatprep.subr.bf16.mxu0 0
      %1552 = vmatpush1.bf16.msra.mxu0 0
      %1553 = vmatprep.subr.bf16.mxu0 0
      %1554 = vmatpush1.bf16.msra.mxu0 0
      %1555 = vmatprep.subr.bf16.mxu0 %v892
      %1556 = vmatpush1.bf16.msra.mxu0 %v889
      %1557 = vmatprep.subr.bf16.mxu0 %v873
      %1558 = vmatpush1.bf16.msra.mxu0 %v872
      %1559 = vmatprep.subr.bf16.mxu0 0
      %1560 = vmatpush2.bf16.msra.mxu0 0
      %1561 = vmatprep.subr.bf16.mxu0 0
      %1562 = vmatpush2.bf16.msra.mxu0 0
      %1563 = vmatprep.subr.bf16.mxu0 0
      %1564 = vmatpush2.bf16.msra.mxu0 0
      %1565 = vmatprep.subr.bf16.mxu0 0
      %1566 = vmatpush2.bf16.msra.mxu0 0
      %1567 = vmatprep.subr.bf16.mxu0 0
      %1568 = vmatpush2.bf16.msra.mxu0 0
      %1569 = vmatprep.subr.bf16.mxu0 0
      %1570 = vmatpush2.bf16.msra.mxu0 0
      %1571 = vmatprep.subr.bf16.mxu0 0
      %1572 = vmatpush2.bf16.msra.mxu0 0
      %1573 = vmatprep.subr.bf16.mxu0 0
      %1574 = vmatpush2.bf16.msra.mxu0 0
      %1575 = vmatprep.mubr.bf16.mxu0 0
      %1576 = vmatmul.mubr.bf16.gmra.mxu0 %v291
      %v1577 = vpop.f32.mrf.mxu0
      %v1578 = vadd.f32 %v1492, %v1577
      %v1579 = vpop.f32.mrf.mxu0
      %v1580 = vadd.f32 %v1494, %v1579
      %v1581 = vpop.f32.mrf.mxu0
      %v1582 = vadd.f32 %v1496, %v1581
      %v1583 = vpop.f32.mrf.mxu0
      %v1584 = vadd.f32 %v1498, %v1583
      %1585 = vdwg.mxu0
      %1586 = vmatprep.subr.bf16.mxu0 0
      %1587 = vmatpush1.bf16.msra.mxu0 0
      %1588 = vmatprep.subr.bf16.mxu0 0
      %1589 = vmatpush1.bf16.msra.mxu0 0
      %1590 = vmatprep.subr.bf16.mxu0 0
      %1591 = vmatpush1.bf16.msra.mxu0 0
      %1592 = vmatprep.subr.bf16.mxu0 0
      %1593 = vmatpush1.bf16.msra.mxu0 0
      %1594 = vmatprep.subr.bf16.mxu0 0
      %1595 = vmatpush1.bf16.msra.mxu0 0
      %1596 = vmatprep.subr.bf16.mxu0 0
      %1597 = vmatpush1.bf16.msra.mxu0 0
      %1598 = vmatprep.subr.bf16.mxu0 %v1029
      %1599 = vmatpush1.bf16.msra.mxu0 %v1026
      %1600 = vmatprep.subr.bf16.mxu0 %v1014
      %1601 = vmatpush1.bf16.msra.mxu0 %v1013
      %1602 = vmatprep.subr.bf16.mxu0 0
      %1603 = vmatpush2.bf16.msra.mxu0 0
      %1604 = vmatprep.subr.bf16.mxu0 0
      %1605 = vmatpush2.bf16.msra.mxu0 0
      %1606 = vmatprep.subr.bf16.mxu0 0
      %1607 = vmatpush2.bf16.msra.mxu0 0
      %1608 = vmatprep.subr.bf16.mxu0 0
      %1609 = vmatpush2.bf16.msra.mxu0 0
      %1610 = vmatprep.subr.bf16.mxu0 0
      %1611 = vmatpush2.bf16.msra.mxu0 0
      %1612 = vmatprep.subr.bf16.mxu0 0
      %1613 = vmatpush2.bf16.msra.mxu0 0
      %1614 = vmatprep.subr.bf16.mxu0 0
      %1615 = vmatpush2.bf16.msra.mxu0 0
      %1616 = vmatprep.subr.bf16.mxu0 0
      %1617 = vmatpush2.bf16.msra.mxu0 0
      %1618 = vmatprep.mubr.bf16.mxu0 0
      %1619 = vmatmul.mubr.bf16.gmra.mxu0 %v1318
      %v1620 = vpop.f32.mrf.mxu0
      %v1621 = vadd.f32 0.0, %v1620
      %v1622 = vpop.f32.mrf.mxu0
      %v1623 = vadd.f32 0.0, %v1622
      %v1624 = vpop.f32.mrf.mxu0
      %v1625 = vadd.f32 0.0, %v1624
      %v1626 = vpop.f32.mrf.mxu0
      %v1627 = vadd.f32 0.0, %v1626
      %1628 = vdwg.mxu0
      %1629 = vmatprep.subr.bf16.mxu0 0
      %1630 = vmatpush1.bf16.msra.mxu0 0
      %1631 = vmatprep.subr.bf16.mxu0 0
      %1632 = vmatpush1.bf16.msra.mxu0 0
      %1633 = vmatprep.subr.bf16.mxu0 0
      %1634 = vmatpush1.bf16.msra.mxu0 0
      %1635 = vmatprep.subr.bf16.mxu0 0
      %1636 = vmatpush1.bf16.msra.mxu0 0
      %1637 = vmatprep.subr.bf16.mxu0 0
      %1638 = vmatpush1.bf16.msra.mxu0 0
      %1639 = vmatprep.subr.bf16.mxu0 0
      %1640 = vmatpush1.bf16.msra.mxu0 0
      %1641 = vmatprep.subr.bf16.mxu0 %v1035
      %1642 = vmatpush1.bf16.msra.mxu0 %v1032
      %1643 = vmatprep.subr.bf16.mxu0 %v1016
      %1644 = vmatpush1.bf16.msra.mxu0 %v1015
      %1645 = vmatprep.subr.bf16.mxu0 0
      %1646 = vmatpush2.bf16.msra.mxu0 0
      %1647 = vmatprep.subr.bf16.mxu0 0
      %1648 = vmatpush2.bf16.msra.mxu0 0
      %1649 = vmatprep.subr.bf16.mxu0 0
      %1650 = vmatpush2.bf16.msra.mxu0 0
      %1651 = vmatprep.subr.bf16.mxu0 0
      %1652 = vmatpush2.bf16.msra.mxu0 0
      %1653 = vmatprep.subr.bf16.mxu0 0
      %1654 = vmatpush2.bf16.msra.mxu0 0
      %1655 = vmatprep.subr.bf16.mxu0 0
      %1656 = vmatpush2.bf16.msra.mxu0 0
      %1657 = vmatprep.subr.bf16.mxu0 0
      %1658 = vmatpush2.bf16.msra.mxu0 0
      %1659 = vmatprep.subr.bf16.mxu0 0
      %1660 = vmatpush2.bf16.msra.mxu0 0
      %1661 = vmatprep.mubr.bf16.mxu0 0
      %1662 = vmatmul.mubr.bf16.gmra.mxu0 %v1318
      %v1663 = vpop.f32.mrf.mxu0
      %v1664 = vadd.f32 0.0, %v1663
      %v1665 = vpop.f32.mrf.mxu0
      %v1666 = vadd.f32 0.0, %v1665
      %v1667 = vpop.f32.mrf.mxu0
      %v1668 = vadd.f32 0.0, %v1667
      %v1669 = vpop.f32.mrf.mxu0
      %v1670 = vadd.f32 0.0, %v1669
      %1671 = vdwg.mxu0
      %v1672 = vadd.f32 %v1535, %v1621
      %v1673 = vadd.f32 %v1537, %v1623
      %v1674 = vadd.f32 %v1578, %v1664
      %v1675 = vadd.f32 %v1580, %v1666
      %v1676 = vadd.f32 %v1539, %v1625
      %v1677 = vadd.f32 %v1541, %v1627
      %v1678 = vadd.f32 %v1582, %v1668
      %v1679 = vadd.f32 %v1584, %v1670
      %v1680 = vmax.f32 %v1406, %v1672
      %v1681 = vmax.f32 %v1407, %v1673
      %v1682 = vmax.f32 %v1408, %v1674
      %v1683 = vmax.f32 %v1409, %v1675
      %v1684 = vmax.f32 %v1410, %v1676
      %v1685 = vmax.f32 %v1411, %v1677
      %v1686 = vmax.f32 %v1412, %v1678
      %v1687 = vmax.f32 %v1413, %v1679
      %v1688 = vmax.f32 %v1131, %v1680
      %v1689 = vmax.f32 %v1132, %v1681
      %v1690 = vmax.f32 %v1133, %v1682
      %v1691 = vmax.f32 %v1134, %v1683
      %v1692 = vmax.f32 %v1135, %v1684
      %v1693 = vmax.f32 %v1136, %v1685
      %v1694 = vmax.f32 %v1137, %v1686
      %v1695 = vmax.f32 %v1138, %v1687
      %v1696 = vld [vmem:[%s2] sm:$0xf]
      %v1698 = vlaneseq
      %v1699 = vshrl.u32 %v1698, 7
      %v1700 = vsub.s32 0, %v1699
      %v1701 = vrot.slane %v1696, %v1700
      %v1702 = vlaneseq
      %v1703 = vshrl.u32 %v1702, 7
      %v1704 = vsub.s32 1, %v1703
      %v1705 = vrot.slane %v1696, %v1704
      %v1706 = vlaneseq
      %v1707 = vshrl.u32 %v1706, 7
      %v1708 = vsub.s32 2, %v1707
      %v1709 = vrot.slane %v1696, %v1708
      %v1710 = vlaneseq
      %v1711 = vshrl.u32 %v1710, 7
      %v1712 = vsub.s32 3, %v1711
      %v1713 = vrot.slane %v1696, %v1712
      %v1718 = vadd.f32 %v1688, %v1701
      %v1719 = vadd.f32 %v1689, %v1705
      %v1720 = vadd.f32 %v1690, %v1709
      %v1721 = vadd.f32 %v1691, %v1713
      %v1722 = vadd.f32 %v1692, %v1701
      %v1723 = vadd.f32 %v1693, %v1705
      %v1724 = vadd.f32 %v1694, %v1709
      %v1725 = vadd.f32 %v1695, %v1713
      %v1726 = vmax.f32 %v1718, 0.0
      %v1727 = vmax.f32 %v1719, 0.0
      %v1728 = vmax.f32 %v1720, 0.0
      %v1729 = vmax.f32 %v1721, 0.0
      %v1730 = vmax.f32 %v1722, 0.0
      %v1731 = vmax.f32 %v1723, 0.0
      %v1732 = vmax.f32 %v1724, 0.0
      %v1733 = vmax.f32 %v1725, 0.0
      %1734 = vst [vmem:[#allocation2] sm:$0xff] 0.0
      %1735 = vst [vmem:[#allocation2 + $0x8] sm:$0xff] 0.0
      %1736 = vst [vmem:[#allocation2 + $0x10] sm:$0xff] 0.0
      %1737 = vst [vmem:[#allocation2 + $0x18] sm:$0xff] 0.0
      %1738 = vst [vmem:[#allocation2 + $0x20] sm:$0xff] 0.0
      %1739 = vst [vmem:[#allocation2 + $0x28] sm:$0xff] 0.0
      %1740 = vst [vmem:[#allocation2 + $0x30] sm:$0xff] 0.0
      %1741 = vst [vmem:[#allocation2 + $0x38] sm:$0xff] 0.0
      %vm1750 = vcmask 1040384
      %v1751 = vrot.slane %v1726, 7
      %v1752 = vrot.slane %v1727, 7
      %v1753 = vrot.slane %v1728, 7
      %v1754 = vrot.slane %v1729, 7
      %v1755 = vrot.slane %v1730, 7
      %v1756 = vsel %vm1750, %v1751, %v1755
      %v1757 = vrot.slane %v1731, 7
      %v1758 = vsel %vm1750, %v1752, %v1757
      %v1759 = vrot.slane %v1732, 7
      %v1760 = vsel %vm1750, %v1753, %v1759
      %v1761 = vrot.slane %v1733, 7
      %v1762 = vsel %vm1750, %v1754, %v1761
      %1763 = vrot.lane.b32.xlu0 %v1751, 32
      %v1764 = vpop.permute.xlu0 %1763
      %1765 = vrot.lane.b32.xlu0 %v1752, 32
      %v1766 = vpop.permute.xlu0 %1765
      %1767 = vrot.lane.b32.xlu0 %v1753, 32
      %v1768 = vpop.permute.xlu0 %1767
      %1769 = vrot.lane.b32.xlu0 %v1754, 32
      %v1770 = vpop.permute.xlu0 %1769
      %1771 = vrot.lane.b32.xlu0 %v1756, 32
      %v1772 = vpop.permute.xlu0 %1771
      %1773 = vrot.lane.b32.xlu0 %v1758, 32
      %v1774 = vpop.permute.xlu0 %1773
      %1775 = vrot.lane.b32.xlu0 %v1760, 32
      %v1776 = vpop.permute.xlu0 %1775
      %1777 = vrot.lane.b32.xlu0 %v1762, 32
      %v1778 = vpop.permute.xlu0 %1777
      %vm1779 = vcmask 261120
      %v1780 = vsel %vm1779, %v1764, %v1766
      %v1781 = vsel %vm1779, %v1766, %v1768
      %v1782 = vsel %vm1779, %v1768, %v1770
      %v1783 = vsel %vm1779, %v1772, %v1774
      %v1784 = vsel %vm1779, %v1774, %v1776
      %v1785 = vsel %vm1779, %v1776, %v1778
      %vm1794 = vcmask 1047809
      %1795 = vst.msk [vmem:[#allocation2] sm:$0xfe] %vm1794, %v1764
      %1796 = vst [vmem:[#allocation2 + $0x8] sm:$0xfe] %v1780
      %1797 = vst [vmem:[#allocation2 + $0x10] sm:$0xfe] %v1781
      %vm1798 = vcmask 785409
      %1799 = vst.msk [vmem:[#allocation2 + $0x18] sm:$0xfe] %vm1798, %v1782
      %vm1800 = vcmask 1046784
      %1801 = vst.msk [vmem:[#allocation2 + $0x20] sm:$0x7f] %vm1800, %v1772
      %1802 = vst [vmem:[#allocation2 + $0x28] sm:$0x7f] %v1783
      %1803 = vst [vmem:[#allocation2 + $0x30] sm:$0x7f] %v1784
      %vm1804 = vcmask 784384
      %1805 = vst.msk [vmem:[#allocation2 + $0x38] sm:$0x7f] %vm1804, %v1785
      %v1806 = vld [vmem:[#allocation2] sm:$0xff]
      %v1807 = vld [vmem:[#allocation2 + $0x8] sm:$0xff]
      %v1808 = vld [vmem:[#allocation2 + $0x10] sm:$0xff]
      %v1809 = vld [vmem:[#allocation2 + $0x18] sm:$0xff]
      %v1810 = vld [vmem:[#allocation2 + $0x20] sm:$0xff]
      %v1811 = vld [vmem:[#allocation2 + $0x28] sm:$0xff]
      %v1812 = vld [vmem:[#allocation2 + $0x30] sm:$0xff]
      %v1813 = vld [vmem:[#allocation2 + $0x38] sm:$0xff]
      %v1814 = vpack.c.bf16 %v1810, %v1806
      %v1815 = vpack.c.bf16 %v1811, %v1807
      %v1816 = vpack.c.bf16 %v1812, %v1808
      %v1817 = vpack.c.bf16 %v1813, %v1809
      %v1818 = vld [vmem:[%s3] sm:$0xff]
      %v1819 = vld [vmem:[%s3 + $0x8] sm:$0xff]
      %v1820 = vld [vmem:[%s3 + $0x10] sm:$0xff]
      %v1821 = vld [vmem:[%s3 + $0x18] sm:$0xff]
      %v1822 = vld [vmem:[%s3 + $0x20] sm:$0xff]
      %v1823 = vld [vmem:[%s3 + $0x28] sm:$0xff]
      %v1824 = vld [vmem:[%s3 + $0x30] sm:$0xff]
      %v1825 = vld [vmem:[%s3 + $0x38] sm:$0xff]
      %v1826 = vld [vmem:[%s3 + $0x40] sm:$0xff]
      %v1827 = vld [vmem:[%s3 + $0x48] sm:$0xff]
      %v1828 = vld [vmem:[%s3 + $0x50] sm:$0xff]
      %v1829 = vld [vmem:[%s3 + $0x58] sm:$0xff]
      %v1830 = vld [vmem:[%s3 + $0x60] sm:$0xff]
      %v1831 = vld [vmem:[%s3 + $0x68] sm:$0xff]
      %v1832 = vld [vmem:[%s3 + $0x70] sm:$0xff]
      %v1833 = vld [vmem:[%s3 + $0x78] sm:$0xff]
      %v1834 = vld [vmem:[%s3 + $0x80] sm:$0xff]
      %v1835 = vld [vmem:[%s3 + $0x88] sm:$0xff]
      %v1836 = vld [vmem:[%s3 + $0x90] sm:$0xff]
      %v1837 = vld [vmem:[%s3 + $0x98] sm:$0xff]
      %v1838 = vld [vmem:[%s3 + $0xa0] sm:$0xff]
      %v1839 = vld [vmem:[%s3 + $0xa8] sm:$0xff]
      %v1840 = vld [vmem:[%s3 + $0xb0] sm:$0xff]
      %v1841 = vld [vmem:[%s3 + $0xb8] sm:$0xff]
      %v1842 = vld [vmem:[%s3 + $0xc0] sm:$0xff]
      %v1843 = vld [vmem:[%s3 + $0xc8] sm:$0xff]
      %v1844 = vld [vmem:[%s3 + $0xd0] sm:$0xff]
      %v1845 = vld [vmem:[%s3 + $0xd8] sm:$0xff]
      %v1846 = vld [vmem:[%s3 + $0xe0] sm:$0xff]
      %v1847 = vld [vmem:[%s3 + $0xe8] sm:$0xff]
      %v1848 = vld [vmem:[%s3 + $0xf0] sm:$0xff]
      %v1849 = vld [vmem:[%s3 + $0xf8] sm:$0xff]
      %v1850 = vld [vmem:[%s3 + $0x100] sm:$0xff]
      %v1851 = vld [vmem:[%s3 + $0x108] sm:$0xff]
      %v1852 = vld [vmem:[%s3 + $0x110] sm:$0xff]
      %v1853 = vld [vmem:[%s3 + $0x118] sm:$0xff]
      %v1854 = vld [vmem:[%s3 + $0x120] sm:$0xff]
      %v1855 = vld [vmem:[%s3 + $0x128] sm:$0xff]
      %v1856 = vld [vmem:[%s3 + $0x130] sm:$0xff]
      %v1857 = vld [vmem:[%s3 + $0x138] sm:$0xff]
      %v1858 = vld [vmem:[%s3 + $0x140] sm:$0xff]
      %v1859 = vld [vmem:[%s3 + $0x148] sm:$0xff]
      %v1860 = vld [vmem:[%s3 + $0x150] sm:$0xff]
      %v1861 = vld [vmem:[%s3 + $0x158] sm:$0xff]
      %v1862 = vld [vmem:[%s3 + $0x160] sm:$0xff]
      %v1863 = vld [vmem:[%s3 + $0x168] sm:$0xff]
      %v1864 = vld [vmem:[%s3 + $0x170] sm:$0xff]
      %v1865 = vld [vmem:[%s3 + $0x178] sm:$0xff]
      %v1866 = vld [vmem:[%s3 + $0x180] sm:$0xff]
      %v1867 = vld [vmem:[%s3 + $0x188] sm:$0xff]
      %v1868 = vld [vmem:[%s3 + $0x190] sm:$0xff]
      %v1869 = vld [vmem:[%s3 + $0x198] sm:$0xff]
      %v1870 = vld [vmem:[%s3 + $0x1a0] sm:$0xff]
      %v1871 = vld [vmem:[%s3 + $0x1a8] sm:$0xff]
      %v1872 = vld [vmem:[%s3 + $0x1b0] sm:$0xff]
      %v1873 = vld [vmem:[%s3 + $0x1b8] sm:$0xff]
      %v1874 = vld [vmem:[%s3 + $0x1c0] sm:$0xff]
      %v1875 = vld [vmem:[%s3 + $0x1c8] sm:$0xff]
      %v1876 = vld [vmem:[%s3 + $0x1d0] sm:$0xff]
      %v1877 = vld [vmem:[%s3 + $0x1d8] sm:$0xff]
      %v1878 = vld [vmem:[%s3 + $0x1e0] sm:$0xff]
      %v1879 = vld [vmem:[%s3 + $0x1e8] sm:$0xff]
      %v1880 = vld [vmem:[%s3 + $0x1f0] sm:$0xff]
      %v1881 = vld [vmem:[%s3 + $0x1f8] sm:$0xff]
      %v1882 = vld [vmem:[%s3 + $0x200] sm:$0xff]
      %v1883 = vld [vmem:[%s3 + $0x208] sm:$0xff]
      %v1884 = vld [vmem:[%s3 + $0x210] sm:$0xff]
      %v1885 = vld [vmem:[%s3 + $0x218] sm:$0xff]
      %v1886 = vld [vmem:[%s3 + $0x220] sm:$0xff]
      %v1887 = vld [vmem:[%s3 + $0x228] sm:$0xff]
      %v1888 = vld [vmem:[%s3 + $0x230] sm:$0xff]
      %v1889 = vld [vmem:[%s3 + $0x238] sm:$0xff]
      %v1890 = vld [vmem:[%s3 + $0x240] sm:$0xff]
      %v1891 = vld [vmem:[%s3 + $0x248] sm:$0xff]
      %v1892 = vld [vmem:[%s3 + $0x250] sm:$0xff]
      %v1893 = vld [vmem:[%s3 + $0x258] sm:$0xff]
      %v1894 = vld [vmem:[%s3 + $0x260] sm:$0xff]
      %v1895 = vld [vmem:[%s3 + $0x268] sm:$0xff]
      %v1896 = vld [vmem:[%s3 + $0x270] sm:$0xff]
      %v1897 = vld [vmem:[%s3 + $0x278] sm:$0xff]
      %v1898 = vld [vmem:[%s3 + $0x280] sm:$0xff]
      %v1899 = vld [vmem:[%s3 + $0x288] sm:$0xff]
      %v1900 = vld [vmem:[%s3 + $0x290] sm:$0xff]
      %v1901 = vld [vmem:[%s3 + $0x298] sm:$0xff]
      %v1902 = vld [vmem:[%s3 + $0x2a0] sm:$0xff]
      %v1903 = vld [vmem:[%s3 + $0x2a8] sm:$0xff]
      %v1904 = vld [vmem:[%s3 + $0x2b0] sm:$0xff]
      %v1905 = vld [vmem:[%s3 + $0x2b8] sm:$0xff]
      %v1906 = vld [vmem:[%s3 + $0x2c0] sm:$0xff]
      %v1907 = vld [vmem:[%s3 + $0x2c8] sm:$0xff]
      %v1908 = vld [vmem:[%s3 + $0x2d0] sm:$0xff]
      %v1909 = vld [vmem:[%s3 + $0x2d8] sm:$0xff]
      %v1910 = vld [vmem:[%s3 + $0x2e0] sm:$0xff]
      %v1911 = vld [vmem:[%s3 + $0x2e8] sm:$0xff]
      %v1912 = vld [vmem:[%s3 + $0x2f0] sm:$0xff]
      %v1913 = vld [vmem:[%s3 + $0x2f8] sm:$0xff]
      %v1914 = vld [vmem:[%s3 + $0x300] sm:$0xff]
      %v1915 = vld [vmem:[%s3 + $0x308] sm:$0xff]
      %v1916 = vld [vmem:[%s3 + $0x310] sm:$0xff]
      %v1917 = vld [vmem:[%s3 + $0x318] sm:$0xff]
      %v1918 = vld [vmem:[%s3 + $0x320] sm:$0xff]
      %v1919 = vld [vmem:[%s3 + $0x328] sm:$0xff]
      %v1920 = vld [vmem:[%s3 + $0x330] sm:$0xff]
      %v1921 = vld [vmem:[%s3 + $0x338] sm:$0xff]
      %v1922 = vld [vmem:[%s3 + $0x340] sm:$0xff]
      %v1923 = vld [vmem:[%s3 + $0x348] sm:$0xff]
      %v1924 = vld [vmem:[%s3 + $0x350] sm:$0xff]
      %v1925 = vld [vmem:[%s3 + $0x358] sm:$0xff]
      %v1926 = vld [vmem:[%s3 + $0x360] sm:$0xff]
      %v1927 = vld [vmem:[%s3 + $0x368] sm:$0xff]
      %v1928 = vld [vmem:[%s3 + $0x370] sm:$0xff]
      %v1929 = vld [vmem:[%s3 + $0x378] sm:$0xff]
      %v1930 = vld [vmem:[%s3 + $0x380] sm:$0xff]
      %v1931 = vld [vmem:[%s3 + $0x388] sm:$0xff]
      %v1932 = vld [vmem:[%s3 + $0x390] sm:$0xff]
      %v1933 = vld [vmem:[%s3 + $0x398] sm:$0xff]
      %v1934 = vld [vmem:[%s3 + $0x3a0] sm:$0xff]
      %v1935 = vld [vmem:[%s3 + $0x3a8] sm:$0xff]
      %v1936 = vld [vmem:[%s3 + $0x3b0] sm:$0xff]
      %v1937 = vld [vmem:[%s3 + $0x3b8] sm:$0xff]
      %v1938 = vld [vmem:[%s3 + $0x3c0] sm:$0xff]
      %v1939 = vld [vmem:[%s3 + $0x3c8] sm:$0xff]
      %v1940 = vld [vmem:[%s3 + $0x3d0] sm:$0xff]
      %v1941 = vld [vmem:[%s3 + $0x3d8] sm:$0xff]
      %v1942 = vld [vmem:[%s3 + $0x3e0] sm:$0xff]
      %v1943 = vld [vmem:[%s3 + $0x3e8] sm:$0xff]
      %v1944 = vld [vmem:[%s3 + $0x3f0] sm:$0xff]
      %v1945 = vld [vmem:[%s3 + $0x3f8] sm:$0xff]
      %s1946 = scalar_lea.vmem %s3, 1024
      %v1947 = vld [vmem:[%s1946] sm:$0xff]
      %v1948 = vld [vmem:[%s1946 + $0x8] sm:$0xff]
      %v1949 = vld [vmem:[%s1946 + $0x10] sm:$0xff]
      %v1950 = vld [vmem:[%s1946 + $0x18] sm:$0xff]
      %v1951 = vld [vmem:[%s1946 + $0x20] sm:$0xff]
      %v1952 = vld [vmem:[%s1946 + $0x28] sm:$0xff]
      %v1953 = vld [vmem:[%s1946 + $0x30] sm:$0xff]
      %v1954 = vld [vmem:[%s1946 + $0x38] sm:$0xff]
      %v1955 = vld [vmem:[%s1946 + $0x40] sm:$0xff]
      %v1956 = vld [vmem:[%s1946 + $0x48] sm:$0xff]
      %v1957 = vld [vmem:[%s1946 + $0x50] sm:$0xff]
      %v1958 = vld [vmem:[%s1946 + $0x58] sm:$0xff]
      %v1959 = vld [vmem:[%s1946 + $0x60] sm:$0xff]
      %v1960 = vld [vmem:[%s1946 + $0x68] sm:$0xff]
      %v1961 = vld [vmem:[%s1946 + $0x70] sm:$0xff]
      %v1962 = vld [vmem:[%s1946 + $0x78] sm:$0xff]
      %v1963 = vld [vmem:[%s1946 + $0x80] sm:$0xff]
      %v1964 = vld [vmem:[%s1946 + $0x88] sm:$0xff]
      %v1965 = vld [vmem:[%s1946 + $0x90] sm:$0xff]
      %v1966 = vld [vmem:[%s1946 + $0x98] sm:$0xff]
      %v1967 = vld [vmem:[%s1946 + $0xa0] sm:$0xff]
      %v1968 = vld [vmem:[%s1946 + $0xa8] sm:$0xff]
      %v1969 = vld [vmem:[%s1946 + $0xb0] sm:$0xff]
      %v1970 = vld [vmem:[%s1946 + $0xb8] sm:$0xff]
      %v1971 = vld [vmem:[%s1946 + $0xc0] sm:$0xff]
      %v1972 = vld [vmem:[%s1946 + $0xc8] sm:$0xff]
      %v1973 = vld [vmem:[%s1946 + $0xd0] sm:$0xff]
      %v1974 = vld [vmem:[%s1946 + $0xd8] sm:$0xff]
      %v1975 = vld [vmem:[%s1946 + $0xe0] sm:$0xff]
      %v1976 = vld [vmem:[%s1946 + $0xe8] sm:$0xff]
      %v1977 = vld [vmem:[%s1946 + $0xf0] sm:$0xff]
      %v1978 = vld [vmem:[%s1946 + $0xf8] sm:$0xff]
      %v1979 = vld [vmem:[%s1946 + $0x100] sm:$0xff]
      %v1980 = vld [vmem:[%s1946 + $0x108] sm:$0xff]
      %v1981 = vld [vmem:[%s1946 + $0x110] sm:$0xff]
      %v1982 = vld [vmem:[%s1946 + $0x118] sm:$0xff]
      %v1983 = vld [vmem:[%s1946 + $0x120] sm:$0xff]
      %v1984 = vld [vmem:[%s1946 + $0x128] sm:$0xff]
      %v1985 = vld [vmem:[%s1946 + $0x130] sm:$0xff]
      %v1986 = vld [vmem:[%s1946 + $0x138] sm:$0xff]
      %v1987 = vld [vmem:[%s1946 + $0x140] sm:$0xff]
      %v1988 = vld [vmem:[%s1946 + $0x148] sm:$0xff]
      %v1989 = vld [vmem:[%s1946 + $0x150] sm:$0xff]
      %v1990 = vld [vmem:[%s1946 + $0x158] sm:$0xff]
      %v1991 = vld [vmem:[%s1946 + $0x160] sm:$0xff]
      %v1992 = vld [vmem:[%s1946 + $0x168] sm:$0xff]
      %v1993 = vld [vmem:[%s1946 + $0x170] sm:$0xff]
      %v1994 = vld [vmem:[%s1946 + $0x178] sm:$0xff]
      %v1995 = vld [vmem:[%s1946 + $0x180] sm:$0xff]
      %v1996 = vld [vmem:[%s1946 + $0x188] sm:$0xff]
      %v1997 = vld [vmem:[%s1946 + $0x190] sm:$0xff]
      %v1998 = vld [vmem:[%s1946 + $0x198] sm:$0xff]
      %v1999 = vld [vmem:[%s1946 + $0x1a0] sm:$0xff]
      %v2000 = vld [vmem:[%s1946 + $0x1a8] sm:$0xff]
      %v2001 = vld [vmem:[%s1946 + $0x1b0] sm:$0xff]
      %v2002 = vld [vmem:[%s1946 + $0x1b8] sm:$0xff]
      %v2003 = vld [vmem:[%s1946 + $0x1c0] sm:$0xff]
      %v2004 = vld [vmem:[%s1946 + $0x1c8] sm:$0xff]
      %v2005 = vld [vmem:[%s1946 + $0x1d0] sm:$0xff]
      %v2006 = vld [vmem:[%s1946 + $0x1d8] sm:$0xff]
      %v2007 = vld [vmem:[%s1946 + $0x1e0] sm:$0xff]
      %v2008 = vld [vmem:[%s1946 + $0x1e8] sm:$0xff]
      %v2009 = vld [vmem:[%s1946 + $0x1f0] sm:$0xff]
      %v2010 = vld [vmem:[%s1946 + $0x1f8] sm:$0xff]
      %v2011 = vld [vmem:[%s1946 + $0x200] sm:$0xff]
      %v2012 = vld [vmem:[%s1946 + $0x208] sm:$0xff]
      %v2013 = vld [vmem:[%s1946 + $0x210] sm:$0xff]
      %v2014 = vld [vmem:[%s1946 + $0x218] sm:$0xff]
      %v2015 = vld [vmem:[%s1946 + $0x220] sm:$0xff]
      %v2016 = vld [vmem:[%s1946 + $0x228] sm:$0xff]
      %v2017 = vld [vmem:[%s1946 + $0x230] sm:$0xff]
      %v2018 = vld [vmem:[%s1946 + $0x238] sm:$0xff]
      %v2019 = vld [vmem:[%s1946 + $0x240] sm:$0xff]
      %v2020 = vld [vmem:[%s1946 + $0x248] sm:$0xff]
      %v2021 = vld [vmem:[%s1946 + $0x250] sm:$0xff]
      %v2022 = vld [vmem:[%s1946 + $0x258] sm:$0xff]
      %v2023 = vld [vmem:[%s1946 + $0x260] sm:$0xff]
      %v2024 = vld [vmem:[%s1946 + $0x268] sm:$0xff]
      %v2025 = vld [vmem:[%s1946 + $0x270] sm:$0xff]
      %v2026 = vld [vmem:[%s1946 + $0x278] sm:$0xff]
      %v2027 = vld [vmem:[%s1946 + $0x280] sm:$0xff]
      %v2028 = vld [vmem:[%s1946 + $0x288] sm:$0xff]
      %v2029 = vld [vmem:[%s1946 + $0x290] sm:$0xff]
      %v2030 = vld [vmem:[%s1946 + $0x298] sm:$0xff]
      %v2031 = vld [vmem:[%s1946 + $0x2a0] sm:$0xff]
      %v2032 = vld [vmem:[%s1946 + $0x2a8] sm:$0xff]
      %v2033 = vld [vmem:[%s1946 + $0x2b0] sm:$0xff]
      %v2034 = vld [vmem:[%s1946 + $0x2b8] sm:$0xff]
      %v2035 = vld [vmem:[%s1946 + $0x2c0] sm:$0xff]
      %v2036 = vld [vmem:[%s1946 + $0x2c8] sm:$0xff]
      %v2037 = vld [vmem:[%s1946 + $0x2d0] sm:$0xff]
      %v2038 = vld [vmem:[%s1946 + $0x2d8] sm:$0xff]
      %v2039 = vld [vmem:[%s1946 + $0x2e0] sm:$0xff]
      %v2040 = vld [vmem:[%s1946 + $0x2e8] sm:$0xff]
      %v2041 = vld [vmem:[%s1946 + $0x2f0] sm:$0xff]
      %v2042 = vld [vmem:[%s1946 + $0x2f8] sm:$0xff]
      %v2043 = vld [vmem:[%s1946 + $0x300] sm:$0xff]
      %v2044 = vld [vmem:[%s1946 + $0x308] sm:$0xff]
      %v2045 = vld [vmem:[%s1946 + $0x310] sm:$0xff]
      %v2046 = vld [vmem:[%s1946 + $0x318] sm:$0xff]
      %v2047 = vld [vmem:[%s1946 + $0x320] sm:$0xff]
      %v2048 = vld [vmem:[%s1946 + $0x328] sm:$0xff]
      %v2049 = vld [vmem:[%s1946 + $0x330] sm:$0xff]
      %v2050 = vld [vmem:[%s1946 + $0x338] sm:$0xff]
      %v2051 = vld [vmem:[%s1946 + $0x340] sm:$0xff]
      %v2052 = vld [vmem:[%s1946 + $0x348] sm:$0xff]
      %v2053 = vld [vmem:[%s1946 + $0x350] sm:$0xff]
      %v2054 = vld [vmem:[%s1946 + $0x358] sm:$0xff]
      %v2055 = vld [vmem:[%s1946 + $0x360] sm:$0xff]
      %v2056 = vld [vmem:[%s1946 + $0x368] sm:$0xff]
      %v2057 = vld [vmem:[%s1946 + $0x370] sm:$0xff]
      %v2058 = vld [vmem:[%s1946 + $0x378] sm:$0xff]
      %v2059 = vld [vmem:[%s1946 + $0x380] sm:$0xff]
      %v2060 = vld [vmem:[%s1946 + $0x388] sm:$0xff]
      %v2061 = vld [vmem:[%s1946 + $0x390] sm:$0xff]
      %v2062 = vld [vmem:[%s1946 + $0x398] sm:$0xff]
      %v2063 = vld [vmem:[%s1946 + $0x3a0] sm:$0xff]
      %v2064 = vld [vmem:[%s1946 + $0x3a8] sm:$0xff]
      %v2065 = vld [vmem:[%s1946 + $0x3b0] sm:$0xff]
      %v2066 = vld [vmem:[%s1946 + $0x3b8] sm:$0xff]
      %v2067 = vld [vmem:[%s1946 + $0x3c0] sm:$0xff]
      %v2068 = vld [vmem:[%s1946 + $0x3c8] sm:$0xff]
      %v2069 = vld [vmem:[%s1946 + $0x3d0] sm:$0xff]
      %v2070 = vld [vmem:[%s1946 + $0x3d8] sm:$0xff]
      %v2071 = vld [vmem:[%s1946 + $0x3e0] sm:$0xff]
      %v2072 = vld [vmem:[%s1946 + $0x3e8] sm:$0xff]
      %v2073 = vld [vmem:[%s1946 + $0x3f0] sm:$0xff]
      %v2074 = vld [vmem:[%s1946 + $0x3f8] sm:$0xff]
      %v2076 = vshrl.u32 %v1814, 16
      %v2078 = vshll.u32 %v1814, 16
      %v2080 = vrot.slane %v2078, 1
      %v2081 = vor.u32 %v2076, %v2080
      %v2083 = vshrl.u32 %v1815, 16
      %v2085 = vshll.u32 %v1815, 16
      %v2087 = vrot.slane %v2085, 1
      %v2088 = vor.u32 %v2083, %v2087
      %v2090 = vshrl.u32 %v1816, 16
      %v2092 = vshll.u32 %v1816, 16
      %v2094 = vrot.slane %v2092, 1
      %v2095 = vor.u32 %v2090, %v2094
      %v2097 = vshrl.u32 %v1817, 16
      %v2099 = vshll.u32 %v1817, 16
      %v2101 = vrot.slane %v2099, 1
      %v2102 = vor.u32 %v2097, %v2101
      %v2235 = vunpack.c.l.b16 %v1947
      %v2236 = vunpack.c.h.b16 %v1947
      %v2237 = vunpack.c.l.b16 %v1948
      %v2238 = vunpack.c.h.b16 %v1948
      %v2239 = vunpack.c.l.b16 %v1949
      %v2240 = vunpack.c.h.b16 %v1949
      %v2241 = vunpack.c.l.b16 %v1950
      %v2242 = vunpack.c.h.b16 %v1950
      %v2243 = vunpack.c.l.b16 %v1951
      %v2244 = vunpack.c.h.b16 %v1951
      %v2245 = vunpack.c.l.b16 %v1952
      %v2246 = vunpack.c.h.b16 %v1952
      %v2247 = vunpack.c.l.b16 %v1953
      %v2248 = vunpack.c.h.b16 %v1953
      %v2249 = vunpack.c.l.b16 %v1954
      %v2250 = vunpack.c.h.b16 %v1954
      %v2251 = vunpack.c.l.b16 %v1955
      %v2252 = vunpack.c.h.b16 %v1955
      %v2253 = vunpack.c.l.b16 %v1956
      %v2254 = vunpack.c.h.b16 %v1956
      %v2255 = vunpack.c.l.b16 %v1957
      %v2256 = vunpack.c.h.b16 %v1957
      %v2257 = vunpack.c.l.b16 %v1958
      %v2258 = vunpack.c.h.b16 %v1958
      %v2259 = vunpack.c.l.b16 %v1959
      %v2260 = vunpack.c.h.b16 %v1959
      %v2261 = vunpack.c.l.b16 %v1960
      %v2262 = vunpack.c.h.b16 %v1960
      %v2263 = vunpack.c.l.b16 %v1961
      %v2264 = vunpack.c.h.b16 %v1961
      %v2265 = vunpack.c.l.b16 %v1962
      %v2266 = vunpack.c.h.b16 %v1962
      %v2267 = vunpack.c.l.b16 %v1963
      %v2268 = vunpack.c.h.b16 %v1963
      %v2269 = vunpack.c.l.b16 %v1964
      %v2270 = vunpack.c.h.b16 %v1964
      %v2271 = vunpack.c.l.b16 %v1965
      %v2272 = vunpack.c.h.b16 %v1965
      %v2273 = vunpack.c.l.b16 %v1966
      %v2274 = vunpack.c.h.b16 %v1966
      %v2275 = vunpack.c.l.b16 %v1967
      %v2276 = vunpack.c.h.b16 %v1967
      %v2277 = vunpack.c.l.b16 %v1968
      %v2278 = vunpack.c.h.b16 %v1968
      %v2279 = vunpack.c.l.b16 %v1969
      %v2280 = vunpack.c.h.b16 %v1969
      %v2281 = vunpack.c.l.b16 %v1970
      %v2282 = vunpack.c.h.b16 %v1970
      %v2283 = vunpack.c.l.b16 %v1971
      %v2284 = vunpack.c.h.b16 %v1971
      %v2285 = vunpack.c.l.b16 %v1972
      %v2286 = vunpack.c.h.b16 %v1972
      %v2287 = vunpack.c.l.b16 %v1973
      %v2288 = vunpack.c.h.b16 %v1973
      %v2289 = vunpack.c.l.b16 %v1974
      %v2290 = vunpack.c.h.b16 %v1974
      %v2291 = vunpack.c.l.b16 %v1975
      %v2292 = vunpack.c.h.b16 %v1975
      %v2293 = vunpack.c.l.b16 %v1976
      %v2294 = vunpack.c.h.b16 %v1976
      %v2295 = vunpack.c.l.b16 %v1977
      %v2296 = vunpack.c.h.b16 %v1977
      %v2297 = vunpack.c.l.b16 %v1978
      %v2298 = vunpack.c.h.b16 %v1978
      %v2299 = vunpack.c.l.b16 %v1979
      %v2300 = vunpack.c.h.b16 %v1979
      %v2301 = vunpack.c.l.b16 %v1980
      %v2302 = vunpack.c.h.b16 %v1980
      %v2303 = vunpack.c.l.b16 %v1981
      %v2304 = vunpack.c.h.b16 %v1981
      %v2305 = vunpack.c.l.b16 %v1982
      %v2306 = vunpack.c.h.b16 %v1982
      %v2307 = vunpack.c.l.b16 %v1983
      %v2308 = vunpack.c.h.b16 %v1983
      %v2309 = vunpack.c.l.b16 %v1984
      %v2310 = vunpack.c.h.b16 %v1984
      %v2311 = vunpack.c.l.b16 %v1985
      %v2312 = vunpack.c.h.b16 %v1985
      %v2313 = vunpack.c.l.b16 %v1986
      %v2314 = vunpack.c.h.b16 %v1986
      %v2315 = vunpack.c.l.b16 %v1987
      %v2316 = vunpack.c.h.b16 %v1987
      %v2317 = vunpack.c.l.b16 %v1988
      %v2318 = vunpack.c.h.b16 %v1988
      %v2319 = vunpack.c.l.b16 %v1989
      %v2320 = vunpack.c.h.b16 %v1989
      %v2321 = vunpack.c.l.b16 %v1990
      %v2322 = vunpack.c.h.b16 %v1990
      %v2323 = vunpack.c.l.b16 %v1991
      %v2324 = vunpack.c.h.b16 %v1991
      %v2325 = vunpack.c.l.b16 %v1992
      %v2326 = vunpack.c.h.b16 %v1992
      %v2327 = vunpack.c.l.b16 %v1993
      %v2328 = vunpack.c.h.b16 %v1993
      %v2329 = vunpack.c.l.b16 %v1994
      %v2330 = vunpack.c.h.b16 %v1994
      %v2331 = vunpack.c.l.b16 %v1995
      %v2332 = vunpack.c.h.b16 %v1995
      %v2333 = vunpack.c.l.b16 %v1996
      %v2334 = vunpack.c.h.b16 %v1996
      %v2335 = vunpack.c.l.b16 %v1997
      %v2336 = vunpack.c.h.b16 %v1997
      %v2337 = vunpack.c.l.b16 %v1998
      %v2338 = vunpack.c.h.b16 %v1998
      %v2339 = vunpack.c.l.b16 %v1999
      %v2340 = vunpack.c.h.b16 %v1999
      %v2341 = vunpack.c.l.b16 %v2000
      %v2342 = vunpack.c.h.b16 %v2000
      %v2343 = vunpack.c.l.b16 %v2001
      %v2344 = vunpack.c.h.b16 %v2001
      %v2345 = vunpack.c.l.b16 %v2002
      %v2346 = vunpack.c.h.b16 %v2002
      %v2347 = vunpack.c.l.b16 %v2003
      %v2348 = vunpack.c.h.b16 %v2003
      %v2349 = vunpack.c.l.b16 %v2004
      %v2350 = vunpack.c.h.b16 %v2004
      %v2351 = vunpack.c.l.b16 %v2005
      %v2352 = vunpack.c.h.b16 %v2005
      %v2353 = vunpack.c.l.b16 %v2006
      %v2354 = vunpack.c.h.b16 %v2006
      %v2355 = vunpack.c.l.b16 %v2007
      %v2356 = vunpack.c.h.b16 %v2007
      %v2357 = vunpack.c.l.b16 %v2008
      %v2358 = vunpack.c.h.b16 %v2008
      %v2359 = vunpack.c.l.b16 %v2009
      %v2360 = vunpack.c.h.b16 %v2009
      %v2361 = vunpack.c.l.b16 %v2010
      %v2362 = vunpack.c.h.b16 %v2010
      %v2363 = vunpack.c.l.b16 %v2011
      %v2364 = vunpack.c.h.b16 %v2011
      %v2365 = vunpack.c.l.b16 %v2012
      %v2366 = vunpack.c.h.b16 %v2012
      %v2367 = vunpack.c.l.b16 %v2013
      %v2368 = vunpack.c.h.b16 %v2013
      %v2369 = vunpack.c.l.b16 %v2014
      %v2370 = vunpack.c.h.b16 %v2014
      %v2371 = vunpack.c.l.b16 %v2015
      %v2372 = vunpack.c.h.b16 %v2015
      %v2373 = vunpack.c.l.b16 %v2016
      %v2374 = vunpack.c.h.b16 %v2016
      %v2375 = vunpack.c.l.b16 %v2017
      %v2376 = vunpack.c.h.b16 %v2017
      %v2377 = vunpack.c.l.b16 %v2018
      %v2378 = vunpack.c.h.b16 %v2018
      %v2379 = vunpack.c.l.b16 %v2019
      %v2380 = vunpack.c.h.b16 %v2019
      %v2381 = vunpack.c.l.b16 %v2020
      %v2382 = vunpack.c.h.b16 %v2020
      %v2383 = vunpack.c.l.b16 %v2021
      %v2384 = vunpack.c.h.b16 %v2021
      %v2385 = vunpack.c.l.b16 %v2022
      %v2386 = vunpack.c.h.b16 %v2022
      %v2387 = vunpack.c.l.b16 %v2023
      %v2388 = vunpack.c.h.b16 %v2023
      %v2389 = vunpack.c.l.b16 %v2024
      %v2390 = vunpack.c.h.b16 %v2024
      %v2391 = vunpack.c.l.b16 %v2025
      %v2392 = vunpack.c.h.b16 %v2025
      %v2393 = vunpack.c.l.b16 %v2026
      %v2394 = vunpack.c.h.b16 %v2026
      %v2395 = vunpack.c.l.b16 %v2027
      %v2396 = vunpack.c.h.b16 %v2027
      %v2397 = vunpack.c.l.b16 %v2028
      %v2398 = vunpack.c.h.b16 %v2028
      %v2399 = vunpack.c.l.b16 %v2029
      %v2400 = vunpack.c.h.b16 %v2029
      %v2401 = vunpack.c.l.b16 %v2030
      %v2402 = vunpack.c.h.b16 %v2030
      %v2403 = vunpack.c.l.b16 %v2031
      %v2404 = vunpack.c.h.b16 %v2031
      %v2405 = vunpack.c.l.b16 %v2032
      %v2406 = vunpack.c.h.b16 %v2032
      %v2407 = vunpack.c.l.b16 %v2033
      %v2408 = vunpack.c.h.b16 %v2033
      %v2409 = vunpack.c.l.b16 %v2034
      %v2410 = vunpack.c.h.b16 %v2034
      %v2411 = vunpack.c.l.b16 %v2035
      %v2412 = vunpack.c.h.b16 %v2035
      %v2413 = vunpack.c.l.b16 %v2036
      %v2414 = vunpack.c.h.b16 %v2036
      %v2415 = vunpack.c.l.b16 %v2037
      %v2416 = vunpack.c.h.b16 %v2037
      %v2417 = vunpack.c.l.b16 %v2038
      %v2418 = vunpack.c.h.b16 %v2038
      %v2419 = vunpack.c.l.b16 %v2039
      %v2420 = vunpack.c.h.b16 %v2039
      %v2421 = vunpack.c.l.b16 %v2040
      %v2422 = vunpack.c.h.b16 %v2040
      %v2423 = vunpack.c.l.b16 %v2041
      %v2424 = vunpack.c.h.b16 %v2041
      %v2425 = vunpack.c.l.b16 %v2042
      %v2426 = vunpack.c.h.b16 %v2042
      %v2427 = vunpack.c.l.b16 %v2043
      %v2428 = vunpack.c.h.b16 %v2043
      %v2429 = vunpack.c.l.b16 %v2044
      %v2430 = vunpack.c.h.b16 %v2044
      %v2431 = vunpack.c.l.b16 %v2045
      %v2432 = vunpack.c.h.b16 %v2045
      %v2433 = vunpack.c.l.b16 %v2046
      %v2434 = vunpack.c.h.b16 %v2046
      %v2435 = vunpack.c.l.b16 %v2047
      %v2436 = vunpack.c.h.b16 %v2047
      %v2437 = vunpack.c.l.b16 %v2048
      %v2438 = vunpack.c.h.b16 %v2048
      %v2439 = vunpack.c.l.b16 %v2049
      %v2440 = vunpack.c.h.b16 %v2049
      %v2441 = vunpack.c.l.b16 %v2050
      %v2442 = vunpack.c.h.b16 %v2050
      %v2443 = vunpack.c.l.b16 %v2051
      %v2444 = vunpack.c.h.b16 %v2051
      %v2445 = vunpack.c.l.b16 %v2052
      %v2446 = vunpack.c.h.b16 %v2052
      %v2447 = vunpack.c.l.b16 %v2053
      %v2448 = vunpack.c.h.b16 %v2053
      %v2449 = vunpack.c.l.b16 %v2054
      %v2450 = vunpack.c.h.b16 %v2054
      %v2451 = vunpack.c.l.b16 %v2055
      %v2452 = vunpack.c.h.b16 %v2055
      %v2453 = vunpack.c.l.b16 %v2056
      %v2454 = vunpack.c.h.b16 %v2056
      %v2455 = vunpack.c.l.b16 %v2057
      %v2456 = vunpack.c.h.b16 %v2057
      %v2457 = vunpack.c.l.b16 %v2058
      %v2458 = vunpack.c.h.b16 %v2058
      %v2459 = vunpack.c.l.b16 %v2059
      %v2460 = vunpack.c.h.b16 %v2059
      %v2461 = vunpack.c.l.b16 %v2060
      %v2462 = vunpack.c.h.b16 %v2060
      %v2463 = vunpack.c.l.b16 %v2061
      %v2464 = vunpack.c.h.b16 %v2061
      %v2465 = vunpack.c.l.b16 %v2062
      %v2466 = vunpack.c.h.b16 %v2062
      %v2467 = vunpack.c.l.b16 %v2063
      %v2468 = vunpack.c.h.b16 %v2063
      %v2469 = vunpack.c.l.b16 %v2064
      %v2470 = vunpack.c.h.b16 %v2064
      %v2471 = vunpack.c.l.b16 %v2065
      %v2472 = vunpack.c.h.b16 %v2065
      %v2473 = vunpack.c.l.b16 %v2066
      %v2474 = vunpack.c.h.b16 %v2066
      %v2475 = vunpack.c.l.b16 %v2067
      %v2476 = vunpack.c.h.b16 %v2067
      %v2477 = vunpack.c.l.b16 %v2068
      %v2478 = vunpack.c.h.b16 %v2068
      %v2479 = vunpack.c.l.b16 %v2069
      %v2480 = vunpack.c.h.b16 %v2069
      %v2481 = vunpack.c.l.b16 %v2070
      %v2482 = vunpack.c.h.b16 %v2070
      %v2483 = vunpack.c.l.b16 %v2071
      %v2484 = vunpack.c.h.b16 %v2071
      %v2485 = vunpack.c.l.b16 %v2072
      %v2486 = vunpack.c.h.b16 %v2072
      %v2487 = vunpack.c.l.b16 %v2073
      %v2488 = vunpack.c.h.b16 %v2073
      %v2489 = vunpack.c.l.b16 %v2074
      %v2490 = vunpack.c.h.b16 %v2074
      %v2491 = vpack.c.b16 %v2239, %v2235
      %v2492 = vpack.c.b16 %v2240, %v2236
      %v2493 = vpack.c.b16 %v2241, %v2237
      %v2494 = vpack.c.b16 %v2242, %v2238
      %v2495 = vpack.c.b16 %v2247, %v2243
      %v2496 = vpack.c.b16 %v2248, %v2244
      %v2497 = vpack.c.b16 %v2249, %v2245
      %v2498 = vpack.c.b16 %v2250, %v2246
      %v2499 = vpack.c.b16 %v2255, %v2251
      %v2500 = vpack.c.b16 %v2256, %v2252
      %v2501 = vpack.c.b16 %v2257, %v2253
      %v2502 = vpack.c.b16 %v2258, %v2254
      %v2503 = vpack.c.b16 %v2263, %v2259
      %v2504 = vpack.c.b16 %v2264, %v2260
      %v2505 = vpack.c.b16 %v2265, %v2261
      %v2506 = vpack.c.b16 %v2266, %v2262
      %v2507 = vpack.c.b16 %v2271, %v2267
      %v2508 = vpack.c.b16 %v2272, %v2268
      %v2509 = vpack.c.b16 %v2273, %v2269
      %v2510 = vpack.c.b16 %v2274, %v2270
      %v2511 = vpack.c.b16 %v2279, %v2275
      %v2512 = vpack.c.b16 %v2280, %v2276
      %v2513 = vpack.c.b16 %v2281, %v2277
      %v2514 = vpack.c.b16 %v2282, %v2278
      %v2515 = vpack.c.b16 %v2287, %v2283
      %v2516 = vpack.c.b16 %v2288, %v2284
      %v2517 = vpack.c.b16 %v2289, %v2285
      %v2518 = vpack.c.b16 %v2290, %v2286
      %v2519 = vpack.c.b16 %v2295, %v2291
      %v2520 = vpack.c.b16 %v2296, %v2292
      %v2521 = vpack.c.b16 %v2297, %v2293
      %v2522 = vpack.c.b16 %v2298, %v2294
      %v2523 = vpack.c.b16 %v2303, %v2299
      %v2524 = vpack.c.b16 %v2304, %v2300
      %v2525 = vpack.c.b16 %v2305, %v2301
      %v2526 = vpack.c.b16 %v2306, %v2302
      %v2527 = vpack.c.b16 %v2311, %v2307
      %v2528 = vpack.c.b16 %v2312, %v2308
      %v2529 = vpack.c.b16 %v2313, %v2309
      %v2530 = vpack.c.b16 %v2314, %v2310
      %v2531 = vpack.c.b16 %v2319, %v2315
      %v2532 = vpack.c.b16 %v2320, %v2316
      %v2533 = vpack.c.b16 %v2321, %v2317
      %v2534 = vpack.c.b16 %v2322, %v2318
      %v2535 = vpack.c.b16 %v2327, %v2323
      %v2536 = vpack.c.b16 %v2328, %v2324
      %v2537 = vpack.c.b16 %v2329, %v2325
      %v2538 = vpack.c.b16 %v2330, %v2326
      %v2539 = vpack.c.b16 %v2335, %v2331
      %v2540 = vpack.c.b16 %v2336, %v2332
      %v2541 = vpack.c.b16 %v2337, %v2333
      %v2542 = vpack.c.b16 %v2338, %v2334
      %v2543 = vpack.c.b16 %v2343, %v2339
      %v2544 = vpack.c.b16 %v2344, %v2340
      %v2545 = vpack.c.b16 %v2345, %v2341
      %v2546 = vpack.c.b16 %v2346, %v2342
      %v2547 = vpack.c.b16 %v2351, %v2347
      %v2548 = vpack.c.b16 %v2352, %v2348
      %v2549 = vpack.c.b16 %v2353, %v2349
      %v2550 = vpack.c.b16 %v2354, %v2350
      %v2551 = vpack.c.b16 %v2359, %v2355
      %v2552 = vpack.c.b16 %v2360, %v2356
      %v2553 = vpack.c.b16 %v2361, %v2357
      %v2554 = vpack.c.b16 %v2362, %v2358
      %v2555 = vpack.c.b16 %v2367, %v2363
      %v2556 = vpack.c.b16 %v2368, %v2364
      %v2557 = vpack.c.b16 %v2369, %v2365
      %v2558 = vpack.c.b16 %v2370, %v2366
      %v2559 = vpack.c.b16 %v2375, %v2371
      %v2560 = vpack.c.b16 %v2376, %v2372
      %v2561 = vpack.c.b16 %v2377, %v2373
      %v2562 = vpack.c.b16 %v2378, %v2374
      %v2563 = vpack.c.b16 %v2383, %v2379
      %v2564 = vpack.c.b16 %v2384, %v2380
      %v2565 = vpack.c.b16 %v2385, %v2381
      %v2566 = vpack.c.b16 %v2386, %v2382
      %v2567 = vpack.c.b16 %v2391, %v2387
      %v2568 = vpack.c.b16 %v2392, %v2388
      %v2569 = vpack.c.b16 %v2393, %v2389
      %v2570 = vpack.c.b16 %v2394, %v2390
      %v2571 = vpack.c.b16 %v2399, %v2395
      %v2572 = vpack.c.b16 %v2400, %v2396
      %v2573 = vpack.c.b16 %v2401, %v2397
      %v2574 = vpack.c.b16 %v2402, %v2398
      %v2575 = vpack.c.b16 %v2407, %v2403
      %v2576 = vpack.c.b16 %v2408, %v2404
      %v2577 = vpack.c.b16 %v2409, %v2405
      %v2578 = vpack.c.b16 %v2410, %v2406
      %v2579 = vpack.c.b16 %v2415, %v2411
      %v2580 = vpack.c.b16 %v2416, %v2412
      %v2581 = vpack.c.b16 %v2417, %v2413
      %v2582 = vpack.c.b16 %v2418, %v2414
      %v2583 = vpack.c.b16 %v2423, %v2419
      %v2584 = vpack.c.b16 %v2424, %v2420
      %v2585 = vpack.c.b16 %v2425, %v2421
      %v2586 = vpack.c.b16 %v2426, %v2422
      %v2587 = vpack.c.b16 %v2431, %v2427
      %v2588 = vpack.c.b16 %v2432, %v2428
      %v2589 = vpack.c.b16 %v2433, %v2429
      %v2590 = vpack.c.b16 %v2434, %v2430
      %v2591 = vpack.c.b16 %v2439, %v2435
      %v2592 = vpack.c.b16 %v2440, %v2436
      %v2593 = vpack.c.b16 %v2441, %v2437
      %v2594 = vpack.c.b16 %v2442, %v2438
      %v2595 = vpack.c.b16 %v2447, %v2443
      %v2596 = vpack.c.b16 %v2448, %v2444
      %v2597 = vpack.c.b16 %v2449, %v2445
      %v2598 = vpack.c.b16 %v2450, %v2446
      %v2599 = vpack.c.b16 %v2455, %v2451
      %v2600 = vpack.c.b16 %v2456, %v2452
      %v2601 = vpack.c.b16 %v2457, %v2453
      %v2602 = vpack.c.b16 %v2458, %v2454
      %v2603 = vpack.c.b16 %v2463, %v2459
      %v2604 = vpack.c.b16 %v2464, %v2460
      %v2605 = vpack.c.b16 %v2465, %v2461
      %v2606 = vpack.c.b16 %v2466, %v2462
      %v2607 = vpack.c.b16 %v2471, %v2467
      %v2608 = vpack.c.b16 %v2472, %v2468
      %v2609 = vpack.c.b16 %v2473, %v2469
      %v2610 = vpack.c.b16 %v2474, %v2470
      %v2611 = vpack.c.b16 %v2479, %v2475
      %v2612 = vpack.c.b16 %v2480, %v2476
      %v2613 = vpack.c.b16 %v2481, %v2477
      %v2614 = vpack.c.b16 %v2482, %v2478
      %v2615 = vpack.c.b16 %v2487, %v2483
      %v2616 = vpack.c.b16 %v2488, %v2484
      %v2617 = vpack.c.b16 %v2489, %v2485
      %v2618 = vpack.c.b16 %v2490, %v2486
      %2747 = vmatprep.subr.bf16.mxu0 %v2520
      %2748 = vmatpush1.bf16.msra.mxu0 %v2519
      %2749 = vmatprep.subr.bf16.mxu0 %v2516
      %2750 = vmatpush1.bf16.msra.mxu0 %v2515
      %2751 = vmatprep.subr.bf16.mxu0 %v2512
      %2752 = vmatpush1.bf16.msra.mxu0 %v2511
      %2753 = vmatprep.subr.bf16.mxu0 %v2508
      %2754 = vmatpush1.bf16.msra.mxu0 %v2507
      %2755 = vmatprep.subr.bf16.mxu0 %v2504
      %2756 = vmatpush1.bf16.msra.mxu0 %v2503
      %2757 = vmatprep.subr.bf16.mxu0 %v2500
      %2758 = vmatpush1.bf16.msra.mxu0 %v2499
      %2759 = vmatprep.subr.bf16.mxu0 %v2496
      %2760 = vmatpush1.bf16.msra.mxu0 %v2495
      %2761 = vmatprep.subr.bf16.mxu0 %v2492
      %2762 = vmatpush1.bf16.msra.mxu0 %v2491
      %2763 = vmatprep.subr.bf16.mxu0 %v2552
      %2764 = vmatpush2.bf16.msra.mxu0 %v2551
      %2765 = vmatprep.subr.bf16.mxu0 %v2548
      %2766 = vmatpush2.bf16.msra.mxu0 %v2547
      %2767 = vmatprep.subr.bf16.mxu0 %v2544
      %2768 = vmatpush2.bf16.msra.mxu0 %v2543
      %2769 = vmatprep.subr.bf16.mxu0 %v2540
      %2770 = vmatpush2.bf16.msra.mxu0 %v2539
      %2771 = vmatprep.subr.bf16.mxu0 %v2536
      %2772 = vmatpush2.bf16.msra.mxu0 %v2535
      %2773 = vmatprep.subr.bf16.mxu0 %v2532
      %2774 = vmatpush2.bf16.msra.mxu0 %v2531
      %2775 = vmatprep.subr.bf16.mxu0 %v2528
      %2776 = vmatpush2.bf16.msra.mxu0 %v2527
      %2777 = vmatprep.subr.bf16.mxu0 %v2524
      %2778 = vmatpush2.bf16.msra.mxu0 %v2523
      %2779 = vmatprep.mubr.bf16.mxu0 %v2088
      %2780 = vmatmul.mubr.bf16.gmra.mxu0 %v2081
      %v2781 = vpop.f32.mrf.mxu0
      %v2782 = vadd.f32 0.0, %v2781
      %v2783 = vpop.f32.mrf.mxu0
      %v2784 = vadd.f32 0.0, %v2783
      %v2785 = vpop.f32.mrf.mxu0
      %v2786 = vadd.f32 0.0, %v2785
      %v2787 = vpop.f32.mrf.mxu0
      %v2788 = vadd.f32 0.0, %v2787
      %2789 = vdwg.mxu0
      %2790 = vmatprep.subr.bf16.mxu0 %v2584
      %2791 = vmatpush1.bf16.msra.mxu0 %v2583
      %2792 = vmatprep.subr.bf16.mxu0 %v2580
      %2793 = vmatpush1.bf16.msra.mxu0 %v2579
      %2794 = vmatprep.subr.bf16.mxu0 %v2576
      %2795 = vmatpush1.bf16.msra.mxu0 %v2575
      %2796 = vmatprep.subr.bf16.mxu0 %v2572
      %2797 = vmatpush1.bf16.msra.mxu0 %v2571
      %2798 = vmatprep.subr.bf16.mxu0 %v2568
      %2799 = vmatpush1.bf16.msra.mxu0 %v2567
      %2800 = vmatprep.subr.bf16.mxu0 %v2564
      %2801 = vmatpush1.bf16.msra.mxu0 %v2563
      %2802 = vmatprep.subr.bf16.mxu0 %v2560
      %2803 = vmatpush1.bf16.msra.mxu0 %v2559
      %2804 = vmatprep.subr.bf16.mxu0 %v2556
      %2805 = vmatpush1.bf16.msra.mxu0 %v2555
      %2806 = vmatprep.subr.bf16.mxu0 %v2616
      %2807 = vmatpush2.bf16.msra.mxu0 %v2615
      %2808 = vmatprep.subr.bf16.mxu0 %v2612
      %2809 = vmatpush2.bf16.msra.mxu0 %v2611
      %2810 = vmatprep.subr.bf16.mxu0 %v2608
      %2811 = vmatpush2.bf16.msra.mxu0 %v2607
      %2812 = vmatprep.subr.bf16.mxu0 %v2604
      %2813 = vmatpush2.bf16.msra.mxu0 %v2603
      %2814 = vmatprep.subr.bf16.mxu0 %v2600
      %2815 = vmatpush2.bf16.msra.mxu0 %v2599
      %2816 = vmatprep.subr.bf16.mxu0 %v2596
      %2817 = vmatpush2.bf16.msra.mxu0 %v2595
      %2818 = vmatprep.subr.bf16.mxu0 %v2592
      %2819 = vmatpush2.bf16.msra.mxu0 %v2591
      %2820 = vmatprep.subr.bf16.mxu0 %v2588
      %2821 = vmatpush2.bf16.msra.mxu0 %v2587
      %2822 = vmatprep.mubr.bf16.mxu0 %v2102
      %2823 = vmatmul.mubr.bf16.gmra.mxu0 %v2095
      %v2824 = vpop.f32.mrf.mxu0
      %v2825 = vadd.f32 %v2782, %v2824
      %v2826 = vpop.f32.mrf.mxu0
      %v2827 = vadd.f32 %v2784, %v2826
      %v2828 = vpop.f32.mrf.mxu0
      %v2829 = vadd.f32 %v2786, %v2828
      %v2830 = vpop.f32.mrf.mxu0
      %v2831 = vadd.f32 %v2788, %v2830
      %2832 = vdwg.mxu0
      %2833 = vmatprep.subr.bf16.mxu0 %v2522
      %2834 = vmatpush1.bf16.msra.mxu0 %v2521
      %2835 = vmatprep.subr.bf16.mxu0 %v2518
      %2836 = vmatpush1.bf16.msra.mxu0 %v2517
      %2837 = vmatprep.subr.bf16.mxu0 %v2514
      %2838 = vmatpush1.bf16.msra.mxu0 %v2513
      %2839 = vmatprep.subr.bf16.mxu0 %v2510
      %2840 = vmatpush1.bf16.msra.mxu0 %v2509
      %2841 = vmatprep.subr.bf16.mxu0 %v2506
      %2842 = vmatpush1.bf16.msra.mxu0 %v2505
      %2843 = vmatprep.subr.bf16.mxu0 %v2502
      %2844 = vmatpush1.bf16.msra.mxu0 %v2501
      %2845 = vmatprep.subr.bf16.mxu0 %v2498
      %2846 = vmatpush1.bf16.msra.mxu0 %v2497
      %2847 = vmatprep.subr.bf16.mxu0 %v2494
      %2848 = vmatpush1.bf16.msra.mxu0 %v2493
      %2849 = vmatprep.subr.bf16.mxu0 %v2554
      %2850 = vmatpush2.bf16.msra.mxu0 %v2553
      %2851 = vmatprep.subr.bf16.mxu0 %v2550
      %2852 = vmatpush2.bf16.msra.mxu0 %v2549
      %2853 = vmatprep.subr.bf16.mxu0 %v2546
      %2854 = vmatpush2.bf16.msra.mxu0 %v2545
      %2855 = vmatprep.subr.bf16.mxu0 %v2542
      %2856 = vmatpush2.bf16.msra.mxu0 %v2541
      %2857 = vmatprep.subr.bf16.mxu0 %v2538
      %2858 = vmatpush2.bf16.msra.mxu0 %v2537
      %2859 = vmatprep.subr.bf16.mxu0 %v2534
      %2860 = vmatpush2.bf16.msra.mxu0 %v2533
      %2861 = vmatprep.subr.bf16.mxu0 %v2530
      %2862 = vmatpush2.bf16.msra.mxu0 %v2529
      %2863 = vmatprep.subr.bf16.mxu0 %v2526
      %2864 = vmatpush2.bf16.msra.mxu0 %v2525
      %2865 = vmatprep.mubr.bf16.mxu0 %v2088
      %2866 = vmatmul.mubr.bf16.gmra.mxu0 %v2081
      %v2867 = vpop.f32.mrf.mxu0
      %v2868 = vadd.f32 0.0, %v2867
      %v2869 = vpop.f32.mrf.mxu0
      %v2870 = vadd.f32 0.0, %v2869
      %v2871 = vpop.f32.mrf.mxu0
      %v2872 = vadd.f32 0.0, %v2871
      %v2873 = vpop.f32.mrf.mxu0
      %v2874 = vadd.f32 0.0, %v2873
      %2875 = vdwg.mxu0
      %2876 = vmatprep.subr.bf16.mxu0 %v2586
      %2877 = vmatpush1.bf16.msra.mxu0 %v2585
      %2878 = vmatprep.subr.bf16.mxu0 %v2582
      %2879 = vmatpush1.bf16.msra.mxu0 %v2581
      %2880 = vmatprep.subr.bf16.mxu0 %v2578
      %2881 = vmatpush1.bf16.msra.mxu0 %v2577
      %2882 = vmatprep.subr.bf16.mxu0 %v2574
      %2883 = vmatpush1.bf16.msra.mxu0 %v2573
      %2884 = vmatprep.subr.bf16.mxu0 %v2570
      %2885 = vmatpush1.bf16.msra.mxu0 %v2569
      %2886 = vmatprep.subr.bf16.mxu0 %v2566
      %2887 = vmatpush1.bf16.msra.mxu0 %v2565
      %2888 = vmatprep.subr.bf16.mxu0 %v2562
      %2889 = vmatpush1.bf16.msra.mxu0 %v2561
      %2890 = vmatprep.subr.bf16.mxu0 %v2558
      %2891 = vmatpush1.bf16.msra.mxu0 %v2557
      %2892 = vmatprep.subr.bf16.mxu0 %v2618
      %2893 = vmatpush2.bf16.msra.mxu0 %v2617
      %2894 = vmatprep.subr.bf16.mxu0 %v2614
      %2895 = vmatpush2.bf16.msra.mxu0 %v2613
      %2896 = vmatprep.subr.bf16.mxu0 %v2610
      %2897 = vmatpush2.bf16.msra.mxu0 %v2609
      %2898 = vmatprep.subr.bf16.mxu0 %v2606
      %2899 = vmatpush2.bf16.msra.mxu0 %v2605
      %2900 = vmatprep.subr.bf16.mxu0 %v2602
      %2901 = vmatpush2.bf16.msra.mxu0 %v2601
      %2902 = vmatprep.subr.bf16.mxu0 %v2598
      %2903 = vmatpush2.bf16.msra.mxu0 %v2597
      %2904 = vmatprep.subr.bf16.mxu0 %v2594
      %2905 = vmatpush2.bf16.msra.mxu0 %v2593
      %2906 = vmatprep.subr.bf16.mxu0 %v2590
      %2907 = vmatpush2.bf16.msra.mxu0 %v2589
      %2908 = vmatprep.mubr.bf16.mxu0 %v2102
      %2909 = vmatmul.mubr.bf16.gmra.mxu0 %v2095
      %v2910 = vpop.f32.mrf.mxu0
      %v2911 = vadd.f32 %v2868, %v2910
      %v2912 = vpop.f32.mrf.mxu0
      %v2913 = vadd.f32 %v2870, %v2912
      %v2914 = vpop.f32.mrf.mxu0
      %v2915 = vadd.f32 %v2872, %v2914
      %v2916 = vpop.f32.mrf.mxu0
      %v2917 = vadd.f32 %v2874, %v2916
      %2918 = vdwg.mxu0
      %v3047 = vunpack.c.l.b16 %v1818
      %v3048 = vunpack.c.h.b16 %v1818
      %v3049 = vunpack.c.l.b16 %v1819
      %v3050 = vunpack.c.h.b16 %v1819
      %v3051 = vunpack.c.l.b16 %v1820
      %v3052 = vunpack.c.h.b16 %v1820
      %v3053 = vunpack.c.l.b16 %v1821
      %v3054 = vunpack.c.h.b16 %v1821
      %v3055 = vunpack.c.l.b16 %v1822
      %v3056 = vunpack.c.h.b16 %v1822
      %v3057 = vunpack.c.l.b16 %v1823
      %v3058 = vunpack.c.h.b16 %v1823
      %v3059 = vunpack.c.l.b16 %v1824
      %v3060 = vunpack.c.h.b16 %v1824
      %v3061 = vunpack.c.l.b16 %v1825
      %v3062 = vunpack.c.h.b16 %v1825
      %v3063 = vunpack.c.l.b16 %v1826
      %v3064 = vunpack.c.h.b16 %v1826
      %v3065 = vunpack.c.l.b16 %v1827
      %v3066 = vunpack.c.h.b16 %v1827
      %v3067 = vunpack.c.l.b16 %v1828
      %v3068 = vunpack.c.h.b16 %v1828
      %v3069 = vunpack.c.l.b16 %v1829
      %v3070 = vunpack.c.h.b16 %v1829
      %v3071 = vunpack.c.l.b16 %v1830
      %v3072 = vunpack.c.h.b16 %v1830
      %v3073 = vunpack.c.l.b16 %v1831
      %v3074 = vunpack.c.h.b16 %v1831
      %v3075 = vunpack.c.l.b16 %v1832
      %v3076 = vunpack.c.h.b16 %v1832
      %v3077 = vunpack.c.l.b16 %v1833
      %v3078 = vunpack.c.h.b16 %v1833
      %v3079 = vunpack.c.l.b16 %v1834
      %v3080 = vunpack.c.h.b16 %v1834
      %v3081 = vunpack.c.l.b16 %v1835
      %v3082 = vunpack.c.h.b16 %v1835
      %v3083 = vunpack.c.l.b16 %v1836
      %v3084 = vunpack.c.h.b16 %v1836
      %v3085 = vunpack.c.l.b16 %v1837
      %v3086 = vunpack.c.h.b16 %v1837
      %v3087 = vunpack.c.l.b16 %v1838
      %v3088 = vunpack.c.h.b16 %v1838
      %v3089 = vunpack.c.l.b16 %v1839
      %v3090 = vunpack.c.h.b16 %v1839
      %v3091 = vunpack.c.l.b16 %v1840
      %v3092 = vunpack.c.h.b16 %v1840
      %v3093 = vunpack.c.l.b16 %v1841
      %v3094 = vunpack.c.h.b16 %v1841
      %v3095 = vunpack.c.l.b16 %v1842
      %v3096 = vunpack.c.h.b16 %v1842
      %v3097 = vunpack.c.l.b16 %v1843
      %v3098 = vunpack.c.h.b16 %v1843
      %v3099 = vunpack.c.l.b16 %v1844
      %v3100 = vunpack.c.h.b16 %v1844
      %v3101 = vunpack.c.l.b16 %v1845
      %v3102 = vunpack.c.h.b16 %v1845
      %v3103 = vunpack.c.l.b16 %v1846
      %v3104 = vunpack.c.h.b16 %v1846
      %v3105 = vunpack.c.l.b16 %v1847
      %v3106 = vunpack.c.h.b16 %v1847
      %v3107 = vunpack.c.l.b16 %v1848
      %v3108 = vunpack.c.h.b16 %v1848
      %v3109 = vunpack.c.l.b16 %v1849
      %v3110 = vunpack.c.h.b16 %v1849
      %v3111 = vunpack.c.l.b16 %v1850
      %v3112 = vunpack.c.h.b16 %v1850
      %v3113 = vunpack.c.l.b16 %v1851
      %v3114 = vunpack.c.h.b16 %v1851
      %v3115 = vunpack.c.l.b16 %v1852
      %v3116 = vunpack.c.h.b16 %v1852
      %v3117 = vunpack.c.l.b16 %v1853
      %v3118 = vunpack.c.h.b16 %v1853
      %v3119 = vunpack.c.l.b16 %v1854
      %v3120 = vunpack.c.h.b16 %v1854
      %v3121 = vunpack.c.l.b16 %v1855
      %v3122 = vunpack.c.h.b16 %v1855
      %v3123 = vunpack.c.l.b16 %v1856
      %v3124 = vunpack.c.h.b16 %v1856
      %v3125 = vunpack.c.l.b16 %v1857
      %v3126 = vunpack.c.h.b16 %v1857
      %v3127 = vunpack.c.l.b16 %v1858
      %v3128 = vunpack.c.h.b16 %v1858
      %v3129 = vunpack.c.l.b16 %v1859
      %v3130 = vunpack.c.h.b16 %v1859
      %v3131 = vunpack.c.l.b16 %v1860
      %v3132 = vunpack.c.h.b16 %v1860
      %v3133 = vunpack.c.l.b16 %v1861
      %v3134 = vunpack.c.h.b16 %v1861
      %v3135 = vunpack.c.l.b16 %v1862
      %v3136 = vunpack.c.h.b16 %v1862
      %v3137 = vunpack.c.l.b16 %v1863
      %v3138 = vunpack.c.h.b16 %v1863
      %v3139 = vunpack.c.l.b16 %v1864
      %v3140 = vunpack.c.h.b16 %v1864
      %v3141 = vunpack.c.l.b16 %v1865
      %v3142 = vunpack.c.h.b16 %v1865
      %v3143 = vunpack.c.l.b16 %v1866
      %v3144 = vunpack.c.h.b16 %v1866
      %v3145 = vunpack.c.l.b16 %v1867
      %v3146 = vunpack.c.h.b16 %v1867
      %v3147 = vunpack.c.l.b16 %v1868
      %v3148 = vunpack.c.h.b16 %v1868
      %v3149 = vunpack.c.l.b16 %v1869
      %v3150 = vunpack.c.h.b16 %v1869
      %v3151 = vunpack.c.l.b16 %v1870
      %v3152 = vunpack.c.h.b16 %v1870
      %v3153 = vunpack.c.l.b16 %v1871
      %v3154 = vunpack.c.h.b16 %v1871
      %v3155 = vunpack.c.l.b16 %v1872
      %v3156 = vunpack.c.h.b16 %v1872
      %v3157 = vunpack.c.l.b16 %v1873
      %v3158 = vunpack.c.h.b16 %v1873
      %v3159 = vunpack.c.l.b16 %v1874
      %v3160 = vunpack.c.h.b16 %v1874
      %v3161 = vunpack.c.l.b16 %v1875
      %v3162 = vunpack.c.h.b16 %v1875
      %v3163 = vunpack.c.l.b16 %v1876
      %v3164 = vunpack.c.h.b16 %v1876
      %v3165 = vunpack.c.l.b16 %v1877
      %v3166 = vunpack.c.h.b16 %v1877
      %v3167 = vunpack.c.l.b16 %v1878
      %v3168 = vunpack.c.h.b16 %v1878
      %v3169 = vunpack.c.l.b16 %v1879
      %v3170 = vunpack.c.h.b16 %v1879
      %v3171 = vunpack.c.l.b16 %v1880
      %v3172 = vunpack.c.h.b16 %v1880
      %v3173 = vunpack.c.l.b16 %v1881
      %v3174 = vunpack.c.h.b16 %v1881
      %v3175 = vunpack.c.l.b16 %v1882
      %v3176 = vunpack.c.h.b16 %v1882
      %v3177 = vunpack.c.l.b16 %v1883
      %v3178 = vunpack.c.h.b16 %v1883
      %v3179 = vunpack.c.l.b16 %v1884
      %v3180 = vunpack.c.h.b16 %v1884
      %v3181 = vunpack.c.l.b16 %v1885
      %v3182 = vunpack.c.h.b16 %v1885
      %v3183 = vunpack.c.l.b16 %v1886
      %v3184 = vunpack.c.h.b16 %v1886
      %v3185 = vunpack.c.l.b16 %v1887
      %v3186 = vunpack.c.h.b16 %v1887
      %v3187 = vunpack.c.l.b16 %v1888
      %v3188 = vunpack.c.h.b16 %v1888
      %v3189 = vunpack.c.l.b16 %v1889
      %v3190 = vunpack.c.h.b16 %v1889
      %v3191 = vunpack.c.l.b16 %v1890
      %v3192 = vunpack.c.h.b16 %v1890
      %v3193 = vunpack.c.l.b16 %v1891
      %v3194 = vunpack.c.h.b16 %v1891
      %v3195 = vunpack.c.l.b16 %v1892
      %v3196 = vunpack.c.h.b16 %v1892
      %v3197 = vunpack.c.l.b16 %v1893
      %v3198 = vunpack.c.h.b16 %v1893
      %v3199 = vunpack.c.l.b16 %v1894
      %v3200 = vunpack.c.h.b16 %v1894
      %v3201 = vunpack.c.l.b16 %v1895
      %v3202 = vunpack.c.h.b16 %v1895
      %v3203 = vunpack.c.l.b16 %v1896
      %v3204 = vunpack.c.h.b16 %v1896
      %v3205 = vunpack.c.l.b16 %v1897
      %v3206 = vunpack.c.h.b16 %v1897
      %v3207 = vunpack.c.l.b16 %v1898
      %v3208 = vunpack.c.h.b16 %v1898
      %v3209 = vunpack.c.l.b16 %v1899
      %v3210 = vunpack.c.h.b16 %v1899
      %v3211 = vunpack.c.l.b16 %v1900
      %v3212 = vunpack.c.h.b16 %v1900
      %v3213 = vunpack.c.l.b16 %v1901
      %v3214 = vunpack.c.h.b16 %v1901
      %v3215 = vunpack.c.l.b16 %v1902
      %v3216 = vunpack.c.h.b16 %v1902
      %v3217 = vunpack.c.l.b16 %v1903
      %v3218 = vunpack.c.h.b16 %v1903
      %v3219 = vunpack.c.l.b16 %v1904
      %v3220 = vunpack.c.h.b16 %v1904
      %v3221 = vunpack.c.l.b16 %v1905
      %v3222 = vunpack.c.h.b16 %v1905
      %v3223 = vunpack.c.l.b16 %v1906
      %v3224 = vunpack.c.h.b16 %v1906
      %v3225 = vunpack.c.l.b16 %v1907
      %v3226 = vunpack.c.h.b16 %v1907
      %v3227 = vunpack.c.l.b16 %v1908
      %v3228 = vunpack.c.h.b16 %v1908
      %v3229 = vunpack.c.l.b16 %v1909
      %v3230 = vunpack.c.h.b16 %v1909
      %v3231 = vunpack.c.l.b16 %v1910
      %v3232 = vunpack.c.h.b16 %v1910
      %v3233 = vunpack.c.l.b16 %v1911
      %v3234 = vunpack.c.h.b16 %v1911
      %v3235 = vunpack.c.l.b16 %v1912
      %v3236 = vunpack.c.h.b16 %v1912
      %v3237 = vunpack.c.l.b16 %v1913
      %v3238 = vunpack.c.h.b16 %v1913
      %v3239 = vunpack.c.l.b16 %v1914
      %v3240 = vunpack.c.h.b16 %v1914
      %v3241 = vunpack.c.l.b16 %v1915
      %v3242 = vunpack.c.h.b16 %v1915
      %v3243 = vunpack.c.l.b16 %v1916
      %v3244 = vunpack.c.h.b16 %v1916
      %v3245 = vunpack.c.l.b16 %v1917
      %v3246 = vunpack.c.h.b16 %v1917
      %v3247 = vunpack.c.l.b16 %v1918
      %v3248 = vunpack.c.h.b16 %v1918
      %v3249 = vunpack.c.l.b16 %v1919
      %v3250 = vunpack.c.h.b16 %v1919
      %v3251 = vunpack.c.l.b16 %v1920
      %v3252 = vunpack.c.h.b16 %v1920
      %v3253 = vunpack.c.l.b16 %v1921
      %v3254 = vunpack.c.h.b16 %v1921
      %v3255 = vunpack.c.l.b16 %v1922
      %v3256 = vunpack.c.h.b16 %v1922
      %v3257 = vunpack.c.l.b16 %v1923
      %v3258 = vunpack.c.h.b16 %v1923
      %v3259 = vunpack.c.l.b16 %v1924
      %v3260 = vunpack.c.h.b16 %v1924
      %v3261 = vunpack.c.l.b16 %v1925
      %v3262 = vunpack.c.h.b16 %v1925
      %v3263 = vunpack.c.l.b16 %v1926
      %v3264 = vunpack.c.h.b16 %v1926
      %v3265 = vunpack.c.l.b16 %v1927
      %v3266 = vunpack.c.h.b16 %v1927
      %v3267 = vunpack.c.l.b16 %v1928
      %v3268 = vunpack.c.h.b16 %v1928
      %v3269 = vunpack.c.l.b16 %v1929
      %v3270 = vunpack.c.h.b16 %v1929
      %v3271 = vunpack.c.l.b16 %v1930
      %v3272 = vunpack.c.h.b16 %v1930
      %v3273 = vunpack.c.l.b16 %v1931
      %v3274 = vunpack.c.h.b16 %v1931
      %v3275 = vunpack.c.l.b16 %v1932
      %v3276 = vunpack.c.h.b16 %v1932
      %v3277 = vunpack.c.l.b16 %v1933
      %v3278 = vunpack.c.h.b16 %v1933
      %v3279 = vunpack.c.l.b16 %v1934
      %v3280 = vunpack.c.h.b16 %v1934
      %v3281 = vunpack.c.l.b16 %v1935
      %v3282 = vunpack.c.h.b16 %v1935
      %v3283 = vunpack.c.l.b16 %v1936
      %v3284 = vunpack.c.h.b16 %v1936
      %v3285 = vunpack.c.l.b16 %v1937
      %v3286 = vunpack.c.h.b16 %v1937
      %v3287 = vunpack.c.l.b16 %v1938
      %v3288 = vunpack.c.h.b16 %v1938
      %v3289 = vunpack.c.l.b16 %v1939
      %v3290 = vunpack.c.h.b16 %v1939
      %v3291 = vunpack.c.l.b16 %v1940
      %v3292 = vunpack.c.h.b16 %v1940
      %v3293 = vunpack.c.l.b16 %v1941
      %v3294 = vunpack.c.h.b16 %v1941
      %v3295 = vunpack.c.l.b16 %v1942
      %v3296 = vunpack.c.h.b16 %v1942
      %v3297 = vunpack.c.l.b16 %v1943
      %v3298 = vunpack.c.h.b16 %v1943
      %v3299 = vunpack.c.l.b16 %v1944
      %v3300 = vunpack.c.h.b16 %v1944
      %v3301 = vunpack.c.l.b16 %v1945
      %v3302 = vunpack.c.h.b16 %v1945
      %v3303 = vpack.c.b16 %v3051, %v3047
      %v3304 = vpack.c.b16 %v3052, %v3048
      %v3305 = vpack.c.b16 %v3053, %v3049
      %v3306 = vpack.c.b16 %v3054, %v3050
      %v3307 = vpack.c.b16 %v3059, %v3055
      %v3308 = vpack.c.b16 %v3060, %v3056
      %v3309 = vpack.c.b16 %v3061, %v3057
      %v3310 = vpack.c.b16 %v3062, %v3058
      %v3311 = vpack.c.b16 %v3067, %v3063
      %v3312 = vpack.c.b16 %v3068, %v3064
      %v3313 = vpack.c.b16 %v3069, %v3065
      %v3314 = vpack.c.b16 %v3070, %v3066
      %v3315 = vpack.c.b16 %v3075, %v3071
      %v3316 = vpack.c.b16 %v3076, %v3072
      %v3317 = vpack.c.b16 %v3077, %v3073
      %v3318 = vpack.c.b16 %v3078, %v3074
      %v3319 = vpack.c.b16 %v3083, %v3079
      %v3320 = vpack.c.b16 %v3084, %v3080
      %v3321 = vpack.c.b16 %v3085, %v3081
      %v3322 = vpack.c.b16 %v3086, %v3082
      %v3323 = vpack.c.b16 %v3091, %v3087
      %v3324 = vpack.c.b16 %v3092, %v3088
      %v3325 = vpack.c.b16 %v3093, %v3089
      %v3326 = vpack.c.b16 %v3094, %v3090
      %v3327 = vpack.c.b16 %v3099, %v3095
      %v3328 = vpack.c.b16 %v3100, %v3096
      %v3329 = vpack.c.b16 %v3101, %v3097
      %v3330 = vpack.c.b16 %v3102, %v3098
      %v3331 = vpack.c.b16 %v3107, %v3103
      %v3332 = vpack.c.b16 %v3108, %v3104
      %v3333 = vpack.c.b16 %v3109, %v3105
      %v3334 = vpack.c.b16 %v3110, %v3106
      %v3335 = vpack.c.b16 %v3115, %v3111
      %v3336 = vpack.c.b16 %v3116, %v3112
      %v3337 = vpack.c.b16 %v3117, %v3113
      %v3338 = vpack.c.b16 %v3118, %v3114
      %v3339 = vpack.c.b16 %v3123, %v3119
      %v3340 = vpack.c.b16 %v3124, %v3120
      %v3341 = vpack.c.b16 %v3125, %v3121
      %v3342 = vpack.c.b16 %v3126, %v3122
      %v3343 = vpack.c.b16 %v3131, %v3127
      %v3344 = vpack.c.b16 %v3132, %v3128
      %v3345 = vpack.c.b16 %v3133, %v3129
      %v3346 = vpack.c.b16 %v3134, %v3130
      %v3347 = vpack.c.b16 %v3139, %v3135
      %v3348 = vpack.c.b16 %v3140, %v3136
      %v3349 = vpack.c.b16 %v3141, %v3137
      %v3350 = vpack.c.b16 %v3142, %v3138
      %v3351 = vpack.c.b16 %v3147, %v3143
      %v3352 = vpack.c.b16 %v3148, %v3144
      %v3353 = vpack.c.b16 %v3149, %v3145
      %v3354 = vpack.c.b16 %v3150, %v3146
      %v3355 = vpack.c.b16 %v3155, %v3151
      %v3356 = vpack.c.b16 %v3156, %v3152
      %v3357 = vpack.c.b16 %v3157, %v3153
      %v3358 = vpack.c.b16 %v3158, %v3154
      %v3359 = vpack.c.b16 %v3163, %v3159
      %v3360 = vpack.c.b16 %v3164, %v3160
      %v3361 = vpack.c.b16 %v3165, %v3161
      %v3362 = vpack.c.b16 %v3166, %v3162
      %v3363 = vpack.c.b16 %v3171, %v3167
      %v3364 = vpack.c.b16 %v3172, %v3168
      %v3365 = vpack.c.b16 %v3173, %v3169
      %v3366 = vpack.c.b16 %v3174, %v3170
      %v3367 = vpack.c.b16 %v3179, %v3175
      %v3368 = vpack.c.b16 %v3180, %v3176
      %v3369 = vpack.c.b16 %v3181, %v3177
      %v3370 = vpack.c.b16 %v3182, %v3178
      %v3371 = vpack.c.b16 %v3187, %v3183
      %v3372 = vpack.c.b16 %v3188, %v3184
      %v3373 = vpack.c.b16 %v3189, %v3185
      %v3374 = vpack.c.b16 %v3190, %v3186
      %v3375 = vpack.c.b16 %v3195, %v3191
      %v3376 = vpack.c.b16 %v3196, %v3192
      %v3377 = vpack.c.b16 %v3197, %v3193
      %v3378 = vpack.c.b16 %v3198, %v3194
      %v3379 = vpack.c.b16 %v3203, %v3199
      %v3380 = vpack.c.b16 %v3204, %v3200
      %v3381 = vpack.c.b16 %v3205, %v3201
      %v3382 = vpack.c.b16 %v3206, %v3202
      %v3383 = vpack.c.b16 %v3211, %v3207
      %v3384 = vpack.c.b16 %v3212, %v3208
      %v3385 = vpack.c.b16 %v3213, %v3209
      %v3386 = vpack.c.b16 %v3214, %v3210
      %v3387 = vpack.c.b16 %v3219, %v3215
      %v3388 = vpack.c.b16 %v3220, %v3216
      %v3389 = vpack.c.b16 %v3221, %v3217
      %v3390 = vpack.c.b16 %v3222, %v3218
      %v3391 = vpack.c.b16 %v3227, %v3223
      %v3392 = vpack.c.b16 %v3228, %v3224
      %v3393 = vpack.c.b16 %v3229, %v3225
      %v3394 = vpack.c.b16 %v3230, %v3226
      %v3395 = vpack.c.b16 %v3235, %v3231
      %v3396 = vpack.c.b16 %v3236, %v3232
      %v3397 = vpack.c.b16 %v3237, %v3233
      %v3398 = vpack.c.b16 %v3238, %v3234
      %v3399 = vpack.c.b16 %v3243, %v3239
      %v3400 = vpack.c.b16 %v3244, %v3240
      %v3401 = vpack.c.b16 %v3245, %v3241
      %v3402 = vpack.c.b16 %v3246, %v3242
      %v3403 = vpack.c.b16 %v3251, %v3247
      %v3404 = vpack.c.b16 %v3252, %v3248
      %v3405 = vpack.c.b16 %v3253, %v3249
      %v3406 = vpack.c.b16 %v3254, %v3250
      %v3407 = vpack.c.b16 %v3259, %v3255
      %v3408 = vpack.c.b16 %v3260, %v3256
      %v3409 = vpack.c.b16 %v3261, %v3257
      %v3410 = vpack.c.b16 %v3262, %v3258
      %v3411 = vpack.c.b16 %v3267, %v3263
      %v3412 = vpack.c.b16 %v3268, %v3264
      %v3413 = vpack.c.b16 %v3269, %v3265
      %v3414 = vpack.c.b16 %v3270, %v3266
      %v3415 = vpack.c.b16 %v3275, %v3271
      %v3416 = vpack.c.b16 %v3276, %v3272
      %v3417 = vpack.c.b16 %v3277, %v3273
      %v3418 = vpack.c.b16 %v3278, %v3274
      %v3419 = vpack.c.b16 %v3283, %v3279
      %v3420 = vpack.c.b16 %v3284, %v3280
      %v3421 = vpack.c.b16 %v3285, %v3281
      %v3422 = vpack.c.b16 %v3286, %v3282
      %v3423 = vpack.c.b16 %v3291, %v3287
      %v3424 = vpack.c.b16 %v3292, %v3288
      %v3425 = vpack.c.b16 %v3293, %v3289
      %v3426 = vpack.c.b16 %v3294, %v3290
      %v3427 = vpack.c.b16 %v3299, %v3295
      %v3428 = vpack.c.b16 %v3300, %v3296
      %v3429 = vpack.c.b16 %v3301, %v3297
      %v3430 = vpack.c.b16 %v3302, %v3298
      %3559 = vmatprep.subr.bf16.mxu0 %v3332
      %3560 = vmatpush1.bf16.msra.mxu0 %v3331
      %3561 = vmatprep.subr.bf16.mxu0 %v3328
      %3562 = vmatpush1.bf16.msra.mxu0 %v3327
      %3563 = vmatprep.subr.bf16.mxu0 %v3324
      %3564 = vmatpush1.bf16.msra.mxu0 %v3323
      %3565 = vmatprep.subr.bf16.mxu0 %v3320
      %3566 = vmatpush1.bf16.msra.mxu0 %v3319
      %3567 = vmatprep.subr.bf16.mxu0 %v3316
      %3568 = vmatpush1.bf16.msra.mxu0 %v3315
      %3569 = vmatprep.subr.bf16.mxu0 %v3312
      %3570 = vmatpush1.bf16.msra.mxu0 %v3311
      %3571 = vmatprep.subr.bf16.mxu0 %v3308
      %3572 = vmatpush1.bf16.msra.mxu0 %v3307
      %3573 = vmatprep.subr.bf16.mxu0 %v3304
      %3574 = vmatpush1.bf16.msra.mxu0 %v3303
      %3575 = vmatprep.subr.bf16.mxu0 %v3364
      %3576 = vmatpush2.bf16.msra.mxu0 %v3363
      %3577 = vmatprep.subr.bf16.mxu0 %v3360
      %3578 = vmatpush2.bf16.msra.mxu0 %v3359
      %3579 = vmatprep.subr.bf16.mxu0 %v3356
      %3580 = vmatpush2.bf16.msra.mxu0 %v3355
      %3581 = vmatprep.subr.bf16.mxu0 %v3352
      %3582 = vmatpush2.bf16.msra.mxu0 %v3351
      %3583 = vmatprep.subr.bf16.mxu0 %v3348
      %3584 = vmatpush2.bf16.msra.mxu0 %v3347
      %3585 = vmatprep.subr.bf16.mxu0 %v3344
      %3586 = vmatpush2.bf16.msra.mxu0 %v3343
      %3587 = vmatprep.subr.bf16.mxu0 %v3340
      %3588 = vmatpush2.bf16.msra.mxu0 %v3339
      %3589 = vmatprep.subr.bf16.mxu0 %v3336
      %3590 = vmatpush2.bf16.msra.mxu0 %v3335
      %3591 = vmatprep.mubr.bf16.mxu0 %v1815
      %3592 = vmatmul.mubr.bf16.gmra.mxu0 %v1814
      %v3593 = vpop.f32.mrf.mxu0
      %v3594 = vadd.f32 %v2825, %v3593
      %v3595 = vpop.f32.mrf.mxu0
      %v3596 = vadd.f32 %v2827, %v3595
      %v3597 = vpop.f32.mrf.mxu0
      %v3598 = vadd.f32 %v2829, %v3597
      %v3599 = vpop.f32.mrf.mxu0
      %v3600 = vadd.f32 %v2831, %v3599
      %3601 = vdwg.mxu0
      %3602 = vmatprep.subr.bf16.mxu0 %v3396
      %3603 = vmatpush1.bf16.msra.mxu0 %v3395
      %3604 = vmatprep.subr.bf16.mxu0 %v3392
      %3605 = vmatpush1.bf16.msra.mxu0 %v3391
      %3606 = vmatprep.subr.bf16.mxu0 %v3388
      %3607 = vmatpush1.bf16.msra.mxu0 %v3387
      %3608 = vmatprep.subr.bf16.mxu0 %v3384
      %3609 = vmatpush1.bf16.msra.mxu0 %v3383
      %3610 = vmatprep.subr.bf16.mxu0 %v3380
      %3611 = vmatpush1.bf16.msra.mxu0 %v3379
      %3612 = vmatprep.subr.bf16.mxu0 %v3376
      %3613 = vmatpush1.bf16.msra.mxu0 %v3375
      %3614 = vmatprep.subr.bf16.mxu0 %v3372
      %3615 = vmatpush1.bf16.msra.mxu0 %v3371
      %3616 = vmatprep.subr.bf16.mxu0 %v3368
      %3617 = vmatpush1.bf16.msra.mxu0 %v3367
      %3618 = vmatprep.subr.bf16.mxu0 %v3428
      %3619 = vmatpush2.bf16.msra.mxu0 %v3427
      %3620 = vmatprep.subr.bf16.mxu0 %v3424
      %3621 = vmatpush2.bf16.msra.mxu0 %v3423
      %3622 = vmatprep.subr.bf16.mxu0 %v3420
      %3623 = vmatpush2.bf16.msra.mxu0 %v3419
      %3624 = vmatprep.subr.bf16.mxu0 %v3416
      %3625 = vmatpush2.bf16.msra.mxu0 %v3415
      %3626 = vmatprep.subr.bf16.mxu0 %v3412
      %3627 = vmatpush2.bf16.msra.mxu0 %v3411
      %3628 = vmatprep.subr.bf16.mxu0 %v3408
      %3629 = vmatpush2.bf16.msra.mxu0 %v3407
      %3630 = vmatprep.subr.bf16.mxu0 %v3404
      %3631 = vmatpush2.bf16.msra.mxu0 %v3403
      %3632 = vmatprep.subr.bf16.mxu0 %v3400
      %3633 = vmatpush2.bf16.msra.mxu0 %v3399
      %3634 = vmatprep.mubr.bf16.mxu0 %v1817
      %3635 = vmatmul.mubr.bf16.gmra.mxu0 %v1816
      %v3636 = vpop.f32.mrf.mxu0
      %v3637 = vadd.f32 %v3594, %v3636
      %v3638 = vpop.f32.mrf.mxu0
      %v3639 = vadd.f32 %v3596, %v3638
      %v3640 = vpop.f32.mrf.mxu0
      %v3641 = vadd.f32 %v3598, %v3640
      %v3642 = vpop.f32.mrf.mxu0
      %v3643 = vadd.f32 %v3600, %v3642
      %3644 = vdwg.mxu0
      %3645 = vmatprep.subr.bf16.mxu0 %v3334
      %3646 = vmatpush1.bf16.msra.mxu0 %v3333
      %3647 = vmatprep.subr.bf16.mxu0 %v3330
      %3648 = vmatpush1.bf16.msra.mxu0 %v3329
      %3649 = vmatprep.subr.bf16.mxu0 %v3326
      %3650 = vmatpush1.bf16.msra.mxu0 %v3325
      %3651 = vmatprep.subr.bf16.mxu0 %v3322
      %3652 = vmatpush1.bf16.msra.mxu0 %v3321
      %3653 = vmatprep.subr.bf16.mxu0 %v3318
      %3654 = vmatpush1.bf16.msra.mxu0 %v3317
      %3655 = vmatprep.subr.bf16.mxu0 %v3314
      %3656 = vmatpush1.bf16.msra.mxu0 %v3313
      %3657 = vmatprep.subr.bf16.mxu0 %v3310
      %3658 = vmatpush1.bf16.msra.mxu0 %v3309
      %3659 = vmatprep.subr.bf16.mxu0 %v3306
      %3660 = vmatpush1.bf16.msra.mxu0 %v3305
      %3661 = vmatprep.subr.bf16.mxu0 %v3366
      %3662 = vmatpush2.bf16.msra.mxu0 %v3365
      %3663 = vmatprep.subr.bf16.mxu0 %v3362
      %3664 = vmatpush2.bf16.msra.mxu0 %v3361
      %3665 = vmatprep.subr.bf16.mxu0 %v3358
      %3666 = vmatpush2.bf16.msra.mxu0 %v3357
      %3667 = vmatprep.subr.bf16.mxu0 %v3354
      %3668 = vmatpush2.bf16.msra.mxu0 %v3353
      %3669 = vmatprep.subr.bf16.mxu0 %v3350
      %3670 = vmatpush2.bf16.msra.mxu0 %v3349
      %3671 = vmatprep.subr.bf16.mxu0 %v3346
      %3672 = vmatpush2.bf16.msra.mxu0 %v3345
      %3673 = vmatprep.subr.bf16.mxu0 %v3342
      %3674 = vmatpush2.bf16.msra.mxu0 %v3341
      %3675 = vmatprep.subr.bf16.mxu0 %v3338
      %3676 = vmatpush2.bf16.msra.mxu0 %v3337
      %3677 = vmatprep.mubr.bf16.mxu0 %v1815
      %3678 = vmatmul.mubr.bf16.gmra.mxu0 %v1814
      %v3679 = vpop.f32.mrf.mxu0
      %v3680 = vadd.f32 %v2911, %v3679
      %v3681 = vpop.f32.mrf.mxu0
      %v3682 = vadd.f32 %v2913, %v3681
      %v3683 = vpop.f32.mrf.mxu0
      %v3684 = vadd.f32 %v2915, %v3683
      %v3685 = vpop.f32.mrf.mxu0
      %v3686 = vadd.f32 %v2917, %v3685
      %3687 = vdwg.mxu0
      %3688 = vmatprep.subr.bf16.mxu0 %v3398
      %3689 = vmatpush1.bf16.msra.mxu0 %v3397
      %3690 = vmatprep.subr.bf16.mxu0 %v3394
      %3691 = vmatpush1.bf16.msra.mxu0 %v3393
      %3692 = vmatprep.subr.bf16.mxu0 %v3390
      %3693 = vmatpush1.bf16.msra.mxu0 %v3389
      %3694 = vmatprep.subr.bf16.mxu0 %v3386
      %3695 = vmatpush1.bf16.msra.mxu0 %v3385
      %3696 = vmatprep.subr.bf16.mxu0 %v3382
      %3697 = vmatpush1.bf16.msra.mxu0 %v3381
      %3698 = vmatprep.subr.bf16.mxu0 %v3378
      %3699 = vmatpush1.bf16.msra.mxu0 %v3377
      %3700 = vmatprep.subr.bf16.mxu0 %v3374
      %3701 = vmatpush1.bf16.msra.mxu0 %v3373
      %3702 = vmatprep.subr.bf16.mxu0 %v3370
      %3703 = vmatpush1.bf16.msra.mxu0 %v3369
      %3704 = vmatprep.subr.bf16.mxu0 %v3430
      %3705 = vmatpush2.bf16.msra.mxu0 %v3429
      %3706 = vmatprep.subr.bf16.mxu0 %v3426
      %3707 = vmatpush2.bf16.msra.mxu0 %v3425
      %3708 = vmatprep.subr.bf16.mxu0 %v3422
      %3709 = vmatpush2.bf16.msra.mxu0 %v3421
      %3710 = vmatprep.subr.bf16.mxu0 %v3418
      %3711 = vmatpush2.bf16.msra.mxu0 %v3417
      %3712 = vmatprep.subr.bf16.mxu0 %v3414
      %3713 = vmatpush2.bf16.msra.mxu0 %v3413
      %3714 = vmatprep.subr.bf16.mxu0 %v3410
      %3715 = vmatpush2.bf16.msra.mxu0 %v3409
      %3716 = vmatprep.subr.bf16.mxu0 %v3406
      %3717 = vmatpush2.bf16.msra.mxu0 %v3405
      %3718 = vmatprep.subr.bf16.mxu0 %v3402
      %3719 = vmatpush2.bf16.msra.mxu0 %v3401
      %3720 = vmatprep.mubr.bf16.mxu0 %v1817
      %3721 = vmatmul.mubr.bf16.gmra.mxu0 %v1816
      %v3722 = vpop.f32.mrf.mxu0
      %v3723 = vadd.f32 %v3680, %v3722
      %v3724 = vpop.f32.mrf.mxu0
      %v3725 = vadd.f32 %v3682, %v3724
      %v3726 = vpop.f32.mrf.mxu0
      %v3727 = vadd.f32 %v3684, %v3726
      %v3728 = vpop.f32.mrf.mxu0
      %v3729 = vadd.f32 %v3686, %v3728
      %3730 = vdwg.mxu0
      %s3731 = scalar_lea.vmem %s3, 2048
      %v3732 = vld [vmem:[%s3731] sm:$0xff]
      %v3733 = vld [vmem:[%s3731 + $0x8] sm:$0xff]
      %v3734 = vld [vmem:[%s3731 + $0x10] sm:$0xff]
      %v3735 = vld [vmem:[%s3731 + $0x18] sm:$0xff]
      %v3736 = vld [vmem:[%s3731 + $0x20] sm:$0xff]
      %v3737 = vld [vmem:[%s3731 + $0x28] sm:$0xff]
      %v3738 = vld [vmem:[%s3731 + $0x30] sm:$0xff]
      %v3739 = vld [vmem:[%s3731 + $0x38] sm:$0xff]
      %v3740 = vld [vmem:[%s3731 + $0x40] sm:$0xff]
      %v3741 = vld [vmem:[%s3731 + $0x48] sm:$0xff]
      %v3742 = vld [vmem:[%s3731 + $0x50] sm:$0xff]
      %v3743 = vld [vmem:[%s3731 + $0x58] sm:$0xff]
      %v3744 = vld [vmem:[%s3731 + $0x60] sm:$0xff]
      %v3745 = vld [vmem:[%s3731 + $0x68] sm:$0xff]
      %v3746 = vld [vmem:[%s3731 + $0x70] sm:$0xff]
      %v3747 = vld [vmem:[%s3731 + $0x78] sm:$0xff]
      %v3748 = vld [vmem:[%s3731 + $0x80] sm:$0xff]
      %v3749 = vld [vmem:[%s3731 + $0x88] sm:$0xff]
      %v3750 = vld [vmem:[%s3731 + $0x90] sm:$0xff]
      %v3751 = vld [vmem:[%s3731 + $0x98] sm:$0xff]
      %v3752 = vld [vmem:[%s3731 + $0xa0] sm:$0xff]
      %v3753 = vld [vmem:[%s3731 + $0xa8] sm:$0xff]
      %v3754 = vld [vmem:[%s3731 + $0xb0] sm:$0xff]
      %v3755 = vld [vmem:[%s3731 + $0xb8] sm:$0xff]
      %v3756 = vld [vmem:[%s3731 + $0xc0] sm:$0xff]
      %v3757 = vld [vmem:[%s3731 + $0xc8] sm:$0xff]
      %v3758 = vld [vmem:[%s3731 + $0xd0] sm:$0xff]
      %v3759 = vld [vmem:[%s3731 + $0xd8] sm:$0xff]
      %v3760 = vld [vmem:[%s3731 + $0xe0] sm:$0xff]
      %v3761 = vld [vmem:[%s3731 + $0xe8] sm:$0xff]
      %v3762 = vld [vmem:[%s3731 + $0xf0] sm:$0xff]
      %v3763 = vld [vmem:[%s3731 + $0xf8] sm:$0xff]
      %v3764 = vld [vmem:[%s3731 + $0x100] sm:$0xff]
      %v3765 = vld [vmem:[%s3731 + $0x108] sm:$0xff]
      %v3766 = vld [vmem:[%s3731 + $0x110] sm:$0xff]
      %v3767 = vld [vmem:[%s3731 + $0x118] sm:$0xff]
      %v3768 = vld [vmem:[%s3731 + $0x120] sm:$0xff]
      %v3769 = vld [vmem:[%s3731 + $0x128] sm:$0xff]
      %v3770 = vld [vmem:[%s3731 + $0x130] sm:$0xff]
      %v3771 = vld [vmem:[%s3731 + $0x138] sm:$0xff]
      %v3772 = vld [vmem:[%s3731 + $0x140] sm:$0xff]
      %v3773 = vld [vmem:[%s3731 + $0x148] sm:$0xff]
      %v3774 = vld [vmem:[%s3731 + $0x150] sm:$0xff]
      %v3775 = vld [vmem:[%s3731 + $0x158] sm:$0xff]
      %v3776 = vld [vmem:[%s3731 + $0x160] sm:$0xff]
      %v3777 = vld [vmem:[%s3731 + $0x168] sm:$0xff]
      %v3778 = vld [vmem:[%s3731 + $0x170] sm:$0xff]
      %v3779 = vld [vmem:[%s3731 + $0x178] sm:$0xff]
      %v3780 = vld [vmem:[%s3731 + $0x180] sm:$0xff]
      %v3781 = vld [vmem:[%s3731 + $0x188] sm:$0xff]
      %v3782 = vld [vmem:[%s3731 + $0x190] sm:$0xff]
      %v3783 = vld [vmem:[%s3731 + $0x198] sm:$0xff]
      %v3784 = vld [vmem:[%s3731 + $0x1a0] sm:$0xff]
      %v3785 = vld [vmem:[%s3731 + $0x1a8] sm:$0xff]
      %v3786 = vld [vmem:[%s3731 + $0x1b0] sm:$0xff]
      %v3787 = vld [vmem:[%s3731 + $0x1b8] sm:$0xff]
      %v3788 = vld [vmem:[%s3731 + $0x1c0] sm:$0xff]
      %v3789 = vld [vmem:[%s3731 + $0x1c8] sm:$0xff]
      %v3790 = vld [vmem:[%s3731 + $0x1d0] sm:$0xff]
      %v3791 = vld [vmem:[%s3731 + $0x1d8] sm:$0xff]
      %v3792 = vld [vmem:[%s3731 + $0x1e0] sm:$0xff]
      %v3793 = vld [vmem:[%s3731 + $0x1e8] sm:$0xff]
      %v3794 = vld [vmem:[%s3731 + $0x1f0] sm:$0xff]
      %v3795 = vld [vmem:[%s3731 + $0x1f8] sm:$0xff]
      %v3796 = vld [vmem:[%s3731 + $0x200] sm:$0xff]
      %v3797 = vld [vmem:[%s3731 + $0x208] sm:$0xff]
      %v3798 = vld [vmem:[%s3731 + $0x210] sm:$0xff]
      %v3799 = vld [vmem:[%s3731 + $0x218] sm:$0xff]
      %v3800 = vld [vmem:[%s3731 + $0x220] sm:$0xff]
      %v3801 = vld [vmem:[%s3731 + $0x228] sm:$0xff]
      %v3802 = vld [vmem:[%s3731 + $0x230] sm:$0xff]
      %v3803 = vld [vmem:[%s3731 + $0x238] sm:$0xff]
      %v3804 = vld [vmem:[%s3731 + $0x240] sm:$0xff]
      %v3805 = vld [vmem:[%s3731 + $0x248] sm:$0xff]
      %v3806 = vld [vmem:[%s3731 + $0x250] sm:$0xff]
      %v3807 = vld [vmem:[%s3731 + $0x258] sm:$0xff]
      %v3808 = vld [vmem:[%s3731 + $0x260] sm:$0xff]
      %v3809 = vld [vmem:[%s3731 + $0x268] sm:$0xff]
      %v3810 = vld [vmem:[%s3731 + $0x270] sm:$0xff]
      %v3811 = vld [vmem:[%s3731 + $0x278] sm:$0xff]
      %v3812 = vld [vmem:[%s3731 + $0x280] sm:$0xff]
      %v3813 = vld [vmem:[%s3731 + $0x288] sm:$0xff]
      %v3814 = vld [vmem:[%s3731 + $0x290] sm:$0xff]
      %v3815 = vld [vmem:[%s3731 + $0x298] sm:$0xff]
      %v3816 = vld [vmem:[%s3731 + $0x2a0] sm:$0xff]
      %v3817 = vld [vmem:[%s3731 + $0x2a8] sm:$0xff]
      %v3818 = vld [vmem:[%s3731 + $0x2b0] sm:$0xff]
      %v3819 = vld [vmem:[%s3731 + $0x2b8] sm:$0xff]
      %v3820 = vld [vmem:[%s3731 + $0x2c0] sm:$0xff]
      %v3821 = vld [vmem:[%s3731 + $0x2c8] sm:$0xff]
      %v3822 = vld [vmem:[%s3731 + $0x2d0] sm:$0xff]
      %v3823 = vld [vmem:[%s3731 + $0x2d8] sm:$0xff]
      %v3824 = vld [vmem:[%s3731 + $0x2e0] sm:$0xff]
      %v3825 = vld [vmem:[%s3731 + $0x2e8] sm:$0xff]
      %v3826 = vld [vmem:[%s3731 + $0x2f0] sm:$0xff]
      %v3827 = vld [vmem:[%s3731 + $0x2f8] sm:$0xff]
      %v3828 = vld [vmem:[%s3731 + $0x300] sm:$0xff]
      %v3829 = vld [vmem:[%s3731 + $0x308] sm:$0xff]
      %v3830 = vld [vmem:[%s3731 + $0x310] sm:$0xff]
      %v3831 = vld [vmem:[%s3731 + $0x318] sm:$0xff]
      %v3832 = vld [vmem:[%s3731 + $0x320] sm:$0xff]
      %v3833 = vld [vmem:[%s3731 + $0x328] sm:$0xff]
      %v3834 = vld [vmem:[%s3731 + $0x330] sm:$0xff]
      %v3835 = vld [vmem:[%s3731 + $0x338] sm:$0xff]
      %v3836 = vld [vmem:[%s3731 + $0x340] sm:$0xff]
      %v3837 = vld [vmem:[%s3731 + $0x348] sm:$0xff]
      %v3838 = vld [vmem:[%s3731 + $0x350] sm:$0xff]
      %v3839 = vld [vmem:[%s3731 + $0x358] sm:$0xff]
      %v3840 = vld [vmem:[%s3731 + $0x360] sm:$0xff]
      %v3841 = vld [vmem:[%s3731 + $0x368] sm:$0xff]
      %v3842 = vld [vmem:[%s3731 + $0x370] sm:$0xff]
      %v3843 = vld [vmem:[%s3731 + $0x378] sm:$0xff]
      %v3844 = vld [vmem:[%s3731 + $0x380] sm:$0xff]
      %v3845 = vld [vmem:[%s3731 + $0x388] sm:$0xff]
      %v3846 = vld [vmem:[%s3731 + $0x390] sm:$0xff]
      %v3847 = vld [vmem:[%s3731 + $0x398] sm:$0xff]
      %v3848 = vld [vmem:[%s3731 + $0x3a0] sm:$0xff]
      %v3849 = vld [vmem:[%s3731 + $0x3a8] sm:$0xff]
      %v3850 = vld [vmem:[%s3731 + $0x3b0] sm:$0xff]
      %v3851 = vld [vmem:[%s3731 + $0x3b8] sm:$0xff]
      %v3852 = vld [vmem:[%s3731 + $0x3c0] sm:$0xff]
      %v3853 = vld [vmem:[%s3731 + $0x3c8] sm:$0xff]
      %v3854 = vld [vmem:[%s3731 + $0x3d0] sm:$0xff]
      %v3855 = vld [vmem:[%s3731 + $0x3d8] sm:$0xff]
      %v3856 = vld [vmem:[%s3731 + $0x3e0] sm:$0xff]
      %v3857 = vld [vmem:[%s3731 + $0x3e8] sm:$0xff]
      %v3858 = vld [vmem:[%s3731 + $0x3f0] sm:$0xff]
      %v3859 = vld [vmem:[%s3731 + $0x3f8] sm:$0xff]
      %v3864 = vrot.slane %v1814, 1
      %v3865 = vrot.slane %v1815, 1
      %v3866 = vrot.slane %v1816, 1
      %v3867 = vrot.slane %v1817, 1
      %v4000 = vunpack.c.l.b16 %v3732
      %v4001 = vunpack.c.h.b16 %v3732
      %v4002 = vunpack.c.l.b16 %v3733
      %v4003 = vunpack.c.h.b16 %v3733
      %v4004 = vunpack.c.l.b16 %v3734
      %v4005 = vunpack.c.h.b16 %v3734
      %v4006 = vunpack.c.l.b16 %v3735
      %v4007 = vunpack.c.h.b16 %v3735
      %v4008 = vunpack.c.l.b16 %v3736
      %v4009 = vunpack.c.h.b16 %v3736
      %v4010 = vunpack.c.l.b16 %v3737
      %v4011 = vunpack.c.h.b16 %v3737
      %v4012 = vunpack.c.l.b16 %v3738
      %v4013 = vunpack.c.h.b16 %v3738
      %v4014 = vunpack.c.l.b16 %v3739
      %v4015 = vunpack.c.h.b16 %v3739
      %v4016 = vunpack.c.l.b16 %v3740
      %v4017 = vunpack.c.h.b16 %v3740
      %v4018 = vunpack.c.l.b16 %v3741
      %v4019 = vunpack.c.h.b16 %v3741
      %v4020 = vunpack.c.l.b16 %v3742
      %v4021 = vunpack.c.h.b16 %v3742
      %v4022 = vunpack.c.l.b16 %v3743
      %v4023 = vunpack.c.h.b16 %v3743
      %v4024 = vunpack.c.l.b16 %v3744
      %v4025 = vunpack.c.h.b16 %v3744
      %v4026 = vunpack.c.l.b16 %v3745
      %v4027 = vunpack.c.h.b16 %v3745
      %v4028 = vunpack.c.l.b16 %v3746
      %v4029 = vunpack.c.h.b16 %v3746
      %v4030 = vunpack.c.l.b16 %v3747
      %v4031 = vunpack.c.h.b16 %v3747
      %v4032 = vunpack.c.l.b16 %v3748
      %v4033 = vunpack.c.h.b16 %v3748
      %v4034 = vunpack.c.l.b16 %v3749
      %v4035 = vunpack.c.h.b16 %v3749
      %v4036 = vunpack.c.l.b16 %v3750
      %v4037 = vunpack.c.h.b16 %v3750
      %v4038 = vunpack.c.l.b16 %v3751
      %v4039 = vunpack.c.h.b16 %v3751
      %v4040 = vunpack.c.l.b16 %v3752
      %v4041 = vunpack.c.h.b16 %v3752
      %v4042 = vunpack.c.l.b16 %v3753
      %v4043 = vunpack.c.h.b16 %v3753
      %v4044 = vunpack.c.l.b16 %v3754
      %v4045 = vunpack.c.h.b16 %v3754
      %v4046 = vunpack.c.l.b16 %v3755
      %v4047 = vunpack.c.h.b16 %v3755
      %v4048 = vunpack.c.l.b16 %v3756
      %v4049 = vunpack.c.h.b16 %v3756
      %v4050 = vunpack.c.l.b16 %v3757
      %v4051 = vunpack.c.h.b16 %v3757
      %v4052 = vunpack.c.l.b16 %v3758
      %v4053 = vunpack.c.h.b16 %v3758
      %v4054 = vunpack.c.l.b16 %v3759
      %v4055 = vunpack.c.h.b16 %v3759
      %v4056 = vunpack.c.l.b16 %v3760
      %v4057 = vunpack.c.h.b16 %v3760
      %v4058 = vunpack.c.l.b16 %v3761
      %v4059 = vunpack.c.h.b16 %v3761
      %v4060 = vunpack.c.l.b16 %v3762
      %v4061 = vunpack.c.h.b16 %v3762
      %v4062 = vunpack.c.l.b16 %v3763
      %v4063 = vunpack.c.h.b16 %v3763
      %v4064 = vunpack.c.l.b16 %v3764
      %v4065 = vunpack.c.h.b16 %v3764
      %v4066 = vunpack.c.l.b16 %v3765
      %v4067 = vunpack.c.h.b16 %v3765
      %v4068 = vunpack.c.l.b16 %v3766
      %v4069 = vunpack.c.h.b16 %v3766
      %v4070 = vunpack.c.l.b16 %v3767
      %v4071 = vunpack.c.h.b16 %v3767
      %v4072 = vunpack.c.l.b16 %v3768
      %v4073 = vunpack.c.h.b16 %v3768
      %v4074 = vunpack.c.l.b16 %v3769
      %v4075 = vunpack.c.h.b16 %v3769
      %v4076 = vunpack.c.l.b16 %v3770
      %v4077 = vunpack.c.h.b16 %v3770
      %v4078 = vunpack.c.l.b16 %v3771
      %v4079 = vunpack.c.h.b16 %v3771
      %v4080 = vunpack.c.l.b16 %v3772
      %v4081 = vunpack.c.h.b16 %v3772
      %v4082 = vunpack.c.l.b16 %v3773
      %v4083 = vunpack.c.h.b16 %v3773
      %v4084 = vunpack.c.l.b16 %v3774
      %v4085 = vunpack.c.h.b16 %v3774
      %v4086 = vunpack.c.l.b16 %v3775
      %v4087 = vunpack.c.h.b16 %v3775
      %v4088 = vunpack.c.l.b16 %v3776
      %v4089 = vunpack.c.h.b16 %v3776
      %v4090 = vunpack.c.l.b16 %v3777
      %v4091 = vunpack.c.h.b16 %v3777
      %v4092 = vunpack.c.l.b16 %v3778
      %v4093 = vunpack.c.h.b16 %v3778
      %v4094 = vunpack.c.l.b16 %v3779
      %v4095 = vunpack.c.h.b16 %v3779
      %v4096 = vunpack.c.l.b16 %v3780
      %v4097 = vunpack.c.h.b16 %v3780
      %v4098 = vunpack.c.l.b16 %v3781
      %v4099 = vunpack.c.h.b16 %v3781
      %v4100 = vunpack.c.l.b16 %v3782
      %v4101 = vunpack.c.h.b16 %v3782
      %v4102 = vunpack.c.l.b16 %v3783
      %v4103 = vunpack.c.h.b16 %v3783
      %v4104 = vunpack.c.l.b16 %v3784
      %v4105 = vunpack.c.h.b16 %v3784
      %v4106 = vunpack.c.l.b16 %v3785
      %v4107 = vunpack.c.h.b16 %v3785
      %v4108 = vunpack.c.l.b16 %v3786
      %v4109 = vunpack.c.h.b16 %v3786
      %v4110 = vunpack.c.l.b16 %v3787
      %v4111 = vunpack.c.h.b16 %v3787
      %v4112 = vunpack.c.l.b16 %v3788
      %v4113 = vunpack.c.h.b16 %v3788
      %v4114 = vunpack.c.l.b16 %v3789
      %v4115 = vunpack.c.h.b16 %v3789
      %v4116 = vunpack.c.l.b16 %v3790
      %v4117 = vunpack.c.h.b16 %v3790
      %v4118 = vunpack.c.l.b16 %v3791
      %v4119 = vunpack.c.h.b16 %v3791
      %v4120 = vunpack.c.l.b16 %v3792
      %v4121 = vunpack.c.h.b16 %v3792
      %v4122 = vunpack.c.l.b16 %v3793
      %v4123 = vunpack.c.h.b16 %v3793
      %v4124 = vunpack.c.l.b16 %v3794
      %v4125 = vunpack.c.h.b16 %v3794
      %v4126 = vunpack.c.l.b16 %v3795
      %v4127 = vunpack.c.h.b16 %v3795
      %v4128 = vunpack.c.l.b16 %v3796
      %v4129 = vunpack.c.h.b16 %v3796
      %v4130 = vunpack.c.l.b16 %v3797
      %v4131 = vunpack.c.h.b16 %v3797
      %v4132 = vunpack.c.l.b16 %v3798
      %v4133 = vunpack.c.h.b16 %v3798
      %v4134 = vunpack.c.l.b16 %v3799
      %v4135 = vunpack.c.h.b16 %v3799
      %v4136 = vunpack.c.l.b16 %v3800
      %v4137 = vunpack.c.h.b16 %v3800
      %v4138 = vunpack.c.l.b16 %v3801
      %v4139 = vunpack.c.h.b16 %v3801
      %v4140 = vunpack.c.l.b16 %v3802
      %v4141 = vunpack.c.h.b16 %v3802
      %v4142 = vunpack.c.l.b16 %v3803
      %v4143 = vunpack.c.h.b16 %v3803
      %v4144 = vunpack.c.l.b16 %v3804
      %v4145 = vunpack.c.h.b16 %v3804
      %v4146 = vunpack.c.l.b16 %v3805
      %v4147 = vunpack.c.h.b16 %v3805
      %v4148 = vunpack.c.l.b16 %v3806
      %v4149 = vunpack.c.h.b16 %v3806
      %v4150 = vunpack.c.l.b16 %v3807
      %v4151 = vunpack.c.h.b16 %v3807
      %v4152 = vunpack.c.l.b16 %v3808
      %v4153 = vunpack.c.h.b16 %v3808
      %v4154 = vunpack.c.l.b16 %v3809
      %v4155 = vunpack.c.h.b16 %v3809
      %v4156 = vunpack.c.l.b16 %v3810
      %v4157 = vunpack.c.h.b16 %v3810
      %v4158 = vunpack.c.l.b16 %v3811
      %v4159 = vunpack.c.h.b16 %v3811
      %v4160 = vunpack.c.l.b16 %v3812
      %v4161 = vunpack.c.h.b16 %v3812
      %v4162 = vunpack.c.l.b16 %v3813
      %v4163 = vunpack.c.h.b16 %v3813
      %v4164 = vunpack.c.l.b16 %v3814
      %v4165 = vunpack.c.h.b16 %v3814
      %v4166 = vunpack.c.l.b16 %v3815
      %v4167 = vunpack.c.h.b16 %v3815
      %v4168 = vunpack.c.l.b16 %v3816
      %v4169 = vunpack.c.h.b16 %v3816
      %v4170 = vunpack.c.l.b16 %v3817
      %v4171 = vunpack.c.h.b16 %v3817
      %v4172 = vunpack.c.l.b16 %v3818
      %v4173 = vunpack.c.h.b16 %v3818
      %v4174 = vunpack.c.l.b16 %v3819
      %v4175 = vunpack.c.h.b16 %v3819
      %v4176 = vunpack.c.l.b16 %v3820
      %v4177 = vunpack.c.h.b16 %v3820
      %v4178 = vunpack.c.l.b16 %v3821
      %v4179 = vunpack.c.h.b16 %v3821
      %v4180 = vunpack.c.l.b16 %v3822
      %v4181 = vunpack.c.h.b16 %v3822
      %v4182 = vunpack.c.l.b16 %v3823
      %v4183 = vunpack.c.h.b16 %v3823
      %v4184 = vunpack.c.l.b16 %v3824
      %v4185 = vunpack.c.h.b16 %v3824
      %v4186 = vunpack.c.l.b16 %v3825
      %v4187 = vunpack.c.h.b16 %v3825
      %v4188 = vunpack.c.l.b16 %v3826
      %v4189 = vunpack.c.h.b16 %v3826
      %v4190 = vunpack.c.l.b16 %v3827
      %v4191 = vunpack.c.h.b16 %v3827
      %v4192 = vunpack.c.l.b16 %v3828
      %v4193 = vunpack.c.h.b16 %v3828
      %v4194 = vunpack.c.l.b16 %v3829
      %v4195 = vunpack.c.h.b16 %v3829
      %v4196 = vunpack.c.l.b16 %v3830
      %v4197 = vunpack.c.h.b16 %v3830
      %v4198 = vunpack.c.l.b16 %v3831
      %v4199 = vunpack.c.h.b16 %v3831
      %v4200 = vunpack.c.l.b16 %v3832
      %v4201 = vunpack.c.h.b16 %v3832
      %v4202 = vunpack.c.l.b16 %v3833
      %v4203 = vunpack.c.h.b16 %v3833
      %v4204 = vunpack.c.l.b16 %v3834
      %v4205 = vunpack.c.h.b16 %v3834
      %v4206 = vunpack.c.l.b16 %v3835
      %v4207 = vunpack.c.h.b16 %v3835
      %v4208 = vunpack.c.l.b16 %v3836
      %v4209 = vunpack.c.h.b16 %v3836
      %v4210 = vunpack.c.l.b16 %v3837
      %v4211 = vunpack.c.h.b16 %v3837
      %v4212 = vunpack.c.l.b16 %v3838
      %v4213 = vunpack.c.h.b16 %v3838
      %v4214 = vunpack.c.l.b16 %v3839
      %v4215 = vunpack.c.h.b16 %v3839
      %v4216 = vunpack.c.l.b16 %v3840
      %v4217 = vunpack.c.h.b16 %v3840
      %v4218 = vunpack.c.l.b16 %v3841
      %v4219 = vunpack.c.h.b16 %v3841
      %v4220 = vunpack.c.l.b16 %v3842
      %v4221 = vunpack.c.h.b16 %v3842
      %v4222 = vunpack.c.l.b16 %v3843
      %v4223 = vunpack.c.h.b16 %v3843
      %v4224 = vunpack.c.l.b16 %v3844
      %v4225 = vunpack.c.h.b16 %v3844
      %v4226 = vunpack.c.l.b16 %v3845
      %v4227 = vunpack.c.h.b16 %v3845
      %v4228 = vunpack.c.l.b16 %v3846
      %v4229 = vunpack.c.h.b16 %v3846
      %v4230 = vunpack.c.l.b16 %v3847
      %v4231 = vunpack.c.h.b16 %v3847
      %v4232 = vunpack.c.l.b16 %v3848
      %v4233 = vunpack.c.h.b16 %v3848
      %v4234 = vunpack.c.l.b16 %v3849
      %v4235 = vunpack.c.h.b16 %v3849
      %v4236 = vunpack.c.l.b16 %v3850
      %v4237 = vunpack.c.h.b16 %v3850
      %v4238 = vunpack.c.l.b16 %v3851
      %v4239 = vunpack.c.h.b16 %v3851
      %v4240 = vunpack.c.l.b16 %v3852
      %v4241 = vunpack.c.h.b16 %v3852
      %v4242 = vunpack.c.l.b16 %v3853
      %v4243 = vunpack.c.h.b16 %v3853
      %v4244 = vunpack.c.l.b16 %v3854
      %v4245 = vunpack.c.h.b16 %v3854
      %v4246 = vunpack.c.l.b16 %v3855
      %v4247 = vunpack.c.h.b16 %v3855
      %v4248 = vunpack.c.l.b16 %v3856
      %v4249 = vunpack.c.h.b16 %v3856
      %v4250 = vunpack.c.l.b16 %v3857
      %v4251 = vunpack.c.h.b16 %v3857
      %v4252 = vunpack.c.l.b16 %v3858
      %v4253 = vunpack.c.h.b16 %v3858
      %v4254 = vunpack.c.l.b16 %v3859
      %v4255 = vunpack.c.h.b16 %v3859
      %v4256 = vpack.c.b16 %v4004, %v4000
      %v4257 = vpack.c.b16 %v4005, %v4001
      %v4258 = vpack.c.b16 %v4006, %v4002
      %v4259 = vpack.c.b16 %v4007, %v4003
      %v4260 = vpack.c.b16 %v4012, %v4008
      %v4261 = vpack.c.b16 %v4013, %v4009
      %v4262 = vpack.c.b16 %v4014, %v4010
      %v4263 = vpack.c.b16 %v4015, %v4011
      %v4264 = vpack.c.b16 %v4020, %v4016
      %v4265 = vpack.c.b16 %v4021, %v4017
      %v4266 = vpack.c.b16 %v4022, %v4018
      %v4267 = vpack.c.b16 %v4023, %v4019
      %v4268 = vpack.c.b16 %v4028, %v4024
      %v4269 = vpack.c.b16 %v4029, %v4025
      %v4270 = vpack.c.b16 %v4030, %v4026
      %v4271 = vpack.c.b16 %v4031, %v4027
      %v4272 = vpack.c.b16 %v4036, %v4032
      %v4273 = vpack.c.b16 %v4037, %v4033
      %v4274 = vpack.c.b16 %v4038, %v4034
      %v4275 = vpack.c.b16 %v4039, %v4035
      %v4276 = vpack.c.b16 %v4044, %v4040
      %v4277 = vpack.c.b16 %v4045, %v4041
      %v4278 = vpack.c.b16 %v4046, %v4042
      %v4279 = vpack.c.b16 %v4047, %v4043
      %v4280 = vpack.c.b16 %v4052, %v4048
      %v4281 = vpack.c.b16 %v4053, %v4049
      %v4282 = vpack.c.b16 %v4054, %v4050
      %v4283 = vpack.c.b16 %v4055, %v4051
      %v4284 = vpack.c.b16 %v4060, %v4056
      %v4285 = vpack.c.b16 %v4061, %v4057
      %v4286 = vpack.c.b16 %v4062, %v4058
      %v4287 = vpack.c.b16 %v4063, %v4059
      %v4288 = vpack.c.b16 %v4068, %v4064
      %v4289 = vpack.c.b16 %v4069, %v4065
      %v4290 = vpack.c.b16 %v4070, %v4066
      %v4291 = vpack.c.b16 %v4071, %v4067
      %v4292 = vpack.c.b16 %v4076, %v4072
      %v4293 = vpack.c.b16 %v4077, %v4073
      %v4294 = vpack.c.b16 %v4078, %v4074
      %v4295 = vpack.c.b16 %v4079, %v4075
      %v4296 = vpack.c.b16 %v4084, %v4080
      %v4297 = vpack.c.b16 %v4085, %v4081
      %v4298 = vpack.c.b16 %v4086, %v4082
      %v4299 = vpack.c.b16 %v4087, %v4083
      %v4300 = vpack.c.b16 %v4092, %v4088
      %v4301 = vpack.c.b16 %v4093, %v4089
      %v4302 = vpack.c.b16 %v4094, %v4090
      %v4303 = vpack.c.b16 %v4095, %v4091
      %v4304 = vpack.c.b16 %v4100, %v4096
      %v4305 = vpack.c.b16 %v4101, %v4097
      %v4306 = vpack.c.b16 %v4102, %v4098
      %v4307 = vpack.c.b16 %v4103, %v4099
      %v4308 = vpack.c.b16 %v4108, %v4104
      %v4309 = vpack.c.b16 %v4109, %v4105
      %v4310 = vpack.c.b16 %v4110, %v4106
      %v4311 = vpack.c.b16 %v4111, %v4107
      %v4312 = vpack.c.b16 %v4116, %v4112
      %v4313 = vpack.c.b16 %v4117, %v4113
      %v4314 = vpack.c.b16 %v4118, %v4114
      %v4315 = vpack.c.b16 %v4119, %v4115
      %v4316 = vpack.c.b16 %v4124, %v4120
      %v4317 = vpack.c.b16 %v4125, %v4121
      %v4318 = vpack.c.b16 %v4126, %v4122
      %v4319 = vpack.c.b16 %v4127, %v4123
      %v4320 = vpack.c.b16 %v4132, %v4128
      %v4321 = vpack.c.b16 %v4133, %v4129
      %v4322 = vpack.c.b16 %v4134, %v4130
      %v4323 = vpack.c.b16 %v4135, %v4131
      %v4324 = vpack.c.b16 %v4140, %v4136
      %v4325 = vpack.c.b16 %v4141, %v4137
      %v4326 = vpack.c.b16 %v4142, %v4138
      %v4327 = vpack.c.b16 %v4143, %v4139
      %v4328 = vpack.c.b16 %v4148, %v4144
      %v4329 = vpack.c.b16 %v4149, %v4145
      %v4330 = vpack.c.b16 %v4150, %v4146
      %v4331 = vpack.c.b16 %v4151, %v4147
      %v4332 = vpack.c.b16 %v4156, %v4152
      %v4333 = vpack.c.b16 %v4157, %v4153
      %v4334 = vpack.c.b16 %v4158, %v4154
      %v4335 = vpack.c.b16 %v4159, %v4155
      %v4336 = vpack.c.b16 %v4164, %v4160
      %v4337 = vpack.c.b16 %v4165, %v4161
      %v4338 = vpack.c.b16 %v4166, %v4162
      %v4339 = vpack.c.b16 %v4167, %v4163
      %v4340 = vpack.c.b16 %v4172, %v4168
      %v4341 = vpack.c.b16 %v4173, %v4169
      %v4342 = vpack.c.b16 %v4174, %v4170
      %v4343 = vpack.c.b16 %v4175, %v4171
      %v4344 = vpack.c.b16 %v4180, %v4176
      %v4345 = vpack.c.b16 %v4181, %v4177
      %v4346 = vpack.c.b16 %v4182, %v4178
      %v4347 = vpack.c.b16 %v4183, %v4179
      %v4348 = vpack.c.b16 %v4188, %v4184
      %v4349 = vpack.c.b16 %v4189, %v4185
      %v4350 = vpack.c.b16 %v4190, %v4186
      %v4351 = vpack.c.b16 %v4191, %v4187
      %v4352 = vpack.c.b16 %v4196, %v4192
      %v4353 = vpack.c.b16 %v4197, %v4193
      %v4354 = vpack.c.b16 %v4198, %v4194
      %v4355 = vpack.c.b16 %v4199, %v4195
      %v4356 = vpack.c.b16 %v4204, %v4200
      %v4357 = vpack.c.b16 %v4205, %v4201
      %v4358 = vpack.c.b16 %v4206, %v4202
      %v4359 = vpack.c.b16 %v4207, %v4203
      %v4360 = vpack.c.b16 %v4212, %v4208
      %v4361 = vpack.c.b16 %v4213, %v4209
      %v4362 = vpack.c.b16 %v4214, %v4210
      %v4363 = vpack.c.b16 %v4215, %v4211
      %v4364 = vpack.c.b16 %v4220, %v4216
      %v4365 = vpack.c.b16 %v4221, %v4217
      %v4366 = vpack.c.b16 %v4222, %v4218
      %v4367 = vpack.c.b16 %v4223, %v4219
      %v4368 = vpack.c.b16 %v4228, %v4224
      %v4369 = vpack.c.b16 %v4229, %v4225
      %v4370 = vpack.c.b16 %v4230, %v4226
      %v4371 = vpack.c.b16 %v4231, %v4227
      %v4372 = vpack.c.b16 %v4236, %v4232
      %v4373 = vpack.c.b16 %v4237, %v4233
      %v4374 = vpack.c.b16 %v4238, %v4234
      %v4375 = vpack.c.b16 %v4239, %v4235
      %v4376 = vpack.c.b16 %v4244, %v4240
      %v4377 = vpack.c.b16 %v4245, %v4241
      %v4378 = vpack.c.b16 %v4246, %v4242
      %v4379 = vpack.c.b16 %v4247, %v4243
      %v4380 = vpack.c.b16 %v4252, %v4248
      %v4381 = vpack.c.b16 %v4253, %v4249
      %v4382 = vpack.c.b16 %v4254, %v4250
      %v4383 = vpack.c.b16 %v4255, %v4251
      %4512 = vmatprep.subr.bf16.mxu0 %v4285
      %4513 = vmatpush1.bf16.msra.mxu0 %v4284
      %4514 = vmatprep.subr.bf16.mxu0 %v4281
      %4515 = vmatpush1.bf16.msra.mxu0 %v4280
      %4516 = vmatprep.subr.bf16.mxu0 %v4277
      %4517 = vmatpush1.bf16.msra.mxu0 %v4276
      %4518 = vmatprep.subr.bf16.mxu0 %v4273
      %4519 = vmatpush1.bf16.msra.mxu0 %v4272
      %4520 = vmatprep.subr.bf16.mxu0 %v4269
      %4521 = vmatpush1.bf16.msra.mxu0 %v4268
      %4522 = vmatprep.subr.bf16.mxu0 %v4265
      %4523 = vmatpush1.bf16.msra.mxu0 %v4264
      %4524 = vmatprep.subr.bf16.mxu0 %v4261
      %4525 = vmatpush1.bf16.msra.mxu0 %v4260
      %4526 = vmatprep.subr.bf16.mxu0 %v4257
      %4527 = vmatpush1.bf16.msra.mxu0 %v4256
      %4528 = vmatprep.subr.bf16.mxu0 %v4317
      %4529 = vmatpush2.bf16.msra.mxu0 %v4316
      %4530 = vmatprep.subr.bf16.mxu0 %v4313
      %4531 = vmatpush2.bf16.msra.mxu0 %v4312
      %4532 = vmatprep.subr.bf16.mxu0 %v4309
      %4533 = vmatpush2.bf16.msra.mxu0 %v4308
      %4534 = vmatprep.subr.bf16.mxu0 %v4305
      %4535 = vmatpush2.bf16.msra.mxu0 %v4304
      %4536 = vmatprep.subr.bf16.mxu0 %v4301
      %4537 = vmatpush2.bf16.msra.mxu0 %v4300
      %4538 = vmatprep.subr.bf16.mxu0 %v4297
      %4539 = vmatpush2.bf16.msra.mxu0 %v4296
      %4540 = vmatprep.subr.bf16.mxu0 %v4293
      %4541 = vmatpush2.bf16.msra.mxu0 %v4292
      %4542 = vmatprep.subr.bf16.mxu0 %v4289
      %4543 = vmatpush2.bf16.msra.mxu0 %v4288
      %4544 = vmatprep.mubr.bf16.mxu0 %v3865
      %4545 = vmatmul.mubr.bf16.gmra.mxu0 %v3864
      %v4546 = vpop.f32.mrf.mxu0
      %v4547 = vadd.f32 0.0, %v4546
      %v4548 = vpop.f32.mrf.mxu0
      %v4549 = vadd.f32 0.0, %v4548
      %v4550 = vpop.f32.mrf.mxu0
      %v4551 = vadd.f32 0.0, %v4550
      %v4552 = vpop.f32.mrf.mxu0
      %v4553 = vadd.f32 0.0, %v4552
      %4554 = vdwg.mxu0
      %4555 = vmatprep.subr.bf16.mxu0 %v4349
      %4556 = vmatpush1.bf16.msra.mxu0 %v4348
      %4557 = vmatprep.subr.bf16.mxu0 %v4345
      %4558 = vmatpush1.bf16.msra.mxu0 %v4344
      %4559 = vmatprep.subr.bf16.mxu0 %v4341
      %4560 = vmatpush1.bf16.msra.mxu0 %v4340
      %4561 = vmatprep.subr.bf16.mxu0 %v4337
      %4562 = vmatpush1.bf16.msra.mxu0 %v4336
      %4563 = vmatprep.subr.bf16.mxu0 %v4333
      %4564 = vmatpush1.bf16.msra.mxu0 %v4332
      %4565 = vmatprep.subr.bf16.mxu0 %v4329
      %4566 = vmatpush1.bf16.msra.mxu0 %v4328
      %4567 = vmatprep.subr.bf16.mxu0 %v4325
      %4568 = vmatpush1.bf16.msra.mxu0 %v4324
      %4569 = vmatprep.subr.bf16.mxu0 %v4321
      %4570 = vmatpush1.bf16.msra.mxu0 %v4320
      %4571 = vmatprep.subr.bf16.mxu0 %v4381
      %4572 = vmatpush2.bf16.msra.mxu0 %v4380
      %4573 = vmatprep.subr.bf16.mxu0 %v4377
      %4574 = vmatpush2.bf16.msra.mxu0 %v4376
      %4575 = vmatprep.subr.bf16.mxu0 %v4373
      %4576 = vmatpush2.bf16.msra.mxu0 %v4372
      %4577 = vmatprep.subr.bf16.mxu0 %v4369
      %4578 = vmatpush2.bf16.msra.mxu0 %v4368
      %4579 = vmatprep.subr.bf16.mxu0 %v4365
      %4580 = vmatpush2.bf16.msra.mxu0 %v4364
      %4581 = vmatprep.subr.bf16.mxu0 %v4361
      %4582 = vmatpush2.bf16.msra.mxu0 %v4360
      %4583 = vmatprep.subr.bf16.mxu0 %v4357
      %4584 = vmatpush2.bf16.msra.mxu0 %v4356
      %4585 = vmatprep.subr.bf16.mxu0 %v4353
      %4586 = vmatpush2.bf16.msra.mxu0 %v4352
      %4587 = vmatprep.mubr.bf16.mxu0 %v3867
      %4588 = vmatmul.mubr.bf16.gmra.mxu0 %v3866
      %v4589 = vpop.f32.mrf.mxu0
      %v4590 = vadd.f32 %v4547, %v4589
      %v4591 = vpop.f32.mrf.mxu0
      %v4592 = vadd.f32 %v4549, %v4591
      %v4593 = vpop.f32.mrf.mxu0
      %v4594 = vadd.f32 %v4551, %v4593
      %v4595 = vpop.f32.mrf.mxu0
      %v4596 = vadd.f32 %v4553, %v4595
      %4597 = vdwg.mxu0
      %4598 = vmatprep.subr.bf16.mxu0 %v4287
      %4599 = vmatpush1.bf16.msra.mxu0 %v4286
      %4600 = vmatprep.subr.bf16.mxu0 %v4283
      %4601 = vmatpush1.bf16.msra.mxu0 %v4282
      %4602 = vmatprep.subr.bf16.mxu0 %v4279
      %4603 = vmatpush1.bf16.msra.mxu0 %v4278
      %4604 = vmatprep.subr.bf16.mxu0 %v4275
      %4605 = vmatpush1.bf16.msra.mxu0 %v4274
      %4606 = vmatprep.subr.bf16.mxu0 %v4271
      %4607 = vmatpush1.bf16.msra.mxu0 %v4270
      %4608 = vmatprep.subr.bf16.mxu0 %v4267
      %4609 = vmatpush1.bf16.msra.mxu0 %v4266
      %4610 = vmatprep.subr.bf16.mxu0 %v4263
      %4611 = vmatpush1.bf16.msra.mxu0 %v4262
      %4612 = vmatprep.subr.bf16.mxu0 %v4259
      %4613 = vmatpush1.bf16.msra.mxu0 %v4258
      %4614 = vmatprep.subr.bf16.mxu0 %v4319
      %4615 = vmatpush2.bf16.msra.mxu0 %v4318
      %4616 = vmatprep.subr.bf16.mxu0 %v4315
      %4617 = vmatpush2.bf16.msra.mxu0 %v4314
      %4618 = vmatprep.subr.bf16.mxu0 %v4311
      %4619 = vmatpush2.bf16.msra.mxu0 %v4310
      %4620 = vmatprep.subr.bf16.mxu0 %v4307
      %4621 = vmatpush2.bf16.msra.mxu0 %v4306
      %4622 = vmatprep.subr.bf16.mxu0 %v4303
      %4623 = vmatpush2.bf16.msra.mxu0 %v4302
      %4624 = vmatprep.subr.bf16.mxu0 %v4299
      %4625 = vmatpush2.bf16.msra.mxu0 %v4298
      %4626 = vmatprep.subr.bf16.mxu0 %v4295
      %4627 = vmatpush2.bf16.msra.mxu0 %v4294
      %4628 = vmatprep.subr.bf16.mxu0 %v4291
      %4629 = vmatpush2.bf16.msra.mxu0 %v4290
      %4630 = vmatprep.mubr.bf16.mxu0 %v3865
      %4631 = vmatmul.mubr.bf16.gmra.mxu0 %v3864
      %v4632 = vpop.f32.mrf.mxu0
      %v4633 = vadd.f32 0.0, %v4632
      %v4634 = vpop.f32.mrf.mxu0
      %v4635 = vadd.f32 0.0, %v4634
      %v4636 = vpop.f32.mrf.mxu0
      %v4637 = vadd.f32 0.0, %v4636
      %v4638 = vpop.f32.mrf.mxu0
      %v4639 = vadd.f32 0.0, %v4638
      %4640 = vdwg.mxu0
      %4641 = vmatprep.subr.bf16.mxu0 %v4351
      %4642 = vmatpush1.bf16.msra.mxu0 %v4350
      %4643 = vmatprep.subr.bf16.mxu0 %v4347
      %4644 = vmatpush1.bf16.msra.mxu0 %v4346
      %4645 = vmatprep.subr.bf16.mxu0 %v4343
      %4646 = vmatpush1.bf16.msra.mxu0 %v4342
      %4647 = vmatprep.subr.bf16.mxu0 %v4339
      %4648 = vmatpush1.bf16.msra.mxu0 %v4338
      %4649 = vmatprep.subr.bf16.mxu0 %v4335
      %4650 = vmatpush1.bf16.msra.mxu0 %v4334
      %4651 = vmatprep.subr.bf16.mxu0 %v4331
      %4652 = vmatpush1.bf16.msra.mxu0 %v4330
      %4653 = vmatprep.subr.bf16.mxu0 %v4327
      %4654 = vmatpush1.bf16.msra.mxu0 %v4326
      %4655 = vmatprep.subr.bf16.mxu0 %v4323
      %4656 = vmatpush1.bf16.msra.mxu0 %v4322
      %4657 = vmatprep.subr.bf16.mxu0 %v4383
      %4658 = vmatpush2.bf16.msra.mxu0 %v4382
      %4659 = vmatprep.subr.bf16.mxu0 %v4379
      %4660 = vmatpush2.bf16.msra.mxu0 %v4378
      %4661 = vmatprep.subr.bf16.mxu0 %v4375
      %4662 = vmatpush2.bf16.msra.mxu0 %v4374
      %4663 = vmatprep.subr.bf16.mxu0 %v4371
      %4664 = vmatpush2.bf16.msra.mxu0 %v4370
      %4665 = vmatprep.subr.bf16.mxu0 %v4367
      %4666 = vmatpush2.bf16.msra.mxu0 %v4366
      %4667 = vmatprep.subr.bf16.mxu0 %v4363
      %4668 = vmatpush2.bf16.msra.mxu0 %v4362
      %4669 = vmatprep.subr.bf16.mxu0 %v4359
      %4670 = vmatpush2.bf16.msra.mxu0 %v4358
      %4671 = vmatprep.subr.bf16.mxu0 %v4355
      %4672 = vmatpush2.bf16.msra.mxu0 %v4354
      %4673 = vmatprep.mubr.bf16.mxu0 %v3867
      %4674 = vmatmul.mubr.bf16.gmra.mxu0 %v3866
      %v4675 = vpop.f32.mrf.mxu0
      %v4676 = vadd.f32 %v4633, %v4675
      %v4677 = vpop.f32.mrf.mxu0
      %v4678 = vadd.f32 %v4635, %v4677
      %v4679 = vpop.f32.mrf.mxu0
      %v4680 = vadd.f32 %v4637, %v4679
      %v4681 = vpop.f32.mrf.mxu0
      %v4682 = vadd.f32 %v4639, %v4681
      %4683 = vdwg.mxu0
      %v4684 = vadd.f32 %v3637, %v4590
      %v4685 = vadd.f32 %v3639, %v4592
      %v4686 = vadd.f32 %v3723, %v4676
      %v4687 = vadd.f32 %v3725, %v4678
      %v4688 = vadd.f32 %v3641, %v4594
      %v4689 = vadd.f32 %v3643, %v4596
      %v4690 = vadd.f32 %v3727, %v4680
      %v4691 = vadd.f32 %v3729, %v4682
      %s4692 = scalar_lea.vmem %s3, 3072
      %v4693 = vld [vmem:[%s4692] sm:$0xff]
      %v4694 = vld [vmem:[%s4692 + $0x8] sm:$0xff]
      %v4695 = vld [vmem:[%s4692 + $0x10] sm:$0xff]
      %v4696 = vld [vmem:[%s4692 + $0x18] sm:$0xff]
      %v4697 = vld [vmem:[%s4692 + $0x20] sm:$0xff]
      %v4698 = vld [vmem:[%s4692 + $0x28] sm:$0xff]
      %v4699 = vld [vmem:[%s4692 + $0x30] sm:$0xff]
      %v4700 = vld [vmem:[%s4692 + $0x38] sm:$0xff]
      %v4701 = vld [vmem:[%s4692 + $0x40] sm:$0xff]
      %v4702 = vld [vmem:[%s4692 + $0x48] sm:$0xff]
      %v4703 = vld [vmem:[%s4692 + $0x50] sm:$0xff]
      %v4704 = vld [vmem:[%s4692 + $0x58] sm:$0xff]
      %v4705 = vld [vmem:[%s4692 + $0x60] sm:$0xff]
      %v4706 = vld [vmem:[%s4692 + $0x68] sm:$0xff]
      %v4707 = vld [vmem:[%s4692 + $0x70] sm:$0xff]
      %v4708 = vld [vmem:[%s4692 + $0x78] sm:$0xff]
      %v4709 = vld [vmem:[%s4692 + $0x80] sm:$0xff]
      %v4710 = vld [vmem:[%s4692 + $0x88] sm:$0xff]
      %v4711 = vld [vmem:[%s4692 + $0x90] sm:$0xff]
      %v4712 = vld [vmem:[%s4692 + $0x98] sm:$0xff]
      %v4713 = vld [vmem:[%s4692 + $0xa0] sm:$0xff]
      %v4714 = vld [vmem:[%s4692 + $0xa8] sm:$0xff]
      %v4715 = vld [vmem:[%s4692 + $0xb0] sm:$0xff]
      %v4716 = vld [vmem:[%s4692 + $0xb8] sm:$0xff]
      %v4717 = vld [vmem:[%s4692 + $0xc0] sm:$0xff]
      %v4718 = vld [vmem:[%s4692 + $0xc8] sm:$0xff]
      %v4719 = vld [vmem:[%s4692 + $0xd0] sm:$0xff]
      %v4720 = vld [vmem:[%s4692 + $0xd8] sm:$0xff]
      %v4721 = vld [vmem:[%s4692 + $0xe0] sm:$0xff]
      %v4722 = vld [vmem:[%s4692 + $0xe8] sm:$0xff]
      %v4723 = vld [vmem:[%s4692 + $0xf0] sm:$0xff]
      %v4724 = vld [vmem:[%s4692 + $0xf8] sm:$0xff]
      %v4725 = vld [vmem:[%s4692 + $0x100] sm:$0xff]
      %v4726 = vld [vmem:[%s4692 + $0x108] sm:$0xff]
      %v4727 = vld [vmem:[%s4692 + $0x110] sm:$0xff]
      %v4728 = vld [vmem:[%s4692 + $0x118] sm:$0xff]
      %v4729 = vld [vmem:[%s4692 + $0x120] sm:$0xff]
      %v4730 = vld [vmem:[%s4692 + $0x128] sm:$0xff]
      %v4731 = vld [vmem:[%s4692 + $0x130] sm:$0xff]
      %v4732 = vld [vmem:[%s4692 + $0x138] sm:$0xff]
      %v4733 = vld [vmem:[%s4692 + $0x140] sm:$0xff]
      %v4734 = vld [vmem:[%s4692 + $0x148] sm:$0xff]
      %v4735 = vld [vmem:[%s4692 + $0x150] sm:$0xff]
      %v4736 = vld [vmem:[%s4692 + $0x158] sm:$0xff]
      %v4737 = vld [vmem:[%s4692 + $0x160] sm:$0xff]
      %v4738 = vld [vmem:[%s4692 + $0x168] sm:$0xff]
      %v4739 = vld [vmem:[%s4692 + $0x170] sm:$0xff]
      %v4740 = vld [vmem:[%s4692 + $0x178] sm:$0xff]
      %v4741 = vld [vmem:[%s4692 + $0x180] sm:$0xff]
      %v4742 = vld [vmem:[%s4692 + $0x188] sm:$0xff]
      %v4743 = vld [vmem:[%s4692 + $0x190] sm:$0xff]
      %v4744 = vld [vmem:[%s4692 + $0x198] sm:$0xff]
      %v4745 = vld [vmem:[%s4692 + $0x1a0] sm:$0xff]
      %v4746 = vld [vmem:[%s4692 + $0x1a8] sm:$0xff]
      %v4747 = vld [vmem:[%s4692 + $0x1b0] sm:$0xff]
      %v4748 = vld [vmem:[%s4692 + $0x1b8] sm:$0xff]
      %v4749 = vld [vmem:[%s4692 + $0x1c0] sm:$0xff]
      %v4750 = vld [vmem:[%s4692 + $0x1c8] sm:$0xff]
      %v4751 = vld [vmem:[%s4692 + $0x1d0] sm:$0xff]
      %v4752 = vld [vmem:[%s4692 + $0x1d8] sm:$0xff]
      %v4753 = vld [vmem:[%s4692 + $0x1e0] sm:$0xff]
      %v4754 = vld [vmem:[%s4692 + $0x1e8] sm:$0xff]
      %v4755 = vld [vmem:[%s4692 + $0x1f0] sm:$0xff]
      %v4756 = vld [vmem:[%s4692 + $0x1f8] sm:$0xff]
      %v4757 = vld [vmem:[%s4692 + $0x200] sm:$0xff]
      %v4758 = vld [vmem:[%s4692 + $0x208] sm:$0xff]
      %v4759 = vld [vmem:[%s4692 + $0x210] sm:$0xff]
      %v4760 = vld [vmem:[%s4692 + $0x218] sm:$0xff]
      %v4761 = vld [vmem:[%s4692 + $0x220] sm:$0xff]
      %v4762 = vld [vmem:[%s4692 + $0x228] sm:$0xff]
      %v4763 = vld [vmem:[%s4692 + $0x230] sm:$0xff]
      %v4764 = vld [vmem:[%s4692 + $0x238] sm:$0xff]
      %v4765 = vld [vmem:[%s4692 + $0x240] sm:$0xff]
      %v4766 = vld [vmem:[%s4692 + $0x248] sm:$0xff]
      %v4767 = vld [vmem:[%s4692 + $0x250] sm:$0xff]
      %v4768 = vld [vmem:[%s4692 + $0x258] sm:$0xff]
      %v4769 = vld [vmem:[%s4692 + $0x260] sm:$0xff]
      %v4770 = vld [vmem:[%s4692 + $0x268] sm:$0xff]
      %v4771 = vld [vmem:[%s4692 + $0x270] sm:$0xff]
      %v4772 = vld [vmem:[%s4692 + $0x278] sm:$0xff]
      %v4773 = vld [vmem:[%s4692 + $0x280] sm:$0xff]
      %v4774 = vld [vmem:[%s4692 + $0x288] sm:$0xff]
      %v4775 = vld [vmem:[%s4692 + $0x290] sm:$0xff]
      %v4776 = vld [vmem:[%s4692 + $0x298] sm:$0xff]
      %v4777 = vld [vmem:[%s4692 + $0x2a0] sm:$0xff]
      %v4778 = vld [vmem:[%s4692 + $0x2a8] sm:$0xff]
      %v4779 = vld [vmem:[%s4692 + $0x2b0] sm:$0xff]
      %v4780 = vld [vmem:[%s4692 + $0x2b8] sm:$0xff]
      %v4781 = vld [vmem:[%s4692 + $0x2c0] sm:$0xff]
      %v4782 = vld [vmem:[%s4692 + $0x2c8] sm:$0xff]
      %v4783 = vld [vmem:[%s4692 + $0x2d0] sm:$0xff]
      %v4784 = vld [vmem:[%s4692 + $0x2d8] sm:$0xff]
      %v4785 = vld [vmem:[%s4692 + $0x2e0] sm:$0xff]
      %v4786 = vld [vmem:[%s4692 + $0x2e8] sm:$0xff]
      %v4787 = vld [vmem:[%s4692 + $0x2f0] sm:$0xff]
      %v4788 = vld [vmem:[%s4692 + $0x2f8] sm:$0xff]
      %v4789 = vld [vmem:[%s4692 + $0x300] sm:$0xff]
      %v4790 = vld [vmem:[%s4692 + $0x308] sm:$0xff]
      %v4791 = vld [vmem:[%s4692 + $0x310] sm:$0xff]
      %v4792 = vld [vmem:[%s4692 + $0x318] sm:$0xff]
      %v4793 = vld [vmem:[%s4692 + $0x320] sm:$0xff]
      %v4794 = vld [vmem:[%s4692 + $0x328] sm:$0xff]
      %v4795 = vld [vmem:[%s4692 + $0x330] sm:$0xff]
      %v4796 = vld [vmem:[%s4692 + $0x338] sm:$0xff]
      %v4797 = vld [vmem:[%s4692 + $0x340] sm:$0xff]
      %v4798 = vld [vmem:[%s4692 + $0x348] sm:$0xff]
      %v4799 = vld [vmem:[%s4692 + $0x350] sm:$0xff]
      %v4800 = vld [vmem:[%s4692 + $0x358] sm:$0xff]
      %v4801 = vld [vmem:[%s4692 + $0x360] sm:$0xff]
      %v4802 = vld [vmem:[%s4692 + $0x368] sm:$0xff]
      %v4803 = vld [vmem:[%s4692 + $0x370] sm:$0xff]
      %v4804 = vld [vmem:[%s4692 + $0x378] sm:$0xff]
      %v4805 = vld [vmem:[%s4692 + $0x380] sm:$0xff]
      %v4806 = vld [vmem:[%s4692 + $0x388] sm:$0xff]
      %v4807 = vld [vmem:[%s4692 + $0x390] sm:$0xff]
      %v4808 = vld [vmem:[%s4692 + $0x398] sm:$0xff]
      %v4809 = vld [vmem:[%s4692 + $0x3a0] sm:$0xff]
      %v4810 = vld [vmem:[%s4692 + $0x3a8] sm:$0xff]
      %v4811 = vld [vmem:[%s4692 + $0x3b0] sm:$0xff]
      %v4812 = vld [vmem:[%s4692 + $0x3b8] sm:$0xff]
      %v4813 = vld [vmem:[%s4692 + $0x3c0] sm:$0xff]
      %v4814 = vld [vmem:[%s4692 + $0x3c8] sm:$0xff]
      %v4815 = vld [vmem:[%s4692 + $0x3d0] sm:$0xff]
      %v4816 = vld [vmem:[%s4692 + $0x3d8] sm:$0xff]
      %v4817 = vld [vmem:[%s4692 + $0x3e0] sm:$0xff]
      %v4818 = vld [vmem:[%s4692 + $0x3e8] sm:$0xff]
      %v4819 = vld [vmem:[%s4692 + $0x3f0] sm:$0xff]
      %v4820 = vld [vmem:[%s4692 + $0x3f8] sm:$0xff]
      %s4821 = scalar_lea.vmem %s3, 4096
      %v4822 = vld [vmem:[%s4821] sm:$0xff]
      %v4823 = vld [vmem:[%s4821 + $0x8] sm:$0xff]
      %v4824 = vld [vmem:[%s4821 + $0x10] sm:$0xff]
      %v4825 = vld [vmem:[%s4821 + $0x18] sm:$0xff]
      %v4826 = vld [vmem:[%s4821 + $0x20] sm:$0xff]
      %v4827 = vld [vmem:[%s4821 + $0x28] sm:$0xff]
      %v4828 = vld [vmem:[%s4821 + $0x30] sm:$0xff]
      %v4829 = vld [vmem:[%s4821 + $0x38] sm:$0xff]
      %v4830 = vld [vmem:[%s4821 + $0x40] sm:$0xff]
      %v4831 = vld [vmem:[%s4821 + $0x48] sm:$0xff]
      %v4832 = vld [vmem:[%s4821 + $0x50] sm:$0xff]
      %v4833 = vld [vmem:[%s4821 + $0x58] sm:$0xff]
      %v4834 = vld [vmem:[%s4821 + $0x60] sm:$0xff]
      %v4835 = vld [vmem:[%s4821 + $0x68] sm:$0xff]
      %v4836 = vld [vmem:[%s4821 + $0x70] sm:$0xff]
      %v4837 = vld [vmem:[%s4821 + $0x78] sm:$0xff]
      %v4838 = vld [vmem:[%s4821 + $0x80] sm:$0xff]
      %v4839 = vld [vmem:[%s4821 + $0x88] sm:$0xff]
      %v4840 = vld [vmem:[%s4821 + $0x90] sm:$0xff]
      %v4841 = vld [vmem:[%s4821 + $0x98] sm:$0xff]
      %v4842 = vld [vmem:[%s4821 + $0xa0] sm:$0xff]
      %v4843 = vld [vmem:[%s4821 + $0xa8] sm:$0xff]
      %v4844 = vld [vmem:[%s4821 + $0xb0] sm:$0xff]
      %v4845 = vld [vmem:[%s4821 + $0xb8] sm:$0xff]
      %v4846 = vld [vmem:[%s4821 + $0xc0] sm:$0xff]
      %v4847 = vld [vmem:[%s4821 + $0xc8] sm:$0xff]
      %v4848 = vld [vmem:[%s4821 + $0xd0] sm:$0xff]
      %v4849 = vld [vmem:[%s4821 + $0xd8] sm:$0xff]
      %v4850 = vld [vmem:[%s4821 + $0xe0] sm:$0xff]
      %v4851 = vld [vmem:[%s4821 + $0xe8] sm:$0xff]
      %v4852 = vld [vmem:[%s4821 + $0xf0] sm:$0xff]
      %v4853 = vld [vmem:[%s4821 + $0xf8] sm:$0xff]
      %v4854 = vld [vmem:[%s4821 + $0x100] sm:$0xff]
      %v4855 = vld [vmem:[%s4821 + $0x108] sm:$0xff]
      %v4856 = vld [vmem:[%s4821 + $0x110] sm:$0xff]
      %v4857 = vld [vmem:[%s4821 + $0x118] sm:$0xff]
      %v4858 = vld [vmem:[%s4821 + $0x120] sm:$0xff]
      %v4859 = vld [vmem:[%s4821 + $0x128] sm:$0xff]
      %v4860 = vld [vmem:[%s4821 + $0x130] sm:$0xff]
      %v4861 = vld [vmem:[%s4821 + $0x138] sm:$0xff]
      %v4862 = vld [vmem:[%s4821 + $0x140] sm:$0xff]
      %v4863 = vld [vmem:[%s4821 + $0x148] sm:$0xff]
      %v4864 = vld [vmem:[%s4821 + $0x150] sm:$0xff]
      %v4865 = vld [vmem:[%s4821 + $0x158] sm:$0xff]
      %v4866 = vld [vmem:[%s4821 + $0x160] sm:$0xff]
      %v4867 = vld [vmem:[%s4821 + $0x168] sm:$0xff]
      %v4868 = vld [vmem:[%s4821 + $0x170] sm:$0xff]
      %v4869 = vld [vmem:[%s4821 + $0x178] sm:$0xff]
      %v4870 = vld [vmem:[%s4821 + $0x180] sm:$0xff]
      %v4871 = vld [vmem:[%s4821 + $0x188] sm:$0xff]
      %v4872 = vld [vmem:[%s4821 + $0x190] sm:$0xff]
      %v4873 = vld [vmem:[%s4821 + $0x198] sm:$0xff]
      %v4874 = vld [vmem:[%s4821 + $0x1a0] sm:$0xff]
      %v4875 = vld [vmem:[%s4821 + $0x1a8] sm:$0xff]
      %v4876 = vld [vmem:[%s4821 + $0x1b0] sm:$0xff]
      %v4877 = vld [vmem:[%s4821 + $0x1b8] sm:$0xff]
      %v4878 = vld [vmem:[%s4821 + $0x1c0] sm:$0xff]
      %v4879 = vld [vmem:[%s4821 + $0x1c8] sm:$0xff]
      %v4880 = vld [vmem:[%s4821 + $0x1d0] sm:$0xff]
      %v4881 = vld [vmem:[%s4821 + $0x1d8] sm:$0xff]
      %v4882 = vld [vmem:[%s4821 + $0x1e0] sm:$0xff]
      %v4883 = vld [vmem:[%s4821 + $0x1e8] sm:$0xff]
      %v4884 = vld [vmem:[%s4821 + $0x1f0] sm:$0xff]
      %v4885 = vld [vmem:[%s4821 + $0x1f8] sm:$0xff]
      %v4886 = vld [vmem:[%s4821 + $0x200] sm:$0xff]
      %v4887 = vld [vmem:[%s4821 + $0x208] sm:$0xff]
      %v4888 = vld [vmem:[%s4821 + $0x210] sm:$0xff]
      %v4889 = vld [vmem:[%s4821 + $0x218] sm:$0xff]
      %v4890 = vld [vmem:[%s4821 + $0x220] sm:$0xff]
      %v4891 = vld [vmem:[%s4821 + $0x228] sm:$0xff]
      %v4892 = vld [vmem:[%s4821 + $0x230] sm:$0xff]
      %v4893 = vld [vmem:[%s4821 + $0x238] sm:$0xff]
      %v4894 = vld [vmem:[%s4821 + $0x240] sm:$0xff]
      %v4895 = vld [vmem:[%s4821 + $0x248] sm:$0xff]
      %v4896 = vld [vmem:[%s4821 + $0x250] sm:$0xff]
      %v4897 = vld [vmem:[%s4821 + $0x258] sm:$0xff]
      %v4898 = vld [vmem:[%s4821 + $0x260] sm:$0xff]
      %v4899 = vld [vmem:[%s4821 + $0x268] sm:$0xff]
      %v4900 = vld [vmem:[%s4821 + $0x270] sm:$0xff]
      %v4901 = vld [vmem:[%s4821 + $0x278] sm:$0xff]
      %v4902 = vld [vmem:[%s4821 + $0x280] sm:$0xff]
      %v4903 = vld [vmem:[%s4821 + $0x288] sm:$0xff]
      %v4904 = vld [vmem:[%s4821 + $0x290] sm:$0xff]
      %v4905 = vld [vmem:[%s4821 + $0x298] sm:$0xff]
      %v4906 = vld [vmem:[%s4821 + $0x2a0] sm:$0xff]
      %v4907 = vld [vmem:[%s4821 + $0x2a8] sm:$0xff]
      %v4908 = vld [vmem:[%s4821 + $0x2b0] sm:$0xff]
      %v4909 = vld [vmem:[%s4821 + $0x2b8] sm:$0xff]
      %v4910 = vld [vmem:[%s4821 + $0x2c0] sm:$0xff]
      %v4911 = vld [vmem:[%s4821 + $0x2c8] sm:$0xff]
      %v4912 = vld [vmem:[%s4821 + $0x2d0] sm:$0xff]
      %v4913 = vld [vmem:[%s4821 + $0x2d8] sm:$0xff]
      %v4914 = vld [vmem:[%s4821 + $0x2e0] sm:$0xff]
      %v4915 = vld [vmem:[%s4821 + $0x2e8] sm:$0xff]
      %v4916 = vld [vmem:[%s4821 + $0x2f0] sm:$0xff]
      %v4917 = vld [vmem:[%s4821 + $0x2f8] sm:$0xff]
      %v4918 = vld [vmem:[%s4821 + $0x300] sm:$0xff]
      %v4919 = vld [vmem:[%s4821 + $0x308] sm:$0xff]
      %v4920 = vld [vmem:[%s4821 + $0x310] sm:$0xff]
      %v4921 = vld [vmem:[%s4821 + $0x318] sm:$0xff]
      %v4922 = vld [vmem:[%s4821 + $0x320] sm:$0xff]
      %v4923 = vld [vmem:[%s4821 + $0x328] sm:$0xff]
      %v4924 = vld [vmem:[%s4821 + $0x330] sm:$0xff]
      %v4925 = vld [vmem:[%s4821 + $0x338] sm:$0xff]
      %v4926 = vld [vmem:[%s4821 + $0x340] sm:$0xff]
      %v4927 = vld [vmem:[%s4821 + $0x348] sm:$0xff]
      %v4928 = vld [vmem:[%s4821 + $0x350] sm:$0xff]
      %v4929 = vld [vmem:[%s4821 + $0x358] sm:$0xff]
      %v4930 = vld [vmem:[%s4821 + $0x360] sm:$0xff]
      %v4931 = vld [vmem:[%s4821 + $0x368] sm:$0xff]
      %v4932 = vld [vmem:[%s4821 + $0x370] sm:$0xff]
      %v4933 = vld [vmem:[%s4821 + $0x378] sm:$0xff]
      %v4934 = vld [vmem:[%s4821 + $0x380] sm:$0xff]
      %v4935 = vld [vmem:[%s4821 + $0x388] sm:$0xff]
      %v4936 = vld [vmem:[%s4821 + $0x390] sm:$0xff]
      %v4937 = vld [vmem:[%s4821 + $0x398] sm:$0xff]
      %v4938 = vld [vmem:[%s4821 + $0x3a0] sm:$0xff]
      %v4939 = vld [vmem:[%s4821 + $0x3a8] sm:$0xff]
      %v4940 = vld [vmem:[%s4821 + $0x3b0] sm:$0xff]
      %v4941 = vld [vmem:[%s4821 + $0x3b8] sm:$0xff]
      %v4942 = vld [vmem:[%s4821 + $0x3c0] sm:$0xff]
      %v4943 = vld [vmem:[%s4821 + $0x3c8] sm:$0xff]
      %v4944 = vld [vmem:[%s4821 + $0x3d0] sm:$0xff]
      %v4945 = vld [vmem:[%s4821 + $0x3d8] sm:$0xff]
      %v4946 = vld [vmem:[%s4821 + $0x3e0] sm:$0xff]
      %v4947 = vld [vmem:[%s4821 + $0x3e8] sm:$0xff]
      %v4948 = vld [vmem:[%s4821 + $0x3f0] sm:$0xff]
      %v4949 = vld [vmem:[%s4821 + $0x3f8] sm:$0xff]
      %v5078 = vunpack.c.l.b16 %v4822
      %v5079 = vunpack.c.h.b16 %v4822
      %v5080 = vunpack.c.l.b16 %v4823
      %v5081 = vunpack.c.h.b16 %v4823
      %v5082 = vunpack.c.l.b16 %v4824
      %v5083 = vunpack.c.h.b16 %v4824
      %v5084 = vunpack.c.l.b16 %v4825
      %v5085 = vunpack.c.h.b16 %v4825
      %v5086 = vunpack.c.l.b16 %v4826
      %v5087 = vunpack.c.h.b16 %v4826
      %v5088 = vunpack.c.l.b16 %v4827
      %v5089 = vunpack.c.h.b16 %v4827
      %v5090 = vunpack.c.l.b16 %v4828
      %v5091 = vunpack.c.h.b16 %v4828
      %v5092 = vunpack.c.l.b16 %v4829
      %v5093 = vunpack.c.h.b16 %v4829
      %v5094 = vunpack.c.l.b16 %v4830
      %v5095 = vunpack.c.h.b16 %v4830
      %v5096 = vunpack.c.l.b16 %v4831
      %v5097 = vunpack.c.h.b16 %v4831
      %v5098 = vunpack.c.l.b16 %v4832
      %v5099 = vunpack.c.h.b16 %v4832
      %v5100 = vunpack.c.l.b16 %v4833
      %v5101 = vunpack.c.h.b16 %v4833
      %v5102 = vunpack.c.l.b16 %v4834
      %v5103 = vunpack.c.h.b16 %v4834
      %v5104 = vunpack.c.l.b16 %v4835
      %v5105 = vunpack.c.h.b16 %v4835
      %v5106 = vunpack.c.l.b16 %v4836
      %v5107 = vunpack.c.h.b16 %v4836
      %v5108 = vunpack.c.l.b16 %v4837
      %v5109 = vunpack.c.h.b16 %v4837
      %v5110 = vunpack.c.l.b16 %v4838
      %v5111 = vunpack.c.h.b16 %v4838
      %v5112 = vunpack.c.l.b16 %v4839
      %v5113 = vunpack.c.h.b16 %v4839
      %v5114 = vunpack.c.l.b16 %v4840
      %v5115 = vunpack.c.h.b16 %v4840
      %v5116 = vunpack.c.l.b16 %v4841
      %v5117 = vunpack.c.h.b16 %v4841
      %v5118 = vunpack.c.l.b16 %v4842
      %v5119 = vunpack.c.h.b16 %v4842
      %v5120 = vunpack.c.l.b16 %v4843
      %v5121 = vunpack.c.h.b16 %v4843
      %v5122 = vunpack.c.l.b16 %v4844
      %v5123 = vunpack.c.h.b16 %v4844
      %v5124 = vunpack.c.l.b16 %v4845
      %v5125 = vunpack.c.h.b16 %v4845
      %v5126 = vunpack.c.l.b16 %v4846
      %v5127 = vunpack.c.h.b16 %v4846
      %v5128 = vunpack.c.l.b16 %v4847
      %v5129 = vunpack.c.h.b16 %v4847
      %v5130 = vunpack.c.l.b16 %v4848
      %v5131 = vunpack.c.h.b16 %v4848
      %v5132 = vunpack.c.l.b16 %v4849
      %v5133 = vunpack.c.h.b16 %v4849
      %v5134 = vunpack.c.l.b16 %v4850
      %v5135 = vunpack.c.h.b16 %v4850
      %v5136 = vunpack.c.l.b16 %v4851
      %v5137 = vunpack.c.h.b16 %v4851
      %v5138 = vunpack.c.l.b16 %v4852
      %v5139 = vunpack.c.h.b16 %v4852
      %v5140 = vunpack.c.l.b16 %v4853
      %v5141 = vunpack.c.h.b16 %v4853
      %v5142 = vunpack.c.l.b16 %v4854
      %v5143 = vunpack.c.h.b16 %v4854
      %v5144 = vunpack.c.l.b16 %v4855
      %v5145 = vunpack.c.h.b16 %v4855
      %v5146 = vunpack.c.l.b16 %v4856
      %v5147 = vunpack.c.h.b16 %v4856
      %v5148 = vunpack.c.l.b16 %v4857
      %v5149 = vunpack.c.h.b16 %v4857
      %v5150 = vunpack.c.l.b16 %v4858
      %v5151 = vunpack.c.h.b16 %v4858
      %v5152 = vunpack.c.l.b16 %v4859
      %v5153 = vunpack.c.h.b16 %v4859
      %v5154 = vunpack.c.l.b16 %v4860
      %v5155 = vunpack.c.h.b16 %v4860
      %v5156 = vunpack.c.l.b16 %v4861
      %v5157 = vunpack.c.h.b16 %v4861
      %v5158 = vunpack.c.l.b16 %v4862
      %v5159 = vunpack.c.h.b16 %v4862
      %v5160 = vunpack.c.l.b16 %v4863
      %v5161 = vunpack.c.h.b16 %v4863
      %v5162 = vunpack.c.l.b16 %v4864
      %v5163 = vunpack.c.h.b16 %v4864
      %v5164 = vunpack.c.l.b16 %v4865
      %v5165 = vunpack.c.h.b16 %v4865
      %v5166 = vunpack.c.l.b16 %v4866
      %v5167 = vunpack.c.h.b16 %v4866
      %v5168 = vunpack.c.l.b16 %v4867
      %v5169 = vunpack.c.h.b16 %v4867
      %v5170 = vunpack.c.l.b16 %v4868
      %v5171 = vunpack.c.h.b16 %v4868
      %v5172 = vunpack.c.l.b16 %v4869
      %v5173 = vunpack.c.h.b16 %v4869
      %v5174 = vunpack.c.l.b16 %v4870
      %v5175 = vunpack.c.h.b16 %v4870
      %v5176 = vunpack.c.l.b16 %v4871
      %v5177 = vunpack.c.h.b16 %v4871
      %v5178 = vunpack.c.l.b16 %v4872
      %v5179 = vunpack.c.h.b16 %v4872
      %v5180 = vunpack.c.l.b16 %v4873
      %v5181 = vunpack.c.h.b16 %v4873
      %v5182 = vunpack.c.l.b16 %v4874
      %v5183 = vunpack.c.h.b16 %v4874
      %v5184 = vunpack.c.l.b16 %v4875
      %v5185 = vunpack.c.h.b16 %v4875
      %v5186 = vunpack.c.l.b16 %v4876
      %v5187 = vunpack.c.h.b16 %v4876
      %v5188 = vunpack.c.l.b16 %v4877
      %v5189 = vunpack.c.h.b16 %v4877
      %v5190 = vunpack.c.l.b16 %v4878
      %v5191 = vunpack.c.h.b16 %v4878
      %v5192 = vunpack.c.l.b16 %v4879
      %v5193 = vunpack.c.h.b16 %v4879
      %v5194 = vunpack.c.l.b16 %v4880
      %v5195 = vunpack.c.h.b16 %v4880
      %v5196 = vunpack.c.l.b16 %v4881
      %v5197 = vunpack.c.h.b16 %v4881
      %v5198 = vunpack.c.l.b16 %v4882
      %v5199 = vunpack.c.h.b16 %v4882
      %v5200 = vunpack.c.l.b16 %v4883
      %v5201 = vunpack.c.h.b16 %v4883
      %v5202 = vunpack.c.l.b16 %v4884
      %v5203 = vunpack.c.h.b16 %v4884
      %v5204 = vunpack.c.l.b16 %v4885
      %v5205 = vunpack.c.h.b16 %v4885
      %v5206 = vunpack.c.l.b16 %v4886
      %v5207 = vunpack.c.h.b16 %v4886
      %v5208 = vunpack.c.l.b16 %v4887
      %v5209 = vunpack.c.h.b16 %v4887
      %v5210 = vunpack.c.l.b16 %v4888
      %v5211 = vunpack.c.h.b16 %v4888
      %v5212 = vunpack.c.l.b16 %v4889
      %v5213 = vunpack.c.h.b16 %v4889
      %v5214 = vunpack.c.l.b16 %v4890
      %v5215 = vunpack.c.h.b16 %v4890
      %v5216 = vunpack.c.l.b16 %v4891
      %v5217 = vunpack.c.h.b16 %v4891
      %v5218 = vunpack.c.l.b16 %v4892
      %v5219 = vunpack.c.h.b16 %v4892
      %v5220 = vunpack.c.l.b16 %v4893
      %v5221 = vunpack.c.h.b16 %v4893
      %v5222 = vunpack.c.l.b16 %v4894
      %v5223 = vunpack.c.h.b16 %v4894
      %v5224 = vunpack.c.l.b16 %v4895
      %v5225 = vunpack.c.h.b16 %v4895
      %v5226 = vunpack.c.l.b16 %v4896
      %v5227 = vunpack.c.h.b16 %v4896
      %v5228 = vunpack.c.l.b16 %v4897
      %v5229 = vunpack.c.h.b16 %v4897
      %v5230 = vunpack.c.l.b16 %v4898
      %v5231 = vunpack.c.h.b16 %v4898
      %v5232 = vunpack.c.l.b16 %v4899
      %v5233 = vunpack.c.h.b16 %v4899
      %v5234 = vunpack.c.l.b16 %v4900
      %v5235 = vunpack.c.h.b16 %v4900
      %v5236 = vunpack.c.l.b16 %v4901
      %v5237 = vunpack.c.h.b16 %v4901
      %v5238 = vunpack.c.l.b16 %v4902
      %v5239 = vunpack.c.h.b16 %v4902
      %v5240 = vunpack.c.l.b16 %v4903
      %v5241 = vunpack.c.h.b16 %v4903
      %v5242 = vunpack.c.l.b16 %v4904
      %v5243 = vunpack.c.h.b16 %v4904
      %v5244 = vunpack.c.l.b16 %v4905
      %v5245 = vunpack.c.h.b16 %v4905
      %v5246 = vunpack.c.l.b16 %v4906
      %v5247 = vunpack.c.h.b16 %v4906
      %v5248 = vunpack.c.l.b16 %v4907
      %v5249 = vunpack.c.h.b16 %v4907
      %v5250 = vunpack.c.l.b16 %v4908
      %v5251 = vunpack.c.h.b16 %v4908
      %v5252 = vunpack.c.l.b16 %v4909
      %v5253 = vunpack.c.h.b16 %v4909
      %v5254 = vunpack.c.l.b16 %v4910
      %v5255 = vunpack.c.h.b16 %v4910
      %v5256 = vunpack.c.l.b16 %v4911
      %v5257 = vunpack.c.h.b16 %v4911
      %v5258 = vunpack.c.l.b16 %v4912
      %v5259 = vunpack.c.h.b16 %v4912
      %v5260 = vunpack.c.l.b16 %v4913
      %v5261 = vunpack.c.h.b16 %v4913
      %v5262 = vunpack.c.l.b16 %v4914
      %v5263 = vunpack.c.h.b16 %v4914
      %v5264 = vunpack.c.l.b16 %v4915
      %v5265 = vunpack.c.h.b16 %v4915
      %v5266 = vunpack.c.l.b16 %v4916
      %v5267 = vunpack.c.h.b16 %v4916
      %v5268 = vunpack.c.l.b16 %v4917
      %v5269 = vunpack.c.h.b16 %v4917
      %v5270 = vunpack.c.l.b16 %v4918
      %v5271 = vunpack.c.h.b16 %v4918
      %v5272 = vunpack.c.l.b16 %v4919
      %v5273 = vunpack.c.h.b16 %v4919
      %v5274 = vunpack.c.l.b16 %v4920
      %v5275 = vunpack.c.h.b16 %v4920
      %v5276 = vunpack.c.l.b16 %v4921
      %v5277 = vunpack.c.h.b16 %v4921
      %v5278 = vunpack.c.l.b16 %v4922
      %v5279 = vunpack.c.h.b16 %v4922
      %v5280 = vunpack.c.l.b16 %v4923
      %v5281 = vunpack.c.h.b16 %v4923
      %v5282 = vunpack.c.l.b16 %v4924
      %v5283 = vunpack.c.h.b16 %v4924
      %v5284 = vunpack.c.l.b16 %v4925
      %v5285 = vunpack.c.h.b16 %v4925
      %v5286 = vunpack.c.l.b16 %v4926
      %v5287 = vunpack.c.h.b16 %v4926
      %v5288 = vunpack.c.l.b16 %v4927
      %v5289 = vunpack.c.h.b16 %v4927
      %v5290 = vunpack.c.l.b16 %v4928
      %v5291 = vunpack.c.h.b16 %v4928
      %v5292 = vunpack.c.l.b16 %v4929
      %v5293 = vunpack.c.h.b16 %v4929
      %v5294 = vunpack.c.l.b16 %v4930
      %v5295 = vunpack.c.h.b16 %v4930
      %v5296 = vunpack.c.l.b16 %v4931
      %v5297 = vunpack.c.h.b16 %v4931
      %v5298 = vunpack.c.l.b16 %v4932
      %v5299 = vunpack.c.h.b16 %v4932
      %v5300 = vunpack.c.l.b16 %v4933
      %v5301 = vunpack.c.h.b16 %v4933
      %v5302 = vunpack.c.l.b16 %v4934
      %v5303 = vunpack.c.h.b16 %v4934
      %v5304 = vunpack.c.l.b16 %v4935
      %v5305 = vunpack.c.h.b16 %v4935
      %v5306 = vunpack.c.l.b16 %v4936
      %v5307 = vunpack.c.h.b16 %v4936
      %v5308 = vunpack.c.l.b16 %v4937
      %v5309 = vunpack.c.h.b16 %v4937
      %v5310 = vunpack.c.l.b16 %v4938
      %v5311 = vunpack.c.h.b16 %v4938
      %v5312 = vunpack.c.l.b16 %v4939
      %v5313 = vunpack.c.h.b16 %v4939
      %v5314 = vunpack.c.l.b16 %v4940
      %v5315 = vunpack.c.h.b16 %v4940
      %v5316 = vunpack.c.l.b16 %v4941
      %v5317 = vunpack.c.h.b16 %v4941
      %v5318 = vunpack.c.l.b16 %v4942
      %v5319 = vunpack.c.h.b16 %v4942
      %v5320 = vunpack.c.l.b16 %v4943
      %v5321 = vunpack.c.h.b16 %v4943
      %v5322 = vunpack.c.l.b16 %v4944
      %v5323 = vunpack.c.h.b16 %v4944
      %v5324 = vunpack.c.l.b16 %v4945
      %v5325 = vunpack.c.h.b16 %v4945
      %v5326 = vunpack.c.l.b16 %v4946
      %v5327 = vunpack.c.h.b16 %v4946
      %v5328 = vunpack.c.l.b16 %v4947
      %v5329 = vunpack.c.h.b16 %v4947
      %v5330 = vunpack.c.l.b16 %v4948
      %v5331 = vunpack.c.h.b16 %v4948
      %v5332 = vunpack.c.l.b16 %v4949
      %v5333 = vunpack.c.h.b16 %v4949
      %v5334 = vpack.c.b16 %v5082, %v5078
      %v5335 = vpack.c.b16 %v5083, %v5079
      %v5336 = vpack.c.b16 %v5084, %v5080
      %v5337 = vpack.c.b16 %v5085, %v5081
      %v5338 = vpack.c.b16 %v5090, %v5086
      %v5339 = vpack.c.b16 %v5091, %v5087
      %v5340 = vpack.c.b16 %v5092, %v5088
      %v5341 = vpack.c.b16 %v5093, %v5089
      %v5342 = vpack.c.b16 %v5098, %v5094
      %v5343 = vpack.c.b16 %v5099, %v5095
      %v5344 = vpack.c.b16 %v5100, %v5096
      %v5345 = vpack.c.b16 %v5101, %v5097
      %v5346 = vpack.c.b16 %v5106, %v5102
      %v5347 = vpack.c.b16 %v5107, %v5103
      %v5348 = vpack.c.b16 %v5108, %v5104
      %v5349 = vpack.c.b16 %v5109, %v5105
      %v5350 = vpack.c.b16 %v5114, %v5110
      %v5351 = vpack.c.b16 %v5115, %v5111
      %v5352 = vpack.c.b16 %v5116, %v5112
      %v5353 = vpack.c.b16 %v5117, %v5113
      %v5354 = vpack.c.b16 %v5122, %v5118
      %v5355 = vpack.c.b16 %v5123, %v5119
      %v5356 = vpack.c.b16 %v5124, %v5120
      %v5357 = vpack.c.b16 %v5125, %v5121
      %v5358 = vpack.c.b16 %v5130, %v5126
      %v5359 = vpack.c.b16 %v5131, %v5127
      %v5360 = vpack.c.b16 %v5132, %v5128
      %v5361 = vpack.c.b16 %v5133, %v5129
      %v5362 = vpack.c.b16 %v5138, %v5134
      %v5363 = vpack.c.b16 %v5139, %v5135
      %v5364 = vpack.c.b16 %v5140, %v5136
      %v5365 = vpack.c.b16 %v5141, %v5137
      %v5366 = vpack.c.b16 %v5146, %v5142
      %v5367 = vpack.c.b16 %v5147, %v5143
      %v5368 = vpack.c.b16 %v5148, %v5144
      %v5369 = vpack.c.b16 %v5149, %v5145
      %v5370 = vpack.c.b16 %v5154, %v5150
      %v5371 = vpack.c.b16 %v5155, %v5151
      %v5372 = vpack.c.b16 %v5156, %v5152
      %v5373 = vpack.c.b16 %v5157, %v5153
      %v5374 = vpack.c.b16 %v5162, %v5158
      %v5375 = vpack.c.b16 %v5163, %v5159
      %v5376 = vpack.c.b16 %v5164, %v5160
      %v5377 = vpack.c.b16 %v5165, %v5161
      %v5378 = vpack.c.b16 %v5170, %v5166
      %v5379 = vpack.c.b16 %v5171, %v5167
      %v5380 = vpack.c.b16 %v5172, %v5168
      %v5381 = vpack.c.b16 %v5173, %v5169
      %v5382 = vpack.c.b16 %v5178, %v5174
      %v5383 = vpack.c.b16 %v5179, %v5175
      %v5384 = vpack.c.b16 %v5180, %v5176
      %v5385 = vpack.c.b16 %v5181, %v5177
      %v5386 = vpack.c.b16 %v5186, %v5182
      %v5387 = vpack.c.b16 %v5187, %v5183
      %v5388 = vpack.c.b16 %v5188, %v5184
      %v5389 = vpack.c.b16 %v5189, %v5185
      %v5390 = vpack.c.b16 %v5194, %v5190
      %v5391 = vpack.c.b16 %v5195, %v5191
      %v5392 = vpack.c.b16 %v5196, %v5192
      %v5393 = vpack.c.b16 %v5197, %v5193
      %v5394 = vpack.c.b16 %v5202, %v5198
      %v5395 = vpack.c.b16 %v5203, %v5199
      %v5396 = vpack.c.b16 %v5204, %v5200
      %v5397 = vpack.c.b16 %v5205, %v5201
      %v5398 = vpack.c.b16 %v5210, %v5206
      %v5399 = vpack.c.b16 %v5211, %v5207
      %v5400 = vpack.c.b16 %v5212, %v5208
      %v5401 = vpack.c.b16 %v5213, %v5209
      %v5402 = vpack.c.b16 %v5218, %v5214
      %v5403 = vpack.c.b16 %v5219, %v5215
      %v5404 = vpack.c.b16 %v5220, %v5216
      %v5405 = vpack.c.b16 %v5221, %v5217
      %v5406 = vpack.c.b16 %v5226, %v5222
      %v5407 = vpack.c.b16 %v5227, %v5223
      %v5408 = vpack.c.b16 %v5228, %v5224
      %v5409 = vpack.c.b16 %v5229, %v5225
      %v5410 = vpack.c.b16 %v5234, %v5230
      %v5411 = vpack.c.b16 %v5235, %v5231
      %v5412 = vpack.c.b16 %v5236, %v5232
      %v5413 = vpack.c.b16 %v5237, %v5233
      %v5414 = vpack.c.b16 %v5242, %v5238
      %v5415 = vpack.c.b16 %v5243, %v5239
      %v5416 = vpack.c.b16 %v5244, %v5240
      %v5417 = vpack.c.b16 %v5245, %v5241
      %v5418 = vpack.c.b16 %v5250, %v5246
      %v5419 = vpack.c.b16 %v5251, %v5247
      %v5420 = vpack.c.b16 %v5252, %v5248
      %v5421 = vpack.c.b16 %v5253, %v5249
      %v5422 = vpack.c.b16 %v5258, %v5254
      %v5423 = vpack.c.b16 %v5259, %v5255
      %v5424 = vpack.c.b16 %v5260, %v5256
      %v5425 = vpack.c.b16 %v5261, %v5257
      %v5426 = vpack.c.b16 %v5266, %v5262
      %v5427 = vpack.c.b16 %v5267, %v5263
      %v5428 = vpack.c.b16 %v5268, %v5264
      %v5429 = vpack.c.b16 %v5269, %v5265
      %v5430 = vpack.c.b16 %v5274, %v5270
      %v5431 = vpack.c.b16 %v5275, %v5271
      %v5432 = vpack.c.b16 %v5276, %v5272
      %v5433 = vpack.c.b16 %v5277, %v5273
      %v5434 = vpack.c.b16 %v5282, %v5278
      %v5435 = vpack.c.b16 %v5283, %v5279
      %v5436 = vpack.c.b16 %v5284, %v5280
      %v5437 = vpack.c.b16 %v5285, %v5281
      %v5438 = vpack.c.b16 %v5290, %v5286
      %v5439 = vpack.c.b16 %v5291, %v5287
      %v5440 = vpack.c.b16 %v5292, %v5288
      %v5441 = vpack.c.b16 %v5293, %v5289
      %v5442 = vpack.c.b16 %v5298, %v5294
      %v5443 = vpack.c.b16 %v5299, %v5295
      %v5444 = vpack.c.b16 %v5300, %v5296
      %v5445 = vpack.c.b16 %v5301, %v5297
      %v5446 = vpack.c.b16 %v5306, %v5302
      %v5447 = vpack.c.b16 %v5307, %v5303
      %v5448 = vpack.c.b16 %v5308, %v5304
      %v5449 = vpack.c.b16 %v5309, %v5305
      %v5450 = vpack.c.b16 %v5314, %v5310
      %v5451 = vpack.c.b16 %v5315, %v5311
      %v5452 = vpack.c.b16 %v5316, %v5312
      %v5453 = vpack.c.b16 %v5317, %v5313
      %v5454 = vpack.c.b16 %v5322, %v5318
      %v5455 = vpack.c.b16 %v5323, %v5319
      %v5456 = vpack.c.b16 %v5324, %v5320
      %v5457 = vpack.c.b16 %v5325, %v5321
      %v5458 = vpack.c.b16 %v5330, %v5326
      %v5459 = vpack.c.b16 %v5331, %v5327
      %v5460 = vpack.c.b16 %v5332, %v5328
      %v5461 = vpack.c.b16 %v5333, %v5329
      %5590 = vmatprep.subr.bf16.mxu0 %v5363
      %5591 = vmatpush1.bf16.msra.mxu0 %v5362
      %5592 = vmatprep.subr.bf16.mxu0 %v5359
      %5593 = vmatpush1.bf16.msra.mxu0 %v5358
      %5594 = vmatprep.subr.bf16.mxu0 %v5355
      %5595 = vmatpush1.bf16.msra.mxu0 %v5354
      %5596 = vmatprep.subr.bf16.mxu0 %v5351
      %5597 = vmatpush1.bf16.msra.mxu0 %v5350
      %5598 = vmatprep.subr.bf16.mxu0 %v5347
      %5599 = vmatpush1.bf16.msra.mxu0 %v5346
      %5600 = vmatprep.subr.bf16.mxu0 %v5343
      %5601 = vmatpush1.bf16.msra.mxu0 %v5342
      %5602 = vmatprep.subr.bf16.mxu0 %v5339
      %5603 = vmatpush1.bf16.msra.mxu0 %v5338
      %5604 = vmatprep.subr.bf16.mxu0 %v5335
      %5605 = vmatpush1.bf16.msra.mxu0 %v5334
      %5606 = vmatprep.subr.bf16.mxu0 %v5395
      %5607 = vmatpush2.bf16.msra.mxu0 %v5394
      %5608 = vmatprep.subr.bf16.mxu0 %v5391
      %5609 = vmatpush2.bf16.msra.mxu0 %v5390
      %5610 = vmatprep.subr.bf16.mxu0 %v5387
      %5611 = vmatpush2.bf16.msra.mxu0 %v5386
      %5612 = vmatprep.subr.bf16.mxu0 %v5383
      %5613 = vmatpush2.bf16.msra.mxu0 %v5382
      %5614 = vmatprep.subr.bf16.mxu0 %v5379
      %5615 = vmatpush2.bf16.msra.mxu0 %v5378
      %5616 = vmatprep.subr.bf16.mxu0 %v5375
      %5617 = vmatpush2.bf16.msra.mxu0 %v5374
      %5618 = vmatprep.subr.bf16.mxu0 %v5371
      %5619 = vmatpush2.bf16.msra.mxu0 %v5370
      %5620 = vmatprep.subr.bf16.mxu0 %v5367
      %5621 = vmatpush2.bf16.msra.mxu0 %v5366
      %5622 = vmatprep.mubr.bf16.mxu0 %v2088
      %5623 = vmatmul.mubr.bf16.gmra.mxu0 %v2081
      %v5624 = vpop.f32.mrf.mxu0
      %v5625 = vadd.f32 0.0, %v5624
      %v5626 = vpop.f32.mrf.mxu0
      %v5627 = vadd.f32 0.0, %v5626
      %v5628 = vpop.f32.mrf.mxu0
      %v5629 = vadd.f32 0.0, %v5628
      %v5630 = vpop.f32.mrf.mxu0
      %v5631 = vadd.f32 0.0, %v5630
      %5632 = vdwg.mxu0
      %5633 = vmatprep.subr.bf16.mxu0 %v5427
      %5634 = vmatpush1.bf16.msra.mxu0 %v5426
      %5635 = vmatprep.subr.bf16.mxu0 %v5423
      %5636 = vmatpush1.bf16.msra.mxu0 %v5422
      %5637 = vmatprep.subr.bf16.mxu0 %v5419
      %5638 = vmatpush1.bf16.msra.mxu0 %v5418
      %5639 = vmatprep.subr.bf16.mxu0 %v5415
      %5640 = vmatpush1.bf16.msra.mxu0 %v5414
      %5641 = vmatprep.subr.bf16.mxu0 %v5411
      %5642 = vmatpush1.bf16.msra.mxu0 %v5410
      %5643 = vmatprep.subr.bf16.mxu0 %v5407
      %5644 = vmatpush1.bf16.msra.mxu0 %v5406
      %5645 = vmatprep.subr.bf16.mxu0 %v5403
      %5646 = vmatpush1.bf16.msra.mxu0 %v5402
      %5647 = vmatprep.subr.bf16.mxu0 %v5399
      %5648 = vmatpush1.bf16.msra.mxu0 %v5398
      %5649 = vmatprep.subr.bf16.mxu0 %v5459
      %5650 = vmatpush2.bf16.msra.mxu0 %v5458
      %5651 = vmatprep.subr.bf16.mxu0 %v5455
      %5652 = vmatpush2.bf16.msra.mxu0 %v5454
      %5653 = vmatprep.subr.bf16.mxu0 %v5451
      %5654 = vmatpush2.bf16.msra.mxu0 %v5450
      %5655 = vmatprep.subr.bf16.mxu0 %v5447
      %5656 = vmatpush2.bf16.msra.mxu0 %v5446
      %5657 = vmatprep.subr.bf16.mxu0 %v5443
      %5658 = vmatpush2.bf16.msra.mxu0 %v5442
      %5659 = vmatprep.subr.bf16.mxu0 %v5439
      %5660 = vmatpush2.bf16.msra.mxu0 %v5438
      %5661 = vmatprep.subr.bf16.mxu0 %v5435
      %5662 = vmatpush2.bf16.msra.mxu0 %v5434
      %5663 = vmatprep.subr.bf16.mxu0 %v5431
      %5664 = vmatpush2.bf16.msra.mxu0 %v5430
      %5665 = vmatprep.mubr.bf16.mxu0 %v2102
      %5666 = vmatmul.mubr.bf16.gmra.mxu0 %v2095
      %v5667 = vpop.f32.mrf.mxu0
      %v5668 = vadd.f32 %v5625, %v5667
      %v5669 = vpop.f32.mrf.mxu0
      %v5670 = vadd.f32 %v5627, %v5669
      %v5671 = vpop.f32.mrf.mxu0
      %v5672 = vadd.f32 %v5629, %v5671
      %v5673 = vpop.f32.mrf.mxu0
      %v5674 = vadd.f32 %v5631, %v5673
      %5675 = vdwg.mxu0
      %5676 = vmatprep.subr.bf16.mxu0 %v5365
      %5677 = vmatpush1.bf16.msra.mxu0 %v5364
      %5678 = vmatprep.subr.bf16.mxu0 %v5361
      %5679 = vmatpush1.bf16.msra.mxu0 %v5360
      %5680 = vmatprep.subr.bf16.mxu0 %v5357
      %5681 = vmatpush1.bf16.msra.mxu0 %v5356
      %5682 = vmatprep.subr.bf16.mxu0 %v5353
      %5683 = vmatpush1.bf16.msra.mxu0 %v5352
      %5684 = vmatprep.subr.bf16.mxu0 %v5349
      %5685 = vmatpush1.bf16.msra.mxu0 %v5348
      %5686 = vmatprep.subr.bf16.mxu0 %v5345
      %5687 = vmatpush1.bf16.msra.mxu0 %v5344
      %5688 = vmatprep.subr.bf16.mxu0 %v5341
      %5689 = vmatpush1.bf16.msra.mxu0 %v5340
      %5690 = vmatprep.subr.bf16.mxu0 %v5337
      %5691 = vmatpush1.bf16.msra.mxu0 %v5336
      %5692 = vmatprep.subr.bf16.mxu0 %v5397
      %5693 = vmatpush2.bf16.msra.mxu0 %v5396
      %5694 = vmatprep.subr.bf16.mxu0 %v5393
      %5695 = vmatpush2.bf16.msra.mxu0 %v5392
      %5696 = vmatprep.subr.bf16.mxu0 %v5389
      %5697 = vmatpush2.bf16.msra.mxu0 %v5388
      %5698 = vmatprep.subr.bf16.mxu0 %v5385
      %5699 = vmatpush2.bf16.msra.mxu0 %v5384
      %5700 = vmatprep.subr.bf16.mxu0 %v5381
      %5701 = vmatpush2.bf16.msra.mxu0 %v5380
      %5702 = vmatprep.subr.bf16.mxu0 %v5377
      %5703 = vmatpush2.bf16.msra.mxu0 %v5376
      %5704 = vmatprep.subr.bf16.mxu0 %v5373
      %5705 = vmatpush2.bf16.msra.mxu0 %v5372
      %5706 = vmatprep.subr.bf16.mxu0 %v5369
      %5707 = vmatpush2.bf16.msra.mxu0 %v5368
      %5708 = vmatprep.mubr.bf16.mxu0 %v2088
      %5709 = vmatmul.mubr.bf16.gmra.mxu0 %v2081
      %v5710 = vpop.f32.mrf.mxu0
      %v5711 = vadd.f32 0.0, %v5710
      %v5712 = vpop.f32.mrf.mxu0
      %v5713 = vadd.f32 0.0, %v5712
      %v5714 = vpop.f32.mrf.mxu0
      %v5715 = vadd.f32 0.0, %v5714
      %v5716 = vpop.f32.mrf.mxu0
      %v5717 = vadd.f32 0.0, %v5716
      %5718 = vdwg.mxu0
      %5719 = vmatprep.subr.bf16.mxu0 %v5429
      %5720 = vmatpush1.bf16.msra.mxu0 %v5428
      %5721 = vmatprep.subr.bf16.mxu0 %v5425
      %5722 = vmatpush1.bf16.msra.mxu0 %v5424
      %5723 = vmatprep.subr.bf16.mxu0 %v5421
      %5724 = vmatpush1.bf16.msra.mxu0 %v5420
      %5725 = vmatprep.subr.bf16.mxu0 %v5417
      %5726 = vmatpush1.bf16.msra.mxu0 %v5416
      %5727 = vmatprep.subr.bf16.mxu0 %v5413
      %5728 = vmatpush1.bf16.msra.mxu0 %v5412
      %5729 = vmatprep.subr.bf16.mxu0 %v5409
      %5730 = vmatpush1.bf16.msra.mxu0 %v5408
      %5731 = vmatprep.subr.bf16.mxu0 %v5405
      %5732 = vmatpush1.bf16.msra.mxu0 %v5404
      %5733 = vmatprep.subr.bf16.mxu0 %v5401
      %5734 = vmatpush1.bf16.msra.mxu0 %v5400
      %5735 = vmatprep.subr.bf16.mxu0 %v5461
      %5736 = vmatpush2.bf16.msra.mxu0 %v5460
      %5737 = vmatprep.subr.bf16.mxu0 %v5457
      %5738 = vmatpush2.bf16.msra.mxu0 %v5456
      %5739 = vmatprep.subr.bf16.mxu0 %v5453
      %5740 = vmatpush2.bf16.msra.mxu0 %v5452
      %5741 = vmatprep.subr.bf16.mxu0 %v5449
      %5742 = vmatpush2.bf16.msra.mxu0 %v5448
      %5743 = vmatprep.subr.bf16.mxu0 %v5445
      %5744 = vmatpush2.bf16.msra.mxu0 %v5444
      %5745 = vmatprep.subr.bf16.mxu0 %v5441
      %5746 = vmatpush2.bf16.msra.mxu0 %v5440
      %5747 = vmatprep.subr.bf16.mxu0 %v5437
      %5748 = vmatpush2.bf16.msra.mxu0 %v5436
      %5749 = vmatprep.subr.bf16.mxu0 %v5433
      %5750 = vmatpush2.bf16.msra.mxu0 %v5432
      %5751 = vmatprep.mubr.bf16.mxu0 %v2102
      %5752 = vmatmul.mubr.bf16.gmra.mxu0 %v2095
      %v5753 = vpop.f32.mrf.mxu0
      %v5754 = vadd.f32 %v5711, %v5753
      %v5755 = vpop.f32.mrf.mxu0
      %v5756 = vadd.f32 %v5713, %v5755
      %v5757 = vpop.f32.mrf.mxu0
      %v5758 = vadd.f32 %v5715, %v5757
      %v5759 = vpop.f32.mrf.mxu0
      %v5760 = vadd.f32 %v5717, %v5759
      %5761 = vdwg.mxu0
      %v5890 = vunpack.c.l.b16 %v4693
      %v5891 = vunpack.c.h.b16 %v4693
      %v5892 = vunpack.c.l.b16 %v4694
      %v5893 = vunpack.c.h.b16 %v4694
      %v5894 = vunpack.c.l.b16 %v4695
      %v5895 = vunpack.c.h.b16 %v4695
      %v5896 = vunpack.c.l.b16 %v4696
      %v5897 = vunpack.c.h.b16 %v4696
      %v5898 = vunpack.c.l.b16 %v4697
      %v5899 = vunpack.c.h.b16 %v4697
      %v5900 = vunpack.c.l.b16 %v4698
      %v5901 = vunpack.c.h.b16 %v4698
      %v5902 = vunpack.c.l.b16 %v4699
      %v5903 = vunpack.c.h.b16 %v4699
      %v5904 = vunpack.c.l.b16 %v4700
      %v5905 = vunpack.c.h.b16 %v4700
      %v5906 = vunpack.c.l.b16 %v4701
      %v5907 = vunpack.c.h.b16 %v4701
      %v5908 = vunpack.c.l.b16 %v4702
      %v5909 = vunpack.c.h.b16 %v4702
      %v5910 = vunpack.c.l.b16 %v4703
      %v5911 = vunpack.c.h.b16 %v4703
      %v5912 = vunpack.c.l.b16 %v4704
      %v5913 = vunpack.c.h.b16 %v4704
      %v5914 = vunpack.c.l.b16 %v4705
      %v5915 = vunpack.c.h.b16 %v4705
      %v5916 = vunpack.c.l.b16 %v4706
      %v5917 = vunpack.c.h.b16 %v4706
      %v5918 = vunpack.c.l.b16 %v4707
      %v5919 = vunpack.c.h.b16 %v4707
      %v5920 = vunpack.c.l.b16 %v4708
      %v5921 = vunpack.c.h.b16 %v4708
      %v5922 = vunpack.c.l.b16 %v4709
      %v5923 = vunpack.c.h.b16 %v4709
      %v5924 = vunpack.c.l.b16 %v4710
      %v5925 = vunpack.c.h.b16 %v4710
      %v5926 = vunpack.c.l.b16 %v4711
      %v5927 = vunpack.c.h.b16 %v4711
      %v5928 = vunpack.c.l.b16 %v4712
      %v5929 = vunpack.c.h.b16 %v4712
      %v5930 = vunpack.c.l.b16 %v4713
      %v5931 = vunpack.c.h.b16 %v4713
      %v5932 = vunpack.c.l.b16 %v4714
      %v5933 = vunpack.c.h.b16 %v4714
      %v5934 = vunpack.c.l.b16 %v4715
      %v5935 = vunpack.c.h.b16 %v4715
      %v5936 = vunpack.c.l.b16 %v4716
      %v5937 = vunpack.c.h.b16 %v4716
      %v5938 = vunpack.c.l.b16 %v4717
      %v5939 = vunpack.c.h.b16 %v4717
      %v5940 = vunpack.c.l.b16 %v4718
      %v5941 = vunpack.c.h.b16 %v4718
      %v5942 = vunpack.c.l.b16 %v4719
      %v5943 = vunpack.c.h.b16 %v4719
      %v5944 = vunpack.c.l.b16 %v4720
      %v5945 = vunpack.c.h.b16 %v4720
      %v5946 = vunpack.c.l.b16 %v4721
      %v5947 = vunpack.c.h.b16 %v4721
      %v5948 = vunpack.c.l.b16 %v4722
      %v5949 = vunpack.c.h.b16 %v4722
      %v5950 = vunpack.c.l.b16 %v4723
      %v5951 = vunpack.c.h.b16 %v4723
      %v5952 = vunpack.c.l.b16 %v4724
      %v5953 = vunpack.c.h.b16 %v4724
      %v5954 = vunpack.c.l.b16 %v4725
      %v5955 = vunpack.c.h.b16 %v4725
      %v5956 = vunpack.c.l.b16 %v4726
      %v5957 = vunpack.c.h.b16 %v4726
      %v5958 = vunpack.c.l.b16 %v4727
      %v5959 = vunpack.c.h.b16 %v4727
      %v5960 = vunpack.c.l.b16 %v4728
      %v5961 = vunpack.c.h.b16 %v4728
      %v5962 = vunpack.c.l.b16 %v4729
      %v5963 = vunpack.c.h.b16 %v4729
      %v5964 = vunpack.c.l.b16 %v4730
      %v5965 = vunpack.c.h.b16 %v4730
      %v5966 = vunpack.c.l.b16 %v4731
      %v5967 = vunpack.c.h.b16 %v4731
      %v5968 = vunpack.c.l.b16 %v4732
      %v5969 = vunpack.c.h.b16 %v4732
      %v5970 = vunpack.c.l.b16 %v4733
      %v5971 = vunpack.c.h.b16 %v4733
      %v5972 = vunpack.c.l.b16 %v4734
      %v5973 = vunpack.c.h.b16 %v4734
      %v5974 = vunpack.c.l.b16 %v4735
      %v5975 = vunpack.c.h.b16 %v4735
      %v5976 = vunpack.c.l.b16 %v4736
      %v5977 = vunpack.c.h.b16 %v4736
      %v5978 = vunpack.c.l.b16 %v4737
      %v5979 = vunpack.c.h.b16 %v4737
      %v5980 = vunpack.c.l.b16 %v4738
      %v5981 = vunpack.c.h.b16 %v4738
      %v5982 = vunpack.c.l.b16 %v4739
      %v5983 = vunpack.c.h.b16 %v4739
      %v5984 = vunpack.c.l.b16 %v4740
      %v5985 = vunpack.c.h.b16 %v4740
      %v5986 = vunpack.c.l.b16 %v4741
      %v5987 = vunpack.c.h.b16 %v4741
      %v5988 = vunpack.c.l.b16 %v4742
      %v5989 = vunpack.c.h.b16 %v4742
      %v5990 = vunpack.c.l.b16 %v4743
      %v5991 = vunpack.c.h.b16 %v4743
      %v5992 = vunpack.c.l.b16 %v4744
      %v5993 = vunpack.c.h.b16 %v4744
      %v5994 = vunpack.c.l.b16 %v4745
      %v5995 = vunpack.c.h.b16 %v4745
      %v5996 = vunpack.c.l.b16 %v4746
      %v5997 = vunpack.c.h.b16 %v4746
      %v5998 = vunpack.c.l.b16 %v4747
      %v5999 = vunpack.c.h.b16 %v4747
      %v6000 = vunpack.c.l.b16 %v4748
      %v6001 = vunpack.c.h.b16 %v4748
      %v6002 = vunpack.c.l.b16 %v4749
      %v6003 = vunpack.c.h.b16 %v4749
      %v6004 = vunpack.c.l.b16 %v4750
      %v6005 = vunpack.c.h.b16 %v4750
      %v6006 = vunpack.c.l.b16 %v4751
      %v6007 = vunpack.c.h.b16 %v4751
      %v6008 = vunpack.c.l.b16 %v4752
      %v6009 = vunpack.c.h.b16 %v4752
      %v6010 = vunpack.c.l.b16 %v4753
      %v6011 = vunpack.c.h.b16 %v4753
      %v6012 = vunpack.c.l.b16 %v4754
      %v6013 = vunpack.c.h.b16 %v4754
      %v6014 = vunpack.c.l.b16 %v4755
      %v6015 = vunpack.c.h.b16 %v4755
      %v6016 = vunpack.c.l.b16 %v4756
      %v6017 = vunpack.c.h.b16 %v4756
      %v6018 = vunpack.c.l.b16 %v4757
      %v6019 = vunpack.c.h.b16 %v4757
      %v6020 = vunpack.c.l.b16 %v4758
      %v6021 = vunpack.c.h.b16 %v4758
      %v6022 = vunpack.c.l.b16 %v4759
      %v6023 = vunpack.c.h.b16 %v4759
      %v6024 = vunpack.c.l.b16 %v4760
      %v6025 = vunpack.c.h.b16 %v4760
      %v6026 = vunpack.c.l.b16 %v4761
      %v6027 = vunpack.c.h.b16 %v4761
      %v6028 = vunpack.c.l.b16 %v4762
      %v6029 = vunpack.c.h.b16 %v4762
      %v6030 = vunpack.c.l.b16 %v4763
      %v6031 = vunpack.c.h.b16 %v4763
      %v6032 = vunpack.c.l.b16 %v4764
      %v6033 = vunpack.c.h.b16 %v4764
      %v6034 = vunpack.c.l.b16 %v4765
      %v6035 = vunpack.c.h.b16 %v4765
      %v6036 = vunpack.c.l.b16 %v4766
      %v6037 = vunpack.c.h.b16 %v4766
      %v6038 = vunpack.c.l.b16 %v4767
      %v6039 = vunpack.c.h.b16 %v4767
      %v6040 = vunpack.c.l.b16 %v4768
      %v6041 = vunpack.c.h.b16 %v4768
      %v6042 = vunpack.c.l.b16 %v4769
      %v6043 = vunpack.c.h.b16 %v4769
      %v6044 = vunpack.c.l.b16 %v4770
      %v6045 = vunpack.c.h.b16 %v4770
      %v6046 = vunpack.c.l.b16 %v4771
      %v6047 = vunpack.c.h.b16 %v4771
      %v6048 = vunpack.c.l.b16 %v4772
      %v6049 = vunpack.c.h.b16 %v4772
      %v6050 = vunpack.c.l.b16 %v4773
      %v6051 = vunpack.c.h.b16 %v4773
      %v6052 = vunpack.c.l.b16 %v4774
      %v6053 = vunpack.c.h.b16 %v4774
      %v6054 = vunpack.c.l.b16 %v4775
      %v6055 = vunpack.c.h.b16 %v4775
      %v6056 = vunpack.c.l.b16 %v4776
      %v6057 = vunpack.c.h.b16 %v4776
      %v6058 = vunpack.c.l.b16 %v4777
      %v6059 = vunpack.c.h.b16 %v4777
      %v6060 = vunpack.c.l.b16 %v4778
      %v6061 = vunpack.c.h.b16 %v4778
      %v6062 = vunpack.c.l.b16 %v4779
      %v6063 = vunpack.c.h.b16 %v4779
      %v6064 = vunpack.c.l.b16 %v4780
      %v6065 = vunpack.c.h.b16 %v4780
      %v6066 = vunpack.c.l.b16 %v4781
      %v6067 = vunpack.c.h.b16 %v4781
      %v6068 = vunpack.c.l.b16 %v4782
      %v6069 = vunpack.c.h.b16 %v4782
      %v6070 = vunpack.c.l.b16 %v4783
      %v6071 = vunpack.c.h.b16 %v4783
      %v6072 = vunpack.c.l.b16 %v4784
      %v6073 = vunpack.c.h.b16 %v4784
      %v6074 = vunpack.c.l.b16 %v4785
      %v6075 = vunpack.c.h.b16 %v4785
      %v6076 = vunpack.c.l.b16 %v4786
      %v6077 = vunpack.c.h.b16 %v4786
      %v6078 = vunpack.c.l.b16 %v4787
      %v6079 = vunpack.c.h.b16 %v4787
      %v6080 = vunpack.c.l.b16 %v4788
      %v6081 = vunpack.c.h.b16 %v4788
      %v6082 = vunpack.c.l.b16 %v4789
      %v6083 = vunpack.c.h.b16 %v4789
      %v6084 = vunpack.c.l.b16 %v4790
      %v6085 = vunpack.c.h.b16 %v4790
      %v6086 = vunpack.c.l.b16 %v4791
      %v6087 = vunpack.c.h.b16 %v4791
      %v6088 = vunpack.c.l.b16 %v4792
      %v6089 = vunpack.c.h.b16 %v4792
      %v6090 = vunpack.c.l.b16 %v4793
      %v6091 = vunpack.c.h.b16 %v4793
      %v6092 = vunpack.c.l.b16 %v4794
      %v6093 = vunpack.c.h.b16 %v4794
      %v6094 = vunpack.c.l.b16 %v4795
      %v6095 = vunpack.c.h.b16 %v4795
      %v6096 = vunpack.c.l.b16 %v4796
      %v6097 = vunpack.c.h.b16 %v4796
      %v6098 = vunpack.c.l.b16 %v4797
      %v6099 = vunpack.c.h.b16 %v4797
      %v6100 = vunpack.c.l.b16 %v4798
      %v6101 = vunpack.c.h.b16 %v4798
      %v6102 = vunpack.c.l.b16 %v4799
      %v6103 = vunpack.c.h.b16 %v4799
      %v6104 = vunpack.c.l.b16 %v4800
      %v6105 = vunpack.c.h.b16 %v4800
      %v6106 = vunpack.c.l.b16 %v4801
      %v6107 = vunpack.c.h.b16 %v4801
      %v6108 = vunpack.c.l.b16 %v4802
      %v6109 = vunpack.c.h.b16 %v4802
      %v6110 = vunpack.c.l.b16 %v4803
      %v6111 = vunpack.c.h.b16 %v4803
      %v6112 = vunpack.c.l.b16 %v4804
      %v6113 = vunpack.c.h.b16 %v4804
      %v6114 = vunpack.c.l.b16 %v4805
      %v6115 = vunpack.c.h.b16 %v4805
      %v6116 = vunpack.c.l.b16 %v4806
      %v6117 = vunpack.c.h.b16 %v4806
      %v6118 = vunpack.c.l.b16 %v4807
      %v6119 = vunpack.c.h.b16 %v4807
      %v6120 = vunpack.c.l.b16 %v4808
      %v6121 = vunpack.c.h.b16 %v4808
      %v6122 = vunpack.c.l.b16 %v4809
      %v6123 = vunpack.c.h.b16 %v4809
      %v6124 = vunpack.c.l.b16 %v4810
      %v6125 = vunpack.c.h.b16 %v4810
      %v6126 = vunpack.c.l.b16 %v4811
      %v6127 = vunpack.c.h.b16 %v4811
      %v6128 = vunpack.c.l.b16 %v4812
      %v6129 = vunpack.c.h.b16 %v4812
      %v6130 = vunpack.c.l.b16 %v4813
      %v6131 = vunpack.c.h.b16 %v4813
      %v6132 = vunpack.c.l.b16 %v4814
      %v6133 = vunpack.c.h.b16 %v4814
      %v6134 = vunpack.c.l.b16 %v4815
      %v6135 = vunpack.c.h.b16 %v4815
      %v6136 = vunpack.c.l.b16 %v4816
      %v6137 = vunpack.c.h.b16 %v4816
      %v6138 = vunpack.c.l.b16 %v4817
      %v6139 = vunpack.c.h.b16 %v4817
      %v6140 = vunpack.c.l.b16 %v4818
      %v6141 = vunpack.c.h.b16 %v4818
      %v6142 = vunpack.c.l.b16 %v4819
      %v6143 = vunpack.c.h.b16 %v4819
      %v6144 = vunpack.c.l.b16 %v4820
      %v6145 = vunpack.c.h.b16 %v4820
      %v6146 = vpack.c.b16 %v5894, %v5890
      %v6147 = vpack.c.b16 %v5895, %v5891
      %v6148 = vpack.c.b16 %v5896, %v5892
      %v6149 = vpack.c.b16 %v5897, %v5893
      %v6150 = vpack.c.b16 %v5902, %v5898
      %v6151 = vpack.c.b16 %v5903, %v5899
      %v6152 = vpack.c.b16 %v5904, %v5900
      %v6153 = vpack.c.b16 %v5905, %v5901
      %v6154 = vpack.c.b16 %v5910, %v5906
      %v6155 = vpack.c.b16 %v5911, %v5907
      %v6156 = vpack.c.b16 %v5912, %v5908
      %v6157 = vpack.c.b16 %v5913, %v5909
      %v6158 = vpack.c.b16 %v5918, %v5914
      %v6159 = vpack.c.b16 %v5919, %v5915
      %v6160 = vpack.c.b16 %v5920, %v5916
      %v6161 = vpack.c.b16 %v5921, %v5917
      %v6162 = vpack.c.b16 %v5926, %v5922
      %v6163 = vpack.c.b16 %v5927, %v5923
      %v6164 = vpack.c.b16 %v5928, %v5924
      %v6165 = vpack.c.b16 %v5929, %v5925
      %v6166 = vpack.c.b16 %v5934, %v5930
      %v6167 = vpack.c.b16 %v5935, %v5931
      %v6168 = vpack.c.b16 %v5936, %v5932
      %v6169 = vpack.c.b16 %v5937, %v5933
      %v6170 = vpack.c.b16 %v5942, %v5938
      %v6171 = vpack.c.b16 %v5943, %v5939
      %v6172 = vpack.c.b16 %v5944, %v5940
      %v6173 = vpack.c.b16 %v5945, %v5941
      %v6174 = vpack.c.b16 %v5950, %v5946
      %v6175 = vpack.c.b16 %v5951, %v5947
      %v6176 = vpack.c.b16 %v5952, %v5948
      %v6177 = vpack.c.b16 %v5953, %v5949
      %v6178 = vpack.c.b16 %v5958, %v5954
      %v6179 = vpack.c.b16 %v5959, %v5955
      %v6180 = vpack.c.b16 %v5960, %v5956
      %v6181 = vpack.c.b16 %v5961, %v5957
      %v6182 = vpack.c.b16 %v5966, %v5962
      %v6183 = vpack.c.b16 %v5967, %v5963
      %v6184 = vpack.c.b16 %v5968, %v5964
      %v6185 = vpack.c.b16 %v5969, %v5965
      %v6186 = vpack.c.b16 %v5974, %v5970
      %v6187 = vpack.c.b16 %v5975, %v5971
      %v6188 = vpack.c.b16 %v5976, %v5972
      %v6189 = vpack.c.b16 %v5977, %v5973
      %v6190 = vpack.c.b16 %v5982, %v5978
      %v6191 = vpack.c.b16 %v5983, %v5979
      %v6192 = vpack.c.b16 %v5984, %v5980
      %v6193 = vpack.c.b16 %v5985, %v5981
      %v6194 = vpack.c.b16 %v5990, %v5986
      %v6195 = vpack.c.b16 %v5991, %v5987
      %v6196 = vpack.c.b16 %v5992, %v5988
      %v6197 = vpack.c.b16 %v5993, %v5989
      %v6198 = vpack.c.b16 %v5998, %v5994
      %v6199 = vpack.c.b16 %v5999, %v5995
      %v6200 = vpack.c.b16 %v6000, %v5996
      %v6201 = vpack.c.b16 %v6001, %v5997
      %v6202 = vpack.c.b16 %v6006, %v6002
      %v6203 = vpack.c.b16 %v6007, %v6003
      %v6204 = vpack.c.b16 %v6008, %v6004
      %v6205 = vpack.c.b16 %v6009, %v6005
      %v6206 = vpack.c.b16 %v6014, %v6010
      %v6207 = vpack.c.b16 %v6015, %v6011
      %v6208 = vpack.c.b16 %v6016, %v6012
      %v6209 = vpack.c.b16 %v6017, %v6013
      %v6210 = vpack.c.b16 %v6022, %v6018
      %v6211 = vpack.c.b16 %v6023, %v6019
      %v6212 = vpack.c.b16 %v6024, %v6020
      %v6213 = vpack.c.b16 %v6025, %v6021
      %v6214 = vpack.c.b16 %v6030, %v6026
      %v6215 = vpack.c.b16 %v6031, %v6027
      %v6216 = vpack.c.b16 %v6032, %v6028
      %v6217 = vpack.c.b16 %v6033, %v6029
      %v6218 = vpack.c.b16 %v6038, %v6034
      %v6219 = vpack.c.b16 %v6039, %v6035
      %v6220 = vpack.c.b16 %v6040, %v6036
      %v6221 = vpack.c.b16 %v6041, %v6037
      %v6222 = vpack.c.b16 %v6046, %v6042
      %v6223 = vpack.c.b16 %v6047, %v6043
      %v6224 = vpack.c.b16 %v6048, %v6044
      %v6225 = vpack.c.b16 %v6049, %v6045
      %v6226 = vpack.c.b16 %v6054, %v6050
      %v6227 = vpack.c.b16 %v6055, %v6051
      %v6228 = vpack.c.b16 %v6056, %v6052
      %v6229 = vpack.c.b16 %v6057, %v6053
      %v6230 = vpack.c.b16 %v6062, %v6058
      %v6231 = vpack.c.b16 %v6063, %v6059
      %v6232 = vpack.c.b16 %v6064, %v6060
      %v6233 = vpack.c.b16 %v6065, %v6061
      %v6234 = vpack.c.b16 %v6070, %v6066
      %v6235 = vpack.c.b16 %v6071, %v6067
      %v6236 = vpack.c.b16 %v6072, %v6068
      %v6237 = vpack.c.b16 %v6073, %v6069
      %v6238 = vpack.c.b16 %v6078, %v6074
      %v6239 = vpack.c.b16 %v6079, %v6075
      %v6240 = vpack.c.b16 %v6080, %v6076
      %v6241 = vpack.c.b16 %v6081, %v6077
      %v6242 = vpack.c.b16 %v6086, %v6082
      %v6243 = vpack.c.b16 %v6087, %v6083
      %v6244 = vpack.c.b16 %v6088, %v6084
      %v6245 = vpack.c.b16 %v6089, %v6085
      %v6246 = vpack.c.b16 %v6094, %v6090
      %v6247 = vpack.c.b16 %v6095, %v6091
      %v6248 = vpack.c.b16 %v6096, %v6092
      %v6249 = vpack.c.b16 %v6097, %v6093
      %v6250 = vpack.c.b16 %v6102, %v6098
      %v6251 = vpack.c.b16 %v6103, %v6099
      %v6252 = vpack.c.b16 %v6104, %v6100
      %v6253 = vpack.c.b16 %v6105, %v6101
      %v6254 = vpack.c.b16 %v6110, %v6106
      %v6255 = vpack.c.b16 %v6111, %v6107
      %v6256 = vpack.c.b16 %v6112, %v6108
      %v6257 = vpack.c.b16 %v6113, %v6109
      %v6258 = vpack.c.b16 %v6118, %v6114
      %v6259 = vpack.c.b16 %v6119, %v6115
      %v6260 = vpack.c.b16 %v6120, %v6116
      %v6261 = vpack.c.b16 %v6121, %v6117
      %v6262 = vpack.c.b16 %v6126, %v6122
      %v6263 = vpack.c.b16 %v6127, %v6123
      %v6264 = vpack.c.b16 %v6128, %v6124
      %v6265 = vpack.c.b16 %v6129, %v6125
      %v6266 = vpack.c.b16 %v6134, %v6130
      %v6267 = vpack.c.b16 %v6135, %v6131
      %v6268 = vpack.c.b16 %v6136, %v6132
      %v6269 = vpack.c.b16 %v6137, %v6133
      %v6270 = vpack.c.b16 %v6142, %v6138
      %v6271 = vpack.c.b16 %v6143, %v6139
      %v6272 = vpack.c.b16 %v6144, %v6140
      %v6273 = vpack.c.b16 %v6145, %v6141
      %6402 = vmatprep.subr.bf16.mxu0 %v6175
      %6403 = vmatpush1.bf16.msra.mxu0 %v6174
      %6404 = vmatprep.subr.bf16.mxu0 %v6171
      %6405 = vmatpush1.bf16.msra.mxu0 %v6170
      %6406 = vmatprep.subr.bf16.mxu0 %v6167
      %6407 = vmatpush1.bf16.msra.mxu0 %v6166
      %6408 = vmatprep.subr.bf16.mxu0 %v6163
      %6409 = vmatpush1.bf16.msra.mxu0 %v6162
      %6410 = vmatprep.subr.bf16.mxu0 %v6159
      %6411 = vmatpush1.bf16.msra.mxu0 %v6158
      %6412 = vmatprep.subr.bf16.mxu0 %v6155
      %6413 = vmatpush1.bf16.msra.mxu0 %v6154
      %6414 = vmatprep.subr.bf16.mxu0 %v6151
      %6415 = vmatpush1.bf16.msra.mxu0 %v6150
      %6416 = vmatprep.subr.bf16.mxu0 %v6147
      %6417 = vmatpush1.bf16.msra.mxu0 %v6146
      %6418 = vmatprep.subr.bf16.mxu0 %v6207
      %6419 = vmatpush2.bf16.msra.mxu0 %v6206
      %6420 = vmatprep.subr.bf16.mxu0 %v6203
      %6421 = vmatpush2.bf16.msra.mxu0 %v6202
      %6422 = vmatprep.subr.bf16.mxu0 %v6199
      %6423 = vmatpush2.bf16.msra.mxu0 %v6198
      %6424 = vmatprep.subr.bf16.mxu0 %v6195
      %6425 = vmatpush2.bf16.msra.mxu0 %v6194
      %6426 = vmatprep.subr.bf16.mxu0 %v6191
      %6427 = vmatpush2.bf16.msra.mxu0 %v6190
      %6428 = vmatprep.subr.bf16.mxu0 %v6187
      %6429 = vmatpush2.bf16.msra.mxu0 %v6186
      %6430 = vmatprep.subr.bf16.mxu0 %v6183
      %6431 = vmatpush2.bf16.msra.mxu0 %v6182
      %6432 = vmatprep.subr.bf16.mxu0 %v6179
      %6433 = vmatpush2.bf16.msra.mxu0 %v6178
      %6434 = vmatprep.mubr.bf16.mxu0 %v1815
      %6435 = vmatmul.mubr.bf16.gmra.mxu0 %v1814
      %v6436 = vpop.f32.mrf.mxu0
      %v6437 = vadd.f32 %v5668, %v6436
      %v6438 = vpop.f32.mrf.mxu0
      %v6439 = vadd.f32 %v5670, %v6438
      %v6440 = vpop.f32.mrf.mxu0
      %v6441 = vadd.f32 %v5672, %v6440
      %v6442 = vpop.f32.mrf.mxu0
      %v6443 = vadd.f32 %v5674, %v6442
      %6444 = vdwg.mxu0
      %6445 = vmatprep.subr.bf16.mxu0 %v6239
      %6446 = vmatpush1.bf16.msra.mxu0 %v6238
      %6447 = vmatprep.subr.bf16.mxu0 %v6235
      %6448 = vmatpush1.bf16.msra.mxu0 %v6234
      %6449 = vmatprep.subr.bf16.mxu0 %v6231
      %6450 = vmatpush1.bf16.msra.mxu0 %v6230
      %6451 = vmatprep.subr.bf16.mxu0 %v6227
      %6452 = vmatpush1.bf16.msra.mxu0 %v6226
      %6453 = vmatprep.subr.bf16.mxu0 %v6223
      %6454 = vmatpush1.bf16.msra.mxu0 %v6222
      %6455 = vmatprep.subr.bf16.mxu0 %v6219
      %6456 = vmatpush1.bf16.msra.mxu0 %v6218
      %6457 = vmatprep.subr.bf16.mxu0 %v6215
      %6458 = vmatpush1.bf16.msra.mxu0 %v6214
      %6459 = vmatprep.subr.bf16.mxu0 %v6211
      %6460 = vmatpush1.bf16.msra.mxu0 %v6210
      %6461 = vmatprep.subr.bf16.mxu0 %v6271
      %6462 = vmatpush2.bf16.msra.mxu0 %v6270
      %6463 = vmatprep.subr.bf16.mxu0 %v6267
      %6464 = vmatpush2.bf16.msra.mxu0 %v6266
      %6465 = vmatprep.subr.bf16.mxu0 %v6263
      %6466 = vmatpush2.bf16.msra.mxu0 %v6262
      %6467 = vmatprep.subr.bf16.mxu0 %v6259
      %6468 = vmatpush2.bf16.msra.mxu0 %v6258
      %6469 = vmatprep.subr.bf16.mxu0 %v6255
      %6470 = vmatpush2.bf16.msra.mxu0 %v6254
      %6471 = vmatprep.subr.bf16.mxu0 %v6251
      %6472 = vmatpush2.bf16.msra.mxu0 %v6250
      %6473 = vmatprep.subr.bf16.mxu0 %v6247
      %6474 = vmatpush2.bf16.msra.mxu0 %v6246
      %6475 = vmatprep.subr.bf16.mxu0 %v6243
      %6476 = vmatpush2.bf16.msra.mxu0 %v6242
      %6477 = vmatprep.mubr.bf16.mxu0 %v1817
      %6478 = vmatmul.mubr.bf16.gmra.mxu0 %v1816
      %v6479 = vpop.f32.mrf.mxu0
      %v6480 = vadd.f32 %v6437, %v6479
      %v6481 = vpop.f32.mrf.mxu0
      %v6482 = vadd.f32 %v6439, %v6481
      %v6483 = vpop.f32.mrf.mxu0
      %v6484 = vadd.f32 %v6441, %v6483
      %v6485 = vpop.f32.mrf.mxu0
      %v6486 = vadd.f32 %v6443, %v6485
      %6487 = vdwg.mxu0
      %6488 = vmatprep.subr.bf16.mxu0 %v6177
      %6489 = vmatpush1.bf16.msra.mxu0 %v6176
      %6490 = vmatprep.subr.bf16.mxu0 %v6173
      %6491 = vmatpush1.bf16.msra.mxu0 %v6172
      %6492 = vmatprep.subr.bf16.mxu0 %v6169
      %6493 = vmatpush1.bf16.msra.mxu0 %v6168
      %6494 = vmatprep.subr.bf16.mxu0 %v6165
      %6495 = vmatpush1.bf16.msra.mxu0 %v6164
      %6496 = vmatprep.subr.bf16.mxu0 %v6161
      %6497 = vmatpush1.bf16.msra.mxu0 %v6160
      %6498 = vmatprep.subr.bf16.mxu0 %v6157
      %6499 = vmatpush1.bf16.msra.mxu0 %v6156
      %6500 = vmatprep.subr.bf16.mxu0 %v6153
      %6501 = vmatpush1.bf16.msra.mxu0 %v6152
      %6502 = vmatprep.subr.bf16.mxu0 %v6149
      %6503 = vmatpush1.bf16.msra.mxu0 %v6148
      %6504 = vmatprep.subr.bf16.mxu0 %v6209
      %6505 = vmatpush2.bf16.msra.mxu0 %v6208
      %6506 = vmatprep.subr.bf16.mxu0 %v6205
      %6507 = vmatpush2.bf16.msra.mxu0 %v6204
      %6508 = vmatprep.subr.bf16.mxu0 %v6201
      %6509 = vmatpush2.bf16.msra.mxu0 %v6200
      %6510 = vmatprep.subr.bf16.mxu0 %v6197
      %6511 = vmatpush2.bf16.msra.mxu0 %v6196
      %6512 = vmatprep.subr.bf16.mxu0 %v6193
      %6513 = vmatpush2.bf16.msra.mxu0 %v6192
      %6514 = vmatprep.subr.bf16.mxu0 %v6189
      %6515 = vmatpush2.bf16.msra.mxu0 %v6188
      %6516 = vmatprep.subr.bf16.mxu0 %v6185
      %6517 = vmatpush2.bf16.msra.mxu0 %v6184
      %6518 = vmatprep.subr.bf16.mxu0 %v6181
      %6519 = vmatpush2.bf16.msra.mxu0 %v6180
      %6520 = vmatprep.mubr.bf16.mxu0 %v1815
      %6521 = vmatmul.mubr.bf16.gmra.mxu0 %v1814
      %v6522 = vpop.f32.mrf.mxu0
      %v6523 = vadd.f32 %v5754, %v6522
      %v6524 = vpop.f32.mrf.mxu0
      %v6525 = vadd.f32 %v5756, %v6524
      %v6526 = vpop.f32.mrf.mxu0
      %v6527 = vadd.f32 %v5758, %v6526
      %v6528 = vpop.f32.mrf.mxu0
      %v6529 = vadd.f32 %v5760, %v6528
      %6530 = vdwg.mxu0
      %6531 = vmatprep.subr.bf16.mxu0 %v6241
      %6532 = vmatpush1.bf16.msra.mxu0 %v6240
      %6533 = vmatprep.subr.bf16.mxu0 %v6237
      %6534 = vmatpush1.bf16.msra.mxu0 %v6236
      %6535 = vmatprep.subr.bf16.mxu0 %v6233
      %6536 = vmatpush1.bf16.msra.mxu0 %v6232
      %6537 = vmatprep.subr.bf16.mxu0 %v6229
      %6538 = vmatpush1.bf16.msra.mxu0 %v6228
      %6539 = vmatprep.subr.bf16.mxu0 %v6225
      %6540 = vmatpush1.bf16.msra.mxu0 %v6224
      %6541 = vmatprep.subr.bf16.mxu0 %v6221
      %6542 = vmatpush1.bf16.msra.mxu0 %v6220
      %6543 = vmatprep.subr.bf16.mxu0 %v6217
      %6544 = vmatpush1.bf16.msra.mxu0 %v6216
      %6545 = vmatprep.subr.bf16.mxu0 %v6213
      %6546 = vmatpush1.bf16.msra.mxu0 %v6212
      %6547 = vmatprep.subr.bf16.mxu0 %v6273
      %6548 = vmatpush2.bf16.msra.mxu0 %v6272
      %6549 = vmatprep.subr.bf16.mxu0 %v6269
      %6550 = vmatpush2.bf16.msra.mxu0 %v6268
      %6551 = vmatprep.subr.bf16.mxu0 %v6265
      %6552 = vmatpush2.bf16.msra.mxu0 %v6264
      %6553 = vmatprep.subr.bf16.mxu0 %v6261
      %6554 = vmatpush2.bf16.msra.mxu0 %v6260
      %6555 = vmatprep.subr.bf16.mxu0 %v6257
      %6556 = vmatpush2.bf16.msra.mxu0 %v6256
      %6557 = vmatprep.subr.bf16.mxu0 %v6253
      %6558 = vmatpush2.bf16.msra.mxu0 %v6252
      %6559 = vmatprep.subr.bf16.mxu0 %v6249
      %6560 = vmatpush2.bf16.msra.mxu0 %v6248
      %6561 = vmatprep.subr.bf16.mxu0 %v6245
      %6562 = vmatpush2.bf16.msra.mxu0 %v6244
      %6563 = vmatprep.mubr.bf16.mxu0 %v1817
      %6564 = vmatmul.mubr.bf16.gmra.mxu0 %v1816
      %v6565 = vpop.f32.mrf.mxu0
      %v6566 = vadd.f32 %v6523, %v6565
      %v6567 = vpop.f32.mrf.mxu0
      %v6568 = vadd.f32 %v6525, %v6567
      %v6569 = vpop.f32.mrf.mxu0
      %v6570 = vadd.f32 %v6527, %v6569
      %v6571 = vpop.f32.mrf.mxu0
      %v6572 = vadd.f32 %v6529, %v6571
      %6573 = vdwg.mxu0
      %s6574 = scalar_lea.vmem %s3, 5120
      %v6575 = vld [vmem:[%s6574] sm:$0xff]
      %v6576 = vld [vmem:[%s6574 + $0x8] sm:$0xff]
      %v6577 = vld [vmem:[%s6574 + $0x10] sm:$0xff]
      %v6578 = vld [vmem:[%s6574 + $0x18] sm:$0xff]
      %v6579 = vld [vmem:[%s6574 + $0x20] sm:$0xff]
      %v6580 = vld [vmem:[%s6574 + $0x28] sm:$0xff]
      %v6581 = vld [vmem:[%s6574 + $0x30] sm:$0xff]
      %v6582 = vld [vmem:[%s6574 + $0x38] sm:$0xff]
      %v6583 = vld [vmem:[%s6574 + $0x40] sm:$0xff]
      %v6584 = vld [vmem:[%s6574 + $0x48] sm:$0xff]
      %v6585 = vld [vmem:[%s6574 + $0x50] sm:$0xff]
      %v6586 = vld [vmem:[%s6574 + $0x58] sm:$0xff]
      %v6587 = vld [vmem:[%s6574 + $0x60] sm:$0xff]
      %v6588 = vld [vmem:[%s6574 + $0x68] sm:$0xff]
      %v6589 = vld [vmem:[%s6574 + $0x70] sm:$0xff]
      %v6590 = vld [vmem:[%s6574 + $0x78] sm:$0xff]
      %v6591 = vld [vmem:[%s6574 + $0x80] sm:$0xff]
      %v6592 = vld [vmem:[%s6574 + $0x88] sm:$0xff]
      %v6593 = vld [vmem:[%s6574 + $0x90] sm:$0xff]
      %v6594 = vld [vmem:[%s6574 + $0x98] sm:$0xff]
      %v6595 = vld [vmem:[%s6574 + $0xa0] sm:$0xff]
      %v6596 = vld [vmem:[%s6574 + $0xa8] sm:$0xff]
      %v6597 = vld [vmem:[%s6574 + $0xb0] sm:$0xff]
      %v6598 = vld [vmem:[%s6574 + $0xb8] sm:$0xff]
      %v6599 = vld [vmem:[%s6574 + $0xc0] sm:$0xff]
      %v6600 = vld [vmem:[%s6574 + $0xc8] sm:$0xff]
      %v6601 = vld [vmem:[%s6574 + $0xd0] sm:$0xff]
      %v6602 = vld [vmem:[%s6574 + $0xd8] sm:$0xff]
      %v6603 = vld [vmem:[%s6574 + $0xe0] sm:$0xff]
      %v6604 = vld [vmem:[%s6574 + $0xe8] sm:$0xff]
      %v6605 = vld [vmem:[%s6574 + $0xf0] sm:$0xff]
      %v6606 = vld [vmem:[%s6574 + $0xf8] sm:$0xff]
      %v6607 = vld [vmem:[%s6574 + $0x100] sm:$0xff]
      %v6608 = vld [vmem:[%s6574 + $0x108] sm:$0xff]
      %v6609 = vld [vmem:[%s6574 + $0x110] sm:$0xff]
      %v6610 = vld [vmem:[%s6574 + $0x118] sm:$0xff]
      %v6611 = vld [vmem:[%s6574 + $0x120] sm:$0xff]
      %v6612 = vld [vmem:[%s6574 + $0x128] sm:$0xff]
      %v6613 = vld [vmem:[%s6574 + $0x130] sm:$0xff]
      %v6614 = vld [vmem:[%s6574 + $0x138] sm:$0xff]
      %v6615 = vld [vmem:[%s6574 + $0x140] sm:$0xff]
      %v6616 = vld [vmem:[%s6574 + $0x148] sm:$0xff]
      %v6617 = vld [vmem:[%s6574 + $0x150] sm:$0xff]
      %v6618 = vld [vmem:[%s6574 + $0x158] sm:$0xff]
      %v6619 = vld [vmem:[%s6574 + $0x160] sm:$0xff]
      %v6620 = vld [vmem:[%s6574 + $0x168] sm:$0xff]
      %v6621 = vld [vmem:[%s6574 + $0x170] sm:$0xff]
      %v6622 = vld [vmem:[%s6574 + $0x178] sm:$0xff]
      %v6623 = vld [vmem:[%s6574 + $0x180] sm:$0xff]
      %v6624 = vld [vmem:[%s6574 + $0x188] sm:$0xff]
      %v6625 = vld [vmem:[%s6574 + $0x190] sm:$0xff]
      %v6626 = vld [vmem:[%s6574 + $0x198] sm:$0xff]
      %v6627 = vld [vmem:[%s6574 + $0x1a0] sm:$0xff]
      %v6628 = vld [vmem:[%s6574 + $0x1a8] sm:$0xff]
      %v6629 = vld [vmem:[%s6574 + $0x1b0] sm:$0xff]
      %v6630 = vld [vmem:[%s6574 + $0x1b8] sm:$0xff]
      %v6631 = vld [vmem:[%s6574 + $0x1c0] sm:$0xff]
      %v6632 = vld [vmem:[%s6574 + $0x1c8] sm:$0xff]
      %v6633 = vld [vmem:[%s6574 + $0x1d0] sm:$0xff]
      %v6634 = vld [vmem:[%s6574 + $0x1d8] sm:$0xff]
      %v6635 = vld [vmem:[%s6574 + $0x1e0] sm:$0xff]
      %v6636 = vld [vmem:[%s6574 + $0x1e8] sm:$0xff]
      %v6637 = vld [vmem:[%s6574 + $0x1f0] sm:$0xff]
      %v6638 = vld [vmem:[%s6574 + $0x1f8] sm:$0xff]
      %v6639 = vld [vmem:[%s6574 + $0x200] sm:$0xff]
      %v6640 = vld [vmem:[%s6574 + $0x208] sm:$0xff]
      %v6641 = vld [vmem:[%s6574 + $0x210] sm:$0xff]
      %v6642 = vld [vmem:[%s6574 + $0x218] sm:$0xff]
      %v6643 = vld [vmem:[%s6574 + $0x220] sm:$0xff]
      %v6644 = vld [vmem:[%s6574 + $0x228] sm:$0xff]
      %v6645 = vld [vmem:[%s6574 + $0x230] sm:$0xff]
      %v6646 = vld [vmem:[%s6574 + $0x238] sm:$0xff]
      %v6647 = vld [vmem:[%s6574 + $0x240] sm:$0xff]
      %v6648 = vld [vmem:[%s6574 + $0x248] sm:$0xff]
      %v6649 = vld [vmem:[%s6574 + $0x250] sm:$0xff]
      %v6650 = vld [vmem:[%s6574 + $0x258] sm:$0xff]
      %v6651 = vld [vmem:[%s6574 + $0x260] sm:$0xff]
      %v6652 = vld [vmem:[%s6574 + $0x268] sm:$0xff]
      %v6653 = vld [vmem:[%s6574 + $0x270] sm:$0xff]
      %v6654 = vld [vmem:[%s6574 + $0x278] sm:$0xff]
      %v6655 = vld [vmem:[%s6574 + $0x280] sm:$0xff]
      %v6656 = vld [vmem:[%s6574 + $0x288] sm:$0xff]
      %v6657 = vld [vmem:[%s6574 + $0x290] sm:$0xff]
      %v6658 = vld [vmem:[%s6574 + $0x298] sm:$0xff]
      %v6659 = vld [vmem:[%s6574 + $0x2a0] sm:$0xff]
      %v6660 = vld [vmem:[%s6574 + $0x2a8] sm:$0xff]
      %v6661 = vld [vmem:[%s6574 + $0x2b0] sm:$0xff]
      %v6662 = vld [vmem:[%s6574 + $0x2b8] sm:$0xff]
      %v6663 = vld [vmem:[%s6574 + $0x2c0] sm:$0xff]
      %v6664 = vld [vmem:[%s6574 + $0x2c8] sm:$0xff]
      %v6665 = vld [vmem:[%s6574 + $0x2d0] sm:$0xff]
      %v6666 = vld [vmem:[%s6574 + $0x2d8] sm:$0xff]
      %v6667 = vld [vmem:[%s6574 + $0x2e0] sm:$0xff]
      %v6668 = vld [vmem:[%s6574 + $0x2e8] sm:$0xff]
      %v6669 = vld [vmem:[%s6574 + $0x2f0] sm:$0xff]
      %v6670 = vld [vmem:[%s6574 + $0x2f8] sm:$0xff]
      %v6671 = vld [vmem:[%s6574 + $0x300] sm:$0xff]
      %v6672 = vld [vmem:[%s6574 + $0x308] sm:$0xff]
      %v6673 = vld [vmem:[%s6574 + $0x310] sm:$0xff]
      %v6674 = vld [vmem:[%s6574 + $0x318] sm:$0xff]
      %v6675 = vld [vmem:[%s6574 + $0x320] sm:$0xff]
      %v6676 = vld [vmem:[%s6574 + $0x328] sm:$0xff]
      %v6677 = vld [vmem:[%s6574 + $0x330] sm:$0xff]
      %v6678 = vld [vmem:[%s6574 + $0x338] sm:$0xff]
      %v6679 = vld [vmem:[%s6574 + $0x340] sm:$0xff]
      %v6680 = vld [vmem:[%s6574 + $0x348] sm:$0xff]
      %v6681 = vld [vmem:[%s6574 + $0x350] sm:$0xff]
      %v6682 = vld [vmem:[%s6574 + $0x358] sm:$0xff]
      %v6683 = vld [vmem:[%s6574 + $0x360] sm:$0xff]
      %v6684 = vld [vmem:[%s6574 + $0x368] sm:$0xff]
      %v6685 = vld [vmem:[%s6574 + $0x370] sm:$0xff]
      %v6686 = vld [vmem:[%s6574 + $0x378] sm:$0xff]
      %v6687 = vld [vmem:[%s6574 + $0x380] sm:$0xff]
      %v6688 = vld [vmem:[%s6574 + $0x388] sm:$0xff]
      %v6689 = vld [vmem:[%s6574 + $0x390] sm:$0xff]
      %v6690 = vld [vmem:[%s6574 + $0x398] sm:$0xff]
      %v6691 = vld [vmem:[%s6574 + $0x3a0] sm:$0xff]
      %v6692 = vld [vmem:[%s6574 + $0x3a8] sm:$0xff]
      %v6693 = vld [vmem:[%s6574 + $0x3b0] sm:$0xff]
      %v6694 = vld [vmem:[%s6574 + $0x3b8] sm:$0xff]
      %v6695 = vld [vmem:[%s6574 + $0x3c0] sm:$0xff]
      %v6696 = vld [vmem:[%s6574 + $0x3c8] sm:$0xff]
      %v6697 = vld [vmem:[%s6574 + $0x3d0] sm:$0xff]
      %v6698 = vld [vmem:[%s6574 + $0x3d8] sm:$0xff]
      %v6699 = vld [vmem:[%s6574 + $0x3e0] sm:$0xff]
      %v6700 = vld [vmem:[%s6574 + $0x3e8] sm:$0xff]
      %v6701 = vld [vmem:[%s6574 + $0x3f0] sm:$0xff]
      %v6702 = vld [vmem:[%s6574 + $0x3f8] sm:$0xff]
      %v6831 = vunpack.c.l.b16 %v6575
      %v6832 = vunpack.c.h.b16 %v6575
      %v6833 = vunpack.c.l.b16 %v6576
      %v6834 = vunpack.c.h.b16 %v6576
      %v6835 = vunpack.c.l.b16 %v6577
      %v6836 = vunpack.c.h.b16 %v6577
      %v6837 = vunpack.c.l.b16 %v6578
      %v6838 = vunpack.c.h.b16 %v6578
      %v6839 = vunpack.c.l.b16 %v6579
      %v6840 = vunpack.c.h.b16 %v6579
      %v6841 = vunpack.c.l.b16 %v6580
      %v6842 = vunpack.c.h.b16 %v6580
      %v6843 = vunpack.c.l.b16 %v6581
      %v6844 = vunpack.c.h.b16 %v6581
      %v6845 = vunpack.c.l.b16 %v6582
      %v6846 = vunpack.c.h.b16 %v6582
      %v6847 = vunpack.c.l.b16 %v6583
      %v6848 = vunpack.c.h.b16 %v6583
      %v6849 = vunpack.c.l.b16 %v6584
      %v6850 = vunpack.c.h.b16 %v6584
      %v6851 = vunpack.c.l.b16 %v6585
      %v6852 = vunpack.c.h.b16 %v6585
      %v6853 = vunpack.c.l.b16 %v6586
      %v6854 = vunpack.c.h.b16 %v6586
      %v6855 = vunpack.c.l.b16 %v6587
      %v6856 = vunpack.c.h.b16 %v6587
      %v6857 = vunpack.c.l.b16 %v6588
      %v6858 = vunpack.c.h.b16 %v6588
      %v6859 = vunpack.c.l.b16 %v6589
      %v6860 = vunpack.c.h.b16 %v6589
      %v6861 = vunpack.c.l.b16 %v6590
      %v6862 = vunpack.c.h.b16 %v6590
      %v6863 = vunpack.c.l.b16 %v6591
      %v6864 = vunpack.c.h.b16 %v6591
      %v6865 = vunpack.c.l.b16 %v6592
      %v6866 = vunpack.c.h.b16 %v6592
      %v6867 = vunpack.c.l.b16 %v6593
      %v6868 = vunpack.c.h.b16 %v6593
      %v6869 = vunpack.c.l.b16 %v6594
      %v6870 = vunpack.c.h.b16 %v6594
      %v6871 = vunpack.c.l.b16 %v6595
      %v6872 = vunpack.c.h.b16 %v6595
      %v6873 = vunpack.c.l.b16 %v6596
      %v6874 = vunpack.c.h.b16 %v6596
      %v6875 = vunpack.c.l.b16 %v6597
      %v6876 = vunpack.c.h.b16 %v6597
      %v6877 = vunpack.c.l.b16 %v6598
      %v6878 = vunpack.c.h.b16 %v6598
      %v6879 = vunpack.c.l.b16 %v6599
      %v6880 = vunpack.c.h.b16 %v6599
      %v6881 = vunpack.c.l.b16 %v6600
      %v6882 = vunpack.c.h.b16 %v6600
      %v6883 = vunpack.c.l.b16 %v6601
      %v6884 = vunpack.c.h.b16 %v6601
      %v6885 = vunpack.c.l.b16 %v6602
      %v6886 = vunpack.c.h.b16 %v6602
      %v6887 = vunpack.c.l.b16 %v6603
      %v6888 = vunpack.c.h.b16 %v6603
      %v6889 = vunpack.c.l.b16 %v6604
      %v6890 = vunpack.c.h.b16 %v6604
      %v6891 = vunpack.c.l.b16 %v6605
      %v6892 = vunpack.c.h.b16 %v6605
      %v6893 = vunpack.c.l.b16 %v6606
      %v6894 = vunpack.c.h.b16 %v6606
      %v6895 = vunpack.c.l.b16 %v6607
      %v6896 = vunpack.c.h.b16 %v6607
      %v6897 = vunpack.c.l.b16 %v6608
      %v6898 = vunpack.c.h.b16 %v6608
      %v6899 = vunpack.c.l.b16 %v6609
      %v6900 = vunpack.c.h.b16 %v6609
      %v6901 = vunpack.c.l.b16 %v6610
      %v6902 = vunpack.c.h.b16 %v6610
      %v6903 = vunpack.c.l.b16 %v6611
      %v6904 = vunpack.c.h.b16 %v6611
      %v6905 = vunpack.c.l.b16 %v6612
      %v6906 = vunpack.c.h.b16 %v6612
      %v6907 = vunpack.c.l.b16 %v6613
      %v6908 = vunpack.c.h.b16 %v6613
      %v6909 = vunpack.c.l.b16 %v6614
      %v6910 = vunpack.c.h.b16 %v6614
      %v6911 = vunpack.c.l.b16 %v6615
      %v6912 = vunpack.c.h.b16 %v6615
      %v6913 = vunpack.c.l.b16 %v6616
      %v6914 = vunpack.c.h.b16 %v6616
      %v6915 = vunpack.c.l.b16 %v6617
      %v6916 = vunpack.c.h.b16 %v6617
      %v6917 = vunpack.c.l.b16 %v6618
      %v6918 = vunpack.c.h.b16 %v6618
      %v6919 = vunpack.c.l.b16 %v6619
      %v6920 = vunpack.c.h.b16 %v6619
      %v6921 = vunpack.c.l.b16 %v6620
      %v6922 = vunpack.c.h.b16 %v6620
      %v6923 = vunpack.c.l.b16 %v6621
      %v6924 = vunpack.c.h.b16 %v6621
      %v6925 = vunpack.c.l.b16 %v6622
      %v6926 = vunpack.c.h.b16 %v6622
      %v6927 = vunpack.c.l.b16 %v6623
      %v6928 = vunpack.c.h.b16 %v6623
      %v6929 = vunpack.c.l.b16 %v6624
      %v6930 = vunpack.c.h.b16 %v6624
      %v6931 = vunpack.c.l.b16 %v6625
      %v6932 = vunpack.c.h.b16 %v6625
      %v6933 = vunpack.c.l.b16 %v6626
      %v6934 = vunpack.c.h.b16 %v6626
      %v6935 = vunpack.c.l.b16 %v6627
      %v6936 = vunpack.c.h.b16 %v6627
      %v6937 = vunpack.c.l.b16 %v6628
      %v6938 = vunpack.c.h.b16 %v6628
      %v6939 = vunpack.c.l.b16 %v6629
      %v6940 = vunpack.c.h.b16 %v6629
      %v6941 = vunpack.c.l.b16 %v6630
      %v6942 = vunpack.c.h.b16 %v6630
      %v6943 = vunpack.c.l.b16 %v6631
      %v6944 = vunpack.c.h.b16 %v6631
      %v6945 = vunpack.c.l.b16 %v6632
      %v6946 = vunpack.c.h.b16 %v6632
      %v6947 = vunpack.c.l.b16 %v6633
      %v6948 = vunpack.c.h.b16 %v6633
      %v6949 = vunpack.c.l.b16 %v6634
      %v6950 = vunpack.c.h.b16 %v6634
      %v6951 = vunpack.c.l.b16 %v6635
      %v6952 = vunpack.c.h.b16 %v6635
      %v6953 = vunpack.c.l.b16 %v6636
      %v6954 = vunpack.c.h.b16 %v6636
      %v6955 = vunpack.c.l.b16 %v6637
      %v6956 = vunpack.c.h.b16 %v6637
      %v6957 = vunpack.c.l.b16 %v6638
      %v6958 = vunpack.c.h.b16 %v6638
      %v6959 = vunpack.c.l.b16 %v6639
      %v6960 = vunpack.c.h.b16 %v6639
      %v6961 = vunpack.c.l.b16 %v6640
      %v6962 = vunpack.c.h.b16 %v6640
      %v6963 = vunpack.c.l.b16 %v6641
      %v6964 = vunpack.c.h.b16 %v6641
      %v6965 = vunpack.c.l.b16 %v6642
      %v6966 = vunpack.c.h.b16 %v6642
      %v6967 = vunpack.c.l.b16 %v6643
      %v6968 = vunpack.c.h.b16 %v6643
      %v6969 = vunpack.c.l.b16 %v6644
      %v6970 = vunpack.c.h.b16 %v6644
      %v6971 = vunpack.c.l.b16 %v6645
      %v6972 = vunpack.c.h.b16 %v6645
      %v6973 = vunpack.c.l.b16 %v6646
      %v6974 = vunpack.c.h.b16 %v6646
      %v6975 = vunpack.c.l.b16 %v6647
      %v6976 = vunpack.c.h.b16 %v6647
      %v6977 = vunpack.c.l.b16 %v6648
      %v6978 = vunpack.c.h.b16 %v6648
      %v6979 = vunpack.c.l.b16 %v6649
      %v6980 = vunpack.c.h.b16 %v6649
      %v6981 = vunpack.c.l.b16 %v6650
      %v6982 = vunpack.c.h.b16 %v6650
      %v6983 = vunpack.c.l.b16 %v6651
      %v6984 = vunpack.c.h.b16 %v6651
      %v6985 = vunpack.c.l.b16 %v6652
      %v6986 = vunpack.c.h.b16 %v6652
      %v6987 = vunpack.c.l.b16 %v6653
      %v6988 = vunpack.c.h.b16 %v6653
      %v6989 = vunpack.c.l.b16 %v6654
      %v6990 = vunpack.c.h.b16 %v6654
      %v6991 = vunpack.c.l.b16 %v6655
      %v6992 = vunpack.c.h.b16 %v6655
      %v6993 = vunpack.c.l.b16 %v6656
      %v6994 = vunpack.c.h.b16 %v6656
      %v6995 = vunpack.c.l.b16 %v6657
      %v6996 = vunpack.c.h.b16 %v6657
      %v6997 = vunpack.c.l.b16 %v6658
      %v6998 = vunpack.c.h.b16 %v6658
      %v6999 = vunpack.c.l.b16 %v6659
      %v7000 = vunpack.c.h.b16 %v6659
      %v7001 = vunpack.c.l.b16 %v6660
      %v7002 = vunpack.c.h.b16 %v6660
      %v7003 = vunpack.c.l.b16 %v6661
      %v7004 = vunpack.c.h.b16 %v6661
      %v7005 = vunpack.c.l.b16 %v6662
      %v7006 = vunpack.c.h.b16 %v6662
      %v7007 = vunpack.c.l.b16 %v6663
      %v7008 = vunpack.c.h.b16 %v6663
      %v7009 = vunpack.c.l.b16 %v6664
      %v7010 = vunpack.c.h.b16 %v6664
      %v7011 = vunpack.c.l.b16 %v6665
      %v7012 = vunpack.c.h.b16 %v6665
      %v7013 = vunpack.c.l.b16 %v6666
      %v7014 = vunpack.c.h.b16 %v6666
      %v7015 = vunpack.c.l.b16 %v6667
      %v7016 = vunpack.c.h.b16 %v6667
      %v7017 = vunpack.c.l.b16 %v6668
      %v7018 = vunpack.c.h.b16 %v6668
      %v7019 = vunpack.c.l.b16 %v6669
      %v7020 = vunpack.c.h.b16 %v6669
      %v7021 = vunpack.c.l.b16 %v6670
      %v7022 = vunpack.c.h.b16 %v6670
      %v7023 = vunpack.c.l.b16 %v6671
      %v7024 = vunpack.c.h.b16 %v6671
      %v7025 = vunpack.c.l.b16 %v6672
      %v7026 = vunpack.c.h.b16 %v6672
      %v7027 = vunpack.c.l.b16 %v6673
      %v7028 = vunpack.c.h.b16 %v6673
      %v7029 = vunpack.c.l.b16 %v6674
      %v7030 = vunpack.c.h.b16 %v6674
      %v7031 = vunpack.c.l.b16 %v6675
      %v7032 = vunpack.c.h.b16 %v6675
      %v7033 = vunpack.c.l.b16 %v6676
      %v7034 = vunpack.c.h.b16 %v6676
      %v7035 = vunpack.c.l.b16 %v6677
      %v7036 = vunpack.c.h.b16 %v6677
      %v7037 = vunpack.c.l.b16 %v6678
      %v7038 = vunpack.c.h.b16 %v6678
      %v7039 = vunpack.c.l.b16 %v6679
      %v7040 = vunpack.c.h.b16 %v6679
      %v7041 = vunpack.c.l.b16 %v6680
      %v7042 = vunpack.c.h.b16 %v6680
      %v7043 = vunpack.c.l.b16 %v6681
      %v7044 = vunpack.c.h.b16 %v6681
      %v7045 = vunpack.c.l.b16 %v6682
      %v7046 = vunpack.c.h.b16 %v6682
      %v7047 = vunpack.c.l.b16 %v6683
      %v7048 = vunpack.c.h.b16 %v6683
      %v7049 = vunpack.c.l.b16 %v6684
      %v7050 = vunpack.c.h.b16 %v6684
      %v7051 = vunpack.c.l.b16 %v6685
      %v7052 = vunpack.c.h.b16 %v6685
      %v7053 = vunpack.c.l.b16 %v6686
      %v7054 = vunpack.c.h.b16 %v6686
      %v7055 = vunpack.c.l.b16 %v6687
      %v7056 = vunpack.c.h.b16 %v6687
      %v7057 = vunpack.c.l.b16 %v6688
      %v7058 = vunpack.c.h.b16 %v6688
      %v7059 = vunpack.c.l.b16 %v6689
      %v7060 = vunpack.c.h.b16 %v6689
      %v7061 = vunpack.c.l.b16 %v6690
      %v7062 = vunpack.c.h.b16 %v6690
      %v7063 = vunpack.c.l.b16 %v6691
      %v7064 = vunpack.c.h.b16 %v6691
      %v7065 = vunpack.c.l.b16 %v6692
      %v7066 = vunpack.c.h.b16 %v6692
      %v7067 = vunpack.c.l.b16 %v6693
      %v7068 = vunpack.c.h.b16 %v6693
      %v7069 = vunpack.c.l.b16 %v6694
      %v7070 = vunpack.c.h.b16 %v6694
      %v7071 = vunpack.c.l.b16 %v6695
      %v7072 = vunpack.c.h.b16 %v6695
      %v7073 = vunpack.c.l.b16 %v6696
      %v7074 = vunpack.c.h.b16 %v6696
      %v7075 = vunpack.c.l.b16 %v6697
      %v7076 = vunpack.c.h.b16 %v6697
      %v7077 = vunpack.c.l.b16 %v6698
      %v7078 = vunpack.c.h.b16 %v6698
      %v7079 = vunpack.c.l.b16 %v6699
      %v7080 = vunpack.c.h.b16 %v6699
      %v7081 = vunpack.c.l.b16 %v6700
      %v7082 = vunpack.c.h.b16 %v6700
      %v7083 = vunpack.c.l.b16 %v6701
      %v7084 = vunpack.c.h.b16 %v6701
      %v7085 = vunpack.c.l.b16 %v6702
      %v7086 = vunpack.c.h.b16 %v6702
      %v7087 = vpack.c.b16 %v6835, %v6831
      %v7088 = vpack.c.b16 %v6836, %v6832
      %v7089 = vpack.c.b16 %v6837, %v6833
      %v7090 = vpack.c.b16 %v6838, %v6834
      %v7091 = vpack.c.b16 %v6843, %v6839
      %v7092 = vpack.c.b16 %v6844, %v6840
      %v7093 = vpack.c.b16 %v6845, %v6841
      %v7094 = vpack.c.b16 %v6846, %v6842
      %v7095 = vpack.c.b16 %v6851, %v6847
      %v7096 = vpack.c.b16 %v6852, %v6848
      %v7097 = vpack.c.b16 %v6853, %v6849
      %v7098 = vpack.c.b16 %v6854, %v6850
      %v7099 = vpack.c.b16 %v6859, %v6855
      %v7100 = vpack.c.b16 %v6860, %v6856
      %v7101 = vpack.c.b16 %v6861, %v6857
      %v7102 = vpack.c.b16 %v6862, %v6858
      %v7103 = vpack.c.b16 %v6867, %v6863
      %v7104 = vpack.c.b16 %v6868, %v6864
      %v7105 = vpack.c.b16 %v6869, %v6865
      %v7106 = vpack.c.b16 %v6870, %v6866
      %v7107 = vpack.c.b16 %v6875, %v6871
      %v7108 = vpack.c.b16 %v6876, %v6872
      %v7109 = vpack.c.b16 %v6877, %v6873
      %v7110 = vpack.c.b16 %v6878, %v6874
      %v7111 = vpack.c.b16 %v6883, %v6879
      %v7112 = vpack.c.b16 %v6884, %v6880
      %v7113 = vpack.c.b16 %v6885, %v6881
      %v7114 = vpack.c.b16 %v6886, %v6882
      %v7115 = vpack.c.b16 %v6891, %v6887
      %v7116 = vpack.c.b16 %v6892, %v6888
      %v7117 = vpack.c.b16 %v6893, %v6889
      %v7118 = vpack.c.b16 %v6894, %v6890
      %v7119 = vpack.c.b16 %v6899, %v6895
      %v7120 = vpack.c.b16 %v6900, %v6896
      %v7121 = vpack.c.b16 %v6901, %v6897
      %v7122 = vpack.c.b16 %v6902, %v6898
      %v7123 = vpack.c.b16 %v6907, %v6903
      %v7124 = vpack.c.b16 %v6908, %v6904
      %v7125 = vpack.c.b16 %v6909, %v6905
      %v7126 = vpack.c.b16 %v6910, %v6906
      %v7127 = vpack.c.b16 %v6915, %v6911
      %v7128 = vpack.c.b16 %v6916, %v6912
      %v7129 = vpack.c.b16 %v6917, %v6913
      %v7130 = vpack.c.b16 %v6918, %v6914
      %v7131 = vpack.c.b16 %v6923, %v6919
      %v7132 = vpack.c.b16 %v6924, %v6920
      %v7133 = vpack.c.b16 %v6925, %v6921
      %v7134 = vpack.c.b16 %v6926, %v6922
      %v7135 = vpack.c.b16 %v6931, %v6927
      %v7136 = vpack.c.b16 %v6932, %v6928
      %v7137 = vpack.c.b16 %v6933, %v6929
      %v7138 = vpack.c.b16 %v6934, %v6930
      %v7139 = vpack.c.b16 %v6939, %v6935
      %v7140 = vpack.c.b16 %v6940, %v6936
      %v7141 = vpack.c.b16 %v6941, %v6937
      %v7142 = vpack.c.b16 %v6942, %v6938
      %v7143 = vpack.c.b16 %v6947, %v6943
      %v7144 = vpack.c.b16 %v6948, %v6944
      %v7145 = vpack.c.b16 %v6949, %v6945
      %v7146 = vpack.c.b16 %v6950, %v6946
      %v7147 = vpack.c.b16 %v6955, %v6951
      %v7148 = vpack.c.b16 %v6956, %v6952
      %v7149 = vpack.c.b16 %v6957, %v6953
      %v7150 = vpack.c.b16 %v6958, %v6954
      %v7151 = vpack.c.b16 %v6963, %v6959
      %v7152 = vpack.c.b16 %v6964, %v6960
      %v7153 = vpack.c.b16 %v6965, %v6961
      %v7154 = vpack.c.b16 %v6966, %v6962
      %v7155 = vpack.c.b16 %v6971, %v6967
      %v7156 = vpack.c.b16 %v6972, %v6968
      %v7157 = vpack.c.b16 %v6973, %v6969
      %v7158 = vpack.c.b16 %v6974, %v6970
      %v7159 = vpack.c.b16 %v6979, %v6975
      %v7160 = vpack.c.b16 %v6980, %v6976
      %v7161 = vpack.c.b16 %v6981, %v6977
      %v7162 = vpack.c.b16 %v6982, %v6978
      %v7163 = vpack.c.b16 %v6987, %v6983
      %v7164 = vpack.c.b16 %v6988, %v6984
      %v7165 = vpack.c.b16 %v6989, %v6985
      %v7166 = vpack.c.b16 %v6990, %v6986
      %v7167 = vpack.c.b16 %v6995, %v6991
      %v7168 = vpack.c.b16 %v6996, %v6992
      %v7169 = vpack.c.b16 %v6997, %v6993
      %v7170 = vpack.c.b16 %v6998, %v6994
      %v7171 = vpack.c.b16 %v7003, %v6999
      %v7172 = vpack.c.b16 %v7004, %v7000
      %v7173 = vpack.c.b16 %v7005, %v7001
      %v7174 = vpack.c.b16 %v7006, %v7002
      %v7175 = vpack.c.b16 %v7011, %v7007
      %v7176 = vpack.c.b16 %v7012, %v7008
      %v7177 = vpack.c.b16 %v7013, %v7009
      %v7178 = vpack.c.b16 %v7014, %v7010
      %v7179 = vpack.c.b16 %v7019, %v7015
      %v7180 = vpack.c.b16 %v7020, %v7016
      %v7181 = vpack.c.b16 %v7021, %v7017
      %v7182 = vpack.c.b16 %v7022, %v7018
      %v7183 = vpack.c.b16 %v7027, %v7023
      %v7184 = vpack.c.b16 %v7028, %v7024
      %v7185 = vpack.c.b16 %v7029, %v7025
      %v7186 = vpack.c.b16 %v7030, %v7026
      %v7187 = vpack.c.b16 %v7035, %v7031
      %v7188 = vpack.c.b16 %v7036, %v7032
      %v7189 = vpack.c.b16 %v7037, %v7033
      %v7190 = vpack.c.b16 %v7038, %v7034
      %v7191 = vpack.c.b16 %v7043, %v7039
      %v7192 = vpack.c.b16 %v7044, %v7040
      %v7193 = vpack.c.b16 %v7045, %v7041
      %v7194 = vpack.c.b16 %v7046, %v7042
      %v7195 = vpack.c.b16 %v7051, %v7047
      %v7196 = vpack.c.b16 %v7052, %v7048
      %v7197 = vpack.c.b16 %v7053, %v7049
      %v7198 = vpack.c.b16 %v7054, %v7050
      %v7199 = vpack.c.b16 %v7059, %v7055
      %v7200 = vpack.c.b16 %v7060, %v7056
      %v7201 = vpack.c.b16 %v7061, %v7057
      %v7202 = vpack.c.b16 %v7062, %v7058
      %v7203 = vpack.c.b16 %v7067, %v7063
      %v7204 = vpack.c.b16 %v7068, %v7064
      %v7205 = vpack.c.b16 %v7069, %v7065
      %v7206 = vpack.c.b16 %v7070, %v7066
      %v7207 = vpack.c.b16 %v7075, %v7071
      %v7208 = vpack.c.b16 %v7076, %v7072
      %v7209 = vpack.c.b16 %v7077, %v7073
      %v7210 = vpack.c.b16 %v7078, %v7074
      %v7211 = vpack.c.b16 %v7083, %v7079
      %v7212 = vpack.c.b16 %v7084, %v7080
      %v7213 = vpack.c.b16 %v7085, %v7081
      %v7214 = vpack.c.b16 %v7086, %v7082
      %7343 = vmatprep.subr.bf16.mxu0 %v7116
      %7344 = vmatpush1.bf16.msra.mxu0 %v7115
      %7345 = vmatprep.subr.bf16.mxu0 %v7112
      %7346 = vmatpush1.bf16.msra.mxu0 %v7111
      %7347 = vmatprep.subr.bf16.mxu0 %v7108
      %7348 = vmatpush1.bf16.msra.mxu0 %v7107
      %7349 = vmatprep.subr.bf16.mxu0 %v7104
      %7350 = vmatpush1.bf16.msra.mxu0 %v7103
      %7351 = vmatprep.subr.bf16.mxu0 %v7100
      %7352 = vmatpush1.bf16.msra.mxu0 %v7099
      %7353 = vmatprep.subr.bf16.mxu0 %v7096
      %7354 = vmatpush1.bf16.msra.mxu0 %v7095
      %7355 = vmatprep.subr.bf16.mxu0 %v7092
      %7356 = vmatpush1.bf16.msra.mxu0 %v7091
      %7357 = vmatprep.subr.bf16.mxu0 %v7088
      %7358 = vmatpush1.bf16.msra.mxu0 %v7087
      %7359 = vmatprep.subr.bf16.mxu0 %v7148
      %7360 = vmatpush2.bf16.msra.mxu0 %v7147
      %7361 = vmatprep.subr.bf16.mxu0 %v7144
      %7362 = vmatpush2.bf16.msra.mxu0 %v7143
      %7363 = vmatprep.subr.bf16.mxu0 %v7140
      %7364 = vmatpush2.bf16.msra.mxu0 %v7139
      %7365 = vmatprep.subr.bf16.mxu0 %v7136
      %7366 = vmatpush2.bf16.msra.mxu0 %v7135
      %7367 = vmatprep.subr.bf16.mxu0 %v7132
      %7368 = vmatpush2.bf16.msra.mxu0 %v7131
      %7369 = vmatprep.subr.bf16.mxu0 %v7128
      %7370 = vmatpush2.bf16.msra.mxu0 %v7127
      %7371 = vmatprep.subr.bf16.mxu0 %v7124
      %7372 = vmatpush2.bf16.msra.mxu0 %v7123
      %7373 = vmatprep.subr.bf16.mxu0 %v7120
      %7374 = vmatpush2.bf16.msra.mxu0 %v7119
      %7375 = vmatprep.mubr.bf16.mxu0 %v3865
      %7376 = vmatmul.mubr.bf16.gmra.mxu0 %v3864
      %v7377 = vpop.f32.mrf.mxu0
      %v7378 = vadd.f32 0.0, %v7377
      %v7379 = vpop.f32.mrf.mxu0
      %v7380 = vadd.f32 0.0, %v7379
      %v7381 = vpop.f32.mrf.mxu0
      %v7382 = vadd.f32 0.0, %v7381
      %v7383 = vpop.f32.mrf.mxu0
      %v7384 = vadd.f32 0.0, %v7383
      %7385 = vdwg.mxu0
      %7386 = vmatprep.subr.bf16.mxu0 %v7180
      %7387 = vmatpush1.bf16.msra.mxu0 %v7179
      %7388 = vmatprep.subr.bf16.mxu0 %v7176
      %7389 = vmatpush1.bf16.msra.mxu0 %v7175
      %7390 = vmatprep.subr.bf16.mxu0 %v7172
      %7391 = vmatpush1.bf16.msra.mxu0 %v7171
      %7392 = vmatprep.subr.bf16.mxu0 %v7168
      %7393 = vmatpush1.bf16.msra.mxu0 %v7167
      %7394 = vmatprep.subr.bf16.mxu0 %v7164
      %7395 = vmatpush1.bf16.msra.mxu0 %v7163
      %7396 = vmatprep.subr.bf16.mxu0 %v7160
      %7397 = vmatpush1.bf16.msra.mxu0 %v7159
      %7398 = vmatprep.subr.bf16.mxu0 %v7156
      %7399 = vmatpush1.bf16.msra.mxu0 %v7155
      %7400 = vmatprep.subr.bf16.mxu0 %v7152
      %7401 = vmatpush1.bf16.msra.mxu0 %v7151
      %7402 = vmatprep.subr.bf16.mxu0 %v7212
      %7403 = vmatpush2.bf16.msra.mxu0 %v7211
      %7404 = vmatprep.subr.bf16.mxu0 %v7208
      %7405 = vmatpush2.bf16.msra.mxu0 %v7207
      %7406 = vmatprep.subr.bf16.mxu0 %v7204
      %7407 = vmatpush2.bf16.msra.mxu0 %v7203
      %7408 = vmatprep.subr.bf16.mxu0 %v7200
      %7409 = vmatpush2.bf16.msra.mxu0 %v7199
      %7410 = vmatprep.subr.bf16.mxu0 %v7196
      %7411 = vmatpush2.bf16.msra.mxu0 %v7195
      %7412 = vmatprep.subr.bf16.mxu0 %v7192
      %7413 = vmatpush2.bf16.msra.mxu0 %v7191
      %7414 = vmatprep.subr.bf16.mxu0 %v7188
      %7415 = vmatpush2.bf16.msra.mxu0 %v7187
      %7416 = vmatprep.subr.bf16.mxu0 %v7184
      %7417 = vmatpush2.bf16.msra.mxu0 %v7183
      %7418 = vmatprep.mubr.bf16.mxu0 %v3867
      %7419 = vmatmul.mubr.bf16.gmra.mxu0 %v3866
      %v7420 = vpop.f32.mrf.mxu0
      %v7421 = vadd.f32 %v7378, %v7420
      %v7422 = vpop.f32.mrf.mxu0
      %v7423 = vadd.f32 %v7380, %v7422
      %v7424 = vpop.f32.mrf.mxu0
      %v7425 = vadd.f32 %v7382, %v7424
      %v7426 = vpop.f32.mrf.mxu0
      %v7427 = vadd.f32 %v7384, %v7426
      %7428 = vdwg.mxu0
      %7429 = vmatprep.subr.bf16.mxu0 %v7118
      %7430 = vmatpush1.bf16.msra.mxu0 %v7117
      %7431 = vmatprep.subr.bf16.mxu0 %v7114
      %7432 = vmatpush1.bf16.msra.mxu0 %v7113
      %7433 = vmatprep.subr.bf16.mxu0 %v7110
      %7434 = vmatpush1.bf16.msra.mxu0 %v7109
      %7435 = vmatprep.subr.bf16.mxu0 %v7106
      %7436 = vmatpush1.bf16.msra.mxu0 %v7105
      %7437 = vmatprep.subr.bf16.mxu0 %v7102
      %7438 = vmatpush1.bf16.msra.mxu0 %v7101
      %7439 = vmatprep.subr.bf16.mxu0 %v7098
      %7440 = vmatpush1.bf16.msra.mxu0 %v7097
      %7441 = vmatprep.subr.bf16.mxu0 %v7094
      %7442 = vmatpush1.bf16.msra.mxu0 %v7093
      %7443 = vmatprep.subr.bf16.mxu0 %v7090
      %7444 = vmatpush1.bf16.msra.mxu0 %v7089
      %7445 = vmatprep.subr.bf16.mxu0 %v7150
      %7446 = vmatpush2.bf16.msra.mxu0 %v7149
      %7447 = vmatprep.subr.bf16.mxu0 %v7146
      %7448 = vmatpush2.bf16.msra.mxu0 %v7145
      %7449 = vmatprep.subr.bf16.mxu0 %v7142
      %7450 = vmatpush2.bf16.msra.mxu0 %v7141
      %7451 = vmatprep.subr.bf16.mxu0 %v7138
      %7452 = vmatpush2.bf16.msra.mxu0 %v7137
      %7453 = vmatprep.subr.bf16.mxu0 %v7134
      %7454 = vmatpush2.bf16.msra.mxu0 %v7133
      %7455 = vmatprep.subr.bf16.mxu0 %v7130
      %7456 = vmatpush2.bf16.msra.mxu0 %v7129
      %7457 = vmatprep.subr.bf16.mxu0 %v7126
      %7458 = vmatpush2.bf16.msra.mxu0 %v7125
      %7459 = vmatprep.subr.bf16.mxu0 %v7122
      %7460 = vmatpush2.bf16.msra.mxu0 %v7121
      %7461 = vmatprep.mubr.bf16.mxu0 %v3865
      %7462 = vmatmul.mubr.bf16.gmra.mxu0 %v3864
      %v7463 = vpop.f32.mrf.mxu0
      %v7464 = vadd.f32 0.0, %v7463
      %v7465 = vpop.f32.mrf.mxu0
      %v7466 = vadd.f32 0.0, %v7465
      %v7467 = vpop.f32.mrf.mxu0
      %v7468 = vadd.f32 0.0, %v7467
      %v7469 = vpop.f32.mrf.mxu0
      %v7470 = vadd.f32 0.0, %v7469
      %7471 = vdwg.mxu0
      %7472 = vmatprep.subr.bf16.mxu0 %v7182
      %7473 = vmatpush1.bf16.msra.mxu0 %v7181
      %7474 = vmatprep.subr.bf16.mxu0 %v7178
      %7475 = vmatpush1.bf16.msra.mxu0 %v7177
      %7476 = vmatprep.subr.bf16.mxu0 %v7174
      %7477 = vmatpush1.bf16.msra.mxu0 %v7173
      %7478 = vmatprep.subr.bf16.mxu0 %v7170
      %7479 = vmatpush1.bf16.msra.mxu0 %v7169
      %7480 = vmatprep.subr.bf16.mxu0 %v7166
      %7481 = vmatpush1.bf16.msra.mxu0 %v7165
      %7482 = vmatprep.subr.bf16.mxu0 %v7162
      %7483 = vmatpush1.bf16.msra.mxu0 %v7161
      %7484 = vmatprep.subr.bf16.mxu0 %v7158
      %7485 = vmatpush1.bf16.msra.mxu0 %v7157
      %7486 = vmatprep.subr.bf16.mxu0 %v7154
      %7487 = vmatpush1.bf16.msra.mxu0 %v7153
      %7488 = vmatprep.subr.bf16.mxu0 %v7214
      %7489 = vmatpush2.bf16.msra.mxu0 %v7213
      %7490 = vmatprep.subr.bf16.mxu0 %v7210
      %7491 = vmatpush2.bf16.msra.mxu0 %v7209
      %7492 = vmatprep.subr.bf16.mxu0 %v7206
      %7493 = vmatpush2.bf16.msra.mxu0 %v7205
      %7494 = vmatprep.subr.bf16.mxu0 %v7202
      %7495 = vmatpush2.bf16.msra.mxu0 %v7201
      %7496 = vmatprep.subr.bf16.mxu0 %v7198
      %7497 = vmatpush2.bf16.msra.mxu0 %v7197
      %7498 = vmatprep.subr.bf16.mxu0 %v7194
      %7499 = vmatpush2.bf16.msra.mxu0 %v7193
      %7500 = vmatprep.subr.bf16.mxu0 %v7190
      %7501 = vmatpush2.bf16.msra.mxu0 %v7189
      %7502 = vmatprep.subr.bf16.mxu0 %v7186
      %7503 = vmatpush2.bf16.msra.mxu0 %v7185
      %7504 = vmatprep.mubr.bf16.mxu0 %v3867
      %7505 = vmatmul.mubr.bf16.gmra.mxu0 %v3866
      %v7506 = vpop.f32.mrf.mxu0
      %v7507 = vadd.f32 %v7464, %v7506
      %v7508 = vpop.f32.mrf.mxu0
      %v7509 = vadd.f32 %v7466, %v7508
      %v7510 = vpop.f32.mrf.mxu0
      %v7511 = vadd.f32 %v7468, %v7510
      %v7512 = vpop.f32.mrf.mxu0
      %v7513 = vadd.f32 %v7470, %v7512
      %7514 = vdwg.mxu0
      %v7515 = vadd.f32 %v6480, %v7421
      %v7516 = vadd.f32 %v6482, %v7423
      %v7517 = vadd.f32 %v6566, %v7507
      %v7518 = vadd.f32 %v6568, %v7509
      %v7519 = vadd.f32 %v6484, %v7425
      %v7520 = vadd.f32 %v6486, %v7427
      %v7521 = vadd.f32 %v6570, %v7511
      %v7522 = vadd.f32 %v6572, %v7513
      %v7523 = vmax.f32 %v4684, %v7515
      %v7524 = vmax.f32 %v4685, %v7516
      %v7525 = vmax.f32 %v4686, %v7517
      %v7526 = vmax.f32 %v4687, %v7518
      %v7527 = vmax.f32 %v4688, %v7519
      %v7528 = vmax.f32 %v4689, %v7520
      %v7529 = vmax.f32 %v4690, %v7521
      %v7530 = vmax.f32 %v4691, %v7522
      %v7531 = vld [vmem:[%s4] sm:$0xf]
      %v7533 = vlaneseq
      %v7534 = vshrl.u32 %v7533, 7
      %v7535 = vsub.s32 0, %v7534
      %v7536 = vrot.slane %v7531, %v7535
      %v7537 = vlaneseq
      %v7538 = vshrl.u32 %v7537, 7
      %v7539 = vsub.s32 1, %v7538
      %v7540 = vrot.slane %v7531, %v7539
      %v7541 = vlaneseq
      %v7542 = vshrl.u32 %v7541, 7
      %v7543 = vsub.s32 2, %v7542
      %v7544 = vrot.slane %v7531, %v7543
      %v7545 = vlaneseq
      %v7546 = vshrl.u32 %v7545, 7
      %v7547 = vsub.s32 3, %v7546
      %v7548 = vrot.slane %v7531, %v7547
      %v7553 = vadd.f32 %v7523, %v7536
      %v7554 = vadd.f32 %v7524, %v7540
      %v7555 = vadd.f32 %v7525, %v7544
      %v7556 = vadd.f32 %v7526, %v7548
      %v7557 = vadd.f32 %v7527, %v7536
      %v7558 = vadd.f32 %v7528, %v7540
      %v7559 = vadd.f32 %v7529, %v7544
      %v7560 = vadd.f32 %v7530, %v7548
      %v7561 = vmax.f32 %v7553, 0.0
      %v7562 = vmax.f32 %v7554, 0.0
      %v7563 = vmax.f32 %v7555, 0.0
      %v7564 = vmax.f32 %v7556, 0.0
      %v7565 = vmax.f32 %v7557, 0.0
      %v7566 = vmax.f32 %v7558, 0.0
      %v7567 = vmax.f32 %v7559, 0.0
      %v7568 = vmax.f32 %v7560, 0.0
      %7569 = vst [vmem:[%s224] sm:$0x7f] 0.0
      %7570 = vst [vmem:[%s224 + $0x8] sm:$0x7f] 0.0
      %7571 = vst [vmem:[%s224 + $0x10] sm:$0x7f] 0.0
      %7572 = vst [vmem:[%s224 + $0x18] sm:$0x7f] 0.0
      %v7577 = vrot.slane %v7561, 1
      %v7578 = vrot.slane %v7562, 1
      %v7579 = vrot.slane %v7563, 1
      %v7580 = vrot.slane %v7564, 1
      %v7585 = vmax.f32 %v7561, %v7577
      %v7586 = vmax.f32 %v7562, %v7578
      %v7587 = vmax.f32 %v7563, %v7579
      %v7588 = vmax.f32 %v7564, %v7580
      %v7593 = vcombine.low %v7585, %v7586
      %v7594 = vcombine.low %v7587, %v7588
      %v7596 = vunpack.c.l.s4 1966171168
      %v7597 = vunpack.c.0.s8 %v7596
      %v7598 = vlaneseq
      %v7599 = vshrl.u32 %v7598, 7
      %v7600 = vsub.s32 %v7597, %v7599
      %v7601 = vrot.slane %v7593, %v7600
      %v7603 = vunpack.c.l.s4 1966171168
      %v7604 = vunpack.c.0.s8 %v7603
      %v7605 = vlaneseq
      %v7606 = vshrl.u32 %v7605, 7
      %v7607 = vsub.s32 %v7604, %v7606
      %v7608 = vrot.slane %v7594, %v7607
      %v7609 = vcombine.low %v7601, %v7608
      %v7611 = vunpack.c.l.s4 1966171168
      %v7612 = vunpack.c.0.s8 %v7611
      %v7613 = vlaneseq
      %v7614 = vshrl.u32 %v7613, 7
      %v7615 = vsub.s32 %v7612, %v7614
      %v7616 = vrot.slane %v7609, %v7615
      %v7618 = vlaneseq
      %vm7619 = vcmp.ge.s32.totalorder %v7618, 0
      %vm7620 = vcmp.lt.s32.totalorder %v7618, 448
      %vm7621 = vmand %vm7619, %vm7620
      %7622 = vst.msk [vmem:[%s224] ss:$8 sm:$0xf] %vm7621, %v7616
      %7623 = vst.msk [vmem:[%s224] ss:$8 sm:$0x0] %vm7621, %v7616
      %v7624 = vcombine.high %v7616, %v7616
      %s7626 = scalar_lea.vmem %s224, 1
      %7627 = vst.msk [vmem:[%s7626] ss:$8 sm:$0xf] %vm7621, %v7624
      %7628 = vst.msk [vmem:[%s7626] ss:$8 sm:$0x0] %vm7621, %v7624
      %v7629 = vcombine.high %v7585, %v7586
      %v7630 = vcombine.high %v7587, %v7588
      %v7632 = vunpack.c.l.s4 1966171168
      %v7633 = vunpack.c.0.s8 %v7632
      %v7634 = vlaneseq
      %v7635 = vshrl.u32 %v7634, 7
      %v7636 = vsub.s32 %v7633, %v7635
      %v7637 = vrot.slane %v7629, %v7636
      %v7639 = vunpack.c.l.s4 1966171168
      %v7640 = vunpack.c.0.s8 %v7639
      %v7641 = vlaneseq
      %v7642 = vshrl.u32 %v7641, 7
      %v7643 = vsub.s32 %v7640, %v7642
      %v7644 = vrot.slane %v7630, %v7643
      %v7645 = vcombine.low %v7637, %v7644
      %v7647 = vunpack.c.l.s4 1966171168
      %v7648 = vunpack.c.0.s8 %v7647
      %v7649 = vlaneseq
      %v7650 = vshrl.u32 %v7649, 7
      %v7651 = vsub.s32 %v7648, %v7650
      %v7652 = vrot.slane %v7645, %v7651
      %s7654 = scalar_lea.vmem %s224, 2
      %7655 = vst.msk [vmem:[%s7654] ss:$8 sm:$0xf] %vm7621, %v7652
      %7656 = vst.msk [vmem:[%s7654] ss:$8 sm:$0x0] %vm7621, %v7652
      %v7657 = vcombine.high %v7652, %v7652
      %s7659 = scalar_lea.vmem %s224, 3
      %7660 = vst.msk [vmem:[%s7659] ss:$8 sm:$0xf] %vm7621, %v7657
      %7661 = vst.msk [vmem:[%s7659] ss:$8 sm:$0x0] %vm7621, %v7657
      %v7666 = vrot.slane %v7565, 1
      %v7667 = vrot.slane %v7566, 1
      %v7668 = vrot.slane %v7567, 1
      %v7669 = vrot.slane %v7568, 1
      %v7674 = vmax.f32 %v7565, %v7666
      %v7675 = vmax.f32 %v7566, %v7667
      %v7676 = vmax.f32 %v7567, %v7668
      %v7677 = vmax.f32 %v7568, %v7669
      %v7682 = vcombine.low %v7674, %v7675
      %v7683 = vcombine.low %v7676, %v7677
      %v7685 = vunpack.c.l.s4 1966171168
      %v7686 = vunpack.c.0.s8 %v7685
      %v7687 = vlaneseq
      %v7688 = vshrl.u32 %v7687, 7
      %v7689 = vsub.s32 %v7686, %v7688
      %v7690 = vrot.slane %v7682, %v7689
      %v7692 = vunpack.c.l.s4 1966171168
      %v7693 = vunpack.c.0.s8 %v7692
      %v7694 = vlaneseq
      %v7695 = vshrl.u32 %v7694, 7
      %v7696 = vsub.s32 %v7693, %v7695
      %v7697 = vrot.slane %v7683, %v7696
      %v7698 = vcombine.low %v7690, %v7697
      %v7700 = vunpack.c.l.s4 1966171168
      %v7701 = vunpack.c.0.s8 %v7700
      %v7702 = vlaneseq
      %v7703 = vshrl.u32 %v7702, 7
      %v7704 = vsub.s32 %v7701, %v7703
      %v7705 = vrot.slane %v7698, %v7704
      %s7707 = scalar_lea.vmem %s224, 4
      %7708 = vst.msk [vmem:[%s7707] ss:$8 sm:$0xf] %vm7621, %v7705
      %7709 = vst.msk [vmem:[%s7707] ss:$8 sm:$0x0] %vm7621, %v7705
      %v7710 = vcombine.high %v7705, %v7705
      %s7712 = scalar_lea.vmem %s224, 5
      %7713 = vst.msk [vmem:[%s7712] ss:$8 sm:$0xf] %vm7621, %v7710
      %7714 = vst.msk [vmem:[%s7712] ss:$8 sm:$0x0] %vm7621, %v7710
      %v7715 = vcombine.high %v7674, %v7675
      %v7716 = vcombine.high %v7676, %v7677
      %v7718 = vunpack.c.l.s4 1966171168
      %v7719 = vunpack.c.0.s8 %v7718
      %v7720 = vlaneseq
      %v7721 = vshrl.u32 %v7720, 7
      %v7722 = vsub.s32 %v7719, %v7721
      %v7723 = vrot.slane %v7715, %v7722
      %v7725 = vunpack.c.l.s4 1966171168
      %v7726 = vunpack.c.0.s8 %v7725
      %v7727 = vlaneseq
      %v7728 = vshrl.u32 %v7727, 7
      %v7729 = vsub.s32 %v7726, %v7728
      %v7730 = vrot.slane %v7716, %v7729
      %v7731 = vcombine.low %v7723, %v7730
      %v7733 = vunpack.c.l.s4 1966171168
      %v7734 = vunpack.c.0.s8 %v7733
      %v7735 = vlaneseq
      %v7736 = vshrl.u32 %v7735, 7
      %v7737 = vsub.s32 %v7734, %v7736
      %v7738 = vrot.slane %v7731, %v7737
      %s7740 = scalar_lea.vmem %s224, 6
      %7741 = vst.msk [vmem:[%s7740] ss:$8 sm:$0xf] %vm7621, %v7738
      %7742 = vst.msk [vmem:[%s7740] ss:$8 sm:$0x0] %vm7621, %v7738
      %p7743 = scmp.lt.s32.totalorder %s16, 1
      %s7744 = scalar_select %p7743, %s16, 1
      %s7745 = smul.addr %s7744, 4
      %s7746 = smul.addr %s7745, 8
      %s7747 = scalar_lea.vmem %s5, %s7746
      // Predicated region
      $region41: #{forward.2} parent=39 // pred_check
        %p7748 = pneg %p144
      $region42: #{forward.2} parent=39 // pred_check_branch
        %7750 = sbr.rel (%p7748) target = $region44
      $region43: #{forward.2} parent=39 // pred_region
        _
      $region44: #{forward.2} parent=39 // pred_fallthru
        _
    $region40: #{forward.2} parent=5 // pred_fallthru
      _
    %p7751 = scmp.le.s32.totalorder 2, %s11
    // Predicated region
    $region45: #{forward.2} parent=5 // pred_check
      %p7752 = pneg %p7751
    $region46: #{forward.2} parent=5 // pred_check_branch
      %7754 = sbr.rel (%p7752) target = $region48
    $region47: #{forward.2} parent=5 // pred_region
      %s7755 = ssub.s32 %s11, 2
      // Predicated region
      $region49: #{forward.2} parent=47 // pred_check
        %p7756 = pneg %p150
      $region50: #{forward.2} parent=47 // pred_check_branch
        %7758 = sbr.rel (%p7756) target = $region52
      $region51: #{forward.2} parent=47 // pred_region
        %p7759 = scmp.lt.s32.totalorder %s17, 1
        %s7760 = scalar_select %p7759, %s17, 1
        %s7761 = smul.addr %s7760, 4
        %s7762 = smul.addr %s7761, 8
        %s7763 = scalar_lea.vmem %s5, %s7762
      $region52: #{forward.2} parent=47 // pred_fallthru
        _
    $region48: #{forward.2} parent=5 // pred_fallthru
      _
  $region6: #{forward.2} parent=0 // loop_footer
    %s15 = sadd.s32 1, %s11
  $region7: #{forward.2} parent=0 // loop_footer_branch
    %10 = sbr.rel target = $region3
  $region8: #{forward.2} parent=0 // loop_exit
    _

</llo_original>
